<compile_context>
chip_gen: v7x
topology: tpu7x:2x2x1
jax: 0.10.0
libtpu: 0.0.40
codegen_flags: <defaults>
</compile_context>

<pallas_src>
import jax
import jax.numpy as jnp
from jax.experimental import pallas as pl
from jax.experimental.pallas import tpu as pltpu

STD_PRIOR = 0.039
DIAG_NOISE = 0.1


# -----------------------------------------------------------------------------
# Fused 3-layer prior network kernel.  grid = (S,); one weight sample per step,
# the whole batch in one block.
#   xcol : (B*H*W, k*k*Cin)  im2col of x (built once in the wrapper)
#   xflat: (B*H*W, Cin)      x channels at each pixel (for the 1x1 layer)
#   w*/b*: per-sample weights, already reshaped/split by input source
#   out  : (S, B, H*W, ncls)
# -----------------------------------------------------------------------------
def _make_fused_kernel(B, H, W, ksize=3):
    HW = H * W
    pad = (ksize - 1) // 2
    Hp, Wp = H + 2 * pad, W + 2 * pad

    def kernel(xcol_ref, xflat_ref,
               w1_ref, b1_ref, w2x_ref, w2h_ref, b2_ref,
               w3x_ref, w3h1_ref, w3h2_ref, b3_ref,
               o_ref, h1pad_ref):
        hid = w1_ref.shape[-1]

        xcol = xcol_ref[...]            # (B*HW, k*k*Cin)
        xflat = xflat_ref[...]          # (B*HW, Cin)
        w1 = w1_ref[0]
        b1 = b1_ref[0]
        w2x = w2x_ref[0]
        w2h = w2h_ref[0]
        b2 = b2_ref[0]
        w3x = w3x_ref[0]
        w3h1 = w3h1_ref[0]
        w3h2 = w3h2_ref[0]
        b3 = b3_ref[0]

        # --- layer 1: 3x3 conv(x) as ONE k*k*Cin-deep MXU contraction, relu ---
        h1 = jnp.dot(xcol, w1, preferred_element_type=jnp.float32) + b1
        h1 = jnp.maximum(h1, 0.0)                                   # (B*HW, hid)

        # --- stash h1 with a zero ring in VMEM so layer-2 taps can be sliced --
        h1pad_ref[...] = jnp.zeros((B, Hp, Wp, hid), jnp.float32)
        for b in range(B):
            h1pad_ref[b, pad:pad + H, pad:pad + W, :] = (
                h1[b * HW:(b + 1) * HW, :].reshape(H, W, hid))

        # --- layer 2: conv(concat(x,h1)) == conv(x)@w2x + conv(h1)@w2h, relu --
        slabs = []
        for b in range(B):
            taps = [h1pad_ref[b, dy:dy + H, dx:dx + W, :].reshape(HW, hid)
                    for dy in range(ksize) for dx in range(ksize)]
            slabs.append(jnp.concatenate(taps, axis=1))             # (HW, k*k*hid)
        slab = jnp.concatenate(slabs, axis=0)                       # (B*HW, k*k*hid)
        h2 = (jnp.dot(xcol, w2x, preferred_element_type=jnp.float32)
              + jnp.dot(slab, w2h, preferred_element_type=jnp.float32) + b2)
        h2 = jnp.maximum(h2, 0.0)                                   # (B*HW, hid)

        # --- layer 3: 1x1 conv over concat(x, h1, h2) -------------------------
        out = (jnp.dot(xflat, w3x, preferred_element_type=jnp.float32)
               + jnp.dot(h1, w3h1, preferred_element_type=jnp.float32)
               + jnp.dot(h2, w3h2, preferred_element_type=jnp.float32)
               + b3)                                                # (B*HW, ncls)

        o_ref[0] = out.reshape(B, HW, out.shape[-1])

    return kernel


# -----------------------------------------------------------------------------
# Mean / covariance reduction kernel (BNN statistics hot path).
#   outs : (S, B, K)  -> mean (B, K), cov_bbk (B, B, K)   (K lane-dense)
#   cov_bbk[j, l, k] = sum_s phi[s, j, k] * phi[s, l, k]  (+ diag_noise on j==l)
# Only the upper triangle is computed; the mirror is written directly.
# -----------------------------------------------------------------------------
def _make_stats_kernel(S, B, diag_noise):
    inv_s = 1.0 / S

    def kernel(outs_ref, mean_ref, cov_ref):
        outs = outs_ref[...]                              # (S, B, K)
        mean = jnp.sum(outs, axis=0) * inv_s              # (B, K)
        mean_ref[...] = mean
        phi = outs - mean[None, :, :]                     # (S, B, K)
        for j in range(B):
            for l in range(j, B):
                c = jnp.sum(phi[:, j, :] * phi[:, l, :], axis=0, keepdims=True)
                if l == j:
                    c = c + diag_noise
                cov_ref[j, l:l + 1, :] = c
                if l != j:
                    cov_ref[l, j:j + 1, :] = c

    return kernel


def mean_cov(outs, diag_noise):
    """outs: (S, B, K) -> (out_mean (B, K), out_cov (B, K, B)) like the torch einsum."""
    S, B, K = outs.shape
    mean, cov_bbk = pl.pallas_call(
        _make_stats_kernel(S, B, diag_noise),
        out_shape=(jax.ShapeDtypeStruct((B, K), jnp.float32),
                   jax.ShapeDtypeStruct((B, B, K), jnp.float32)),
    )(outs)
    return mean, jnp.transpose(cov_bbk, (0, 2, 1))  # (B, K, B)


# -----------------------------------------------------------------------------
# Prior network parameters: every conv weight / bias i.i.d. N(0, STD_PRIOR) per
# sample.  Dense-net concats are expressed as split weights (w2x/w2h, w3x/..).
# -----------------------------------------------------------------------------
def make_params(key, S, cin, hidden, n_classes):
    ks = jax.random.split(key, 9)

    def n(k, shape):
        return STD_PRIOR * jax.random.normal(k, shape, jnp.float32)

    return {
        "w1":   n(ks[0], (S, 3, 3, cin, hidden)),
        "b1":   n(ks[1], (S, 1, hidden)),
        "w2x":  n(ks[2], (S, 3, 3, cin, hidden)),
        "w2h":  n(ks[3], (S, 3, 3, hidden, hidden)),
        "b2":   n(ks[4], (S, 1, hidden)),
        "w3x":  n(ks[5], (S, cin, n_classes)),
        "w3h1": n(ks[6], (S, hidden, n_classes)),
        "w3h2": n(ks[7], (S, hidden, n_classes)),
        "b3":   n(ks[8], (S, 1, n_classes)),
    }


def bnn_forward(x_t, params, x_c=None, S=20, diag_noise=DIAG_NOISE):
    """x_t, x_c: NCHW float32 (PyTorch convention). Returns (out_mean, out_cov)."""
    assert x_t.ndim == 4
    x = x_t if x_c is None else jnp.concatenate([x_t, x_c], axis=0)
    x = x.astype(jnp.float32)
    B, Cin, H, W = x.shape
    HW = H * W
    ksize, pad = 3, 1

    # Prepare the (tiny) input slabs once on the XLA side: NHWC, zero-padded,
    # im2col'd.  These are passed once and NOT replicated across S.
    x_nhwc = jnp.transpose(x, (0, 2, 3, 1))                            # (B,H,W,Cin)
    xp = jnp.pad(x_nhwc, ((0, 0), (pad, pad), (pad, pad), (0, 0)))     # (B,Hp,Wp,Cin)
    cols = [xp[:, dy:dy + H, dx:dx + W, :]
            for dy in range(ksize) for dx in range(ksize)]
    xcol = jnp.concatenate(cols, axis=-1).reshape(B * HW, ksize * ksize * Cin)
    xflat = x_nhwc.reshape(B * HW, Cin)

    hid = params["w1"].shape[-1]
    ncls = params["w3x"].shape[-1]
    w1f = params["w1"].reshape(S, ksize * ksize * Cin, hid)
    w2xf = params["w2x"].reshape(S, ksize * ksize * Cin, hid)
    w2hf = params["w2h"].reshape(S, ksize * ksize * hid, hid)

    out = pl.pallas_call(
        _make_fused_kernel(B, H, W, ksize=ksize),
        out_shape=jax.ShapeDtypeStruct((S, B, HW, ncls), jnp.float32),
        grid=(S,),
        in_specs=[
            pl.BlockSpec((B * HW, ksize * ksize * Cin), lambda s: (0, 0)),
            pl.BlockSpec((B * HW, Cin), lambda s: (0, 0)),
            pl.BlockSpec((1, ksize * ksize * Cin, hid), lambda s: (s, 0, 0)),
            pl.BlockSpec((1, 1, hid), lambda s: (s, 0, 0)),
            pl.BlockSpec((1, ksize * ksize * Cin, hid), lambda s: (s, 0, 0)),
            pl.BlockSpec((1, ksize * ksize * hid, hid), lambda s: (s, 0, 0)),
            pl.BlockSpec((1, 1, hid), lambda s: (s, 0, 0)),
            pl.BlockSpec((1, Cin, ncls), lambda s: (s, 0, 0)),
            pl.BlockSpec((1, hid, ncls), lambda s: (s, 0, 0)),
            pl.BlockSpec((1, hid, ncls), lambda s: (s, 0, 0)),
            pl.BlockSpec((1, 1, ncls), lambda s: (s, 0, 0)),
        ],
        out_specs=pl.BlockSpec((1, B, HW, ncls), lambda s: (s, 0, 0, 0)),
        scratch_shapes=[pltpu.VMEM((B, H + 2 * pad, W + 2 * pad, hid), jnp.float32)],
        compiler_params=pltpu.CompilerParams(dimension_semantics=("parallel",)),
    )(xcol, xflat, w1f, params["b1"], w2xf, w2hf, params["b2"],
      params["w3x"], params["w3h1"], params["w3h2"], params["b3"])

    # Reorder the (tiny) logits to the torch NCHW flatten order (C, H, W).
    outs = jnp.transpose(out, (0, 1, 3, 2)).reshape(S, B, ncls * HW)   # (S, B, K)
    return mean_cov(outs, diag_noise)


# -----------------------------------------------------------------------------
# Pure-JAX reference (correctness check against the Pallas path).
# -----------------------------------------------------------------------------
def _conv_ref(x, w, b, relu):
    out = jax.lax.conv_general_dilated(
        x, w, window_strides=(1, 1), padding="SAME",
        dimension_numbers=("NHWC", "HWIO", "NHWC")) + b[None, None, None, :]
    return jnp.maximum(out, 0.0) if relu else out


def bnn_forward_ref(x_t, params, x_c=None, S=20, diag_noise=DIAG_NOISE):
    x = x_t if x_c is None else jnp.concatenate([x_t, x_c], axis=0)
    B = x.shape[0]
    x_nhwc = jnp.transpose(x, (0, 2, 3, 1)).astype(jnp.float32)
    w2 = jnp.concatenate([params["w2x"], params["w2h"]], axis=3)
    w3 = jnp.concatenate([params["w3x"], params["w3h1"], params["w3h2"]], axis=1)
    w3 = w3[:, None, None, :, :]                    # (S, 1, 1, Cin+2*hid, ncls)
    outs = []
    for s in range(S):
        h1 = _conv_ref(x_nhwc, params["w1"][s], params["b1"][s, 0], True)
        h2 = _conv_ref(jnp.concatenate([x_nhwc, h1], -1), w2[s],
                       params["b2"][s, 0], True)
        o = _conv_ref(jnp.concatenate([x_nhwc, h1, h2], -1), w3[s],
                      params["b3"][s, 0], False)
        outs.append(jnp.transpose(o, (0, 3, 1, 2)).reshape(B, -1))
    outs = jnp.stack(outs, 0)
    mean = outs.mean(0)
    phi = outs - mean[None]
    cov = jnp.einsum('ijk,ilk->jkl', phi, phi)
    cov = cov + diag_noise * jnp.eye(B, dtype=cov.dtype)[:, None, :]
    return mean, cov


if __name__ == "__main__":
    S = 8
    B, Cin, H, W = 2, 3, 16, 16
    hidden, n_classes = 16, 2

    key = jax.random.PRNGKey(0)
    kx, kp = jax.random.split(key)
    x_t = jax.random.normal(kx, (B, Cin, H, W), jnp.float32)   # NCHW, like PyTorch
    params = make_params(kp, S, Cin, hidden, n_classes)

    out_mean, out_cov = bnn_forward(x_t, params, x_c=None, S=S)
    jax.block_until_ready((out_mean, out_cov))

    ref_mean, ref_cov = bnn_forward_ref(x_t, params, x_c=None, S=S)
    K = n_classes * H * W
    assert out_mean.shape == (B, K)
    assert out_cov.shape == (B, K, B)
    assert jnp.allclose(out_mean, ref_mean, rtol=2e-4, atol=2e-5)
    assert jnp.allclose(out_cov, ref_cov, rtol=2e-4, atol=2e-5)
    print("KERNEL_OK")
</pallas_src>

<mosaic_0001>
module attributes {stable_mosaic.version = 11 : i64} {
  func.func @kernel(%arg0: i32, %arg1: memref<512x27xf32, #tpu.memory_space<vmem>>, %arg2: memref<512x3xf32, #tpu.memory_space<vmem>>, %arg3: memref<1x27x16xf32, #tpu.memory_space<vmem>>, %arg4: memref<1x1x16xf32, #tpu.memory_space<vmem>>, %arg5: memref<1x27x16xf32, #tpu.memory_space<vmem>>, %arg6: memref<1x144x16xf32, #tpu.memory_space<vmem>>, %arg7: memref<1x1x16xf32, #tpu.memory_space<vmem>>, %arg8: memref<1x3x2xf32, #tpu.memory_space<vmem>>, %arg9: memref<1x16x2xf32, #tpu.memory_space<vmem>>, %arg10: memref<1x16x2xf32, #tpu.memory_space<vmem>>, %arg11: memref<1x1x2xf32, #tpu.memory_space<vmem>>, %arg12: memref<1x2x256x2xf32, #tpu.memory_space<vmem>>, %arg13: memref<2x18x18x16xf32, #tpu.memory_space<vmem>>) attributes {dimension_semantics = [#tpu.dimension_semantics<parallel>], iteration_bounds = array<i64: 8>, scalar_prefetch = 0 : i64, scratch_operands = 1 : i64, tpu.core_type = #tpu.core_type<tc>, window_params = [{pipeline_mode = #tpu.pipeline_mode<synchronous>, transform_indices = @transform_0, window_bounds = array<i64: 512, 27>}, {pipeline_mode = #tpu.pipeline_mode<synchronous>, transform_indices = @transform_1, window_bounds = array<i64: 512, 3>}, {transform_indices = @transform_2, window_bounds = array<i64: 1, 27, 16>}, {transform_indices = @transform_3, window_bounds = array<i64: 1, 1, 16>}, {transform_indices = @transform_4, window_bounds = array<i64: 1, 27, 16>}, {transform_indices = @transform_5, window_bounds = array<i64: 1, 144, 16>}, {transform_indices = @transform_6, window_bounds = array<i64: 1, 1, 16>}, {transform_indices = @transform_7, window_bounds = array<i64: 1, 3, 2>}, {transform_indices = @transform_8, window_bounds = array<i64: 1, 16, 2>}, {transform_indices = @transform_9, window_bounds = array<i64: 1, 16, 2>}, {transform_indices = @transform_10, window_bounds = array<i64: 1, 1, 2>}, {transform_indices = @transform_11, window_bounds = array<i64: 1, 2, 256, 2>}]} {
    %c0 = arith.constant 0 : index
    %c0_0 = arith.constant 0 : index
    %0 = vector.load %arg1[%c0, %c0_0] : memref<512x27xf32, #tpu.memory_space<vmem>>, vector<512x27xf32>
    %c0_1 = arith.constant 0 : index
    %c0_2 = arith.constant 0 : index
    %1 = vector.load %arg2[%c0_1, %c0_2] : memref<512x3xf32, #tpu.memory_space<vmem>>, vector<512x3xf32>
    %c0_3 = arith.constant 0 : index
    %c0_4 = arith.constant 0 : index
    %c0_5 = arith.constant 0 : index
    %2 = vector.load %arg3[%c0_3, %c0_4, %c0_5] : memref<1x27x16xf32, #tpu.memory_space<vmem>>, vector<1x27x16xf32>
    %3 = vector.shape_cast %2 : vector<1x27x16xf32> to vector<27x16xf32>
    %c0_6 = arith.constant 0 : index
    %c0_7 = arith.constant 0 : index
    %c0_8 = arith.constant 0 : index
    %4 = vector.load %arg4[%c0_6, %c0_7, %c0_8] : memref<1x1x16xf32, #tpu.memory_space<vmem>>, vector<1x1x16xf32>
    %5 = vector.shape_cast %4 : vector<1x1x16xf32> to vector<1x16xf32>
    %c0_9 = arith.constant 0 : index
    %c0_10 = arith.constant 0 : index
    %c0_11 = arith.constant 0 : index
    %6 = vector.load %arg5[%c0_9, %c0_10, %c0_11] : memref<1x27x16xf32, #tpu.memory_space<vmem>>, vector<1x27x16xf32>
    %7 = vector.shape_cast %6 : vector<1x27x16xf32> to vector<27x16xf32>
    %c0_12 = arith.constant 0 : index
    %c0_13 = arith.constant 0 : index
    %c0_14 = arith.constant 0 : index
    %8 = vector.load %arg6[%c0_12, %c0_13, %c0_14] : memref<1x144x16xf32, #tpu.memory_space<vmem>>, vector<1x144x16xf32>
    %9 = vector.shape_cast %8 : vector<1x144x16xf32> to vector<144x16xf32>
    %c0_15 = arith.constant 0 : index
    %c0_16 = arith.constant 0 : index
    %c0_17 = arith.constant 0 : index
    %10 = vector.load %arg7[%c0_15, %c0_16, %c0_17] : memref<1x1x16xf32, #tpu.memory_space<vmem>>, vector<1x1x16xf32>
    %11 = vector.shape_cast %10 : vector<1x1x16xf32> to vector<1x16xf32>
    %c0_18 = arith.constant 0 : index
    %c0_19 = arith.constant 0 : index
    %c0_20 = arith.constant 0 : index
    %12 = vector.load %arg8[%c0_18, %c0_19, %c0_20] : memref<1x3x2xf32, #tpu.memory_space<vmem>>, vector<1x3x2xf32>
    %13 = vector.shape_cast %12 : vector<1x3x2xf32> to vector<3x2xf32>
    %c0_21 = arith.constant 0 : index
    %c0_22 = arith.constant 0 : index
    %c0_23 = arith.constant 0 : index
    %14 = vector.load %arg9[%c0_21, %c0_22, %c0_23] : memref<1x16x2xf32, #tpu.memory_space<vmem>>, vector<1x16x2xf32>
    %15 = vector.shape_cast %14 : vector<1x16x2xf32> to vector<16x2xf32>
    %c0_24 = arith.constant 0 : index
    %c0_25 = arith.constant 0 : index
    %c0_26 = arith.constant 0 : index
    %16 = vector.load %arg10[%c0_24, %c0_25, %c0_26] : memref<1x16x2xf32, #tpu.memory_space<vmem>>, vector<1x16x2xf32>
    %17 = vector.shape_cast %16 : vector<1x16x2xf32> to vector<16x2xf32>
    %c0_27 = arith.constant 0 : index
    %c0_28 = arith.constant 0 : index
    %c0_29 = arith.constant 0 : index
    %18 = vector.load %arg11[%c0_27, %c0_28, %c0_29] : memref<1x1x2xf32, #tpu.memory_space<vmem>>, vector<1x1x2xf32>
    %19 = vector.shape_cast %18 : vector<1x1x2xf32> to vector<1x2xf32>
    %cst = arith.constant dense<0.000000e+00> : vector<512x16xf32>
    %20 = tpu.matmul %0, %3, %cst {dimension_numbers = #tpu.dot_dimension_numbers<[1], [0], [0], [1], [0, 0, 1, 1], [], []>} : vector<512x27xf32>, vector<27x16xf32>, vector<512x16xf32> -> vector<512x16xf32>
    %21 = vector.broadcast %5 : vector<1x16xf32> to vector<512x16xf32>
    %22 = arith.addf %20, %21 : vector<512x16xf32>
    %cst_30 = arith.constant 0.000000e+00 : f32
    %23 = vector.broadcast %cst_30 : f32 to vector<512x16xf32>
    %24 = arith.maximumf %22, %23 : vector<512x16xf32>
    %cst_31 = arith.constant 0.000000e+00 : f32
    %25 = vector.broadcast %cst_31 : f32 to vector<2x18x18x16xf32>
    %c0_32 = arith.constant 0 : index
    %c0_33 = arith.constant 0 : index
    %c0_34 = arith.constant 0 : index
    %c0_35 = arith.constant 0 : index
    %26 = vector.load %arg13[%c0_32, %c0_33, %c0_34, %c0_35] : memref<2x18x18x16xf32, #tpu.memory_space<vmem>>, vector<2x18x18x16xf32>
    tpu.vector_store %arg13[%c0_32, %c0_33, %c0_34, %c0_35], %25 {strides = array<i32>} : memref<2x18x18x16xf32, #tpu.memory_space<vmem>>, vector<2x18x18x16xf32>,
    %27 = vector.extract_strided_slice %24 {offsets = [0, 0], sizes = [256, 16], strides = [1, 1]} : vector<512x16xf32> to vector<256x16xf32>
    %28 = vector.shape_cast %27 : vector<256x16xf32> to vector<16x16x16xf32>
    %c0_36 = arith.constant 0 : index
    %c1 = arith.constant 1 : index
    %c1_37 = arith.constant 1 : index
    %c0_38 = arith.constant 0 : index
    %29 = vector.load %arg13[%c0_36, %c1, %c1_37, %c0_38] : memref<2x18x18x16xf32, #tpu.memory_space<vmem>>, vector<1x16x16x16xf32>
    %30 = vector.shape_cast %29 : vector<1x16x16x16xf32> to vector<16x16x16xf32>
    %31 = vector.shape_cast %28 : vector<16x16x16xf32> to vector<1x16x16x16xf32>
    tpu.vector_store %arg13[%c0_36, %c1, %c1_37, %c0_38], %31 {strides = array<i32>} : memref<2x18x18x16xf32, #tpu.memory_space<vmem>>, vector<1x16x16x16xf32>,
    %32 = vector.extract_strided_slice %24 {offsets = [256, 0], sizes = [256, 16], strides = [1, 1]} : vector<512x16xf32> to vector<256x16xf32>
    %33 = vector.shape_cast %32 : vector<256x16xf32> to vector<16x16x16xf32>
    %c1_39 = arith.constant 1 : index
    %c1_40 = arith.constant 1 : index
    %c1_41 = arith.constant 1 : index
    %c0_42 = arith.constant 0 : index
    %34 = vector.load %arg13[%c1_39, %c1_40, %c1_41, %c0_42] : memref<2x18x18x16xf32, #tpu.memory_space<vmem>>, vector<1x16x16x16xf32>
    %35 = vector.shape_cast %34 : vector<1x16x16x16xf32> to vector<16x16x16xf32>
    %36 = vector.shape_cast %33 : vector<16x16x16xf32> to vector<1x16x16x16xf32>
    tpu.vector_store %arg13[%c1_39, %c1_40, %c1_41, %c0_42], %36 {strides = array<i32>} : memref<2x18x18x16xf32, #tpu.memory_space<vmem>>, vector<1x16x16x16xf32>,
    %c0_43 = arith.constant 0 : index
    %c0_44 = arith.constant 0 : index
    %c0_45 = arith.constant 0 : index
    %c0_46 = arith.constant 0 : index
    %37 = vector.load %arg13[%c0_43, %c0_44, %c0_45, %c0_46] : memref<2x18x18x16xf32, #tpu.memory_space<vmem>>, vector<1x16x16x16xf32>
    %38 = vector.shape_cast %37 : vector<1x16x16x16xf32> to vector<16x16x16xf32>
    %39 = vector.shape_cast %38 : vector<16x16x16xf32> to vector<256x16xf32>
    %c0_47 = arith.constant 0 : index
    %c0_48 = arith.constant 0 : index
    %c1_49 = arith.constant 1 : index
    %c0_50 = arith.constant 0 : index
    %40 = vector.load %arg13[%c0_47, %c0_48, %c1_49, %c0_50] : memref<2x18x18x16xf32, #tpu.memory_space<vmem>>, vector<1x16x16x16xf32>
    %41 = vector.shape_cast %40 : vector<1x16x16x16xf32> to vector<16x16x16xf32>
    %42 = vector.shape_cast %41 : vector<16x16x16xf32> to vector<256x16xf32>
    %c0_51 = arith.constant 0 : index
    %c0_52 = arith.constant 0 : index
    %c2 = arith.constant 2 : index
    %c0_53 = arith.constant 0 : index
    %43 = vector.load %arg13[%c0_51, %c0_52, %c2, %c0_53] : memref<2x18x18x16xf32, #tpu.memory_space<vmem>>, vector<1x16x16x16xf32>
    %44 = vector.shape_cast %43 : vector<1x16x16x16xf32> to vector<16x16x16xf32>
    %45 = vector.shape_cast %44 : vector<16x16x16xf32> to vector<256x16xf32>
    %c0_54 = arith.constant 0 : index
    %c1_55 = arith.constant 1 : index
    %c0_56 = arith.constant 0 : index
    %c0_57 = arith.constant 0 : index
    %46 = vector.load %arg13[%c0_54, %c1_55, %c0_56, %c0_57] : memref<2x18x18x16xf32, #tpu.memory_space<vmem>>, vector<1x16x16x16xf32>
    %47 = vector.shape_cast %46 : vector<1x16x16x16xf32> to vector<16x16x16xf32>
    %48 = vector.shape_cast %47 : vector<16x16x16xf32> to vector<256x16xf32>
    %c0_58 = arith.constant 0 : index
    %c1_59 = arith.constant 1 : index
    %c1_60 = arith.constant 1 : index
    %c0_61 = arith.constant 0 : index
    %49 = vector.load %arg13[%c0_58, %c1_59, %c1_60, %c0_61] : memref<2x18x18x16xf32, #tpu.memory_space<vmem>>, vector<1x16x16x16xf32>
    %50 = vector.shape_cast %49 : vector<1x16x16x16xf32> to vector<16x16x16xf32>
    %51 = vector.shape_cast %50 : vector<16x16x16xf32> to vector<256x16xf32>
    %c0_62 = arith.constant 0 : index
    %c1_63 = arith.constant 1 : index
    %c2_64 = arith.constant 2 : index
    %c0_65 = arith.constant 0 : index
    %52 = vector.load %arg13[%c0_62, %c1_63, %c2_64, %c0_65] : memref<2x18x18x16xf32, #tpu.memory_space<vmem>>, vector<1x16x16x16xf32>
    %53 = vector.shape_cast %52 : vector<1x16x16x16xf32> to vector<16x16x16xf32>
    %54 = vector.shape_cast %53 : vector<16x16x16xf32> to vector<256x16xf32>
    %c0_66 = arith.constant 0 : index
    %c2_67 = arith.constant 2 : index
    %c0_68 = arith.constant 0 : index
    %c0_69 = arith.constant 0 : index
    %55 = vector.load %arg13[%c0_66, %c2_67, %c0_68, %c0_69] : memref<2x18x18x16xf32, #tpu.memory_space<vmem>>, vector<1x16x16x16xf32>
    %56 = vector.shape_cast %55 : vector<1x16x16x16xf32> to vector<16x16x16xf32>
    %57 = vector.shape_cast %56 : vector<16x16x16xf32> to vector<256x16xf32>
    %c0_70 = arith.constant 0 : index
    %c2_71 = arith.constant 2 : index
    %c1_72 = arith.constant 1 : index
    %c0_73 = arith.constant 0 : index
    %58 = vector.load %arg13[%c0_70, %c2_71, %c1_72, %c0_73] : memref<2x18x18x16xf32, #tpu.memory_space<vmem>>, vector<1x16x16x16xf32>
    %59 = vector.shape_cast %58 : vector<1x16x16x16xf32> to vector<16x16x16xf32>
    %60 = vector.shape_cast %59 : vector<16x16x16xf32> to vector<256x16xf32>
    %c0_74 = arith.constant 0 : index
    %c2_75 = arith.constant 2 : index
    %c2_76 = arith.constant 2 : index
    %c0_77 = arith.constant 0 : index
    %61 = vector.load %arg13[%c0_74, %c2_75, %c2_76, %c0_77] : memref<2x18x18x16xf32, #tpu.memory_space<vmem>>, vector<1x16x16x16xf32>
    %62 = vector.shape_cast %61 : vector<1x16x16x16xf32> to vector<16x16x16xf32>
    %63 = vector.shape_cast %62 : vector<16x16x16xf32> to vector<256x16xf32>
    %64 = tpu.concatenate %39, %42, %45, %48, %51, %54, %57, %60, %63 in 1 : vector<256x16xf32>, vector<256x16xf32>, vector<256x16xf32>, vector<256x16xf32>, vector<256x16xf32>, vector<256x16xf32>, vector<256x16xf32>, vector<256x16xf32>, vector<256x16xf32> -> vector<256x144xf32>
    %c1_78 = arith.constant 1 : index
    %c0_79 = arith.constant 0 : index
    %c0_80 = arith.constant 0 : index
    %c0_81 = arith.constant 0 : index
    %65 = vector.load %arg13[%c1_78, %c0_79, %c0_80, %c0_81] : memref<2x18x18x16xf32, #tpu.memory_space<vmem>>, vector<1x16x16x16xf32>
    %66 = vector.shape_cast %65 : vector<1x16x16x16xf32> to vector<16x16x16xf32>
    %67 = vector.shape_cast %66 : vector<16x16x16xf32> to vector<256x16xf32>
    %c1_82 = arith.constant 1 : index
    %c0_83 = arith.constant 0 : index
    %c1_84 = arith.constant 1 : index
    %c0_85 = arith.constant 0 : index
    %68 = vector.load %arg13[%c1_82, %c0_83, %c1_84, %c0_85] : memref<2x18x18x16xf32, #tpu.memory_space<vmem>>, vector<1x16x16x16xf32>
    %69 = vector.shape_cast %68 : vector<1x16x16x16xf32> to vector<16x16x16xf32>
    %70 = vector.shape_cast %69 : vector<16x16x16xf32> to vector<256x16xf32>
    %c1_86 = arith.constant 1 : index
    %c0_87 = arith.constant 0 : index
    %c2_88 = arith.constant 2 : index
    %c0_89 = arith.constant 0 : index
    %71 = vector.load %arg13[%c1_86, %c0_87, %c2_88, %c0_89] : memref<2x18x18x16xf32, #tpu.memory_space<vmem>>, vector<1x16x16x16xf32>
    %72 = vector.shape_cast %71 : vector<1x16x16x16xf32> to vector<16x16x16xf32>
    %73 = vector.shape_cast %72 : vector<16x16x16xf32> to vector<256x16xf32>
    %c1_90 = arith.constant 1 : index
    %c1_91 = arith.constant 1 : index
    %c0_92 = arith.constant 0 : index
    %c0_93 = arith.constant 0 : index
    %74 = vector.load %arg13[%c1_90, %c1_91, %c0_92, %c0_93] : memref<2x18x18x16xf32, #tpu.memory_space<vmem>>, vector<1x16x16x16xf32>
    %75 = vector.shape_cast %74 : vector<1x16x16x16xf32> to vector<16x16x16xf32>
    %76 = vector.shape_cast %75 : vector<16x16x16xf32> to vector<256x16xf32>
    %c1_94 = arith.constant 1 : index
    %c1_95 = arith.constant 1 : index
    %c1_96 = arith.constant 1 : index
    %c0_97 = arith.constant 0 : index
    %77 = vector.load %arg13[%c1_94, %c1_95, %c1_96, %c0_97] : memref<2x18x18x16xf32, #tpu.memory_space<vmem>>, vector<1x16x16x16xf32>
    %78 = vector.shape_cast %77 : vector<1x16x16x16xf32> to vector<16x16x16xf32>
    %79 = vector.shape_cast %78 : vector<16x16x16xf32> to vector<256x16xf32>
    %c1_98 = arith.constant 1 : index
    %c1_99 = arith.constant 1 : index
    %c2_100 = arith.constant 2 : index
    %c0_101 = arith.constant 0 : index
    %80 = vector.load %arg13[%c1_98, %c1_99, %c2_100, %c0_101] : memref<2x18x18x16xf32, #tpu.memory_space<vmem>>, vector<1x16x16x16xf32>
    %81 = vector.shape_cast %80 : vector<1x16x16x16xf32> to vector<16x16x16xf32>
    %82 = vector.shape_cast %81 : vector<16x16x16xf32> to vector<256x16xf32>
    %c1_102 = arith.constant 1 : index
    %c2_103 = arith.constant 2 : index
    %c0_104 = arith.constant 0 : index
    %c0_105 = arith.constant 0 : index
    %83 = vector.load %arg13[%c1_102, %c2_103, %c0_104, %c0_105] : memref<2x18x18x16xf32, #tpu.memory_space<vmem>>, vector<1x16x16x16xf32>
    %84 = vector.shape_cast %83 : vector<1x16x16x16xf32> to vector<16x16x16xf32>
    %85 = vector.shape_cast %84 : vector<16x16x16xf32> to vector<256x16xf32>
    %c1_106 = arith.constant 1 : index
    %c2_107 = arith.constant 2 : index
    %c1_108 = arith.constant 1 : index
    %c0_109 = arith.constant 0 : index
    %86 = vector.load %arg13[%c1_106, %c2_107, %c1_108, %c0_109] : memref<2x18x18x16xf32, #tpu.memory_space<vmem>>, vector<1x16x16x16xf32>
    %87 = vector.shape_cast %86 : vector<1x16x16x16xf32> to vector<16x16x16xf32>
    %88 = vector.shape_cast %87 : vector<16x16x16xf32> to vector<256x16xf32>
    %c1_110 = arith.constant 1 : index
    %c2_111 = arith.constant 2 : index
    %c2_112 = arith.constant 2 : index
    %c0_113 = arith.constant 0 : index
    %89 = vector.load %arg13[%c1_110, %c2_111, %c2_112, %c0_113] : memref<2x18x18x16xf32, #tpu.memory_space<vmem>>, vector<1x16x16x16xf32>
    %90 = vector.shape_cast %89 : vector<1x16x16x16xf32> to vector<16x16x16xf32>
    %91 = vector.shape_cast %90 : vector<16x16x16xf32> to vector<256x16xf32>
    %92 = tpu.concatenate %67, %70, %73, %76, %79, %82, %85, %88, %91 in 1 : vector<256x16xf32>, vector<256x16xf32>, vector<256x16xf32>, vector<256x16xf32>, vector<256x16xf32>, vector<256x16xf32>, vector<256x16xf32>, vector<256x16xf32>, vector<256x16xf32> -> vector<256x144xf32>
    %93 = tpu.concatenate %64, %92 in 0 : vector<256x144xf32>, vector<256x144xf32> -> vector<512x144xf32>
    %cst_114 = arith.constant dense<0.000000e+00> : vector<512x16xf32>
    %94 = tpu.matmul %0, %7, %cst_114 {dimension_numbers = #tpu.dot_dimension_numbers<[1], [0], [0], [1], [0, 0, 1, 1], [], []>} : vector<512x27xf32>, vector<27x16xf32>, vector<512x16xf32> -> vector<512x16xf32>
    %cst_115 = arith.constant dense<0.000000e+00> : vector<512x16xf32>
    %95 = tpu.matmul %93, %9, %cst_115 {dimension_numbers = #tpu.dot_dimension_numbers<[1], [0], [0], [1], [0, 0, 1, 1], [], []>} : vector<512x144xf32>, vector<144x16xf32>, vector<512x16xf32> -> vector<512x16xf32>
    %96 = arith.addf %94, %95 : vector<512x16xf32>
    %97 = vector.broadcast %11 : vector<1x16xf32> to vector<512x16xf32>
    %98 = arith.addf %96, %97 : vector<512x16xf32>
    %cst_116 = arith.constant 0.000000e+00 : f32
    %99 = vector.broadcast %cst_116 : f32 to vector<512x16xf32>
    %100 = arith.maximumf %98, %99 : vector<512x16xf32>
    %cst_117 = arith.constant dense<0.000000e+00> : vector<512x2xf32>
    %101 = tpu.matmul %1, %13, %cst_117 {dimension_numbers = #tpu.dot_dimension_numbers<[1], [0], [0], [1], [0, 0, 1, 1], [], []>} : vector<512x3xf32>, vector<3x2xf32>, vector<512x2xf32> -> vector<512x2xf32>
    %cst_118 = arith.constant dense<0.000000e+00> : vector<512x2xf32>
    %102 = tpu.matmul %24, %15, %cst_118 {dimension_numbers = #tpu.dot_dimension_numbers<[1], [0], [0], [1], [0, 0, 1, 1], [], []>} : vector<512x16xf32>, vector<16x2xf32>, vector<512x2xf32> -> vector<512x2xf32>
    %103 = arith.addf %101, %102 : vector<512x2xf32>
    %cst_119 = arith.constant dense<0.000000e+00> : vector<512x2xf32>
    %104 = tpu.matmul %100, %17, %cst_119 {dimension_numbers = #tpu.dot_dimension_numbers<[1], [0], [0], [1], [0, 0, 1, 1], [], []>} : vector<512x16xf32>, vector<16x2xf32>, vector<512x2xf32> -> vector<512x2xf32>
    %105 = arith.addf %103, %104 : vector<512x2xf32>
    %106 = vector.broadcast %19 : vector<1x2xf32> to vector<512x2xf32>
    %107 = arith.addf %105, %106 : vector<512x2xf32>
    %108 = vector.shape_cast %107 : vector<512x2xf32> to vector<2x256x2xf32>
    %c0_120 = arith.constant 0 : index
    %c0_121 = arith.constant 0 : index
    %c0_122 = arith.constant 0 : index
    %c0_123 = arith.constant 0 : index
    %109 = vector.load %arg12[%c0_120, %c0_121, %c0_122, %c0_123] : memref<1x2x256x2xf32, #tpu.memory_space<vmem>>, vector<1x2x256x2xf32>
    %110 = vector.shape_cast %109 : vector<1x2x256x2xf32> to vector<2x256x2xf32>
    %111 = vector.shape_cast %108 : vector<2x256x2xf32> to vector<1x2x256x2xf32>
    tpu.vector_store %arg12[%c0_120, %c0_121, %c0_122, %c0_123], %111 {strides = array<i32>} : memref<1x2x256x2xf32, #tpu.memory_space<vmem>>, vector<1x2x256x2xf32>,
    return
  }
  func.func @transform_0(%arg0: i32) -> (i32, i32) {
    %c0_i32 = arith.constant 0 : i32
    %c0_i32_0 = arith.constant 0 : i32
    %c0_i32_1 = arith.constant 0 : i32
    return %c0_i32, %c0_i32_0 : i32, i32
  }
  func.func @transform_1(%arg0: i32) -> (i32, i32) {
    %c0_i32 = arith.constant 0 : i32
    %c0_i32_0 = arith.constant 0 : i32
    %c0_i32_1 = arith.constant 0 : i32
    return %c0_i32, %c0_i32_0 : i32, i32
  }
  func.func @transform_2(%arg0: i32) -> (i32, i32, i32) {
    %c0_i32 = arith.constant 0 : i32
    %c0_i32_0 = arith.constant 0 : i32
    %c0_i32_1 = arith.constant 0 : i32
    return %arg0, %c0_i32, %c0_i32_0 : i32, i32, i32
  }
  func.func @transform_3(%arg0: i32) -> (i32, i32, i32) {
    %c0_i32 = arith.constant 0 : i32
    %c0_i32_0 = arith.constant 0 : i32
    %c0_i32_1 = arith.constant 0 : i32
    return %arg0, %c0_i32, %c0_i32_0 : i32, i32, i32
  }
  func.func @transform_4(%arg0: i32) -> (i32, i32, i32) {
    %c0_i32 = arith.constant 0 : i32
    %c0_i32_0 = arith.constant 0 : i32
    %c0_i32_1 = arith.constant 0 : i32
    return %arg0, %c0_i32, %c0_i32_0 : i32, i32, i32
  }
  func.func @transform_5(%arg0: i32) -> (i32, i32, i32) {
    %c0_i32 = arith.constant 0 : i32
    %c0_i32_0 = arith.constant 0 : i32
    %c0_i32_1 = arith.constant 0 : i32
    return %arg0, %c0_i32, %c0_i32_0 : i32, i32, i32
  }
  func.func @transform_6(%arg0: i32) -> (i32, i32, i32) {
    %c0_i32 = arith.constant 0 : i32
    %c0_i32_0 = arith.constant 0 : i32
    %c0_i32_1 = arith.constant 0 : i32
    return %arg0, %c0_i32, %c0_i32_0 : i32, i32, i32
  }
  func.func @transform_7(%arg0: i32) -> (i32, i32, i32) {
    %c0_i32 = arith.constant 0 : i32
    %c0_i32_0 = arith.constant 0 : i32
    %c0_i32_1 = arith.constant 0 : i32
    return %arg0, %c0_i32, %c0_i32_0 : i32, i32, i32
  }
  func.func @transform_8(%arg0: i32) -> (i32, i32, i32) {
    %c0_i32 = arith.constant 0 : i32
    %c0_i32_0 = arith.constant 0 : i32
    %c0_i32_1 = arith.constant 0 : i32
    return %arg0, %c0_i32, %c0_i32_0 : i32, i32, i32
  }
  func.func @transform_9(%arg0: i32) -> (i32, i32, i32) {
    %c0_i32 = arith.constant 0 : i32
    %c0_i32_0 = arith.constant 0 : i32
    %c0_i32_1 = arith.constant 0 : i32
    return %arg0, %c0_i32, %c0_i32_0 : i32, i32, i32
  }
  func.func @transform_10(%arg0: i32) -> (i32, i32, i32) {
    %c0_i32 = arith.constant 0 : i32
    %c0_i32_0 = arith.constant 0 : i32
    %c0_i32_1 = arith.constant 0 : i32
    return %arg0, %c0_i32, %c0_i32_0 : i32, i32, i32
  }
  func.func @transform_11(%arg0: i32) -> (i32, i32, i32, i32) {
    %c0_i32 = arith.constant 0 : i32
    %c0_i32_0 = arith.constant 0 : i32
    %c0_i32_1 = arith.constant 0 : i32
    %c0_i32_2 = arith.constant 0 : i32
    return %arg0, %c0_i32, %c0_i32_0, %c0_i32_1 : i32, i32, i32, i32
  }
}

</mosaic_0001>

<llo_original>
// kernel: tpu_custom_call.1
$region0: #{tpu_custom_call.1}
  #allocation0 [shape = 'u32[]', space=smem, size = 0x4, offset = 0x4, fixed_abs, tag = 'smem constant byte address 0x4 - core index']
  #allocation1 [shape = 'u32[144,128]{1,0:T(1,128)}', space=vmem, size = 0x12000, scoped, tag = 'internal scratch']
  #allocation2 [shape = 'f32[2,18,18,16]{3,2,1,0:T(8,128)}', space=vmem, size = 0x6c000, scoped, tag = 'scratch operand']
  %s0 = inlined_call_operand.vmem [shape: f32[512,27], index: 0, kind: input, shape index: {}]
  %s1 = inlined_call_operand.vmem [shape: f32[512,3], index: 1, kind: input, shape index: {}]
  %s2 = inlined_call_operand.vmem [shape: f32[8,27,16], index: 2, kind: input, shape index: {}]
  %s3 = inlined_call_operand.hbm [shape: f32[8,1,16], index: 3, kind: input, shape index: {}]
  %s4 = inlined_call_operand.vmem [shape: f32[8,27,16], index: 4, kind: input, shape index: {}]
  %s5 = inlined_call_operand.vmem [shape: f32[8,144,16], index: 5, kind: input, shape index: {}]
  %s6 = inlined_call_operand.hbm [shape: f32[8,1,16], index: 6, kind: input, shape index: {}]
  %s7 = inlined_call_operand.vmem [shape: f32[8,3,2], index: 7, kind: input, shape index: {}]
  %s8 = inlined_call_operand.vmem [shape: f32[8,16,2], index: 8, kind: input, shape index: {}]
  %s9 = inlined_call_operand.vmem [shape: f32[8,16,2], index: 9, kind: input, shape index: {}]
  %s10 = inlined_call_operand.vmem [shape: f32[8,1,2], index: 10, kind: input, shape index: {}]
  %s11 = inlined_call_operand.vmem [shape: f32[8,2,256,2], index: 11, kind: output, shape index: {}]
  %s12 = sld [smem:[#allocation0]]
  $region85: #{tpu_custom_call.1} parent=0
    _
  %s14 = ssub.s32 1, %s12
  %s15 = scalar_select 0, %s14, %s12
  $region1: #{tpu_custom_call.1} parent=0
    #allocation3 [shape = 'u8[1024]{0}', space=vmem, size = 0x400, scoped, tag = 'input window, operand 3']
    #allocation4 [shape = 's32[2]{0}', space=sflag, size = 0x8, scoped, tag = 'scoped memory for tpu_custom_call.1']
    #allocation5 [shape = 'u8[1024]{0}', space=vmem, size = 0x400, scoped, tag = 'input window, operand 6']
    #allocation6 [shape = 's32[2]{0}', space=sflag, size = 0x8, scoped, tag = 'scoped memory for tpu_custom_call.1']
    %16 = vsyncpa [#allocation4], 0
    %s17 = scalar_lea.sflag [#allocation4], 1
    %18 = vsyncpa %s17, 0
    %19 = vsyncpa [#allocation6], 0
    %s20 = scalar_lea.sflag [#allocation6], 1
    %21 = vsyncpa %s20, 0
    loop: start=0, step=1, limit=10
    $region2: #{tpu_custom_call.1} parent=1 // loop_pre_header
      _
    $region3: #{tpu_custom_call.1} parent=1 // loop_header
      %s23 = sphi 0, %s27
      %p24 = scmp.ge.s32.totalorder %s23, 10
      %s31 = sphi 0, %s31
      %s33 = sphi 0, %s31
      %s34 = sphi 0, %s33
      %s48 = sphi 0, %s34
      %s52 = sphi 0, %s52
      %s54 = sphi 0, %s52
      %s55 = sphi 0, %s54
      %s69 = sphi 0, %s55
      %s75 = sphi 0, %s77
      %s78 = sphi 0, %s75
      %s79 = sphi 0, %s78
      %s95 = sphi 0, %s79
      %s101 = sphi 0, %s103
      %s104 = sphi 0, %s101
      %s105 = sphi 0, %s104
      %s121 = sphi 0, %s105
      %s127 = sphi 0, %s129
      %s130 = sphi 0, %s127
      %s131 = sphi 0, %s130
      %s147 = sphi 0, %s131
      %s153 = sphi 0, %s155
      %s156 = sphi 0, %s153
      %s157 = sphi 0, %s156
      %s173 = sphi 0, %s157
      %s179 = sphi 0, %s181
      %s182 = sphi 0, %s179
      %s183 = sphi 0, %s182
      %s199 = sphi 0, %s183
      %s205 = sphi 0, %s207
      %s208 = sphi 0, %s205
      %s209 = sphi 0, %s208
      %s225 = sphi 0, %s209
      %s231 = sphi 0, %s233
      %s234 = sphi 0, %s231
      %s235 = sphi 0, %s234
      %s251 = sphi 0, %s235
      %s257 = sphi 0, %s259
      %s260 = sphi 0, %s257
      %s261 = sphi 0, %s260
      %s277 = sphi 0, %s261
      %s283 = sphi 0, %s285
      %s286 = sphi 0, %s283
      %s287 = sphi 0, %s286
      %s303 = sphi 0, %s287
      %s309 = sphi 0, %s311
      %s312 = sphi 0, %s309
      %s313 = sphi 0, %s312
      %s329 = sphi 0, %s313
    $region4: #{tpu_custom_call.1} parent=1 // loop_header_branch
      %26 = sbr.rel (%p24) target = $region8
    $region5: #{tpu_custom_call.1} parent=1 // loop_body
      %s28 = ssub.s32 %s23, 1
      %s29 = ssub.s32 %s23, 2
      %s30 = sadd.s32 %s23, 1
      %s32 = sadd.s32 %s31, 1
      %p35 = scmp.eq.s32.totalorder %s23, 7
      %p36 = scmp.ne.s32.totalorder %s31, %s33
      %p37 = scmp.eq.s32.totalorder %s23, 0
      %p38 = por %p36, %p37
      %p39 = scmp.ne.s32.totalorder %s31, %s33
      %p40 = scmp.eq.s32.totalorder %s28, 7
      %p41 = por %p39, %p40
      %p42 = scmp.ne.s32.totalorder %s33, %s34
      %p43 = scmp.eq.s32.totalorder %s28, 0
      %p44 = por %p42, %p43
      %p45 = scmp.ne.s32.totalorder %s33, %s34
      %p46 = scmp.eq.s32.totalorder %s29, 7
      %p47 = por %p45, %p46
      %p49 = scmp.ne.s32.totalorder %s34, %s48
      %p50 = scmp.eq.s32.totalorder %s29, 0
      %p51 = por %p49, %p50
      %s53 = sadd.s32 %s52, 1
      %p56 = scmp.eq.s32.totalorder %s23, 7
      %p57 = scmp.ne.s32.totalorder %s52, %s54
      %p58 = scmp.eq.s32.totalorder %s23, 0
      %p59 = por %p57, %p58
      %p60 = scmp.ne.s32.totalorder %s52, %s54
      %p61 = scmp.eq.s32.totalorder %s28, 7
      %p62 = por %p60, %p61
      %p63 = scmp.ne.s32.totalorder %s54, %s55
      %p64 = scmp.eq.s32.totalorder %s28, 0
      %p65 = por %p63, %p64
      %p66 = scmp.ne.s32.totalorder %s54, %s55
      %p67 = scmp.eq.s32.totalorder %s29, 7
      %p68 = por %p66, %p67
      %p70 = scmp.ne.s32.totalorder %s55, %s69
      %p71 = scmp.eq.s32.totalorder %s29, 0
      %p72 = por %p70, %p71
      %s73 = ssub.s32 %s23, %s30
      %p74 = scmp.eq.s32.totalorder %s73, 0
      %s76 = sadd.s32 %s75, 1
      %s77 = scalar_select %p74, %s75, %s76
      %p80 = pneg %p74
      %p81 = scmp.eq.s32.totalorder %s23, 7
      %p82 = por %p80, %p81
      %p83 = scmp.ne.s32.totalorder %s75, %s78
      %p84 = scmp.eq.s32.totalorder %s23, 0
      %p85 = por %p83, %p84
      %p86 = scmp.ne.s32.totalorder %s75, %s78
      %p87 = scmp.eq.s32.totalorder %s28, 7
      %p88 = por %p86, %p87
      %p89 = scmp.ne.s32.totalorder %s78, %s79
      %p90 = scmp.eq.s32.totalorder %s28, 0
      %p91 = por %p89, %p90
      %p92 = scmp.ne.s32.totalorder %s78, %s79
      %p93 = scmp.eq.s32.totalorder %s29, 7
      %p94 = por %p92, %p93
      %p96 = scmp.ne.s32.totalorder %s79, %s95
      %p97 = scmp.eq.s32.totalorder %s29, 0
      %p98 = por %p96, %p97
      %s99 = ssub.s32 %s23, %s30
      %p100 = scmp.eq.s32.totalorder %s99, 0
      %s102 = sadd.s32 %s101, 1
      %s103 = scalar_select %p100, %s101, %s102
      %p106 = pneg %p100
      %p107 = scmp.eq.s32.totalorder %s23, 7
      %p108 = por %p106, %p107
      %p109 = scmp.ne.s32.totalorder %s101, %s104
      %p110 = scmp.eq.s32.totalorder %s23, 0
      %p111 = por %p109, %p110
      %p112 = scmp.ne.s32.totalorder %s101, %s104
      %p113 = scmp.eq.s32.totalorder %s28, 7
      %p114 = por %p112, %p113
      %p115 = scmp.ne.s32.totalorder %s104, %s105
      %p116 = scmp.eq.s32.totalorder %s28, 0
      %p117 = por %p115, %p116
      %p118 = scmp.ne.s32.totalorder %s104, %s105
      %p119 = scmp.eq.s32.totalorder %s29, 7
      %p120 = por %p118, %p119
      %p122 = scmp.ne.s32.totalorder %s105, %s121
      %p123 = scmp.eq.s32.totalorder %s29, 0
      %p124 = por %p122, %p123
      %s125 = ssub.s32 %s23, %s30
      %p126 = scmp.eq.s32.totalorder %s125, 0
      %s128 = sadd.s32 %s127, 1
      %s129 = scalar_select %p126, %s127, %s128
      %p132 = pneg %p126
      %p133 = scmp.eq.s32.totalorder %s23, 7
      %p134 = por %p132, %p133
      %p135 = scmp.ne.s32.totalorder %s127, %s130
      %p136 = scmp.eq.s32.totalorder %s23, 0
      %p137 = por %p135, %p136
      %p138 = scmp.ne.s32.totalorder %s127, %s130
      %p139 = scmp.eq.s32.totalorder %s28, 7
      %p140 = por %p138, %p139
      %p141 = scmp.ne.s32.totalorder %s130, %s131
      %p142 = scmp.eq.s32.totalorder %s28, 0
      %p143 = por %p141, %p142
      %p144 = scmp.ne.s32.totalorder %s130, %s131
      %p145 = scmp.eq.s32.totalorder %s29, 7
      %p146 = por %p144, %p145
      %p148 = scmp.ne.s32.totalorder %s131, %s147
      %p149 = scmp.eq.s32.totalorder %s29, 0
      %p150 = por %p148, %p149
      %s151 = ssub.s32 %s23, %s30
      %p152 = scmp.eq.s32.totalorder %s151, 0
      %s154 = sadd.s32 %s153, 1
      %s155 = scalar_select %p152, %s153, %s154
      %p158 = pneg %p152
      %p159 = scmp.eq.s32.totalorder %s23, 7
      %p160 = por %p158, %p159
      %p161 = scmp.ne.s32.totalorder %s153, %s156
      %p162 = scmp.eq.s32.totalorder %s23, 0
      %p163 = por %p161, %p162
      %p164 = scmp.ne.s32.totalorder %s153, %s156
      %p165 = scmp.eq.s32.totalorder %s28, 7
      %p166 = por %p164, %p165
      %p167 = scmp.ne.s32.totalorder %s156, %s157
      %p168 = scmp.eq.s32.totalorder %s28, 0
      %p169 = por %p167, %p168
      %p170 = scmp.ne.s32.totalorder %s156, %s157
      %p171 = scmp.eq.s32.totalorder %s29, 7
      %p172 = por %p170, %p171
      %p174 = scmp.ne.s32.totalorder %s157, %s173
      %p175 = scmp.eq.s32.totalorder %s29, 0
      %p176 = por %p174, %p175
      %s177 = ssub.s32 %s23, %s30
      %p178 = scmp.eq.s32.totalorder %s177, 0
      %s180 = sadd.s32 %s179, 1
      %s181 = scalar_select %p178, %s179, %s180
      %p184 = pneg %p178
      %p185 = scmp.eq.s32.totalorder %s23, 7
      %p186 = por %p184, %p185
      %p187 = scmp.ne.s32.totalorder %s179, %s182
      %p188 = scmp.eq.s32.totalorder %s23, 0
      %p189 = por %p187, %p188
      %p190 = scmp.ne.s32.totalorder %s179, %s182
      %p191 = scmp.eq.s32.totalorder %s28, 7
      %p192 = por %p190, %p191
      %p193 = scmp.ne.s32.totalorder %s182, %s183
      %p194 = scmp.eq.s32.totalorder %s28, 0
      %p195 = por %p193, %p194
      %p196 = scmp.ne.s32.totalorder %s182, %s183
      %p197 = scmp.eq.s32.totalorder %s29, 7
      %p198 = por %p196, %p197
      %p200 = scmp.ne.s32.totalorder %s183, %s199
      %p201 = scmp.eq.s32.totalorder %s29, 0
      %p202 = por %p200, %p201
      %s203 = ssub.s32 %s23, %s30
      %p204 = scmp.eq.s32.totalorder %s203, 0
      %s206 = sadd.s32 %s205, 1
      %s207 = scalar_select %p204, %s205, %s206
      %p210 = pneg %p204
      %p211 = scmp.eq.s32.totalorder %s23, 7
      %p212 = por %p210, %p211
      %p213 = scmp.ne.s32.totalorder %s205, %s208
      %p214 = scmp.eq.s32.totalorder %s23, 0
      %p215 = por %p213, %p214
      %p216 = scmp.ne.s32.totalorder %s205, %s208
      %p217 = scmp.eq.s32.totalorder %s28, 7
      %p218 = por %p216, %p217
      %p219 = scmp.ne.s32.totalorder %s208, %s209
      %p220 = scmp.eq.s32.totalorder %s28, 0
      %p221 = por %p219, %p220
      %p222 = scmp.ne.s32.totalorder %s208, %s209
      %p223 = scmp.eq.s32.totalorder %s29, 7
      %p224 = por %p222, %p223
      %p226 = scmp.ne.s32.totalorder %s209, %s225
      %p227 = scmp.eq.s32.totalorder %s29, 0
      %p228 = por %p226, %p227
      %s229 = ssub.s32 %s23, %s30
      %p230 = scmp.eq.s32.totalorder %s229, 0
      %s232 = sadd.s32 %s231, 1
      %s233 = scalar_select %p230, %s231, %s232
      %p236 = pneg %p230
      %p237 = scmp.eq.s32.totalorder %s23, 7
      %p238 = por %p236, %p237
      %p239 = scmp.ne.s32.totalorder %s231, %s234
      %p240 = scmp.eq.s32.totalorder %s23, 0
      %p241 = por %p239, %p240
      %p242 = scmp.ne.s32.totalorder %s231, %s234
      %p243 = scmp.eq.s32.totalorder %s28, 7
      %p244 = por %p242, %p243
      %p245 = scmp.ne.s32.totalorder %s234, %s235
      %p246 = scmp.eq.s32.totalorder %s28, 0
      %p247 = por %p245, %p246
      %p248 = scmp.ne.s32.totalorder %s234, %s235
      %p249 = scmp.eq.s32.totalorder %s29, 7
      %p250 = por %p248, %p249
      %p252 = scmp.ne.s32.totalorder %s235, %s251
      %p253 = scmp.eq.s32.totalorder %s29, 0
      %p254 = por %p252, %p253
      %s255 = ssub.s32 %s23, %s30
      %p256 = scmp.eq.s32.totalorder %s255, 0
      %s258 = sadd.s32 %s257, 1
      %s259 = scalar_select %p256, %s257, %s258
      %p262 = pneg %p256
      %p263 = scmp.eq.s32.totalorder %s23, 7
      %p264 = por %p262, %p263
      %p265 = scmp.ne.s32.totalorder %s257, %s260
      %p266 = scmp.eq.s32.totalorder %s23, 0
      %p267 = por %p265, %p266
      %p268 = scmp.ne.s32.totalorder %s257, %s260
      %p269 = scmp.eq.s32.totalorder %s28, 7
      %p270 = por %p268, %p269
      %p271 = scmp.ne.s32.totalorder %s260, %s261
      %p272 = scmp.eq.s32.totalorder %s28, 0
      %p273 = por %p271, %p272
      %p274 = scmp.ne.s32.totalorder %s260, %s261
      %p275 = scmp.eq.s32.totalorder %s29, 7
      %p276 = por %p274, %p275
      %p278 = scmp.ne.s32.totalorder %s261, %s277
      %p279 = scmp.eq.s32.totalorder %s29, 0
      %p280 = por %p278, %p279
      %s281 = ssub.s32 %s23, %s30
      %p282 = scmp.eq.s32.totalorder %s281, 0
      %s284 = sadd.s32 %s283, 1
      %s285 = scalar_select %p282, %s283, %s284
      %p288 = pneg %p282
      %p289 = scmp.eq.s32.totalorder %s23, 7
      %p290 = por %p288, %p289
      %p291 = scmp.ne.s32.totalorder %s283, %s286
      %p292 = scmp.eq.s32.totalorder %s23, 0
      %p293 = por %p291, %p292
      %p294 = scmp.ne.s32.totalorder %s283, %s286
      %p295 = scmp.eq.s32.totalorder %s28, 7
      %p296 = por %p294, %p295
      %p297 = scmp.ne.s32.totalorder %s286, %s287
      %p298 = scmp.eq.s32.totalorder %s28, 0
      %p299 = por %p297, %p298
      %p300 = scmp.ne.s32.totalorder %s286, %s287
      %p301 = scmp.eq.s32.totalorder %s29, 7
      %p302 = por %p300, %p301
      %p304 = scmp.ne.s32.totalorder %s287, %s303
      %p305 = scmp.eq.s32.totalorder %s29, 0
      %p306 = por %p304, %p305
      %s307 = ssub.s32 %s23, %s30
      %p308 = scmp.eq.s32.totalorder %s307, 0
      %s310 = sadd.s32 %s309, 1
      %s311 = scalar_select %p308, %s309, %s310
      %p314 = pneg %p308
      %p315 = scmp.eq.s32.totalorder %s23, 7
      %p316 = por %p314, %p315
      %p317 = scmp.ne.s32.totalorder %s309, %s312
      %p318 = scmp.eq.s32.totalorder %s23, 0
      %p319 = por %p317, %p318
      %p320 = scmp.ne.s32.totalorder %s309, %s312
      %p321 = scmp.eq.s32.totalorder %s28, 7
      %p322 = por %p320, %p321
      %p323 = scmp.ne.s32.totalorder %s312, %s313
      %p324 = scmp.eq.s32.totalorder %s28, 0
      %p325 = por %p323, %p324
      %p326 = scmp.ne.s32.totalorder %s312, %s313
      %p327 = scmp.eq.s32.totalorder %s29, 7
      %p328 = por %p326, %p327
      %p330 = scmp.ne.s32.totalorder %s313, %s329
      %p331 = scmp.eq.s32.totalorder %s29, 0
      %p332 = por %p330, %p331
      %p333 = scmp.le.s32.totalorder 1, %s23
      %p334 = scmp.lt.s32.totalorder %s23, 9
      %p335 = pnand %p333, %p334
      %p336 = pneg %p335
      // Predicated region
      $region9: #{tpu_custom_call.1} parent=5 // pred_check
        _
      $region10: #{tpu_custom_call.1} parent=5 // pred_check_branch
        %338 = sbr.rel (%p335) target = $region12
      $region11: #{tpu_custom_call.1} parent=5 // pred_region
        %s339 = ssub.s32 %s23, 1
        // Predicated region
        $region13: #{tpu_custom_call.1} parent=11 // pred_check
          %p340 = pneg %p44
        $region14: #{tpu_custom_call.1} parent=11 // pred_check_branch
          %342 = sbr.rel (%p340) target = $region16
        $region15: #{tpu_custom_call.1} parent=11 // pred_region
          _
        $region16: #{tpu_custom_call.1} parent=11 // pred_fallthru
          _
        // Predicated region
        $region17: #{tpu_custom_call.1} parent=11 // pred_check
          %p343 = pneg %p65
        $region18: #{tpu_custom_call.1} parent=11 // pred_check_branch
          %345 = sbr.rel (%p343) target = $region20
        $region19: #{tpu_custom_call.1} parent=11 // pred_region
          _
        $region20: #{tpu_custom_call.1} parent=11 // pred_fallthru
          _
      $region12: #{tpu_custom_call.1} parent=5 // pred_fallthru
        _
      %p346 = scmp.lt.s32.totalorder %s23, 8
      // Predicated region
      $region21: #{tpu_custom_call.1} parent=5 // pred_check
        %p347 = pneg %p346
      $region22: #{tpu_custom_call.1} parent=5 // pred_check_branch
        %349 = sbr.rel (%p347) target = $region24
      $region23: #{tpu_custom_call.1} parent=5 // pred_region
        // Predicated region
        $region25: #{tpu_custom_call.1} parent=23 // pred_check
          %p350 = pneg %p85
        $region26: #{tpu_custom_call.1} parent=23 // pred_check_branch
          %352 = sbr.rel (%p350) target = $region28
        $region27: #{tpu_custom_call.1} parent=23 // pred_region
          %p353 = scmp.lt.s32.totalorder %s23, 7
          %s354 = scalar_select %p353, %s23, 7
          %s355 = smul.addr %s354, 4
          %s356 = smul.addr %s355, 8
          %s357 = scalar_lea.vmem %s2, %s356
        $region28: #{tpu_custom_call.1} parent=23 // pred_fallthru
          _
        // Predicated region
        $region29: #{tpu_custom_call.1} parent=23 // pred_check
          %p358 = pneg %p111
        $region30: #{tpu_custom_call.1} parent=23 // pred_check_branch
          %360 = sbr.rel (%p358) target = $region32
        $region31: #{tpu_custom_call.1} parent=23 // pred_region
          %s361 = sand.u32 %s101, 1
          %s362 = scalar_lea.sflag [#allocation4], %s361
          %s363 = sand.u32 %s101, 1
          %s364 = scalar_lea.vmem [#allocation3], %s363
          %s366 = ssub.s32 16, 16
          %367 = vsyncadd %s362, %s366
          %s368 = smul.addr %s23, 16
          %s369 = scalar_lea.hbm %s3, %s368
          %s371 = sshll.u32 %s364, 4
          %s372 = int_to_ptr.vmem [resolvable:$true] %s371
          %374 = dma.hbm_to_vmem [thread:$0]  %s369, 16, %s372, %s362
        $region32: #{tpu_custom_call.1} parent=23 // pred_fallthru
          _
        // Predicated region
        $region33: #{tpu_custom_call.1} parent=23 // pred_check
          %p375 = pneg %p137
        $region34: #{tpu_custom_call.1} parent=23 // pred_check_branch
          %377 = sbr.rel (%p375) target = $region36
        $region35: #{tpu_custom_call.1} parent=23 // pred_region
          %p378 = scmp.lt.s32.totalorder %s23, 7
          %s379 = scalar_select %p378, %s23, 7
          %s380 = smul.addr %s379, 4
          %s381 = smul.addr %s380, 8
          %s382 = scalar_lea.vmem %s4, %s381
        $region36: #{tpu_custom_call.1} parent=23 // pred_fallthru
          _
        // Predicated region
        $region37: #{tpu_custom_call.1} parent=23 // pred_check
          %p383 = pneg %p163
        $region38: #{tpu_custom_call.1} parent=23 // pred_check_branch
          %385 = sbr.rel (%p383) target = $region40
        $region39: #{tpu_custom_call.1} parent=23 // pred_region
          %p386 = scmp.lt.s32.totalorder %s23, 7
          %s387 = scalar_select %p386, %s23, 7
          %s388 = smul.addr %s387, 18
          %s389 = smul.addr %s388, 8
          %s390 = scalar_lea.vmem %s5, %s389
        $region40: #{tpu_custom_call.1} parent=23 // pred_fallthru
          _
        // Predicated region
        $region41: #{tpu_custom_call.1} parent=23 // pred_check
          %p391 = pneg %p189
        $region42: #{tpu_custom_call.1} parent=23 // pred_check_branch
          %393 = sbr.rel (%p391) target = $region44
        $region43: #{tpu_custom_call.1} parent=23 // pred_region
          %s394 = sand.u32 %s179, 1
          %s395 = scalar_lea.sflag [#allocation6], %s394
          %s396 = sand.u32 %s179, 1
          %s397 = scalar_lea.vmem [#allocation5], %s396
          %s399 = ssub.s32 16, 16
          %400 = vsyncadd %s395, %s399
          %s401 = smul.addr %s23, 16
          %s402 = scalar_lea.hbm %s6, %s401
          %s404 = sshll.u32 %s397, 4
          %s405 = int_to_ptr.vmem [resolvable:$true] %s404
          %407 = dma.hbm_to_vmem [thread:$0]  %s402, 16, %s405, %s395
        $region44: #{tpu_custom_call.1} parent=23 // pred_fallthru
          _
        // Predicated region
        $region45: #{tpu_custom_call.1} parent=23 // pred_check
          %p408 = pneg %p215
        $region46: #{tpu_custom_call.1} parent=23 // pred_check_branch
          %410 = sbr.rel (%p408) target = $region48
        $region47: #{tpu_custom_call.1} parent=23 // pred_region
          %p411 = scmp.lt.s32.totalorder %s23, 7
          %s412 = scalar_select %p411, %s23, 7
          %s413 = smul.addr %s412, 4
          %s414 = scalar_lea.vmem %s7, %s413
        $region48: #{tpu_custom_call.1} parent=23 // pred_fallthru
          _
        // Predicated region
        $region49: #{tpu_custom_call.1} parent=23 // pred_check
          %p415 = pneg %p241
        $region50: #{tpu_custom_call.1} parent=23 // pred_check_branch
          %417 = sbr.rel (%p415) target = $region52
        $region51: #{tpu_custom_call.1} parent=23 // pred_region
          %p418 = scmp.lt.s32.totalorder %s23, 7
          %s419 = scalar_select %p418, %s23, 7
          %s420 = smul.addr %s419, 2
          %s421 = smul.addr %s420, 8
          %s422 = scalar_lea.vmem %s8, %s421
        $region52: #{tpu_custom_call.1} parent=23 // pred_fallthru
          _
        // Predicated region
        $region53: #{tpu_custom_call.1} parent=23 // pred_check
          %p423 = pneg %p267
        $region54: #{tpu_custom_call.1} parent=23 // pred_check_branch
          %425 = sbr.rel (%p423) target = $region56
        $region55: #{tpu_custom_call.1} parent=23 // pred_region
          %p426 = scmp.lt.s32.totalorder %s23, 7
          %s427 = scalar_select %p426, %s23, 7
          %s428 = smul.addr %s427, 2
          %s429 = smul.addr %s428, 8
          %s430 = scalar_lea.vmem %s9, %s429
        $region56: #{tpu_custom_call.1} parent=23 // pred_fallthru
          _
        // Predicated region
        $region57: #{tpu_custom_call.1} parent=23 // pred_check
          %p431 = pneg %p293
        $region58: #{tpu_custom_call.1} parent=23 // pred_check_branch
          %433 = sbr.rel (%p431) target = $region60
        $region59: #{tpu_custom_call.1} parent=23 // pred_region
          %p434 = scmp.lt.s32.totalorder %s23, 7
          %s435 = scalar_select %p434, %s23, 7
          %s436 = scalar_lea.vmem %s10, %s435
        $region60: #{tpu_custom_call.1} parent=23 // pred_fallthru
          _
      $region24: #{tpu_custom_call.1} parent=5 // pred_fallthru
        _
      %p437 = scmp.le.s32.totalorder 1, %s23
      %p438 = scmp.lt.s32.totalorder %s23, 9
      %p439 = pnand %p437, %p438
      %p440 = pneg %p439
      // Predicated region
      $region61: #{tpu_custom_call.1} parent=5 // pred_check
        _
      $region62: #{tpu_custom_call.1} parent=5 // pred_check_branch
        %442 = sbr.rel (%p439) target = $region64
      $region63: #{tpu_custom_call.1} parent=5 // pred_region
        %s443 = ssub.s32 %s23, 1
        %s444 = sand.u32 %s104, 1
        %s445 = scalar_lea.sflag [#allocation4], %s444
        %s446 = sand.u32 %s104, 1
        %s447 = scalar_lea.vmem [#allocation3], %s446
        // Predicated region
        $region65: #{tpu_custom_call.1} parent=63 // pred_check
          %p448 = pneg %p117
        $region66: #{tpu_custom_call.1} parent=63 // pred_check_branch
          %450 = sbr.rel (%p448) target = $region68
        $region67: #{tpu_custom_call.1} parent=63 // pred_region
          %451 = dma.done %s445, 16
        $region68: #{tpu_custom_call.1} parent=63 // pred_fallthru
          _
        %s452 = sand.u32 %s182, 1
        %s453 = scalar_lea.sflag [#allocation6], %s452
        %s454 = sand.u32 %s182, 1
        %s455 = scalar_lea.vmem [#allocation5], %s454
        // Predicated region
        $region69: #{tpu_custom_call.1} parent=63 // pred_check
          %p456 = pneg %p195
        $region70: #{tpu_custom_call.1} parent=63 // pred_check_branch
          %458 = sbr.rel (%p456) target = $region72
        $region71: #{tpu_custom_call.1} parent=63 // pred_region
          %459 = dma.done %s453, 16
        $region72: #{tpu_custom_call.1} parent=63 // pred_fallthru
          _
        %p460 = pneg %p44
        %p461 = pneg %p41
        %p462 = pneg %p65
        %p463 = pneg %p62
        %p464 = scmp.lt.s32.totalorder %s28, 7
        %s465 = scalar_select %p464, %s28, 7
        %s466 = smul.addr %s465, 4
        %s467 = smul.addr %s466, 8
        %s468 = scalar_lea.vmem %s2, %s467
        %p469 = pneg %p91
        %p470 = pneg %p88
        %s471 = sand.u32 %s104, 1
        %s472 = scalar_lea.sflag [#allocation4], %s471
        %s473 = sand.u32 %s104, 1
        %s474 = scalar_lea.vmem [#allocation3], %s473
        %p475 = pneg %p117
        %p476 = pneg %p114
        %p477 = scmp.lt.s32.totalorder %s28, 7
        %s478 = scalar_select %p477, %s28, 7
        %s479 = smul.addr %s478, 4
        %s480 = smul.addr %s479, 8
        %s481 = scalar_lea.vmem %s4, %s480
        %p482 = pneg %p143
        %p483 = pneg %p140
        %p484 = scmp.lt.s32.totalorder %s28, 7
        %s485 = scalar_select %p484, %s28, 7
        %s486 = smul.addr %s485, 18
        %s487 = smul.addr %s486, 8
        %s488 = scalar_lea.vmem %s5, %s487
        %p489 = pneg %p169
        %p490 = pneg %p166
        %s491 = sand.u32 %s182, 1
        %s492 = scalar_lea.sflag [#allocation6], %s491
        %s493 = sand.u32 %s182, 1
        %s494 = scalar_lea.vmem [#allocation5], %s493
        %p495 = pneg %p195
        %p496 = pneg %p192
        %p497 = scmp.lt.s32.totalorder %s28, 7
        %s498 = scalar_select %p497, %s28, 7
        %s499 = smul.addr %s498, 4
        %s500 = scalar_lea.vmem %s7, %s499
        %p501 = pneg %p221
        %p502 = pneg %p218
        %p503 = scmp.lt.s32.totalorder %s28, 7
        %s504 = scalar_select %p503, %s28, 7
        %s505 = smul.addr %s504, 2
        %s506 = smul.addr %s505, 8
        %s507 = scalar_lea.vmem %s8, %s506
        %p508 = pneg %p247
        %p509 = pneg %p244
        %p510 = scmp.lt.s32.totalorder %s28, 7
        %s511 = scalar_select %p510, %s28, 7
        %s512 = smul.addr %s511, 2
        %s513 = smul.addr %s512, 8
        %s514 = scalar_lea.vmem %s9, %s513
        %p515 = pneg %p273
        %p516 = pneg %p270
        %p517 = scmp.lt.s32.totalorder %s28, 7
        %s518 = scalar_select %p517, %s28, 7
        %s519 = scalar_lea.vmem %s10, %s518
        %p520 = pneg %p299
        %p521 = pneg %p296
        %p522 = pneg %p325
        %p523 = pneg %p322
        %p524 = scmp.lt.s32.totalorder %s28, 7
        %s525 = scalar_select %p524, %s28, 7
        %s526 = smul.addr %s525, 64
        %s527 = smul.addr %s526, 8
        %s528 = scalar_lea.vmem %s11, %s527
        %p529 = scmp.lt.s32.totalorder %s28, 7
        %s530 = scalar_select %p529, %s28, 7
        %s531 = smul.addr %s530, 4
        %s532 = smul.addr %s531, 8
        %s533 = scalar_lea.vmem %s2, %s532
        %p534 = scmp.lt.s32.totalorder %s28, 7
        %s535 = scalar_select %p534, %s28, 7
        %s536 = smul.addr %s535, 4
        %s537 = smul.addr %s536, 8
        %s538 = scalar_lea.vmem %s4, %s537
        %p539 = scmp.lt.s32.totalorder %s28, 7
        %s540 = scalar_select %p539, %s28, 7
        %s541 = smul.addr %s540, 18
        %s542 = smul.addr %s541, 8
        %s543 = scalar_lea.vmem %s5, %s542
        %p544 = scmp.lt.s32.totalorder %s28, 7
        %s545 = scalar_select %p544, %s28, 7
        %s546 = smul.addr %s545, 4
        %s547 = scalar_lea.vmem %s7, %s546
        %p548 = scmp.lt.s32.totalorder %s28, 7
        %s549 = scalar_select %p548, %s28, 7
        %s550 = smul.addr %s549, 2
        %s551 = smul.addr %s550, 8
        %s552 = scalar_lea.vmem %s8, %s551
        %p553 = scmp.lt.s32.totalorder %s28, 7
        %s554 = scalar_select %p553, %s28, 7
        %s555 = smul.addr %s554, 2
        %s556 = smul.addr %s555, 8
        %s557 = scalar_lea.vmem %s9, %s556
        %p558 = scmp.lt.s32.totalorder %s28, 7
        %s559 = scalar_select %p558, %s28, 7
        %s560 = scalar_lea.vmem %s10, %s559
        %p561 = scmp.lt.s32.totalorder %s28, 7
        %s562 = scalar_select %p561, %s28, 7
        %s563 = smul.addr %s562, 64
        %s564 = smul.addr %s563, 8
        %s565 = scalar_lea.vmem %s11, %s564
        %v566 = vld [vmem:[%s0] sm:$0xff]
        %v567 = vld [vmem:[%s0 + $0x8] sm:$0xff]
        %v568 = vld [vmem:[%s0 + $0x10] sm:$0xff]
        %v569 = vld [vmem:[%s0 + $0x18] sm:$0xff]
        %v570 = vld [vmem:[%s0 + $0x20] sm:$0xff]
        %v571 = vld [vmem:[%s0 + $0x28] sm:$0xff]
        %v572 = vld [vmem:[%s0 + $0x30] sm:$0xff]
        %v573 = vld [vmem:[%s0 + $0x38] sm:$0xff]
        %v574 = vld [vmem:[%s0 + $0x40] sm:$0xff]
        %v575 = vld [vmem:[%s0 + $0x48] sm:$0xff]
        %v576 = vld [vmem:[%s0 + $0x50] sm:$0xff]
        %v577 = vld [vmem:[%s0 + $0x58] sm:$0xff]
        %v578 = vld [vmem:[%s0 + $0x60] sm:$0xff]
        %v579 = vld [vmem:[%s0 + $0x68] sm:$0xff]
        %v580 = vld [vmem:[%s0 + $0x70] sm:$0xff]
        %v581 = vld [vmem:[%s0 + $0x78] sm:$0xff]
        %v582 = vld [vmem:[%s0 + $0x80] sm:$0xff]
        %v583 = vld [vmem:[%s0 + $0x88] sm:$0xff]
        %v584 = vld [vmem:[%s0 + $0x90] sm:$0xff]
        %v585 = vld [vmem:[%s0 + $0x98] sm:$0xff]
        %v586 = vld [vmem:[%s0 + $0xa0] sm:$0xff]
        %v587 = vld [vmem:[%s0 + $0xa8] sm:$0xff]
        %v588 = vld [vmem:[%s0 + $0xb0] sm:$0xff]
        %v589 = vld [vmem:[%s0 + $0xb8] sm:$0xff]
        %v590 = vld [vmem:[%s0 + $0xc0] sm:$0xff]
        %v591 = vld [vmem:[%s0 + $0xc8] sm:$0xff]
        %v592 = vld [vmem:[%s0 + $0xd0] sm:$0xff]
        %v593 = vld [vmem:[%s0 + $0xd8] sm:$0xff]
        %v594 = vld [vmem:[%s0 + $0xe0] sm:$0xff]
        %v595 = vld [vmem:[%s0 + $0xe8] sm:$0xff]
        %v596 = vld [vmem:[%s0 + $0xf0] sm:$0xff]
        %v597 = vld [vmem:[%s0 + $0xf8] sm:$0xff]
        %v598 = vld [vmem:[%s0 + $0x100] sm:$0xff]
        %v599 = vld [vmem:[%s0 + $0x108] sm:$0xff]
        %v600 = vld [vmem:[%s0 + $0x110] sm:$0xff]
        %v601 = vld [vmem:[%s0 + $0x118] sm:$0xff]
        %v602 = vld [vmem:[%s0 + $0x120] sm:$0xff]
        %v603 = vld [vmem:[%s0 + $0x128] sm:$0xff]
        %v604 = vld [vmem:[%s0 + $0x130] sm:$0xff]
        %v605 = vld [vmem:[%s0 + $0x138] sm:$0xff]
        %v606 = vld [vmem:[%s0 + $0x140] sm:$0xff]
        %v607 = vld [vmem:[%s0 + $0x148] sm:$0xff]
        %v608 = vld [vmem:[%s0 + $0x150] sm:$0xff]
        %v609 = vld [vmem:[%s0 + $0x158] sm:$0xff]
        %v610 = vld [vmem:[%s0 + $0x160] sm:$0xff]
        %v611 = vld [vmem:[%s0 + $0x168] sm:$0xff]
        %v612 = vld [vmem:[%s0 + $0x170] sm:$0xff]
        %v613 = vld [vmem:[%s0 + $0x178] sm:$0xff]
        %v614 = vld [vmem:[%s0 + $0x180] sm:$0xff]
        %v615 = vld [vmem:[%s0 + $0x188] sm:$0xff]
        %v616 = vld [vmem:[%s0 + $0x190] sm:$0xff]
        %v617 = vld [vmem:[%s0 + $0x198] sm:$0xff]
        %v618 = vld [vmem:[%s0 + $0x1a0] sm:$0xff]
        %v619 = vld [vmem:[%s0 + $0x1a8] sm:$0xff]
        %v620 = vld [vmem:[%s0 + $0x1b0] sm:$0xff]
        %v621 = vld [vmem:[%s0 + $0x1b8] sm:$0xff]
        %v622 = vld [vmem:[%s0 + $0x1c0] sm:$0xff]
        %v623 = vld [vmem:[%s0 + $0x1c8] sm:$0xff]
        %v624 = vld [vmem:[%s0 + $0x1d0] sm:$0xff]
        %v625 = vld [vmem:[%s0 + $0x1d8] sm:$0xff]
        %v626 = vld [vmem:[%s0 + $0x1e0] sm:$0xff]
        %v627 = vld [vmem:[%s0 + $0x1e8] sm:$0xff]
        %v628 = vld [vmem:[%s0 + $0x1f0] sm:$0xff]
        %v629 = vld [vmem:[%s0 + $0x1f8] sm:$0xff]
        %v630 = vld [vmem:[%s1] sm:$0xff]
        %v631 = vld [vmem:[%s1 + $0x8] sm:$0xff]
        %v632 = vld [vmem:[%s1 + $0x10] sm:$0xff]
        %v633 = vld [vmem:[%s1 + $0x18] sm:$0xff]
        %v634 = vld [vmem:[%s1 + $0x20] sm:$0xff]
        %v635 = vld [vmem:[%s1 + $0x28] sm:$0xff]
        %v636 = vld [vmem:[%s1 + $0x30] sm:$0xff]
        %v637 = vld [vmem:[%s1 + $0x38] sm:$0xff]
        %v638 = vld [vmem:[%s1 + $0x40] sm:$0xff]
        %v639 = vld [vmem:[%s1 + $0x48] sm:$0xff]
        %v640 = vld [vmem:[%s1 + $0x50] sm:$0xff]
        %v641 = vld [vmem:[%s1 + $0x58] sm:$0xff]
        %v642 = vld [vmem:[%s1 + $0x60] sm:$0xff]
        %v643 = vld [vmem:[%s1 + $0x68] sm:$0xff]
        %v644 = vld [vmem:[%s1 + $0x70] sm:$0xff]
        %v645 = vld [vmem:[%s1 + $0x78] sm:$0xff]
        %v646 = vld [vmem:[%s1 + $0x80] sm:$0xff]
        %v647 = vld [vmem:[%s1 + $0x88] sm:$0xff]
        %v648 = vld [vmem:[%s1 + $0x90] sm:$0xff]
        %v649 = vld [vmem:[%s1 + $0x98] sm:$0xff]
        %v650 = vld [vmem:[%s1 + $0xa0] sm:$0xff]
        %v651 = vld [vmem:[%s1 + $0xa8] sm:$0xff]
        %v652 = vld [vmem:[%s1 + $0xb0] sm:$0xff]
        %v653 = vld [vmem:[%s1 + $0xb8] sm:$0xff]
        %v654 = vld [vmem:[%s1 + $0xc0] sm:$0xff]
        %v655 = vld [vmem:[%s1 + $0xc8] sm:$0xff]
        %v656 = vld [vmem:[%s1 + $0xd0] sm:$0xff]
        %v657 = vld [vmem:[%s1 + $0xd8] sm:$0xff]
        %v658 = vld [vmem:[%s1 + $0xe0] sm:$0xff]
        %v659 = vld [vmem:[%s1 + $0xe8] sm:$0xff]
        %v660 = vld [vmem:[%s1 + $0xf0] sm:$0xff]
        %v661 = vld [vmem:[%s1 + $0xf8] sm:$0xff]
        %v662 = vld [vmem:[%s1 + $0x100] sm:$0xff]
        %v663 = vld [vmem:[%s1 + $0x108] sm:$0xff]
        %v664 = vld [vmem:[%s1 + $0x110] sm:$0xff]
        %v665 = vld [vmem:[%s1 + $0x118] sm:$0xff]
        %v666 = vld [vmem:[%s1 + $0x120] sm:$0xff]
        %v667 = vld [vmem:[%s1 + $0x128] sm:$0xff]
        %v668 = vld [vmem:[%s1 + $0x130] sm:$0xff]
        %v669 = vld [vmem:[%s1 + $0x138] sm:$0xff]
        %v670 = vld [vmem:[%s1 + $0x140] sm:$0xff]
        %v671 = vld [vmem:[%s1 + $0x148] sm:$0xff]
        %v672 = vld [vmem:[%s1 + $0x150] sm:$0xff]
        %v673 = vld [vmem:[%s1 + $0x158] sm:$0xff]
        %v674 = vld [vmem:[%s1 + $0x160] sm:$0xff]
        %v675 = vld [vmem:[%s1 + $0x168] sm:$0xff]
        %v676 = vld [vmem:[%s1 + $0x170] sm:$0xff]
        %v677 = vld [vmem:[%s1 + $0x178] sm:$0xff]
        %v678 = vld [vmem:[%s1 + $0x180] sm:$0xff]
        %v679 = vld [vmem:[%s1 + $0x188] sm:$0xff]
        %v680 = vld [vmem:[%s1 + $0x190] sm:$0xff]
        %v681 = vld [vmem:[%s1 + $0x198] sm:$0xff]
        %v682 = vld [vmem:[%s1 + $0x1a0] sm:$0xff]
        %v683 = vld [vmem:[%s1 + $0x1a8] sm:$0xff]
        %v684 = vld [vmem:[%s1 + $0x1b0] sm:$0xff]
        %v685 = vld [vmem:[%s1 + $0x1b8] sm:$0xff]
        %v686 = vld [vmem:[%s1 + $0x1c0] sm:$0xff]
        %v687 = vld [vmem:[%s1 + $0x1c8] sm:$0xff]
        %v688 = vld [vmem:[%s1 + $0x1d0] sm:$0xff]
        %v689 = vld [vmem:[%s1 + $0x1d8] sm:$0xff]
        %v690 = vld [vmem:[%s1 + $0x1e0] sm:$0xff]
        %v691 = vld [vmem:[%s1 + $0x1e8] sm:$0xff]
        %v692 = vld [vmem:[%s1 + $0x1f0] sm:$0xff]
        %v693 = vld [vmem:[%s1 + $0x1f8] sm:$0xff]
        %v694 = vld [vmem:[%s533] sm:$0xff]
        %v695 = vld [vmem:[%s533 + $0x8] sm:$0xff]
        %v696 = vld [vmem:[%s533 + $0x10] sm:$0xff]
        %v697 = vld [vmem:[%s533 + $0x18] sm:$0x7]
        %v698 = vld [vmem:[%s447] sm:$0x1]
        %v699 = vld [vmem:[%s538] sm:$0xff]
        %v700 = vld [vmem:[%s538 + $0x8] sm:$0xff]
        %v701 = vld [vmem:[%s538 + $0x10] sm:$0xff]
        %v702 = vld [vmem:[%s538 + $0x18] sm:$0x7]
        %v703 = vld [vmem:[%s543] sm:$0xff]
        %v704 = vld [vmem:[%s543 + $0x8] sm:$0xff]
        %v705 = vld [vmem:[%s543 + $0x10] sm:$0xff]
        %v706 = vld [vmem:[%s543 + $0x18] sm:$0xff]
        %v707 = vld [vmem:[%s543 + $0x20] sm:$0xff]
        %v708 = vld [vmem:[%s543 + $0x28] sm:$0xff]
        %v709 = vld [vmem:[%s543 + $0x30] sm:$0xff]
        %v710 = vld [vmem:[%s543 + $0x38] sm:$0xff]
        %v711 = vld [vmem:[%s543 + $0x40] sm:$0xff]
        %v712 = vld [vmem:[%s543 + $0x48] sm:$0xff]
        %v713 = vld [vmem:[%s543 + $0x50] sm:$0xff]
        %v714 = vld [vmem:[%s543 + $0x58] sm:$0xff]
        %v715 = vld [vmem:[%s543 + $0x60] sm:$0xff]
        %v716 = vld [vmem:[%s543 + $0x68] sm:$0xff]
        %v717 = vld [vmem:[%s543 + $0x70] sm:$0xff]
        %v718 = vld [vmem:[%s543 + $0x78] sm:$0xff]
        %v719 = vld [vmem:[%s543 + $0x80] sm:$0xff]
        %v720 = vld [vmem:[%s543 + $0x88] sm:$0xff]
        %v721 = vld [vmem:[%s455] sm:$0x1]
        %v722 = vld [vmem:[%s547] sm:$0x7]
        %v723 = vld [vmem:[%s552] sm:$0xff]
        %v724 = vld [vmem:[%s552 + $0x8] sm:$0xff]
        %v725 = vld [vmem:[%s557] sm:$0xff]
        %v726 = vld [vmem:[%s557 + $0x8] sm:$0xff]
        %v727 = vld [vmem:[%s560] sm:$0x1]
        %v729 = vlaneseq
        %v730 = vshrl.u32 %v729, 7
        %v731 = vsub.s32 0, %v730
        %v732 = vrot.slane %v698, %v731
        %vm734 = vcmask 220160
        %v736 = vsel %vm734, %v566, 0
        %v739 = vsel %vm734, %v567, 0
        %v742 = vsel %vm734, %v568, 0
        %v745 = vsel %vm734, %v569, 0
        %v748 = vsel %vm734, %v570, 0
        %v751 = vsel %vm734, %v571, 0
        %v754 = vsel %vm734, %v572, 0
        %v757 = vsel %vm734, %v573, 0
        %v760 = vsel %vm734, %v574, 0
        %v763 = vsel %vm734, %v575, 0
        %v766 = vsel %vm734, %v576, 0
        %v769 = vsel %vm734, %v577, 0
        %v772 = vsel %vm734, %v578, 0
        %v775 = vsel %vm734, %v579, 0
        %v778 = vsel %vm734, %v580, 0
        %v781 = vsel %vm734, %v581, 0
        %v784 = vsel %vm734, %v582, 0
        %v787 = vsel %vm734, %v583, 0
        %v790 = vsel %vm734, %v584, 0
        %v793 = vsel %vm734, %v585, 0
        %v796 = vsel %vm734, %v586, 0
        %v799 = vsel %vm734, %v587, 0
        %v802 = vsel %vm734, %v588, 0
        %v805 = vsel %vm734, %v589, 0
        %v808 = vsel %vm734, %v590, 0
        %v811 = vsel %vm734, %v591, 0
        %v814 = vsel %vm734, %v592, 0
        %v817 = vsel %vm734, %v593, 0
        %v820 = vsel %vm734, %v594, 0
        %v823 = vsel %vm734, %v595, 0
        %v826 = vsel %vm734, %v596, 0
        %v829 = vsel %vm734, %v597, 0
        %v832 = vsel %vm734, %v598, 0
        %v835 = vsel %vm734, %v599, 0
        %v838 = vsel %vm734, %v600, 0
        %v841 = vsel %vm734, %v601, 0
        %v844 = vsel %vm734, %v602, 0
        %v847 = vsel %vm734, %v603, 0
        %v850 = vsel %vm734, %v604, 0
        %v853 = vsel %vm734, %v605, 0
        %v856 = vsel %vm734, %v606, 0
        %v859 = vsel %vm734, %v607, 0
        %v862 = vsel %vm734, %v608, 0
        %v865 = vsel %vm734, %v609, 0
        %v868 = vsel %vm734, %v610, 0
        %v871 = vsel %vm734, %v611, 0
        %v874 = vsel %vm734, %v612, 0
        %v877 = vsel %vm734, %v613, 0
        %v880 = vsel %vm734, %v614, 0
        %v883 = vsel %vm734, %v615, 0
        %v886 = vsel %vm734, %v616, 0
        %v889 = vsel %vm734, %v617, 0
        %v892 = vsel %vm734, %v618, 0
        %v895 = vsel %vm734, %v619, 0
        %v898 = vsel %vm734, %v620, 0
        %v901 = vsel %vm734, %v621, 0
        %v904 = vsel %vm734, %v622, 0
        %v907 = vsel %vm734, %v623, 0
        %v910 = vsel %vm734, %v624, 0
        %v913 = vsel %vm734, %v625, 0
        %v916 = vsel %vm734, %v626, 0
        %v919 = vsel %vm734, %v627, 0
        %v922 = vsel %vm734, %v628, 0
        %v925 = vsel %vm734, %v629, 0
        %vm927 = vcmask 1042432
        %v929 = vsel %vm927, %v697, 0
        %931 = vmatprep.subr.mxu0 0.0
        %932 = vmatpush1.msra.mxu0 %v694
        %933 = vmatprep.subr.mxu0 0.0
        %934 = vmatpush1.msra.mxu0 %v695
        %935 = vmatprep.subr.mxu0 0.0
        %936 = vmatpush1.msra.mxu0 %v696
        %937 = vmatprep.subr.mxu0 0.0
        %938 = vmatpush1.msra.mxu0 %v929
        %939 = vmatprep.subr.mxu0 0.0
        %940 = vmatpush1.msra.mxu0 0.0
        %941 = vmatprep.subr.mxu0 0.0
        %942 = vmatpush1.msra.mxu0 0.0
        %943 = vmatprep.subr.mxu0 0.0
        %944 = vmatpush1.msra.mxu0 0.0
        %945 = vmatprep.subr.mxu0 0.0
        %946 = vmatpush1.msra.mxu0 0.0
        %947 = vmatprep.subr.mxu0 0.0
        %948 = vmatpush1.msra.mxu0 0.0
        %949 = vmatprep.subr.mxu0 0.0
        %950 = vmatpush1.msra.mxu0 0.0
        %951 = vmatprep.subr.mxu0 0.0
        %952 = vmatpush1.msra.mxu0 0.0
        %953 = vmatprep.subr.mxu0 0.0
        %954 = vmatpush1.msra.mxu0 0.0
        %955 = vmatprep.subr.mxu0 0.0
        %956 = vmatpush1.msra.mxu0 0.0
        %957 = vmatprep.subr.mxu0 0.0
        %958 = vmatpush1.msra.mxu0 0.0
        %959 = vmatprep.subr.mxu0 0.0
        %960 = vmatpush1.msra.mxu0 0.0
        %961 = vmatprep.subr.mxu0 0.0
        %962 = vmatpush1.msra.mxu0 0.0
        %963 = vmatprep.subr.mxu0 0.0
        %964 = vmatpush1.msra.mxu0 0.0
        %965 = vmatprep.subr.mxu0 0.0
        %966 = vmatpush1.msra.mxu0 0.0
        %967 = vmatprep.subr.mxu0 0.0
        %968 = vmatpush1.msra.mxu0 0.0
        %969 = vmatprep.subr.mxu0 0.0
        %970 = vmatpush1.msra.mxu0 0.0
        %971 = vmatprep.subr.mxu0 0.0
        %972 = vmatpush1.msra.mxu0 0.0
        %973 = vmatprep.subr.mxu0 0.0
        %974 = vmatpush1.msra.mxu0 0.0
        %975 = vmatprep.subr.mxu0 0.0
        %976 = vmatpush1.msra.mxu0 0.0
        %977 = vmatprep.subr.mxu0 0.0
        %978 = vmatpush1.msra.mxu0 0.0
        %979 = vmatprep.subr.mxu0 0.0
        %980 = vmatpush1.msra.mxu0 0.0
        %981 = vmatprep.subr.mxu0 0.0
        %982 = vmatpush1.msra.mxu0 0.0
        %983 = vmatprep.subr.mxu0 0.0
        %984 = vmatpush1.msra.mxu0 0.0
        %985 = vmatprep.subr.mxu0 0.0
        %986 = vmatpush1.msra.mxu0 0.0
        %987 = vmatprep.subr.mxu0 0.0
        %988 = vmatpush1.msra.mxu0 0.0
        %989 = vmatprep.subr.mxu0 0.0
        %990 = vmatpush1.msra.mxu0 0.0
        %991 = vmatprep.subr.mxu0 0.0
        %992 = vmatpush1.msra.mxu0 0.0
        %993 = vmatprep.subr.mxu0 0.0
        %994 = vmatpush1.msra.mxu0 0.0
        %995 = vmatprep.mubr.f32.mxu0 0.0
        %996 = vmatmul.mubr.f32.gmra.mrb[0].mxu0 %v736
        %v997 = vpop.f32.mrb[0].mxu0
        %v998 = vadd.f32 %v732, %v997
        %v999 = vpop.f32.mrb[0].mxu0
        %1000 = vmatprep.mubr.f32.mxu0 0.0
        %1001 = vmatmul.mubr.f32.gmra.mrb[0].mxu0 %v739
        %v1002 = vpop.f32.mrb[0].mxu0
        %v1003 = vadd.f32 %v732, %v1002
        %v1004 = vpop.f32.mrb[0].mxu0
        %1005 = vmatprep.mubr.f32.mxu0 0.0
        %1006 = vmatmul.mubr.f32.gmra.mrb[0].mxu0 %v742
        %v1007 = vpop.f32.mrb[0].mxu0
        %v1008 = vadd.f32 %v732, %v1007
        %v1009 = vpop.f32.mrb[0].mxu0
        %1010 = vmatprep.mubr.f32.mxu0 0.0
        %1011 = vmatmul.mubr.f32.gmra.mrb[0].mxu0 %v745
        %v1012 = vpop.f32.mrb[0].mxu0
        %v1013 = vadd.f32 %v732, %v1012
        %v1014 = vpop.f32.mrb[0].mxu0
        %1015 = vmatprep.mubr.f32.mxu0 0.0
        %1016 = vmatmul.mubr.f32.gmra.mrb[0].mxu0 %v748
        %v1017 = vpop.f32.mrb[0].mxu0
        %v1018 = vadd.f32 %v732, %v1017
        %v1019 = vpop.f32.mrb[0].mxu0
        %1020 = vmatprep.mubr.f32.mxu0 0.0
        %1021 = vmatmul.mubr.f32.gmra.mrb[0].mxu0 %v751
        %v1022 = vpop.f32.mrb[0].mxu0
        %v1023 = vadd.f32 %v732, %v1022
        %v1024 = vpop.f32.mrb[0].mxu0
        %1025 = vmatprep.mubr.f32.mxu0 0.0
        %1026 = vmatmul.mubr.f32.gmra.mrb[0].mxu0 %v754
        %v1027 = vpop.f32.mrb[0].mxu0
        %v1028 = vadd.f32 %v732, %v1027
        %v1029 = vpop.f32.mrb[0].mxu0
        %1030 = vmatprep.mubr.f32.mxu0 0.0
        %1031 = vmatmul.mubr.f32.gmra.mrb[0].mxu0 %v757
        %v1032 = vpop.f32.mrb[0].mxu0
        %v1033 = vadd.f32 %v732, %v1032
        %v1034 = vpop.f32.mrb[0].mxu0
        %1035 = vmatprep.mubr.f32.mxu0 0.0
        %1036 = vmatmul.mubr.f32.gmra.mrb[0].mxu0 %v760
        %v1037 = vpop.f32.mrb[0].mxu0
        %v1038 = vadd.f32 %v732, %v1037
        %v1039 = vpop.f32.mrb[0].mxu0
        %1040 = vmatprep.mubr.f32.mxu0 0.0
        %1041 = vmatmul.mubr.f32.gmra.mrb[0].mxu0 %v763
        %v1042 = vpop.f32.mrb[0].mxu0
        %v1043 = vadd.f32 %v732, %v1042
        %v1044 = vpop.f32.mrb[0].mxu0
        %1045 = vmatprep.mubr.f32.mxu0 0.0
        %1046 = vmatmul.mubr.f32.gmra.mrb[0].mxu0 %v766
        %v1047 = vpop.f32.mrb[0].mxu0
        %v1048 = vadd.f32 %v732, %v1047
        %v1049 = vpop.f32.mrb[0].mxu0
        %1050 = vmatprep.mubr.f32.mxu0 0.0
        %1051 = vmatmul.mubr.f32.gmra.mrb[0].mxu0 %v769
        %v1052 = vpop.f32.mrb[0].mxu0
        %v1053 = vadd.f32 %v732, %v1052
        %v1054 = vpop.f32.mrb[0].mxu0
        %1055 = vmatprep.mubr.f32.mxu0 0.0
        %1056 = vmatmul.mubr.f32.gmra.mrb[0].mxu0 %v772
        %v1057 = vpop.f32.mrb[0].mxu0
        %v1058 = vadd.f32 %v732, %v1057
        %v1059 = vpop.f32.mrb[0].mxu0
        %1060 = vmatprep.mubr.f32.mxu0 0.0
        %1061 = vmatmul.mubr.f32.gmra.mrb[0].mxu0 %v775
        %v1062 = vpop.f32.mrb[0].mxu0
        %v1063 = vadd.f32 %v732, %v1062
        %v1064 = vpop.f32.mrb[0].mxu0
        %1065 = vmatprep.mubr.f32.mxu0 0.0
        %1066 = vmatmul.mubr.f32.gmra.mrb[0].mxu0 %v778
        %v1067 = vpop.f32.mrb[0].mxu0
        %v1068 = vadd.f32 %v732, %v1067
        %v1069 = vpop.f32.mrb[0].mxu0
        %1070 = vmatprep.mubr.f32.mxu0 0.0
        %1071 = vmatmul.mubr.f32.gmra.mrb[0].mxu0 %v781
        %v1072 = vpop.f32.mrb[0].mxu0
        %v1073 = vadd.f32 %v732, %v1072
        %v1074 = vpop.f32.mrb[0].mxu0
        %1075 = vmatprep.mubr.f32.mxu0 0.0
        %1076 = vmatmul.mubr.f32.gmra.mrb[0].mxu0 %v784
        %v1077 = vpop.f32.mrb[0].mxu0
        %v1078 = vadd.f32 %v732, %v1077
        %v1079 = vpop.f32.mrb[0].mxu0
        %1080 = vmatprep.mubr.f32.mxu0 0.0
        %1081 = vmatmul.mubr.f32.gmra.mrb[0].mxu0 %v787
        %v1082 = vpop.f32.mrb[0].mxu0
        %v1083 = vadd.f32 %v732, %v1082
        %v1084 = vpop.f32.mrb[0].mxu0
        %1085 = vmatprep.mubr.f32.mxu0 0.0
        %1086 = vmatmul.mubr.f32.gmra.mrb[0].mxu0 %v790
        %v1087 = vpop.f32.mrb[0].mxu0
        %v1088 = vadd.f32 %v732, %v1087
        %v1089 = vpop.f32.mrb[0].mxu0
        %1090 = vmatprep.mubr.f32.mxu0 0.0
        %1091 = vmatmul.mubr.f32.gmra.mrb[0].mxu0 %v793
        %v1092 = vpop.f32.mrb[0].mxu0
        %v1093 = vadd.f32 %v732, %v1092
        %v1094 = vpop.f32.mrb[0].mxu0
        %1095 = vmatprep.mubr.f32.mxu0 0.0
        %1096 = vmatmul.mubr.f32.gmra.mrb[0].mxu0 %v796
        %v1097 = vpop.f32.mrb[0].mxu0
        %v1098 = vadd.f32 %v732, %v1097
        %v1099 = vpop.f32.mrb[0].mxu0
        %1100 = vmatprep.mubr.f32.mxu0 0.0
        %1101 = vmatmul.mubr.f32.gmra.mrb[0].mxu0 %v799
        %v1102 = vpop.f32.mrb[0].mxu0
        %v1103 = vadd.f32 %v732, %v1102
        %v1104 = vpop.f32.mrb[0].mxu0
        %1105 = vmatprep.mubr.f32.mxu0 0.0
        %1106 = vmatmul.mubr.f32.gmra.mrb[0].mxu0 %v802
        %v1107 = vpop.f32.mrb[0].mxu0
        %v1108 = vadd.f32 %v732, %v1107
        %v1109 = vpop.f32.mrb[0].mxu0
        %1110 = vmatprep.mubr.f32.mxu0 0.0
        %1111 = vmatmul.mubr.f32.gmra.mrb[0].mxu0 %v805
        %v1112 = vpop.f32.mrb[0].mxu0
        %v1113 = vadd.f32 %v732, %v1112
        %v1114 = vpop.f32.mrb[0].mxu0
        %1115 = vmatprep.mubr.f32.mxu0 0.0
        %1116 = vmatmul.mubr.f32.gmra.mrb[0].mxu0 %v808
        %v1117 = vpop.f32.mrb[0].mxu0
        %v1118 = vadd.f32 %v732, %v1117
        %v1119 = vpop.f32.mrb[0].mxu0
        %1120 = vmatprep.mubr.f32.mxu0 0.0
        %1121 = vmatmul.mubr.f32.gmra.mrb[0].mxu0 %v811
        %v1122 = vpop.f32.mrb[0].mxu0
        %v1123 = vadd.f32 %v732, %v1122
        %v1124 = vpop.f32.mrb[0].mxu0
        %1125 = vmatprep.mubr.f32.mxu0 0.0
        %1126 = vmatmul.mubr.f32.gmra.mrb[0].mxu0 %v814
        %v1127 = vpop.f32.mrb[0].mxu0
        %v1128 = vadd.f32 %v732, %v1127
        %v1129 = vpop.f32.mrb[0].mxu0
        %1130 = vmatprep.mubr.f32.mxu0 0.0
        %1131 = vmatmul.mubr.f32.gmra.mrb[0].mxu0 %v817
        %v1132 = vpop.f32.mrb[0].mxu0
        %v1133 = vadd.f32 %v732, %v1132
        %v1134 = vpop.f32.mrb[0].mxu0
        %1135 = vmatprep.mubr.f32.mxu0 0.0
        %1136 = vmatmul.mubr.f32.gmra.mrb[0].mxu0 %v820
        %v1137 = vpop.f32.mrb[0].mxu0
        %v1138 = vadd.f32 %v732, %v1137
        %v1139 = vpop.f32.mrb[0].mxu0
        %1140 = vmatprep.mubr.f32.mxu0 0.0
        %1141 = vmatmul.mubr.f32.gmra.mrb[0].mxu0 %v823
        %v1142 = vpop.f32.mrb[0].mxu0
        %v1143 = vadd.f32 %v732, %v1142
        %v1144 = vpop.f32.mrb[0].mxu0
        %1145 = vmatprep.mubr.f32.mxu0 0.0
        %1146 = vmatmul.mubr.f32.gmra.mrb[0].mxu0 %v826
        %v1147 = vpop.f32.mrb[0].mxu0
        %v1148 = vadd.f32 %v732, %v1147
        %v1149 = vpop.f32.mrb[0].mxu0
        %1150 = vmatprep.mubr.f32.mxu0 0.0
        %1151 = vmatmul.mubr.f32.gmra.mrb[0].mxu0 %v829
        %v1152 = vpop.f32.mrb[0].mxu0
        %v1153 = vadd.f32 %v732, %v1152
        %v1154 = vpop.f32.mrb[0].mxu0
        %1155 = vmatprep.mubr.f32.mxu0 0.0
        %1156 = vmatmul.mubr.f32.gmra.mrb[0].mxu0 %v832
        %v1157 = vpop.f32.mrb[0].mxu0
        %v1158 = vadd.f32 %v732, %v1157
        %v1159 = vpop.f32.mrb[0].mxu0
        %1160 = vmatprep.mubr.f32.mxu0 0.0
        %1161 = vmatmul.mubr.f32.gmra.mrb[0].mxu0 %v835
        %v1162 = vpop.f32.mrb[0].mxu0
        %v1163 = vadd.f32 %v732, %v1162
        %v1164 = vpop.f32.mrb[0].mxu0
        %1165 = vmatprep.mubr.f32.mxu0 0.0
        %1166 = vmatmul.mubr.f32.gmra.mrb[0].mxu0 %v838
        %v1167 = vpop.f32.mrb[0].mxu0
        %v1168 = vadd.f32 %v732, %v1167
        %v1169 = vpop.f32.mrb[0].mxu0
        %1170 = vmatprep.mubr.f32.mxu0 0.0
        %1171 = vmatmul.mubr.f32.gmra.mrb[0].mxu0 %v841
        %v1172 = vpop.f32.mrb[0].mxu0
        %v1173 = vadd.f32 %v732, %v1172
        %v1174 = vpop.f32.mrb[0].mxu0
        %1175 = vmatprep.mubr.f32.mxu0 0.0
        %1176 = vmatmul.mubr.f32.gmra.mrb[0].mxu0 %v844
        %v1177 = vpop.f32.mrb[0].mxu0
        %v1178 = vadd.f32 %v732, %v1177
        %v1179 = vpop.f32.mrb[0].mxu0
        %1180 = vmatprep.mubr.f32.mxu0 0.0
        %1181 = vmatmul.mubr.f32.gmra.mrb[0].mxu0 %v847
        %v1182 = vpop.f32.mrb[0].mxu0
        %v1183 = vadd.f32 %v732, %v1182
        %v1184 = vpop.f32.mrb[0].mxu0
        %1185 = vmatprep.mubr.f32.mxu0 0.0
        %1186 = vmatmul.mubr.f32.gmra.mrb[0].mxu0 %v850
        %v1187 = vpop.f32.mrb[0].mxu0
        %v1188 = vadd.f32 %v732, %v1187
        %v1189 = vpop.f32.mrb[0].mxu0
        %1190 = vmatprep.mubr.f32.mxu0 0.0
        %1191 = vmatmul.mubr.f32.gmra.mrb[0].mxu0 %v853
        %v1192 = vpop.f32.mrb[0].mxu0
        %v1193 = vadd.f32 %v732, %v1192
        %v1194 = vpop.f32.mrb[0].mxu0
        %1195 = vmatprep.mubr.f32.mxu0 0.0
        %1196 = vmatmul.mubr.f32.gmra.mrb[0].mxu0 %v856
        %v1197 = vpop.f32.mrb[0].mxu0
        %v1198 = vadd.f32 %v732, %v1197
        %v1199 = vpop.f32.mrb[0].mxu0
        %1200 = vmatprep.mubr.f32.mxu0 0.0
        %1201 = vmatmul.mubr.f32.gmra.mrb[0].mxu0 %v859
        %v1202 = vpop.f32.mrb[0].mxu0
        %v1203 = vadd.f32 %v732, %v1202
        %v1204 = vpop.f32.mrb[0].mxu0
        %1205 = vmatprep.mubr.f32.mxu0 0.0
        %1206 = vmatmul.mubr.f32.gmra.mrb[0].mxu0 %v862
        %v1207 = vpop.f32.mrb[0].mxu0
        %v1208 = vadd.f32 %v732, %v1207
        %v1209 = vpop.f32.mrb[0].mxu0
        %1210 = vmatprep.mubr.f32.mxu0 0.0
        %1211 = vmatmul.mubr.f32.gmra.mrb[0].mxu0 %v865
        %v1212 = vpop.f32.mrb[0].mxu0
        %v1213 = vadd.f32 %v732, %v1212
        %v1214 = vpop.f32.mrb[0].mxu0
        %1215 = vmatprep.mubr.f32.mxu0 0.0
        %1216 = vmatmul.mubr.f32.gmra.mrb[0].mxu0 %v868
        %v1217 = vpop.f32.mrb[0].mxu0
        %v1218 = vadd.f32 %v732, %v1217
        %v1219 = vpop.f32.mrb[0].mxu0
        %1220 = vmatprep.mubr.f32.mxu0 0.0
        %1221 = vmatmul.mubr.f32.gmra.mrb[0].mxu0 %v871
        %v1222 = vpop.f32.mrb[0].mxu0
        %v1223 = vadd.f32 %v732, %v1222
        %v1224 = vpop.f32.mrb[0].mxu0
        %1225 = vmatprep.mubr.f32.mxu0 0.0
        %1226 = vmatmul.mubr.f32.gmra.mrb[0].mxu0 %v874
        %v1227 = vpop.f32.mrb[0].mxu0
        %v1228 = vadd.f32 %v732, %v1227
        %v1229 = vpop.f32.mrb[0].mxu0
        %1230 = vmatprep.mubr.f32.mxu0 0.0
        %1231 = vmatmul.mubr.f32.gmra.mrb[0].mxu0 %v877
        %v1232 = vpop.f32.mrb[0].mxu0
        %v1233 = vadd.f32 %v732, %v1232
        %v1234 = vpop.f32.mrb[0].mxu0
        %1235 = vmatprep.mubr.f32.mxu0 0.0
        %1236 = vmatmul.mubr.f32.gmra.mrb[0].mxu0 %v880
        %v1237 = vpop.f32.mrb[0].mxu0
        %v1238 = vadd.f32 %v732, %v1237
        %v1239 = vpop.f32.mrb[0].mxu0
        %1240 = vmatprep.mubr.f32.mxu0 0.0
        %1241 = vmatmul.mubr.f32.gmra.mrb[0].mxu0 %v883
        %v1242 = vpop.f32.mrb[0].mxu0
        %v1243 = vadd.f32 %v732, %v1242
        %v1244 = vpop.f32.mrb[0].mxu0
        %1245 = vmatprep.mubr.f32.mxu0 0.0
        %1246 = vmatmul.mubr.f32.gmra.mrb[0].mxu0 %v886
        %v1247 = vpop.f32.mrb[0].mxu0
        %v1248 = vadd.f32 %v732, %v1247
        %v1249 = vpop.f32.mrb[0].mxu0
        %1250 = vmatprep.mubr.f32.mxu0 0.0
        %1251 = vmatmul.mubr.f32.gmra.mrb[0].mxu0 %v889
        %v1252 = vpop.f32.mrb[0].mxu0
        %v1253 = vadd.f32 %v732, %v1252
        %v1254 = vpop.f32.mrb[0].mxu0
        %1255 = vmatprep.mubr.f32.mxu0 0.0
        %1256 = vmatmul.mubr.f32.gmra.mrb[0].mxu0 %v892
        %v1257 = vpop.f32.mrb[0].mxu0
        %v1258 = vadd.f32 %v732, %v1257
        %v1259 = vpop.f32.mrb[0].mxu0
        %1260 = vmatprep.mubr.f32.mxu0 0.0
        %1261 = vmatmul.mubr.f32.gmra.mrb[0].mxu0 %v895
        %v1262 = vpop.f32.mrb[0].mxu0
        %v1263 = vadd.f32 %v732, %v1262
        %v1264 = vpop.f32.mrb[0].mxu0
        %1265 = vmatprep.mubr.f32.mxu0 0.0
        %1266 = vmatmul.mubr.f32.gmra.mrb[0].mxu0 %v898
        %v1267 = vpop.f32.mrb[0].mxu0
        %v1268 = vadd.f32 %v732, %v1267
        %v1269 = vpop.f32.mrb[0].mxu0
        %1270 = vmatprep.mubr.f32.mxu0 0.0
        %1271 = vmatmul.mubr.f32.gmra.mrb[0].mxu0 %v901
        %v1272 = vpop.f32.mrb[0].mxu0
        %v1273 = vadd.f32 %v732, %v1272
        %v1274 = vpop.f32.mrb[0].mxu0
        %1275 = vmatprep.mubr.f32.mxu0 0.0
        %1276 = vmatmul.mubr.f32.gmra.mrb[0].mxu0 %v904
        %v1277 = vpop.f32.mrb[0].mxu0
        %v1278 = vadd.f32 %v732, %v1277
        %v1279 = vpop.f32.mrb[0].mxu0
        %1280 = vmatprep.mubr.f32.mxu0 0.0
        %1281 = vmatmul.mubr.f32.gmra.mrb[0].mxu0 %v907
        %v1282 = vpop.f32.mrb[0].mxu0
        %v1283 = vadd.f32 %v732, %v1282
        %v1284 = vpop.f32.mrb[0].mxu0
        %1285 = vmatprep.mubr.f32.mxu0 0.0
        %1286 = vmatmul.mubr.f32.gmra.mrb[0].mxu0 %v910
        %v1287 = vpop.f32.mrb[0].mxu0
        %v1288 = vadd.f32 %v732, %v1287
        %v1289 = vpop.f32.mrb[0].mxu0
        %1290 = vmatprep.mubr.f32.mxu0 0.0
        %1291 = vmatmul.mubr.f32.gmra.mrb[0].mxu0 %v913
        %v1292 = vpop.f32.mrb[0].mxu0
        %v1293 = vadd.f32 %v732, %v1292
        %v1294 = vpop.f32.mrb[0].mxu0
        %1295 = vmatprep.mubr.f32.mxu0 0.0
        %1296 = vmatmul.mubr.f32.gmra.mrb[0].mxu0 %v916
        %v1297 = vpop.f32.mrb[0].mxu0
        %v1298 = vadd.f32 %v732, %v1297
        %v1299 = vpop.f32.mrb[0].mxu0
        %1300 = vmatprep.mubr.f32.mxu0 0.0
        %1301 = vmatmul.mubr.f32.gmra.mrb[0].mxu0 %v919
        %v1302 = vpop.f32.mrb[0].mxu0
        %v1303 = vadd.f32 %v732, %v1302
        %v1304 = vpop.f32.mrb[0].mxu0
        %1305 = vmatprep.mubr.f32.mxu0 0.0
        %1306 = vmatmul.mubr.f32.gmra.mrb[0].mxu0 %v922
        %v1307 = vpop.f32.mrb[0].mxu0
        %v1308 = vadd.f32 %v732, %v1307
        %v1309 = vpop.f32.mrb[0].mxu0
        %1310 = vmatprep.mubr.f32.mxu0 0.0
        %1311 = vmatmul.mubr.f32.gmra.mrb[0].mxu0 %v925
        %v1312 = vpop.f32.mrb[0].mxu0
        %v1313 = vadd.f32 %v732, %v1312
        %v1314 = vpop.f32.mrb[0].mxu0
        %1315 = vdwg.mxu0
        %v1316 = vmax.f32 %v998, 0.0
        %v1317 = vmax.f32 %v1003, 0.0
        %v1318 = vmax.f32 %v1008, 0.0
        %v1319 = vmax.f32 %v1013, 0.0
        %v1320 = vmax.f32 %v1018, 0.0
        %v1321 = vmax.f32 %v1023, 0.0
        %v1322 = vmax.f32 %v1028, 0.0
        %v1323 = vmax.f32 %v1033, 0.0
        %v1324 = vmax.f32 %v1038, 0.0
        %v1325 = vmax.f32 %v1043, 0.0
        %v1326 = vmax.f32 %v1048, 0.0
        %v1327 = vmax.f32 %v1053, 0.0
        %v1328 = vmax.f32 %v1058, 0.0
        %v1329 = vmax.f32 %v1063, 0.0
        %v1330 = vmax.f32 %v1068, 0.0
        %v1331 = vmax.f32 %v1073, 0.0
        %v1332 = vmax.f32 %v1078, 0.0
        %v1333 = vmax.f32 %v1083, 0.0
        %v1334 = vmax.f32 %v1088, 0.0
        %v1335 = vmax.f32 %v1093, 0.0
        %v1336 = vmax.f32 %v1098, 0.0
        %v1337 = vmax.f32 %v1103, 0.0
        %v1338 = vmax.f32 %v1108, 0.0
        %v1339 = vmax.f32 %v1113, 0.0
        %v1340 = vmax.f32 %v1118, 0.0
        %v1341 = vmax.f32 %v1123, 0.0
        %v1342 = vmax.f32 %v1128, 0.0
        %v1343 = vmax.f32 %v1133, 0.0
        %v1344 = vmax.f32 %v1138, 0.0
        %v1345 = vmax.f32 %v1143, 0.0
        %v1346 = vmax.f32 %v1148, 0.0
        %v1347 = vmax.f32 %v1153, 0.0
        %v1348 = vmax.f32 %v1158, 0.0
        %v1349 = vmax.f32 %v1163, 0.0
        %v1350 = vmax.f32 %v1168, 0.0
        %v1351 = vmax.f32 %v1173, 0.0
        %v1352 = vmax.f32 %v1178, 0.0
        %v1353 = vmax.f32 %v1183, 0.0
        %v1354 = vmax.f32 %v1188, 0.0
        %v1355 = vmax.f32 %v1193, 0.0
        %v1356 = vmax.f32 %v1198, 0.0
        %v1357 = vmax.f32 %v1203, 0.0
        %v1358 = vmax.f32 %v1208, 0.0
        %v1359 = vmax.f32 %v1213, 0.0
        %v1360 = vmax.f32 %v1218, 0.0
        %v1361 = vmax.f32 %v1223, 0.0
        %v1362 = vmax.f32 %v1228, 0.0
        %v1363 = vmax.f32 %v1233, 0.0
        %v1364 = vmax.f32 %v1238, 0.0
        %v1365 = vmax.f32 %v1243, 0.0
        %v1366 = vmax.f32 %v1248, 0.0
        %v1367 = vmax.f32 %v1253, 0.0
        %v1368 = vmax.f32 %v1258, 0.0
        %v1369 = vmax.f32 %v1263, 0.0
        %v1370 = vmax.f32 %v1268, 0.0
        %v1371 = vmax.f32 %v1273, 0.0
        %v1372 = vmax.f32 %v1278, 0.0
        %v1373 = vmax.f32 %v1283, 0.0
        %v1374 = vmax.f32 %v1288, 0.0
        %v1375 = vmax.f32 %v1293, 0.0
        %v1376 = vmax.f32 %v1298, 0.0
        %v1377 = vmax.f32 %v1303, 0.0
        %v1378 = vmax.f32 %v1308, 0.0
        %v1379 = vmax.f32 %v1313, 0.0
        %vm1380 = vcmask 130048
        %1381 = vst.msk [vmem:[#allocation2] sm:$0xff] %vm1380, 0.0
        %1382 = vst.msk [vmem:[#allocation2 + $0x8] sm:$0xff] %vm1380, 0.0
        %vm1383 = vcmask 123904
        %1384 = vst.msk [vmem:[#allocation2 + $0x10] sm:$0x3] %vm1383, 0.0
        %1385 = vst.msk [vmem:[#allocation2 + $0x18] sm:$0xff] %vm1380, 0.0
        %1386 = vst.msk [vmem:[#allocation2 + $0x20] sm:$0xff] %vm1380, 0.0
        %1387 = vst.msk [vmem:[#allocation2 + $0x28] sm:$0x3] %vm1383, 0.0
        %1388 = vst.msk [vmem:[#allocation2 + $0x30] sm:$0xff] %vm1380, 0.0
        %1389 = vst.msk [vmem:[#allocation2 + $0x38] sm:$0xff] %vm1380, 0.0
        %1390 = vst.msk [vmem:[#allocation2 + $0x40] sm:$0x3] %vm1383, 0.0
        %1391 = vst.msk [vmem:[#allocation2 + $0x48] sm:$0xff] %vm1380, 0.0
        %1392 = vst.msk [vmem:[#allocation2 + $0x50] sm:$0xff] %vm1380, 0.0
        %1393 = vst.msk [vmem:[#allocation2 + $0x58] sm:$0x3] %vm1383, 0.0
        %1394 = vst.msk [vmem:[#allocation2 + $0x60] sm:$0xff] %vm1380, 0.0
        %1395 = vst.msk [vmem:[#allocation2 + $0x68] sm:$0xff] %vm1380, 0.0
        %1396 = vst.msk [vmem:[#allocation2 + $0x70] sm:$0x3] %vm1383, 0.0
        %1397 = vst.msk [vmem:[#allocation2 + $0x78] sm:$0xff] %vm1380, 0.0
        %1398 = vst.msk [vmem:[#allocation2 + $0x80] sm:$0xff] %vm1380, 0.0
        %1399 = vst.msk [vmem:[#allocation2 + $0x88] sm:$0x3] %vm1383, 0.0
        %1400 = vst.msk [vmem:[#allocation2 + $0x90] sm:$0xff] %vm1380, 0.0
        %1401 = vst.msk [vmem:[#allocation2 + $0x98] sm:$0xff] %vm1380, 0.0
        %1402 = vst.msk [vmem:[#allocation2 + $0xa0] sm:$0x3] %vm1383, 0.0
        %1403 = vst.msk [vmem:[#allocation2 + $0xa8] sm:$0xff] %vm1380, 0.0
        %1404 = vst.msk [vmem:[#allocation2 + $0xb0] sm:$0xff] %vm1380, 0.0
        %1405 = vst.msk [vmem:[#allocation2 + $0xb8] sm:$0x3] %vm1383, 0.0
        %1406 = vst.msk [vmem:[#allocation2 + $0xc0] sm:$0xff] %vm1380, 0.0
        %1407 = vst.msk [vmem:[#allocation2 + $0xc8] sm:$0xff] %vm1380, 0.0
        %1408 = vst.msk [vmem:[#allocation2 + $0xd0] sm:$0x3] %vm1383, 0.0
        %1409 = vst.msk [vmem:[#allocation2 + $0xd8] sm:$0xff] %vm1380, 0.0
        %1410 = vst.msk [vmem:[#allocation2 + $0xe0] sm:$0xff] %vm1380, 0.0
        %1411 = vst.msk [vmem:[#allocation2 + $0xe8] sm:$0x3] %vm1383, 0.0
        %1412 = vst.msk [vmem:[#allocation2 + $0xf0] sm:$0xff] %vm1380, 0.0
        %1413 = vst.msk [vmem:[#allocation2 + $0xf8] sm:$0xff] %vm1380, 0.0
        %1414 = vst.msk [vmem:[#allocation2 + $0x100] sm:$0x3] %vm1383, 0.0
        %1415 = vst.msk [vmem:[#allocation2 + $0x108] sm:$0xff] %vm1380, 0.0
        %1416 = vst.msk [vmem:[#allocation2 + $0x110] sm:$0xff] %vm1380, 0.0
        %1417 = vst.msk [vmem:[#allocation2 + $0x118] sm:$0x3] %vm1383, 0.0
        %1418 = vst.msk [vmem:[#allocation2 + $0x120] sm:$0xff] %vm1380, 0.0
        %1419 = vst.msk [vmem:[#allocation2 + $0x128] sm:$0xff] %vm1380, 0.0
        %1420 = vst.msk [vmem:[#allocation2 + $0x130] sm:$0x3] %vm1383, 0.0
        %1421 = vst.msk [vmem:[#allocation2 + $0x138] sm:$0xff] %vm1380, 0.0
        %1422 = vst.msk [vmem:[#allocation2 + $0x140] sm:$0xff] %vm1380, 0.0
        %1423 = vst.msk [vmem:[#allocation2 + $0x148] sm:$0x3] %vm1383, 0.0
        %1424 = vst.msk [vmem:[#allocation2 + $0x150] sm:$0xff] %vm1380, 0.0
        %1425 = vst.msk [vmem:[#allocation2 + $0x158] sm:$0xff] %vm1380, 0.0
        %1426 = vst.msk [vmem:[#allocation2 + $0x160] sm:$0x3] %vm1383, 0.0
        %1427 = vst.msk [vmem:[#allocation2 + $0x168] sm:$0xff] %vm1380, 0.0
        %1428 = vst.msk [vmem:[#allocation2 + $0x170] sm:$0xff] %vm1380, 0.0
        %1429 = vst.msk [vmem:[#allocation2 + $0x178] sm:$0x3] %vm1383, 0.0
        %1430 = vst.msk [vmem:[#allocation2 + $0x180] sm:$0xff] %vm1380, 0.0
        %1431 = vst.msk [vmem:[#allocation2 + $0x188] sm:$0xff] %vm1380, 0.0
        %1432 = vst.msk [vmem:[#allocation2 + $0x190] sm:$0x3] %vm1383, 0.0
        %1433 = vst.msk [vmem:[#allocation2 + $0x198] sm:$0xff] %vm1380, 0.0
        %1434 = vst.msk [vmem:[#allocation2 + $0x1a0] sm:$0xff] %vm1380, 0.0
        %1435 = vst.msk [vmem:[#allocation2 + $0x1a8] sm:$0x3] %vm1383, 0.0
        %1436 = vst.msk [vmem:[#allocation2 + $0x1b0] sm:$0xff] %vm1380, 0.0
        %1437 = vst.msk [vmem:[#allocation2 + $0x1b8] sm:$0xff] %vm1380, 0.0
        %1438 = vst.msk [vmem:[#allocation2 + $0x1c0] sm:$0x3] %vm1383, 0.0
        %1439 = vst.msk [vmem:[#allocation2 + $0x1c8] sm:$0xff] %vm1380, 0.0
        %1440 = vst.msk [vmem:[#allocation2 + $0x1d0] sm:$0xff] %vm1380, 0.0
        %1441 = vst.msk [vmem:[#allocation2 + $0x1d8] sm:$0x3] %vm1383, 0.0
        %1442 = vst.msk [vmem:[#allocation2 + $0x1e0] sm:$0xff] %vm1380, 0.0
        %1443 = vst.msk [vmem:[#allocation2 + $0x1e8] sm:$0xff] %vm1380, 0.0
        %1444 = vst.msk [vmem:[#allocation2 + $0x1f0] sm:$0x3] %vm1383, 0.0
        %1445 = vst.msk [vmem:[#allocation2 + $0x1f8] sm:$0xff] %vm1380, 0.0
        %1446 = vst.msk [vmem:[#allocation2 + $0x200] sm:$0xff] %vm1380, 0.0
        %1447 = vst.msk [vmem:[#allocation2 + $0x208] sm:$0x3] %vm1383, 0.0
        %1448 = vst.msk [vmem:[#allocation2 + $0x210] sm:$0xff] %vm1380, 0.0
        %1449 = vst.msk [vmem:[#allocation2 + $0x218] sm:$0xff] %vm1380, 0.0
        %1450 = vst.msk [vmem:[#allocation2 + $0x220] sm:$0x3] %vm1383, 0.0
        %1451 = vst.msk [vmem:[#allocation2 + $0x228] sm:$0xff] %vm1380, 0.0
        %1452 = vst.msk [vmem:[#allocation2 + $0x230] sm:$0xff] %vm1380, 0.0
        %1453 = vst.msk [vmem:[#allocation2 + $0x238] sm:$0x3] %vm1383, 0.0
        %1454 = vst.msk [vmem:[#allocation2 + $0x240] sm:$0xff] %vm1380, 0.0
        %1455 = vst.msk [vmem:[#allocation2 + $0x248] sm:$0xff] %vm1380, 0.0
        %1456 = vst.msk [vmem:[#allocation2 + $0x250] sm:$0x3] %vm1383, 0.0
        %1457 = vst.msk [vmem:[#allocation2 + $0x258] sm:$0xff] %vm1380, 0.0
        %1458 = vst.msk [vmem:[#allocation2 + $0x260] sm:$0xff] %vm1380, 0.0
        %1459 = vst.msk [vmem:[#allocation2 + $0x268] sm:$0x3] %vm1383, 0.0
        %1460 = vst.msk [vmem:[#allocation2 + $0x270] sm:$0xff] %vm1380, 0.0
        %1461 = vst.msk [vmem:[#allocation2 + $0x278] sm:$0xff] %vm1380, 0.0
        %1462 = vst.msk [vmem:[#allocation2 + $0x280] sm:$0x3] %vm1383, 0.0
        %1463 = vst.msk [vmem:[#allocation2 + $0x288] sm:$0xff] %vm1380, 0.0
        %1464 = vst.msk [vmem:[#allocation2 + $0x290] sm:$0xff] %vm1380, 0.0
        %1465 = vst.msk [vmem:[#allocation2 + $0x298] sm:$0x3] %vm1383, 0.0
        %1466 = vst.msk [vmem:[#allocation2 + $0x2a0] sm:$0xff] %vm1380, 0.0
        %1467 = vst.msk [vmem:[#allocation2 + $0x2a8] sm:$0xff] %vm1380, 0.0
        %1468 = vst.msk [vmem:[#allocation2 + $0x2b0] sm:$0x3] %vm1383, 0.0
        %1469 = vst.msk [vmem:[#allocation2 + $0x2b8] sm:$0xff] %vm1380, 0.0
        %1470 = vst.msk [vmem:[#allocation2 + $0x2c0] sm:$0xff] %vm1380, 0.0
        %1471 = vst.msk [vmem:[#allocation2 + $0x2c8] sm:$0x3] %vm1383, 0.0
        %1472 = vst.msk [vmem:[#allocation2 + $0x2d0] sm:$0xff] %vm1380, 0.0
        %1473 = vst.msk [vmem:[#allocation2 + $0x2d8] sm:$0xff] %vm1380, 0.0
        %1474 = vst.msk [vmem:[#allocation2 + $0x2e0] sm:$0x3] %vm1383, 0.0
        %1475 = vst.msk [vmem:[#allocation2 + $0x2e8] sm:$0xff] %vm1380, 0.0
        %1476 = vst.msk [vmem:[#allocation2 + $0x2f0] sm:$0xff] %vm1380, 0.0
        %1477 = vst.msk [vmem:[#allocation2 + $0x2f8] sm:$0x3] %vm1383, 0.0
        %1478 = vst.msk [vmem:[#allocation2 + $0x300] sm:$0xff] %vm1380, 0.0
        %1479 = vst.msk [vmem:[#allocation2 + $0x308] sm:$0xff] %vm1380, 0.0
        %1480 = vst.msk [vmem:[#allocation2 + $0x310] sm:$0x3] %vm1383, 0.0
        %1481 = vst.msk [vmem:[#allocation2 + $0x318] sm:$0xff] %vm1380, 0.0
        %1482 = vst.msk [vmem:[#allocation2 + $0x320] sm:$0xff] %vm1380, 0.0
        %1483 = vst.msk [vmem:[#allocation2 + $0x328] sm:$0x3] %vm1383, 0.0
        %1484 = vst.msk [vmem:[#allocation2 + $0x330] sm:$0xff] %vm1380, 0.0
        %1485 = vst.msk [vmem:[#allocation2 + $0x338] sm:$0xff] %vm1380, 0.0
        %1486 = vst.msk [vmem:[#allocation2 + $0x340] sm:$0x3] %vm1383, 0.0
        %1487 = vst.msk [vmem:[#allocation2 + $0x348] sm:$0xff] %vm1380, 0.0
        %1488 = vst.msk [vmem:[#allocation2 + $0x350] sm:$0xff] %vm1380, 0.0
        %1489 = vst.msk [vmem:[#allocation2 + $0x358] sm:$0x3] %vm1383, 0.0
        %s1490 = scalar_lea.vmem [#allocation2], 24
        %1491 = vst.msk [vmem:[%s1490 + $0x1] sm:$0xff] %vm1380, %v1316
        %1492 = vst.msk [vmem:[%s1490 + $0x9] sm:$0xff] %vm1380, %v1317
        %1493 = vst.msk [vmem:[%s1490 + $0x19] sm:$0xff] %vm1380, %v1318
        %1494 = vst.msk [vmem:[%s1490 + $0x21] sm:$0xff] %vm1380, %v1319
        %1495 = vst.msk [vmem:[%s1490 + $0x31] sm:$0xff] %vm1380, %v1320
        %1496 = vst.msk [vmem:[%s1490 + $0x39] sm:$0xff] %vm1380, %v1321
        %1497 = vst.msk [vmem:[%s1490 + $0x49] sm:$0xff] %vm1380, %v1322
        %1498 = vst.msk [vmem:[%s1490 + $0x51] sm:$0xff] %vm1380, %v1323
        %1499 = vst.msk [vmem:[%s1490 + $0x61] sm:$0xff] %vm1380, %v1324
        %1500 = vst.msk [vmem:[%s1490 + $0x69] sm:$0xff] %vm1380, %v1325
        %1501 = vst.msk [vmem:[%s1490 + $0x79] sm:$0xff] %vm1380, %v1326
        %1502 = vst.msk [vmem:[%s1490 + $0x81] sm:$0xff] %vm1380, %v1327
        %1503 = vst.msk [vmem:[%s1490 + $0x91] sm:$0xff] %vm1380, %v1328
        %1504 = vst.msk [vmem:[%s1490 + $0x99] sm:$0xff] %vm1380, %v1329
        %1505 = vst.msk [vmem:[%s1490 + $0xa9] sm:$0xff] %vm1380, %v1330
        %1506 = vst.msk [vmem:[%s1490 + $0xb1] sm:$0xff] %vm1380, %v1331
        %1507 = vst.msk [vmem:[%s1490 + $0xc1] sm:$0xff] %vm1380, %v1332
        %1508 = vst.msk [vmem:[%s1490 + $0xc9] sm:$0xff] %vm1380, %v1333
        %1509 = vst.msk [vmem:[%s1490 + $0xd9] sm:$0xff] %vm1380, %v1334
        %1510 = vst.msk [vmem:[%s1490 + $0xe1] sm:$0xff] %vm1380, %v1335
        %1511 = vst.msk [vmem:[%s1490 + $0xf1] sm:$0xff] %vm1380, %v1336
        %1512 = vst.msk [vmem:[%s1490 + $0xf9] sm:$0xff] %vm1380, %v1337
        %1513 = vst.msk [vmem:[%s1490 + $0x109] sm:$0xff] %vm1380, %v1338
        %1514 = vst.msk [vmem:[%s1490 + $0x111] sm:$0xff] %vm1380, %v1339
        %1515 = vst.msk [vmem:[%s1490 + $0x121] sm:$0xff] %vm1380, %v1340
        %1516 = vst.msk [vmem:[%s1490 + $0x129] sm:$0xff] %vm1380, %v1341
        %1517 = vst.msk [vmem:[%s1490 + $0x139] sm:$0xff] %vm1380, %v1342
        %1518 = vst.msk [vmem:[%s1490 + $0x141] sm:$0xff] %vm1380, %v1343
        %1519 = vst.msk [vmem:[%s1490 + $0x151] sm:$0xff] %vm1380, %v1344
        %1520 = vst.msk [vmem:[%s1490 + $0x159] sm:$0xff] %vm1380, %v1345
        %1521 = vst.msk [vmem:[%s1490 + $0x169] sm:$0xff] %vm1380, %v1346
        %1522 = vst.msk [vmem:[%s1490 + $0x171] sm:$0xff] %vm1380, %v1347
        %s1523 = scalar_lea.vmem [#allocation2], 456
        %1524 = vst.msk [vmem:[%s1523 + $0x1] sm:$0xff] %vm1380, %v1348
        %1525 = vst.msk [vmem:[%s1523 + $0x9] sm:$0xff] %vm1380, %v1349
        %1526 = vst.msk [vmem:[%s1523 + $0x19] sm:$0xff] %vm1380, %v1350
        %1527 = vst.msk [vmem:[%s1523 + $0x21] sm:$0xff] %vm1380, %v1351
        %1528 = vst.msk [vmem:[%s1523 + $0x31] sm:$0xff] %vm1380, %v1352
        %1529 = vst.msk [vmem:[%s1523 + $0x39] sm:$0xff] %vm1380, %v1353
        %1530 = vst.msk [vmem:[%s1523 + $0x49] sm:$0xff] %vm1380, %v1354
        %1531 = vst.msk [vmem:[%s1523 + $0x51] sm:$0xff] %vm1380, %v1355
        %1532 = vst.msk [vmem:[%s1523 + $0x61] sm:$0xff] %vm1380, %v1356
        %1533 = vst.msk [vmem:[%s1523 + $0x69] sm:$0xff] %vm1380, %v1357
        %1534 = vst.msk [vmem:[%s1523 + $0x79] sm:$0xff] %vm1380, %v1358
        %1535 = vst.msk [vmem:[%s1523 + $0x81] sm:$0xff] %vm1380, %v1359
        %1536 = vst.msk [vmem:[%s1523 + $0x91] sm:$0xff] %vm1380, %v1360
        %1537 = vst.msk [vmem:[%s1523 + $0x99] sm:$0xff] %vm1380, %v1361
        %1538 = vst.msk [vmem:[%s1523 + $0xa9] sm:$0xff] %vm1380, %v1362
        %1539 = vst.msk [vmem:[%s1523 + $0xb1] sm:$0xff] %vm1380, %v1363
        %1540 = vst.msk [vmem:[%s1523 + $0xc1] sm:$0xff] %vm1380, %v1364
        %1541 = vst.msk [vmem:[%s1523 + $0xc9] sm:$0xff] %vm1380, %v1365
        %1542 = vst.msk [vmem:[%s1523 + $0xd9] sm:$0xff] %vm1380, %v1366
        %1543 = vst.msk [vmem:[%s1523 + $0xe1] sm:$0xff] %vm1380, %v1367
        %1544 = vst.msk [vmem:[%s1523 + $0xf1] sm:$0xff] %vm1380, %v1368
        %1545 = vst.msk [vmem:[%s1523 + $0xf9] sm:$0xff] %vm1380, %v1369
        %1546 = vst.msk [vmem:[%s1523 + $0x109] sm:$0xff] %vm1380, %v1370
        %1547 = vst.msk [vmem:[%s1523 + $0x111] sm:$0xff] %vm1380, %v1371
        %1548 = vst.msk [vmem:[%s1523 + $0x121] sm:$0xff] %vm1380, %v1372
        %1549 = vst.msk [vmem:[%s1523 + $0x129] sm:$0xff] %vm1380, %v1373
        %1550 = vst.msk [vmem:[%s1523 + $0x139] sm:$0xff] %vm1380, %v1374
        %1551 = vst.msk [vmem:[%s1523 + $0x141] sm:$0xff] %vm1380, %v1375
        %1552 = vst.msk [vmem:[%s1523 + $0x151] sm:$0xff] %vm1380, %v1376
        %1553 = vst.msk [vmem:[%s1523 + $0x159] sm:$0xff] %vm1380, %v1377
        %1554 = vst.msk [vmem:[%s1523 + $0x169] sm:$0xff] %vm1380, %v1378
        %1555 = vst.msk [vmem:[%s1523 + $0x171] sm:$0xff] %vm1380, %v1379
        %v1556 = vld [vmem:[#allocation2] sm:$0xff]
        %v1557 = vld [vmem:[#allocation2 + $0x8] sm:$0xff]
        %v1558 = vld [vmem:[#allocation2 + $0x18] sm:$0xff]
        %v1559 = vld [vmem:[#allocation2 + $0x20] sm:$0xff]
        %v1560 = vld [vmem:[#allocation2 + $0x30] sm:$0xff]
        %v1561 = vld [vmem:[#allocation2 + $0x38] sm:$0xff]
        %v1562 = vld [vmem:[#allocation2 + $0x48] sm:$0xff]
        %v1563 = vld [vmem:[#allocation2 + $0x50] sm:$0xff]
        %v1564 = vld [vmem:[#allocation2 + $0x60] sm:$0xff]
        %v1565 = vld [vmem:[#allocation2 + $0x68] sm:$0xff]
        %v1566 = vld [vmem:[#allocation2 + $0x78] sm:$0xff]
        %v1567 = vld [vmem:[#allocation2 + $0x80] sm:$0xff]
        %v1568 = vld [vmem:[#allocation2 + $0x90] sm:$0xff]
        %v1569 = vld [vmem:[#allocation2 + $0x98] sm:$0xff]
        %v1570 = vld [vmem:[#allocation2 + $0xa8] sm:$0xff]
        %v1571 = vld [vmem:[#allocation2 + $0xb0] sm:$0xff]
        %v1572 = vld [vmem:[#allocation2 + $0xc0] sm:$0xff]
        %v1573 = vld [vmem:[#allocation2 + $0xc8] sm:$0xff]
        %v1574 = vld [vmem:[#allocation2 + $0xd8] sm:$0xff]
        %v1575 = vld [vmem:[#allocation2 + $0xe0] sm:$0xff]
        %v1576 = vld [vmem:[#allocation2 + $0xf0] sm:$0xff]
        %v1577 = vld [vmem:[#allocation2 + $0xf8] sm:$0xff]
        %v1578 = vld [vmem:[#allocation2 + $0x108] sm:$0xff]
        %v1579 = vld [vmem:[#allocation2 + $0x110] sm:$0xff]
        %v1580 = vld [vmem:[#allocation2 + $0x120] sm:$0xff]
        %v1581 = vld [vmem:[#allocation2 + $0x128] sm:$0xff]
        %v1582 = vld [vmem:[#allocation2 + $0x138] sm:$0xff]
        %v1583 = vld [vmem:[#allocation2 + $0x140] sm:$0xff]
        %v1584 = vld [vmem:[#allocation2 + $0x150] sm:$0xff]
        %v1585 = vld [vmem:[#allocation2 + $0x158] sm:$0xff]
        %v1586 = vld [vmem:[#allocation2 + $0x168] sm:$0xff]
        %v1587 = vld [vmem:[#allocation2 + $0x170] sm:$0xff]
        %v1588 = vld [vmem:[#allocation2 + $0x1] sm:$0xff]
        %v1589 = vld [vmem:[#allocation2 + $0x9] sm:$0xff]
        %v1590 = vld [vmem:[#allocation2 + $0x19] sm:$0xff]
        %v1591 = vld [vmem:[#allocation2 + $0x21] sm:$0xff]
        %v1592 = vld [vmem:[#allocation2 + $0x31] sm:$0xff]
        %v1593 = vld [vmem:[#allocation2 + $0x39] sm:$0xff]
        %v1594 = vld [vmem:[#allocation2 + $0x49] sm:$0xff]
        %v1595 = vld [vmem:[#allocation2 + $0x51] sm:$0xff]
        %v1596 = vld [vmem:[#allocation2 + $0x61] sm:$0xff]
        %v1597 = vld [vmem:[#allocation2 + $0x69] sm:$0xff]
        %v1598 = vld [vmem:[#allocation2 + $0x79] sm:$0xff]
        %v1599 = vld [vmem:[#allocation2 + $0x81] sm:$0xff]
        %v1600 = vld [vmem:[#allocation2 + $0x91] sm:$0xff]
        %v1601 = vld [vmem:[#allocation2 + $0x99] sm:$0xff]
        %v1602 = vld [vmem:[#allocation2 + $0xa9] sm:$0xff]
        %v1603 = vld [vmem:[#allocation2 + $0xb1] sm:$0xff]
        %v1604 = vld [vmem:[#allocation2 + $0xc1] sm:$0xff]
        %v1605 = vld [vmem:[#allocation2 + $0xc9] sm:$0xff]
        %v1606 = vld [vmem:[#allocation2 + $0xd9] sm:$0xff]
        %v1607 = vld [vmem:[#allocation2 + $0xe1] sm:$0xff]
        %v1608 = vld [vmem:[#allocation2 + $0xf1] sm:$0xff]
        %v1609 = vld [vmem:[#allocation2 + $0xf9] sm:$0xff]
        %v1610 = vld [vmem:[#allocation2 + $0x109] sm:$0xff]
        %v1611 = vld [vmem:[#allocation2 + $0x111] sm:$0xff]
        %v1612 = vld [vmem:[#allocation2 + $0x121] sm:$0xff]
        %v1613 = vld [vmem:[#allocation2 + $0x129] sm:$0xff]
        %v1614 = vld [vmem:[#allocation2 + $0x139] sm:$0xff]
        %v1615 = vld [vmem:[#allocation2 + $0x141] sm:$0xff]
        %v1616 = vld [vmem:[#allocation2 + $0x151] sm:$0xff]
        %v1617 = vld [vmem:[#allocation2 + $0x159] sm:$0xff]
        %v1618 = vld [vmem:[#allocation2 + $0x169] sm:$0xff]
        %v1619 = vld [vmem:[#allocation2 + $0x171] sm:$0xff]
        %v1620 = vld [vmem:[#allocation2 + $0x2] sm:$0xff]
        %v1621 = vld [vmem:[#allocation2 + $0xa] sm:$0xff]
        %v1622 = vld [vmem:[#allocation2 + $0x1a] sm:$0xff]
        %v1623 = vld [vmem:[#allocation2 + $0x22] sm:$0xff]
        %v1624 = vld [vmem:[#allocation2 + $0x32] sm:$0xff]
        %v1625 = vld [vmem:[#allocation2 + $0x3a] sm:$0xff]
        %v1626 = vld [vmem:[#allocation2 + $0x4a] sm:$0xff]
        %v1627 = vld [vmem:[#allocation2 + $0x52] sm:$0xff]
        %v1628 = vld [vmem:[#allocation2 + $0x62] sm:$0xff]
        %v1629 = vld [vmem:[#allocation2 + $0x6a] sm:$0xff]
        %v1630 = vld [vmem:[#allocation2 + $0x7a] sm:$0xff]
        %v1631 = vld [vmem:[#allocation2 + $0x82] sm:$0xff]
        %v1632 = vld [vmem:[#allocation2 + $0x92] sm:$0xff]
        %v1633 = vld [vmem:[#allocation2 + $0x9a] sm:$0xff]
        %v1634 = vld [vmem:[#allocation2 + $0xaa] sm:$0xff]
        %v1635 = vld [vmem:[#allocation2 + $0xb2] sm:$0xff]
        %v1636 = vld [vmem:[#allocation2 + $0xc2] sm:$0xff]
        %v1637 = vld [vmem:[#allocation2 + $0xca] sm:$0xff]
        %v1638 = vld [vmem:[#allocation2 + $0xda] sm:$0xff]
        %v1639 = vld [vmem:[#allocation2 + $0xe2] sm:$0xff]
        %v1640 = vld [vmem:[#allocation2 + $0xf2] sm:$0xff]
        %v1641 = vld [vmem:[#allocation2 + $0xfa] sm:$0xff]
        %v1642 = vld [vmem:[#allocation2 + $0x10a] sm:$0xff]
        %v1643 = vld [vmem:[#allocation2 + $0x112] sm:$0xff]
        %v1644 = vld [vmem:[#allocation2 + $0x122] sm:$0xff]
        %v1645 = vld [vmem:[#allocation2 + $0x12a] sm:$0xff]
        %v1646 = vld [vmem:[#allocation2 + $0x13a] sm:$0xff]
        %v1647 = vld [vmem:[#allocation2 + $0x142] sm:$0xff]
        %v1648 = vld [vmem:[#allocation2 + $0x152] sm:$0xff]
        %v1649 = vld [vmem:[#allocation2 + $0x15a] sm:$0xff]
        %v1650 = vld [vmem:[#allocation2 + $0x16a] sm:$0xff]
        %v1651 = vld [vmem:[#allocation2 + $0x172] sm:$0xff]
        %v1652 = vld [vmem:[%s1490] sm:$0xff]
        %v1653 = vld [vmem:[%s1490 + $0x8] sm:$0xff]
        %v1654 = vld [vmem:[%s1490 + $0x18] sm:$0xff]
        %v1655 = vld [vmem:[%s1490 + $0x20] sm:$0xff]
        %v1656 = vld [vmem:[%s1490 + $0x30] sm:$0xff]
        %v1657 = vld [vmem:[%s1490 + $0x38] sm:$0xff]
        %v1658 = vld [vmem:[%s1490 + $0x48] sm:$0xff]
        %v1659 = vld [vmem:[%s1490 + $0x50] sm:$0xff]
        %v1660 = vld [vmem:[%s1490 + $0x60] sm:$0xff]
        %v1661 = vld [vmem:[%s1490 + $0x68] sm:$0xff]
        %v1662 = vld [vmem:[%s1490 + $0x78] sm:$0xff]
        %v1663 = vld [vmem:[%s1490 + $0x80] sm:$0xff]
        %v1664 = vld [vmem:[%s1490 + $0x90] sm:$0xff]
        %v1665 = vld [vmem:[%s1490 + $0x98] sm:$0xff]
        %v1666 = vld [vmem:[%s1490 + $0xa8] sm:$0xff]
        %v1667 = vld [vmem:[%s1490 + $0xb0] sm:$0xff]
        %v1668 = vld [vmem:[%s1490 + $0xc0] sm:$0xff]
        %v1669 = vld [vmem:[%s1490 + $0xc8] sm:$0xff]
        %v1670 = vld [vmem:[%s1490 + $0xd8] sm:$0xff]
        %v1671 = vld [vmem:[%s1490 + $0xe0] sm:$0xff]
        %v1672 = vld [vmem:[%s1490 + $0xf0] sm:$0xff]
        %v1673 = vld [vmem:[%s1490 + $0xf8] sm:$0xff]
        %v1674 = vld [vmem:[%s1490 + $0x108] sm:$0xff]
        %v1675 = vld [vmem:[%s1490 + $0x110] sm:$0xff]
        %v1676 = vld [vmem:[%s1490 + $0x120] sm:$0xff]
        %v1677 = vld [vmem:[%s1490 + $0x128] sm:$0xff]
        %v1678 = vld [vmem:[%s1490 + $0x138] sm:$0xff]
        %v1679 = vld [vmem:[%s1490 + $0x140] sm:$0xff]
        %v1680 = vld [vmem:[%s1490 + $0x150] sm:$0xff]
        %v1681 = vld [vmem:[%s1490 + $0x158] sm:$0xff]
        %v1682 = vld [vmem:[%s1490 + $0x168] sm:$0xff]
        %v1683 = vld [vmem:[%s1490 + $0x170] sm:$0xff]
        %v1684 = vld [vmem:[%s1490 + $0x1] sm:$0xff]
        %v1685 = vld [vmem:[%s1490 + $0x9] sm:$0xff]
        %v1686 = vld [vmem:[%s1490 + $0x19] sm:$0xff]
        %v1687 = vld [vmem:[%s1490 + $0x21] sm:$0xff]
        %v1688 = vld [vmem:[%s1490 + $0x31] sm:$0xff]
        %v1689 = vld [vmem:[%s1490 + $0x39] sm:$0xff]
        %v1690 = vld [vmem:[%s1490 + $0x49] sm:$0xff]
        %v1691 = vld [vmem:[%s1490 + $0x51] sm:$0xff]
        %v1692 = vld [vmem:[%s1490 + $0x61] sm:$0xff]
        %v1693 = vld [vmem:[%s1490 + $0x69] sm:$0xff]
        %v1694 = vld [vmem:[%s1490 + $0x79] sm:$0xff]
        %v1695 = vld [vmem:[%s1490 + $0x81] sm:$0xff]
        %v1696 = vld [vmem:[%s1490 + $0x91] sm:$0xff]
        %v1697 = vld [vmem:[%s1490 + $0x99] sm:$0xff]
        %v1698 = vld [vmem:[%s1490 + $0xa9] sm:$0xff]
        %v1699 = vld [vmem:[%s1490 + $0xb1] sm:$0xff]
        %v1700 = vld [vmem:[%s1490 + $0xc1] sm:$0xff]
        %v1701 = vld [vmem:[%s1490 + $0xc9] sm:$0xff]
        %v1702 = vld [vmem:[%s1490 + $0xd9] sm:$0xff]
        %v1703 = vld [vmem:[%s1490 + $0xe1] sm:$0xff]
        %v1704 = vld [vmem:[%s1490 + $0xf1] sm:$0xff]
        %v1705 = vld [vmem:[%s1490 + $0xf9] sm:$0xff]
        %v1706 = vld [vmem:[%s1490 + $0x109] sm:$0xff]
        %v1707 = vld [vmem:[%s1490 + $0x111] sm:$0xff]
        %v1708 = vld [vmem:[%s1490 + $0x121] sm:$0xff]
        %v1709 = vld [vmem:[%s1490 + $0x129] sm:$0xff]
        %v1710 = vld [vmem:[%s1490 + $0x139] sm:$0xff]
        %v1711 = vld [vmem:[%s1490 + $0x141] sm:$0xff]
        %v1712 = vld [vmem:[%s1490 + $0x151] sm:$0xff]
        %v1713 = vld [vmem:[%s1490 + $0x159] sm:$0xff]
        %v1714 = vld [vmem:[%s1490 + $0x169] sm:$0xff]
        %v1715 = vld [vmem:[%s1490 + $0x171] sm:$0xff]
        %v1716 = vld [vmem:[%s1490 + $0x2] sm:$0xff]
        %v1717 = vld [vmem:[%s1490 + $0xa] sm:$0xff]
        %v1718 = vld [vmem:[%s1490 + $0x1a] sm:$0xff]
        %v1719 = vld [vmem:[%s1490 + $0x22] sm:$0xff]
        %v1720 = vld [vmem:[%s1490 + $0x32] sm:$0xff]
        %v1721 = vld [vmem:[%s1490 + $0x3a] sm:$0xff]
        %v1722 = vld [vmem:[%s1490 + $0x4a] sm:$0xff]
        %v1723 = vld [vmem:[%s1490 + $0x52] sm:$0xff]
        %v1724 = vld [vmem:[%s1490 + $0x62] sm:$0xff]
        %v1725 = vld [vmem:[%s1490 + $0x6a] sm:$0xff]
        %v1726 = vld [vmem:[%s1490 + $0x7a] sm:$0xff]
        %v1727 = vld [vmem:[%s1490 + $0x82] sm:$0xff]
        %v1728 = vld [vmem:[%s1490 + $0x92] sm:$0xff]
        %v1729 = vld [vmem:[%s1490 + $0x9a] sm:$0xff]
        %v1730 = vld [vmem:[%s1490 + $0xaa] sm:$0xff]
        %v1731 = vld [vmem:[%s1490 + $0xb2] sm:$0xff]
        %v1732 = vld [vmem:[%s1490 + $0xc2] sm:$0xff]
        %v1733 = vld [vmem:[%s1490 + $0xca] sm:$0xff]
        %v1734 = vld [vmem:[%s1490 + $0xda] sm:$0xff]
        %v1735 = vld [vmem:[%s1490 + $0xe2] sm:$0xff]
        %v1736 = vld [vmem:[%s1490 + $0xf2] sm:$0xff]
        %v1737 = vld [vmem:[%s1490 + $0xfa] sm:$0xff]
        %v1738 = vld [vmem:[%s1490 + $0x10a] sm:$0xff]
        %v1739 = vld [vmem:[%s1490 + $0x112] sm:$0xff]
        %v1740 = vld [vmem:[%s1490 + $0x122] sm:$0xff]
        %v1741 = vld [vmem:[%s1490 + $0x12a] sm:$0xff]
        %v1742 = vld [vmem:[%s1490 + $0x13a] sm:$0xff]
        %v1743 = vld [vmem:[%s1490 + $0x142] sm:$0xff]
        %v1744 = vld [vmem:[%s1490 + $0x152] sm:$0xff]
        %v1745 = vld [vmem:[%s1490 + $0x15a] sm:$0xff]
        %v1746 = vld [vmem:[%s1490 + $0x16a] sm:$0xff]
        %v1747 = vld [vmem:[%s1490 + $0x172] sm:$0xff]
        %s1748 = scalar_lea.vmem [#allocation2], 48
        %v1749 = vld [vmem:[%s1748] sm:$0xff]
        %v1750 = vld [vmem:[%s1748 + $0x8] sm:$0xff]
        %v1751 = vld [vmem:[%s1748 + $0x18] sm:$0xff]
        %v1752 = vld [vmem:[%s1748 + $0x20] sm:$0xff]
        %v1753 = vld [vmem:[%s1748 + $0x30] sm:$0xff]
        %v1754 = vld [vmem:[%s1748 + $0x38] sm:$0xff]
        %v1755 = vld [vmem:[%s1748 + $0x48] sm:$0xff]
        %v1756 = vld [vmem:[%s1748 + $0x50] sm:$0xff]
        %v1757 = vld [vmem:[%s1748 + $0x60] sm:$0xff]
        %v1758 = vld [vmem:[%s1748 + $0x68] sm:$0xff]
        %v1759 = vld [vmem:[%s1748 + $0x78] sm:$0xff]
        %v1760 = vld [vmem:[%s1748 + $0x80] sm:$0xff]
        %v1761 = vld [vmem:[%s1748 + $0x90] sm:$0xff]
        %v1762 = vld [vmem:[%s1748 + $0x98] sm:$0xff]
        %v1763 = vld [vmem:[%s1748 + $0xa8] sm:$0xff]
        %v1764 = vld [vmem:[%s1748 + $0xb0] sm:$0xff]
        %v1765 = vld [vmem:[%s1748 + $0xc0] sm:$0xff]
        %v1766 = vld [vmem:[%s1748 + $0xc8] sm:$0xff]
        %v1767 = vld [vmem:[%s1748 + $0xd8] sm:$0xff]
        %v1768 = vld [vmem:[%s1748 + $0xe0] sm:$0xff]
        %v1769 = vld [vmem:[%s1748 + $0xf0] sm:$0xff]
        %v1770 = vld [vmem:[%s1748 + $0xf8] sm:$0xff]
        %v1771 = vld [vmem:[%s1748 + $0x108] sm:$0xff]
        %v1772 = vld [vmem:[%s1748 + $0x110] sm:$0xff]
        %v1773 = vld [vmem:[%s1748 + $0x120] sm:$0xff]
        %v1774 = vld [vmem:[%s1748 + $0x128] sm:$0xff]
        %v1775 = vld [vmem:[%s1748 + $0x138] sm:$0xff]
        %v1776 = vld [vmem:[%s1748 + $0x140] sm:$0xff]
        %v1777 = vld [vmem:[%s1748 + $0x150] sm:$0xff]
        %v1778 = vld [vmem:[%s1748 + $0x158] sm:$0xff]
        %v1779 = vld [vmem:[%s1748 + $0x168] sm:$0xff]
        %v1780 = vld [vmem:[%s1748 + $0x170] sm:$0xff]
        %v1781 = vld [vmem:[%s1748 + $0x1] sm:$0xff]
        %v1782 = vld [vmem:[%s1748 + $0x9] sm:$0xff]
        %v1783 = vld [vmem:[%s1748 + $0x19] sm:$0xff]
        %v1784 = vld [vmem:[%s1748 + $0x21] sm:$0xff]
        %v1785 = vld [vmem:[%s1748 + $0x31] sm:$0xff]
        %v1786 = vld [vmem:[%s1748 + $0x39] sm:$0xff]
        %v1787 = vld [vmem:[%s1748 + $0x49] sm:$0xff]
        %v1788 = vld [vmem:[%s1748 + $0x51] sm:$0xff]
        %v1789 = vld [vmem:[%s1748 + $0x61] sm:$0xff]
        %v1790 = vld [vmem:[%s1748 + $0x69] sm:$0xff]
        %v1791 = vld [vmem:[%s1748 + $0x79] sm:$0xff]
        %v1792 = vld [vmem:[%s1748 + $0x81] sm:$0xff]
        %v1793 = vld [vmem:[%s1748 + $0x91] sm:$0xff]
        %v1794 = vld [vmem:[%s1748 + $0x99] sm:$0xff]
        %v1795 = vld [vmem:[%s1748 + $0xa9] sm:$0xff]
        %v1796 = vld [vmem:[%s1748 + $0xb1] sm:$0xff]
        %v1797 = vld [vmem:[%s1748 + $0xc1] sm:$0xff]
        %v1798 = vld [vmem:[%s1748 + $0xc9] sm:$0xff]
        %v1799 = vld [vmem:[%s1748 + $0xd9] sm:$0xff]
        %v1800 = vld [vmem:[%s1748 + $0xe1] sm:$0xff]
        %v1801 = vld [vmem:[%s1748 + $0xf1] sm:$0xff]
        %v1802 = vld [vmem:[%s1748 + $0xf9] sm:$0xff]
        %v1803 = vld [vmem:[%s1748 + $0x109] sm:$0xff]
        %v1804 = vld [vmem:[%s1748 + $0x111] sm:$0xff]
        %v1805 = vld [vmem:[%s1748 + $0x121] sm:$0xff]
        %v1806 = vld [vmem:[%s1748 + $0x129] sm:$0xff]
        %v1807 = vld [vmem:[%s1748 + $0x139] sm:$0xff]
        %v1808 = vld [vmem:[%s1748 + $0x141] sm:$0xff]
        %v1809 = vld [vmem:[%s1748 + $0x151] sm:$0xff]
        %v1810 = vld [vmem:[%s1748 + $0x159] sm:$0xff]
        %v1811 = vld [vmem:[%s1748 + $0x169] sm:$0xff]
        %v1812 = vld [vmem:[%s1748 + $0x171] sm:$0xff]
        %v1813 = vld [vmem:[%s1748 + $0x2] sm:$0xff]
        %v1814 = vld [vmem:[%s1748 + $0xa] sm:$0xff]
        %v1815 = vld [vmem:[%s1748 + $0x1a] sm:$0xff]
        %v1816 = vld [vmem:[%s1748 + $0x22] sm:$0xff]
        %v1817 = vld [vmem:[%s1748 + $0x32] sm:$0xff]
        %v1818 = vld [vmem:[%s1748 + $0x3a] sm:$0xff]
        %v1819 = vld [vmem:[%s1748 + $0x4a] sm:$0xff]
        %v1820 = vld [vmem:[%s1748 + $0x52] sm:$0xff]
        %v1821 = vld [vmem:[%s1748 + $0x62] sm:$0xff]
        %v1822 = vld [vmem:[%s1748 + $0x6a] sm:$0xff]
        %v1823 = vld [vmem:[%s1748 + $0x7a] sm:$0xff]
        %v1824 = vld [vmem:[%s1748 + $0x82] sm:$0xff]
        %v1825 = vld [vmem:[%s1748 + $0x92] sm:$0xff]
        %v1826 = vld [vmem:[%s1748 + $0x9a] sm:$0xff]
        %v1827 = vld [vmem:[%s1748 + $0xaa] sm:$0xff]
        %v1828 = vld [vmem:[%s1748 + $0xb2] sm:$0xff]
        %v1829 = vld [vmem:[%s1748 + $0xc2] sm:$0xff]
        %v1830 = vld [vmem:[%s1748 + $0xca] sm:$0xff]
        %v1831 = vld [vmem:[%s1748 + $0xda] sm:$0xff]
        %v1832 = vld [vmem:[%s1748 + $0xe2] sm:$0xff]
        %v1833 = vld [vmem:[%s1748 + $0xf2] sm:$0xff]
        %v1834 = vld [vmem:[%s1748 + $0xfa] sm:$0xff]
        %v1835 = vld [vmem:[%s1748 + $0x10a] sm:$0xff]
        %v1836 = vld [vmem:[%s1748 + $0x112] sm:$0xff]
        %v1837 = vld [vmem:[%s1748 + $0x122] sm:$0xff]
        %v1838 = vld [vmem:[%s1748 + $0x12a] sm:$0xff]
        %v1839 = vld [vmem:[%s1748 + $0x13a] sm:$0xff]
        %v1840 = vld [vmem:[%s1748 + $0x142] sm:$0xff]
        %v1841 = vld [vmem:[%s1748 + $0x152] sm:$0xff]
        %v1842 = vld [vmem:[%s1748 + $0x15a] sm:$0xff]
        %v1843 = vld [vmem:[%s1748 + $0x16a] sm:$0xff]
        %v1844 = vld [vmem:[%s1748 + $0x172] sm:$0xff]
        %1877 = vrot.lane.b32.xlu0 %v1588, 16
        %v1878 = vpop.permute.xlu0 %1877
        %1879 = vrot.lane.b32.xlu0 %v1589, 16
        %v1880 = vpop.permute.xlu0 %1879
        %1881 = vrot.lane.b32.xlu0 %v1590, 16
        %v1882 = vpop.permute.xlu0 %1881
        %1883 = vrot.lane.b32.xlu0 %v1591, 16
        %v1884 = vpop.permute.xlu0 %1883
        %1885 = vrot.lane.b32.xlu0 %v1592, 16
        %v1886 = vpop.permute.xlu0 %1885
        %1887 = vrot.lane.b32.xlu0 %v1593, 16
        %v1888 = vpop.permute.xlu0 %1887
        %1889 = vrot.lane.b32.xlu0 %v1594, 16
        %v1890 = vpop.permute.xlu0 %1889
        %1891 = vrot.lane.b32.xlu0 %v1595, 16
        %v1892 = vpop.permute.xlu0 %1891
        %1893 = vrot.lane.b32.xlu0 %v1596, 16
        %v1894 = vpop.permute.xlu0 %1893
        %1895 = vrot.lane.b32.xlu0 %v1597, 16
        %v1896 = vpop.permute.xlu0 %1895
        %1897 = vrot.lane.b32.xlu0 %v1598, 16
        %v1898 = vpop.permute.xlu0 %1897
        %1899 = vrot.lane.b32.xlu0 %v1599, 16
        %v1900 = vpop.permute.xlu0 %1899
        %1901 = vrot.lane.b32.xlu0 %v1600, 16
        %v1902 = vpop.permute.xlu0 %1901
        %1903 = vrot.lane.b32.xlu0 %v1601, 16
        %v1904 = vpop.permute.xlu0 %1903
        %1905 = vrot.lane.b32.xlu0 %v1602, 16
        %v1906 = vpop.permute.xlu0 %1905
        %1907 = vrot.lane.b32.xlu0 %v1603, 16
        %v1908 = vpop.permute.xlu0 %1907
        %1909 = vrot.lane.b32.xlu0 %v1604, 16
        %v1910 = vpop.permute.xlu0 %1909
        %1911 = vrot.lane.b32.xlu0 %v1605, 16
        %v1912 = vpop.permute.xlu0 %1911
        %1913 = vrot.lane.b32.xlu0 %v1606, 16
        %v1914 = vpop.permute.xlu0 %1913
        %1915 = vrot.lane.b32.xlu0 %v1607, 16
        %v1916 = vpop.permute.xlu0 %1915
        %1917 = vrot.lane.b32.xlu0 %v1608, 16
        %v1918 = vpop.permute.xlu0 %1917
        %1919 = vrot.lane.b32.xlu0 %v1609, 16
        %v1920 = vpop.permute.xlu0 %1919
        %1921 = vrot.lane.b32.xlu0 %v1610, 16
        %v1922 = vpop.permute.xlu0 %1921
        %1923 = vrot.lane.b32.xlu0 %v1611, 16
        %v1924 = vpop.permute.xlu0 %1923
        %1925 = vrot.lane.b32.xlu0 %v1612, 16
        %v1926 = vpop.permute.xlu0 %1925
        %1927 = vrot.lane.b32.xlu0 %v1613, 16
        %v1928 = vpop.permute.xlu0 %1927
        %1929 = vrot.lane.b32.xlu0 %v1614, 16
        %v1930 = vpop.permute.xlu0 %1929
        %1931 = vrot.lane.b32.xlu0 %v1615, 16
        %v1932 = vpop.permute.xlu0 %1931
        %1933 = vrot.lane.b32.xlu0 %v1616, 16
        %v1934 = vpop.permute.xlu0 %1933
        %1935 = vrot.lane.b32.xlu0 %v1617, 16
        %v1936 = vpop.permute.xlu0 %1935
        %1937 = vrot.lane.b32.xlu0 %v1618, 16
        %v1938 = vpop.permute.xlu0 %1937
        %1939 = vrot.lane.b32.xlu0 %v1619, 16
        %v1940 = vpop.permute.xlu0 %1939
        %2005 = vrot.lane.b32.xlu0 %v1620, 32
        %v2006 = vpop.permute.xlu0 %2005
        %2007 = vrot.lane.b32.xlu0 %v1621, 32
        %v2008 = vpop.permute.xlu0 %2007
        %2009 = vrot.lane.b32.xlu0 %v1622, 32
        %v2010 = vpop.permute.xlu0 %2009
        %2011 = vrot.lane.b32.xlu0 %v1623, 32
        %v2012 = vpop.permute.xlu0 %2011
        %2013 = vrot.lane.b32.xlu0 %v1624, 32
        %v2014 = vpop.permute.xlu0 %2013
        %2015 = vrot.lane.b32.xlu0 %v1625, 32
        %v2016 = vpop.permute.xlu0 %2015
        %2017 = vrot.lane.b32.xlu0 %v1626, 32
        %v2018 = vpop.permute.xlu0 %2017
        %2019 = vrot.lane.b32.xlu0 %v1627, 32
        %v2020 = vpop.permute.xlu0 %2019
        %2021 = vrot.lane.b32.xlu0 %v1628, 32
        %v2022 = vpop.permute.xlu0 %2021
        %2023 = vrot.lane.b32.xlu0 %v1629, 32
        %v2024 = vpop.permute.xlu0 %2023
        %2025 = vrot.lane.b32.xlu0 %v1630, 32
        %v2026 = vpop.permute.xlu0 %2025
        %2027 = vrot.lane.b32.xlu0 %v1631, 32
        %v2028 = vpop.permute.xlu0 %2027
        %2029 = vrot.lane.b32.xlu0 %v1632, 32
        %v2030 = vpop.permute.xlu0 %2029
        %2031 = vrot.lane.b32.xlu0 %v1633, 32
        %v2032 = vpop.permute.xlu0 %2031
        %2033 = vrot.lane.b32.xlu0 %v1634, 32
        %v2034 = vpop.permute.xlu0 %2033
        %2035 = vrot.lane.b32.xlu0 %v1635, 32
        %v2036 = vpop.permute.xlu0 %2035
        %2037 = vrot.lane.b32.xlu0 %v1636, 32
        %v2038 = vpop.permute.xlu0 %2037
        %2039 = vrot.lane.b32.xlu0 %v1637, 32
        %v2040 = vpop.permute.xlu0 %2039
        %2041 = vrot.lane.b32.xlu0 %v1638, 32
        %v2042 = vpop.permute.xlu0 %2041
        %2043 = vrot.lane.b32.xlu0 %v1639, 32
        %v2044 = vpop.permute.xlu0 %2043
        %2045 = vrot.lane.b32.xlu0 %v1640, 32
        %v2046 = vpop.permute.xlu0 %2045
        %2047 = vrot.lane.b32.xlu0 %v1641, 32
        %v2048 = vpop.permute.xlu0 %2047
        %2049 = vrot.lane.b32.xlu0 %v1642, 32
        %v2050 = vpop.permute.xlu0 %2049
        %2051 = vrot.lane.b32.xlu0 %v1643, 32
        %v2052 = vpop.permute.xlu0 %2051
        %2053 = vrot.lane.b32.xlu0 %v1644, 32
        %v2054 = vpop.permute.xlu0 %2053
        %2055 = vrot.lane.b32.xlu0 %v1645, 32
        %v2056 = vpop.permute.xlu0 %2055
        %2057 = vrot.lane.b32.xlu0 %v1646, 32
        %v2058 = vpop.permute.xlu0 %2057
        %2059 = vrot.lane.b32.xlu0 %v1647, 32
        %v2060 = vpop.permute.xlu0 %2059
        %2061 = vrot.lane.b32.xlu0 %v1648, 32
        %v2062 = vpop.permute.xlu0 %2061
        %2063 = vrot.lane.b32.xlu0 %v1649, 32
        %v2064 = vpop.permute.xlu0 %2063
        %2065 = vrot.lane.b32.xlu0 %v1650, 32
        %v2066 = vpop.permute.xlu0 %2065
        %2067 = vrot.lane.b32.xlu0 %v1651, 32
        %v2068 = vpop.permute.xlu0 %2067
        %2133 = vrot.lane.b32.xlu0 %v1652, 48
        %v2134 = vpop.permute.xlu0 %2133
        %2135 = vrot.lane.b32.xlu0 %v1653, 48
        %v2136 = vpop.permute.xlu0 %2135
        %2137 = vrot.lane.b32.xlu0 %v1654, 48
        %v2138 = vpop.permute.xlu0 %2137
        %2139 = vrot.lane.b32.xlu0 %v1655, 48
        %v2140 = vpop.permute.xlu0 %2139
        %2141 = vrot.lane.b32.xlu0 %v1656, 48
        %v2142 = vpop.permute.xlu0 %2141
        %2143 = vrot.lane.b32.xlu0 %v1657, 48
        %v2144 = vpop.permute.xlu0 %2143
        %2145 = vrot.lane.b32.xlu0 %v1658, 48
        %v2146 = vpop.permute.xlu0 %2145
        %2147 = vrot.lane.b32.xlu0 %v1659, 48
        %v2148 = vpop.permute.xlu0 %2147
        %2149 = vrot.lane.b32.xlu0 %v1660, 48
        %v2150 = vpop.permute.xlu0 %2149
        %2151 = vrot.lane.b32.xlu0 %v1661, 48
        %v2152 = vpop.permute.xlu0 %2151
        %2153 = vrot.lane.b32.xlu0 %v1662, 48
        %v2154 = vpop.permute.xlu0 %2153
        %2155 = vrot.lane.b32.xlu0 %v1663, 48
        %v2156 = vpop.permute.xlu0 %2155
        %2157 = vrot.lane.b32.xlu0 %v1664, 48
        %v2158 = vpop.permute.xlu0 %2157
        %2159 = vrot.lane.b32.xlu0 %v1665, 48
        %v2160 = vpop.permute.xlu0 %2159
        %2161 = vrot.lane.b32.xlu0 %v1666, 48
        %v2162 = vpop.permute.xlu0 %2161
        %2163 = vrot.lane.b32.xlu0 %v1667, 48
        %v2164 = vpop.permute.xlu0 %2163
        %2165 = vrot.lane.b32.xlu0 %v1668, 48
        %v2166 = vpop.permute.xlu0 %2165
        %2167 = vrot.lane.b32.xlu0 %v1669, 48
        %v2168 = vpop.permute.xlu0 %2167
        %2169 = vrot.lane.b32.xlu0 %v1670, 48
        %v2170 = vpop.permute.xlu0 %2169
        %2171 = vrot.lane.b32.xlu0 %v1671, 48
        %v2172 = vpop.permute.xlu0 %2171
        %2173 = vrot.lane.b32.xlu0 %v1672, 48
        %v2174 = vpop.permute.xlu0 %2173
        %2175 = vrot.lane.b32.xlu0 %v1673, 48
        %v2176 = vpop.permute.xlu0 %2175
        %2177 = vrot.lane.b32.xlu0 %v1674, 48
        %v2178 = vpop.permute.xlu0 %2177
        %2179 = vrot.lane.b32.xlu0 %v1675, 48
        %v2180 = vpop.permute.xlu0 %2179
        %2181 = vrot.lane.b32.xlu0 %v1676, 48
        %v2182 = vpop.permute.xlu0 %2181
        %2183 = vrot.lane.b32.xlu0 %v1677, 48
        %v2184 = vpop.permute.xlu0 %2183
        %2185 = vrot.lane.b32.xlu0 %v1678, 48
        %v2186 = vpop.permute.xlu0 %2185
        %2187 = vrot.lane.b32.xlu0 %v1679, 48
        %v2188 = vpop.permute.xlu0 %2187
        %2189 = vrot.lane.b32.xlu0 %v1680, 48
        %v2190 = vpop.permute.xlu0 %2189
        %2191 = vrot.lane.b32.xlu0 %v1681, 48
        %v2192 = vpop.permute.xlu0 %2191
        %2193 = vrot.lane.b32.xlu0 %v1682, 48
        %v2194 = vpop.permute.xlu0 %2193
        %2195 = vrot.lane.b32.xlu0 %v1683, 48
        %v2196 = vpop.permute.xlu0 %2195
        %2261 = vrot.lane.b32.xlu0 %v1684, 64
        %v2262 = vpop.permute.xlu0 %2261
        %2263 = vrot.lane.b32.xlu0 %v1685, 64
        %v2264 = vpop.permute.xlu0 %2263
        %2265 = vrot.lane.b32.xlu0 %v1686, 64
        %v2266 = vpop.permute.xlu0 %2265
        %2267 = vrot.lane.b32.xlu0 %v1687, 64
        %v2268 = vpop.permute.xlu0 %2267
        %2269 = vrot.lane.b32.xlu0 %v1688, 64
        %v2270 = vpop.permute.xlu0 %2269
        %2271 = vrot.lane.b32.xlu0 %v1689, 64
        %v2272 = vpop.permute.xlu0 %2271
        %2273 = vrot.lane.b32.xlu0 %v1690, 64
        %v2274 = vpop.permute.xlu0 %2273
        %2275 = vrot.lane.b32.xlu0 %v1691, 64
        %v2276 = vpop.permute.xlu0 %2275
        %2277 = vrot.lane.b32.xlu0 %v1692, 64
        %v2278 = vpop.permute.xlu0 %2277
        %2279 = vrot.lane.b32.xlu0 %v1693, 64
        %v2280 = vpop.permute.xlu0 %2279
        %2281 = vrot.lane.b32.xlu0 %v1694, 64
        %v2282 = vpop.permute.xlu0 %2281
        %2283 = vrot.lane.b32.xlu0 %v1695, 64
        %v2284 = vpop.permute.xlu0 %2283
        %2285 = vrot.lane.b32.xlu0 %v1696, 64
        %v2286 = vpop.permute.xlu0 %2285
        %2287 = vrot.lane.b32.xlu0 %v1697, 64
        %v2288 = vpop.permute.xlu0 %2287
        %2289 = vrot.lane.b32.xlu0 %v1698, 64
        %v2290 = vpop.permute.xlu0 %2289
        %2291 = vrot.lane.b32.xlu0 %v1699, 64
        %v2292 = vpop.permute.xlu0 %2291
        %2293 = vrot.lane.b32.xlu0 %v1700, 64
        %v2294 = vpop.permute.xlu0 %2293
        %2295 = vrot.lane.b32.xlu0 %v1701, 64
        %v2296 = vpop.permute.xlu0 %2295
        %2297 = vrot.lane.b32.xlu0 %v1702, 64
        %v2298 = vpop.permute.xlu0 %2297
        %2299 = vrot.lane.b32.xlu0 %v1703, 64
        %v2300 = vpop.permute.xlu0 %2299
        %2301 = vrot.lane.b32.xlu0 %v1704, 64
        %v2302 = vpop.permute.xlu0 %2301
        %2303 = vrot.lane.b32.xlu0 %v1705, 64
        %v2304 = vpop.permute.xlu0 %2303
        %2305 = vrot.lane.b32.xlu0 %v1706, 64
        %v2306 = vpop.permute.xlu0 %2305
        %2307 = vrot.lane.b32.xlu0 %v1707, 64
        %v2308 = vpop.permute.xlu0 %2307
        %2309 = vrot.lane.b32.xlu0 %v1708, 64
        %v2310 = vpop.permute.xlu0 %2309
        %2311 = vrot.lane.b32.xlu0 %v1709, 64
        %v2312 = vpop.permute.xlu0 %2311
        %2313 = vrot.lane.b32.xlu0 %v1710, 64
        %v2314 = vpop.permute.xlu0 %2313
        %2315 = vrot.lane.b32.xlu0 %v1711, 64
        %v2316 = vpop.permute.xlu0 %2315
        %2317 = vrot.lane.b32.xlu0 %v1712, 64
        %v2318 = vpop.permute.xlu0 %2317
        %2319 = vrot.lane.b32.xlu0 %v1713, 64
        %v2320 = vpop.permute.xlu0 %2319
        %2321 = vrot.lane.b32.xlu0 %v1714, 64
        %v2322 = vpop.permute.xlu0 %2321
        %2323 = vrot.lane.b32.xlu0 %v1715, 64
        %v2324 = vpop.permute.xlu0 %2323
        %2389 = vrot.lane.b32.xlu0 %v1716, 80
        %v2390 = vpop.permute.xlu0 %2389
        %2391 = vrot.lane.b32.xlu0 %v1717, 80
        %v2392 = vpop.permute.xlu0 %2391
        %2393 = vrot.lane.b32.xlu0 %v1718, 80
        %v2394 = vpop.permute.xlu0 %2393
        %2395 = vrot.lane.b32.xlu0 %v1719, 80
        %v2396 = vpop.permute.xlu0 %2395
        %2397 = vrot.lane.b32.xlu0 %v1720, 80
        %v2398 = vpop.permute.xlu0 %2397
        %2399 = vrot.lane.b32.xlu0 %v1721, 80
        %v2400 = vpop.permute.xlu0 %2399
        %2401 = vrot.lane.b32.xlu0 %v1722, 80
        %v2402 = vpop.permute.xlu0 %2401
        %2403 = vrot.lane.b32.xlu0 %v1723, 80
        %v2404 = vpop.permute.xlu0 %2403
        %2405 = vrot.lane.b32.xlu0 %v1724, 80
        %v2406 = vpop.permute.xlu0 %2405
        %2407 = vrot.lane.b32.xlu0 %v1725, 80
        %v2408 = vpop.permute.xlu0 %2407
        %2409 = vrot.lane.b32.xlu0 %v1726, 80
        %v2410 = vpop.permute.xlu0 %2409
        %2411 = vrot.lane.b32.xlu0 %v1727, 80
        %v2412 = vpop.permute.xlu0 %2411
        %2413 = vrot.lane.b32.xlu0 %v1728, 80
        %v2414 = vpop.permute.xlu0 %2413
        %2415 = vrot.lane.b32.xlu0 %v1729, 80
        %v2416 = vpop.permute.xlu0 %2415
        %2417 = vrot.lane.b32.xlu0 %v1730, 80
        %v2418 = vpop.permute.xlu0 %2417
        %2419 = vrot.lane.b32.xlu0 %v1731, 80
        %v2420 = vpop.permute.xlu0 %2419
        %2421 = vrot.lane.b32.xlu0 %v1732, 80
        %v2422 = vpop.permute.xlu0 %2421
        %2423 = vrot.lane.b32.xlu0 %v1733, 80
        %v2424 = vpop.permute.xlu0 %2423
        %2425 = vrot.lane.b32.xlu0 %v1734, 80
        %v2426 = vpop.permute.xlu0 %2425
        %2427 = vrot.lane.b32.xlu0 %v1735, 80
        %v2428 = vpop.permute.xlu0 %2427
        %2429 = vrot.lane.b32.xlu0 %v1736, 80
        %v2430 = vpop.permute.xlu0 %2429
        %2431 = vrot.lane.b32.xlu0 %v1737, 80
        %v2432 = vpop.permute.xlu0 %2431
        %2433 = vrot.lane.b32.xlu0 %v1738, 80
        %v2434 = vpop.permute.xlu0 %2433
        %2435 = vrot.lane.b32.xlu0 %v1739, 80
        %v2436 = vpop.permute.xlu0 %2435
        %2437 = vrot.lane.b32.xlu0 %v1740, 80
        %v2438 = vpop.permute.xlu0 %2437
        %2439 = vrot.lane.b32.xlu0 %v1741, 80
        %v2440 = vpop.permute.xlu0 %2439
        %2441 = vrot.lane.b32.xlu0 %v1742, 80
        %v2442 = vpop.permute.xlu0 %2441
        %2443 = vrot.lane.b32.xlu0 %v1743, 80
        %v2444 = vpop.permute.xlu0 %2443
        %2445 = vrot.lane.b32.xlu0 %v1744, 80
        %v2446 = vpop.permute.xlu0 %2445
        %2447 = vrot.lane.b32.xlu0 %v1745, 80
        %v2448 = vpop.permute.xlu0 %2447
        %2449 = vrot.lane.b32.xlu0 %v1746, 80
        %v2450 = vpop.permute.xlu0 %2449
        %2451 = vrot.lane.b32.xlu0 %v1747, 80
        %v2452 = vpop.permute.xlu0 %2451
        %2517 = vrot.lane.b32.xlu0 %v1749, 96
        %v2518 = vpop.permute.xlu0 %2517
        %2519 = vrot.lane.b32.xlu0 %v1750, 96
        %v2520 = vpop.permute.xlu0 %2519
        %2521 = vrot.lane.b32.xlu0 %v1751, 96
        %v2522 = vpop.permute.xlu0 %2521
        %2523 = vrot.lane.b32.xlu0 %v1752, 96
        %v2524 = vpop.permute.xlu0 %2523
        %2525 = vrot.lane.b32.xlu0 %v1753, 96
        %v2526 = vpop.permute.xlu0 %2525
        %2527 = vrot.lane.b32.xlu0 %v1754, 96
        %v2528 = vpop.permute.xlu0 %2527
        %2529 = vrot.lane.b32.xlu0 %v1755, 96
        %v2530 = vpop.permute.xlu0 %2529
        %2531 = vrot.lane.b32.xlu0 %v1756, 96
        %v2532 = vpop.permute.xlu0 %2531
        %2533 = vrot.lane.b32.xlu0 %v1757, 96
        %v2534 = vpop.permute.xlu0 %2533
        %2535 = vrot.lane.b32.xlu0 %v1758, 96
        %v2536 = vpop.permute.xlu0 %2535
        %2537 = vrot.lane.b32.xlu0 %v1759, 96
        %v2538 = vpop.permute.xlu0 %2537
        %2539 = vrot.lane.b32.xlu0 %v1760, 96
        %v2540 = vpop.permute.xlu0 %2539
        %2541 = vrot.lane.b32.xlu0 %v1761, 96
        %v2542 = vpop.permute.xlu0 %2541
        %2543 = vrot.lane.b32.xlu0 %v1762, 96
        %v2544 = vpop.permute.xlu0 %2543
        %2545 = vrot.lane.b32.xlu0 %v1763, 96
        %v2546 = vpop.permute.xlu0 %2545
        %2547 = vrot.lane.b32.xlu0 %v1764, 96
        %v2548 = vpop.permute.xlu0 %2547
        %2549 = vrot.lane.b32.xlu0 %v1765, 96
        %v2550 = vpop.permute.xlu0 %2549
        %2551 = vrot.lane.b32.xlu0 %v1766, 96
        %v2552 = vpop.permute.xlu0 %2551
        %2553 = vrot.lane.b32.xlu0 %v1767, 96
        %v2554 = vpop.permute.xlu0 %2553
        %2555 = vrot.lane.b32.xlu0 %v1768, 96
        %v2556 = vpop.permute.xlu0 %2555
        %2557 = vrot.lane.b32.xlu0 %v1769, 96
        %v2558 = vpop.permute.xlu0 %2557
        %2559 = vrot.lane.b32.xlu0 %v1770, 96
        %v2560 = vpop.permute.xlu0 %2559
        %2561 = vrot.lane.b32.xlu0 %v1771, 96
        %v2562 = vpop.permute.xlu0 %2561
        %2563 = vrot.lane.b32.xlu0 %v1772, 96
        %v2564 = vpop.permute.xlu0 %2563
        %2565 = vrot.lane.b32.xlu0 %v1773, 96
        %v2566 = vpop.permute.xlu0 %2565
        %2567 = vrot.lane.b32.xlu0 %v1774, 96
        %v2568 = vpop.permute.xlu0 %2567
        %2569 = vrot.lane.b32.xlu0 %v1775, 96
        %v2570 = vpop.permute.xlu0 %2569
        %2571 = vrot.lane.b32.xlu0 %v1776, 96
        %v2572 = vpop.permute.xlu0 %2571
        %2573 = vrot.lane.b32.xlu0 %v1777, 96
        %v2574 = vpop.permute.xlu0 %2573
        %2575 = vrot.lane.b32.xlu0 %v1778, 96
        %v2576 = vpop.permute.xlu0 %2575
        %2577 = vrot.lane.b32.xlu0 %v1779, 96
        %v2578 = vpop.permute.xlu0 %2577
        %2579 = vrot.lane.b32.xlu0 %v1780, 96
        %v2580 = vpop.permute.xlu0 %2579
        %2645 = vrot.lane.b32.xlu0 %v1781, 112
        %v2646 = vpop.permute.xlu0 %2645
        %2647 = vrot.lane.b32.xlu0 %v1782, 112
        %v2648 = vpop.permute.xlu0 %2647
        %2649 = vrot.lane.b32.xlu0 %v1783, 112
        %v2650 = vpop.permute.xlu0 %2649
        %2651 = vrot.lane.b32.xlu0 %v1784, 112
        %v2652 = vpop.permute.xlu0 %2651
        %2653 = vrot.lane.b32.xlu0 %v1785, 112
        %v2654 = vpop.permute.xlu0 %2653
        %2655 = vrot.lane.b32.xlu0 %v1786, 112
        %v2656 = vpop.permute.xlu0 %2655
        %2657 = vrot.lane.b32.xlu0 %v1787, 112
        %v2658 = vpop.permute.xlu0 %2657
        %2659 = vrot.lane.b32.xlu0 %v1788, 112
        %v2660 = vpop.permute.xlu0 %2659
        %2661 = vrot.lane.b32.xlu0 %v1789, 112
        %v2662 = vpop.permute.xlu0 %2661
        %2663 = vrot.lane.b32.xlu0 %v1790, 112
        %v2664 = vpop.permute.xlu0 %2663
        %2665 = vrot.lane.b32.xlu0 %v1791, 112
        %v2666 = vpop.permute.xlu0 %2665
        %2667 = vrot.lane.b32.xlu0 %v1792, 112
        %v2668 = vpop.permute.xlu0 %2667
        %2669 = vrot.lane.b32.xlu0 %v1793, 112
        %v2670 = vpop.permute.xlu0 %2669
        %2671 = vrot.lane.b32.xlu0 %v1794, 112
        %v2672 = vpop.permute.xlu0 %2671
        %2673 = vrot.lane.b32.xlu0 %v1795, 112
        %v2674 = vpop.permute.xlu0 %2673
        %2675 = vrot.lane.b32.xlu0 %v1796, 112
        %v2676 = vpop.permute.xlu0 %2675
        %2677 = vrot.lane.b32.xlu0 %v1797, 112
        %v2678 = vpop.permute.xlu0 %2677
        %2679 = vrot.lane.b32.xlu0 %v1798, 112
        %v2680 = vpop.permute.xlu0 %2679
        %2681 = vrot.lane.b32.xlu0 %v1799, 112
        %v2682 = vpop.permute.xlu0 %2681
        %2683 = vrot.lane.b32.xlu0 %v1800, 112
        %v2684 = vpop.permute.xlu0 %2683
        %2685 = vrot.lane.b32.xlu0 %v1801, 112
        %v2686 = vpop.permute.xlu0 %2685
        %2687 = vrot.lane.b32.xlu0 %v1802, 112
        %v2688 = vpop.permute.xlu0 %2687
        %2689 = vrot.lane.b32.xlu0 %v1803, 112
        %v2690 = vpop.permute.xlu0 %2689
        %2691 = vrot.lane.b32.xlu0 %v1804, 112
        %v2692 = vpop.permute.xlu0 %2691
        %2693 = vrot.lane.b32.xlu0 %v1805, 112
        %v2694 = vpop.permute.xlu0 %2693
        %2695 = vrot.lane.b32.xlu0 %v1806, 112
        %v2696 = vpop.permute.xlu0 %2695
        %2697 = vrot.lane.b32.xlu0 %v1807, 112
        %v2698 = vpop.permute.xlu0 %2697
        %2699 = vrot.lane.b32.xlu0 %v1808, 112
        %v2700 = vpop.permute.xlu0 %2699
        %2701 = vrot.lane.b32.xlu0 %v1809, 112
        %v2702 = vpop.permute.xlu0 %2701
        %2703 = vrot.lane.b32.xlu0 %v1810, 112
        %v2704 = vpop.permute.xlu0 %2703
        %2705 = vrot.lane.b32.xlu0 %v1811, 112
        %v2706 = vpop.permute.xlu0 %2705
        %2707 = vrot.lane.b32.xlu0 %v1812, 112
        %v2708 = vpop.permute.xlu0 %2707
        %v2741 = vsel %vm1380, %v1556, %v1878
        %v2742 = vsel %vm1380, %v1557, %v1880
        %v2743 = vsel %vm1380, %v1558, %v1882
        %v2744 = vsel %vm1380, %v1559, %v1884
        %v2745 = vsel %vm1380, %v1560, %v1886
        %v2746 = vsel %vm1380, %v1561, %v1888
        %v2747 = vsel %vm1380, %v1562, %v1890
        %v2748 = vsel %vm1380, %v1563, %v1892
        %v2749 = vsel %vm1380, %v1564, %v1894
        %v2750 = vsel %vm1380, %v1565, %v1896
        %v2751 = vsel %vm1380, %v1566, %v1898
        %v2752 = vsel %vm1380, %v1567, %v1900
        %v2753 = vsel %vm1380, %v1568, %v1902
        %v2754 = vsel %vm1380, %v1569, %v1904
        %v2755 = vsel %vm1380, %v1570, %v1906
        %v2756 = vsel %vm1380, %v1571, %v1908
        %v2757 = vsel %vm1380, %v1572, %v1910
        %v2758 = vsel %vm1380, %v1573, %v1912
        %v2759 = vsel %vm1380, %v1574, %v1914
        %v2760 = vsel %vm1380, %v1575, %v1916
        %v2761 = vsel %vm1380, %v1576, %v1918
        %v2762 = vsel %vm1380, %v1577, %v1920
        %v2763 = vsel %vm1380, %v1578, %v1922
        %v2764 = vsel %vm1380, %v1579, %v1924
        %v2765 = vsel %vm1380, %v1580, %v1926
        %v2766 = vsel %vm1380, %v1581, %v1928
        %v2767 = vsel %vm1380, %v1582, %v1930
        %v2768 = vsel %vm1380, %v1583, %v1932
        %v2769 = vsel %vm1380, %v1584, %v1934
        %v2770 = vsel %vm1380, %v1585, %v1936
        %v2771 = vsel %vm1380, %v1586, %v1938
        %v2772 = vsel %vm1380, %v1587, %v1940
        %vm2773 = vcmask 261120
        %v2774 = vsel %vm2773, %v2741, %v2006
        %v2775 = vsel %vm2773, %v2742, %v2008
        %v2776 = vsel %vm2773, %v2743, %v2010
        %v2777 = vsel %vm2773, %v2744, %v2012
        %v2778 = vsel %vm2773, %v2745, %v2014
        %v2779 = vsel %vm2773, %v2746, %v2016
        %v2780 = vsel %vm2773, %v2747, %v2018
        %v2781 = vsel %vm2773, %v2748, %v2020
        %v2782 = vsel %vm2773, %v2749, %v2022
        %v2783 = vsel %vm2773, %v2750, %v2024
        %v2784 = vsel %vm2773, %v2751, %v2026
        %v2785 = vsel %vm2773, %v2752, %v2028
        %v2786 = vsel %vm2773, %v2753, %v2030
        %v2787 = vsel %vm2773, %v2754, %v2032
        %v2788 = vsel %vm2773, %v2755, %v2034
        %v2789 = vsel %vm2773, %v2756, %v2036
        %v2790 = vsel %vm2773, %v2757, %v2038
        %v2791 = vsel %vm2773, %v2758, %v2040
        %v2792 = vsel %vm2773, %v2759, %v2042
        %v2793 = vsel %vm2773, %v2760, %v2044
        %v2794 = vsel %vm2773, %v2761, %v2046
        %v2795 = vsel %vm2773, %v2762, %v2048
        %v2796 = vsel %vm2773, %v2763, %v2050
        %v2797 = vsel %vm2773, %v2764, %v2052
        %v2798 = vsel %vm2773, %v2765, %v2054
        %v2799 = vsel %vm2773, %v2766, %v2056
        %v2800 = vsel %vm2773, %v2767, %v2058
        %v2801 = vsel %vm2773, %v2768, %v2060
        %v2802 = vsel %vm2773, %v2769, %v2062
        %v2803 = vsel %vm2773, %v2770, %v2064
        %v2804 = vsel %vm2773, %v2771, %v2066
        %v2805 = vsel %vm2773, %v2772, %v2068
        %vm2806 = vcmask 392192
        %v2807 = vsel %vm2806, %v2774, %v2134
        %v2808 = vsel %vm2806, %v2775, %v2136
        %v2809 = vsel %vm2806, %v2776, %v2138
        %v2810 = vsel %vm2806, %v2777, %v2140
        %v2811 = vsel %vm2806, %v2778, %v2142
        %v2812 = vsel %vm2806, %v2779, %v2144
        %v2813 = vsel %vm2806, %v2780, %v2146
        %v2814 = vsel %vm2806, %v2781, %v2148
        %v2815 = vsel %vm2806, %v2782, %v2150
        %v2816 = vsel %vm2806, %v2783, %v2152
        %v2817 = vsel %vm2806, %v2784, %v2154
        %v2818 = vsel %vm2806, %v2785, %v2156
        %v2819 = vsel %vm2806, %v2786, %v2158
        %v2820 = vsel %vm2806, %v2787, %v2160
        %v2821 = vsel %vm2806, %v2788, %v2162
        %v2822 = vsel %vm2806, %v2789, %v2164
        %v2823 = vsel %vm2806, %v2790, %v2166
        %v2824 = vsel %vm2806, %v2791, %v2168
        %v2825 = vsel %vm2806, %v2792, %v2170
        %v2826 = vsel %vm2806, %v2793, %v2172
        %v2827 = vsel %vm2806, %v2794, %v2174
        %v2828 = vsel %vm2806, %v2795, %v2176
        %v2829 = vsel %vm2806, %v2796, %v2178
        %v2830 = vsel %vm2806, %v2797, %v2180
        %v2831 = vsel %vm2806, %v2798, %v2182
        %v2832 = vsel %vm2806, %v2799, %v2184
        %v2833 = vsel %vm2806, %v2800, %v2186
        %v2834 = vsel %vm2806, %v2801, %v2188
        %v2835 = vsel %vm2806, %v2802, %v2190
        %v2836 = vsel %vm2806, %v2803, %v2192
        %v2837 = vsel %vm2806, %v2804, %v2194
        %v2838 = vsel %vm2806, %v2805, %v2196
        %vm2839 = vcmask 523264
        %v2840 = vsel %vm2839, %v2807, %v2262
        %v2841 = vsel %vm2839, %v2808, %v2264
        %v2842 = vsel %vm2839, %v2809, %v2266
        %v2843 = vsel %vm2839, %v2810, %v2268
        %v2844 = vsel %vm2839, %v2811, %v2270
        %v2845 = vsel %vm2839, %v2812, %v2272
        %v2846 = vsel %vm2839, %v2813, %v2274
        %v2847 = vsel %vm2839, %v2814, %v2276
        %v2848 = vsel %vm2839, %v2815, %v2278
        %v2849 = vsel %vm2839, %v2816, %v2280
        %v2850 = vsel %vm2839, %v2817, %v2282
        %v2851 = vsel %vm2839, %v2818, %v2284
        %v2852 = vsel %vm2839, %v2819, %v2286
        %v2853 = vsel %vm2839, %v2820, %v2288
        %v2854 = vsel %vm2839, %v2821, %v2290
        %v2855 = vsel %vm2839, %v2822, %v2292
        %v2856 = vsel %vm2839, %v2823, %v2294
        %v2857 = vsel %vm2839, %v2824, %v2296
        %v2858 = vsel %vm2839, %v2825, %v2298
        %v2859 = vsel %vm2839, %v2826, %v2300
        %v2860 = vsel %vm2839, %v2827, %v2302
        %v2861 = vsel %vm2839, %v2828, %v2304
        %v2862 = vsel %vm2839, %v2829, %v2306
        %v2863 = vsel %vm2839, %v2830, %v2308
        %v2864 = vsel %vm2839, %v2831, %v2310
        %v2865 = vsel %vm2839, %v2832, %v2312
        %v2866 = vsel %vm2839, %v2833, %v2314
        %v2867 = vsel %vm2839, %v2834, %v2316
        %v2868 = vsel %vm2839, %v2835, %v2318
        %v2869 = vsel %vm2839, %v2836, %v2320
        %v2870 = vsel %vm2839, %v2837, %v2322
        %v2871 = vsel %vm2839, %v2838, %v2324
        %vm2872 = vcmask 654336
        %v2873 = vsel %vm2872, %v2840, %v2390
        %v2874 = vsel %vm2872, %v2841, %v2392
        %v2875 = vsel %vm2872, %v2842, %v2394
        %v2876 = vsel %vm2872, %v2843, %v2396
        %v2877 = vsel %vm2872, %v2844, %v2398
        %v2878 = vsel %vm2872, %v2845, %v2400
        %v2879 = vsel %vm2872, %v2846, %v2402
        %v2880 = vsel %vm2872, %v2847, %v2404
        %v2881 = vsel %vm2872, %v2848, %v2406
        %v2882 = vsel %vm2872, %v2849, %v2408
        %v2883 = vsel %vm2872, %v2850, %v2410
        %v2884 = vsel %vm2872, %v2851, %v2412
        %v2885 = vsel %vm2872, %v2852, %v2414
        %v2886 = vsel %vm2872, %v2853, %v2416
        %v2887 = vsel %vm2872, %v2854, %v2418
        %v2888 = vsel %vm2872, %v2855, %v2420
        %v2889 = vsel %vm2872, %v2856, %v2422
        %v2890 = vsel %vm2872, %v2857, %v2424
        %v2891 = vsel %vm2872, %v2858, %v2426
        %v2892 = vsel %vm2872, %v2859, %v2428
        %v2893 = vsel %vm2872, %v2860, %v2430
        %v2894 = vsel %vm2872, %v2861, %v2432
        %v2895 = vsel %vm2872, %v2862, %v2434
        %v2896 = vsel %vm2872, %v2863, %v2436
        %v2897 = vsel %vm2872, %v2864, %v2438
        %v2898 = vsel %vm2872, %v2865, %v2440
        %v2899 = vsel %vm2872, %v2866, %v2442
        %v2900 = vsel %vm2872, %v2867, %v2444
        %v2901 = vsel %vm2872, %v2868, %v2446
        %v2902 = vsel %vm2872, %v2869, %v2448
        %v2903 = vsel %vm2872, %v2870, %v2450
        %v2904 = vsel %vm2872, %v2871, %v2452
        %vm2905 = vcmask 785408
        %v2906 = vsel %vm2905, %v2873, %v2518
        %v2907 = vsel %vm2905, %v2874, %v2520
        %v2908 = vsel %vm2905, %v2875, %v2522
        %v2909 = vsel %vm2905, %v2876, %v2524
        %v2910 = vsel %vm2905, %v2877, %v2526
        %v2911 = vsel %vm2905, %v2878, %v2528
        %v2912 = vsel %vm2905, %v2879, %v2530
        %v2913 = vsel %vm2905, %v2880, %v2532
        %v2914 = vsel %vm2905, %v2881, %v2534
        %v2915 = vsel %vm2905, %v2882, %v2536
        %v2916 = vsel %vm2905, %v2883, %v2538
        %v2917 = vsel %vm2905, %v2884, %v2540
        %v2918 = vsel %vm2905, %v2885, %v2542
        %v2919 = vsel %vm2905, %v2886, %v2544
        %v2920 = vsel %vm2905, %v2887, %v2546
        %v2921 = vsel %vm2905, %v2888, %v2548
        %v2922 = vsel %vm2905, %v2889, %v2550
        %v2923 = vsel %vm2905, %v2890, %v2552
        %v2924 = vsel %vm2905, %v2891, %v2554
        %v2925 = vsel %vm2905, %v2892, %v2556
        %v2926 = vsel %vm2905, %v2893, %v2558
        %v2927 = vsel %vm2905, %v2894, %v2560
        %v2928 = vsel %vm2905, %v2895, %v2562
        %v2929 = vsel %vm2905, %v2896, %v2564
        %v2930 = vsel %vm2905, %v2897, %v2566
        %v2931 = vsel %vm2905, %v2898, %v2568
        %v2932 = vsel %vm2905, %v2899, %v2570
        %v2933 = vsel %vm2905, %v2900, %v2572
        %v2934 = vsel %vm2905, %v2901, %v2574
        %v2935 = vsel %vm2905, %v2902, %v2576
        %v2936 = vsel %vm2905, %v2903, %v2578
        %v2937 = vsel %vm2905, %v2904, %v2580
        %vm2938 = vcmask 916480
        %v2939 = vsel %vm2938, %v2906, %v2646
        %v2940 = vsel %vm2938, %v2907, %v2648
        %v2941 = vsel %vm2938, %v2908, %v2650
        %v2942 = vsel %vm2938, %v2909, %v2652
        %v2943 = vsel %vm2938, %v2910, %v2654
        %v2944 = vsel %vm2938, %v2911, %v2656
        %v2945 = vsel %vm2938, %v2912, %v2658
        %v2946 = vsel %vm2938, %v2913, %v2660
        %v2947 = vsel %vm2938, %v2914, %v2662
        %v2948 = vsel %vm2938, %v2915, %v2664
        %v2949 = vsel %vm2938, %v2916, %v2666
        %v2950 = vsel %vm2938, %v2917, %v2668
        %v2951 = vsel %vm2938, %v2918, %v2670
        %v2952 = vsel %vm2938, %v2919, %v2672
        %v2953 = vsel %vm2938, %v2920, %v2674
        %v2954 = vsel %vm2938, %v2921, %v2676
        %v2955 = vsel %vm2938, %v2922, %v2678
        %v2956 = vsel %vm2938, %v2923, %v2680
        %v2957 = vsel %vm2938, %v2924, %v2682
        %v2958 = vsel %vm2938, %v2925, %v2684
        %v2959 = vsel %vm2938, %v2926, %v2686
        %v2960 = vsel %vm2938, %v2927, %v2688
        %v2961 = vsel %vm2938, %v2928, %v2690
        %v2962 = vsel %vm2938, %v2929, %v2692
        %v2963 = vsel %vm2938, %v2930, %v2694
        %v2964 = vsel %vm2938, %v2931, %v2696
        %v2965 = vsel %vm2938, %v2932, %v2698
        %v2966 = vsel %vm2938, %v2933, %v2700
        %v2967 = vsel %vm2938, %v2934, %v2702
        %v2968 = vsel %vm2938, %v2935, %v2704
        %v2969 = vsel %vm2938, %v2936, %v2706
        %v2970 = vsel %vm2938, %v2937, %v2708
        %s2971 = scalar_lea.vmem [#allocation2], 432
        %v2972 = vld [vmem:[%s2971] sm:$0xff]
        %v2973 = vld [vmem:[%s2971 + $0x8] sm:$0xff]
        %v2974 = vld [vmem:[%s2971 + $0x18] sm:$0xff]
        %v2975 = vld [vmem:[%s2971 + $0x20] sm:$0xff]
        %v2976 = vld [vmem:[%s2971 + $0x30] sm:$0xff]
        %v2977 = vld [vmem:[%s2971 + $0x38] sm:$0xff]
        %v2978 = vld [vmem:[%s2971 + $0x48] sm:$0xff]
        %v2979 = vld [vmem:[%s2971 + $0x50] sm:$0xff]
        %v2980 = vld [vmem:[%s2971 + $0x60] sm:$0xff]
        %v2981 = vld [vmem:[%s2971 + $0x68] sm:$0xff]
        %v2982 = vld [vmem:[%s2971 + $0x78] sm:$0xff]
        %v2983 = vld [vmem:[%s2971 + $0x80] sm:$0xff]
        %v2984 = vld [vmem:[%s2971 + $0x90] sm:$0xff]
        %v2985 = vld [vmem:[%s2971 + $0x98] sm:$0xff]
        %v2986 = vld [vmem:[%s2971 + $0xa8] sm:$0xff]
        %v2987 = vld [vmem:[%s2971 + $0xb0] sm:$0xff]
        %v2988 = vld [vmem:[%s2971 + $0xc0] sm:$0xff]
        %v2989 = vld [vmem:[%s2971 + $0xc8] sm:$0xff]
        %v2990 = vld [vmem:[%s2971 + $0xd8] sm:$0xff]
        %v2991 = vld [vmem:[%s2971 + $0xe0] sm:$0xff]
        %v2992 = vld [vmem:[%s2971 + $0xf0] sm:$0xff]
        %v2993 = vld [vmem:[%s2971 + $0xf8] sm:$0xff]
        %v2994 = vld [vmem:[%s2971 + $0x108] sm:$0xff]
        %v2995 = vld [vmem:[%s2971 + $0x110] sm:$0xff]
        %v2996 = vld [vmem:[%s2971 + $0x120] sm:$0xff]
        %v2997 = vld [vmem:[%s2971 + $0x128] sm:$0xff]
        %v2998 = vld [vmem:[%s2971 + $0x138] sm:$0xff]
        %v2999 = vld [vmem:[%s2971 + $0x140] sm:$0xff]
        %v3000 = vld [vmem:[%s2971 + $0x150] sm:$0xff]
        %v3001 = vld [vmem:[%s2971 + $0x158] sm:$0xff]
        %v3002 = vld [vmem:[%s2971 + $0x168] sm:$0xff]
        %v3003 = vld [vmem:[%s2971 + $0x170] sm:$0xff]
        %v3004 = vld [vmem:[%s2971 + $0x1] sm:$0xff]
        %v3005 = vld [vmem:[%s2971 + $0x9] sm:$0xff]
        %v3006 = vld [vmem:[%s2971 + $0x19] sm:$0xff]
        %v3007 = vld [vmem:[%s2971 + $0x21] sm:$0xff]
        %v3008 = vld [vmem:[%s2971 + $0x31] sm:$0xff]
        %v3009 = vld [vmem:[%s2971 + $0x39] sm:$0xff]
        %v3010 = vld [vmem:[%s2971 + $0x49] sm:$0xff]
        %v3011 = vld [vmem:[%s2971 + $0x51] sm:$0xff]
        %v3012 = vld [vmem:[%s2971 + $0x61] sm:$0xff]
        %v3013 = vld [vmem:[%s2971 + $0x69] sm:$0xff]
        %v3014 = vld [vmem:[%s2971 + $0x79] sm:$0xff]
        %v3015 = vld [vmem:[%s2971 + $0x81] sm:$0xff]
        %v3016 = vld [vmem:[%s2971 + $0x91] sm:$0xff]
        %v3017 = vld [vmem:[%s2971 + $0x99] sm:$0xff]
        %v3018 = vld [vmem:[%s2971 + $0xa9] sm:$0xff]
        %v3019 = vld [vmem:[%s2971 + $0xb1] sm:$0xff]
        %v3020 = vld [vmem:[%s2971 + $0xc1] sm:$0xff]
        %v3021 = vld [vmem:[%s2971 + $0xc9] sm:$0xff]
        %v3022 = vld [vmem:[%s2971 + $0xd9] sm:$0xff]
        %v3023 = vld [vmem:[%s2971 + $0xe1] sm:$0xff]
        %v3024 = vld [vmem:[%s2971 + $0xf1] sm:$0xff]
        %v3025 = vld [vmem:[%s2971 + $0xf9] sm:$0xff]
        %v3026 = vld [vmem:[%s2971 + $0x109] sm:$0xff]
        %v3027 = vld [vmem:[%s2971 + $0x111] sm:$0xff]
        %v3028 = vld [vmem:[%s2971 + $0x121] sm:$0xff]
        %v3029 = vld [vmem:[%s2971 + $0x129] sm:$0xff]
        %v3030 = vld [vmem:[%s2971 + $0x139] sm:$0xff]
        %v3031 = vld [vmem:[%s2971 + $0x141] sm:$0xff]
        %v3032 = vld [vmem:[%s2971 + $0x151] sm:$0xff]
        %v3033 = vld [vmem:[%s2971 + $0x159] sm:$0xff]
        %v3034 = vld [vmem:[%s2971 + $0x169] sm:$0xff]
        %v3035 = vld [vmem:[%s2971 + $0x171] sm:$0xff]
        %v3036 = vld [vmem:[%s2971 + $0x2] sm:$0xff]
        %v3037 = vld [vmem:[%s2971 + $0xa] sm:$0xff]
        %v3038 = vld [vmem:[%s2971 + $0x1a] sm:$0xff]
        %v3039 = vld [vmem:[%s2971 + $0x22] sm:$0xff]
        %v3040 = vld [vmem:[%s2971 + $0x32] sm:$0xff]
        %v3041 = vld [vmem:[%s2971 + $0x3a] sm:$0xff]
        %v3042 = vld [vmem:[%s2971 + $0x4a] sm:$0xff]
        %v3043 = vld [vmem:[%s2971 + $0x52] sm:$0xff]
        %v3044 = vld [vmem:[%s2971 + $0x62] sm:$0xff]
        %v3045 = vld [vmem:[%s2971 + $0x6a] sm:$0xff]
        %v3046 = vld [vmem:[%s2971 + $0x7a] sm:$0xff]
        %v3047 = vld [vmem:[%s2971 + $0x82] sm:$0xff]
        %v3048 = vld [vmem:[%s2971 + $0x92] sm:$0xff]
        %v3049 = vld [vmem:[%s2971 + $0x9a] sm:$0xff]
        %v3050 = vld [vmem:[%s2971 + $0xaa] sm:$0xff]
        %v3051 = vld [vmem:[%s2971 + $0xb2] sm:$0xff]
        %v3052 = vld [vmem:[%s2971 + $0xc2] sm:$0xff]
        %v3053 = vld [vmem:[%s2971 + $0xca] sm:$0xff]
        %v3054 = vld [vmem:[%s2971 + $0xda] sm:$0xff]
        %v3055 = vld [vmem:[%s2971 + $0xe2] sm:$0xff]
        %v3056 = vld [vmem:[%s2971 + $0xf2] sm:$0xff]
        %v3057 = vld [vmem:[%s2971 + $0xfa] sm:$0xff]
        %v3058 = vld [vmem:[%s2971 + $0x10a] sm:$0xff]
        %v3059 = vld [vmem:[%s2971 + $0x112] sm:$0xff]
        %v3060 = vld [vmem:[%s2971 + $0x122] sm:$0xff]
        %v3061 = vld [vmem:[%s2971 + $0x12a] sm:$0xff]
        %v3062 = vld [vmem:[%s2971 + $0x13a] sm:$0xff]
        %v3063 = vld [vmem:[%s2971 + $0x142] sm:$0xff]
        %v3064 = vld [vmem:[%s2971 + $0x152] sm:$0xff]
        %v3065 = vld [vmem:[%s2971 + $0x15a] sm:$0xff]
        %v3066 = vld [vmem:[%s2971 + $0x16a] sm:$0xff]
        %v3067 = vld [vmem:[%s2971 + $0x172] sm:$0xff]
        %v3068 = vld [vmem:[%s1523] sm:$0xff]
        %v3069 = vld [vmem:[%s1523 + $0x8] sm:$0xff]
        %v3070 = vld [vmem:[%s1523 + $0x18] sm:$0xff]
        %v3071 = vld [vmem:[%s1523 + $0x20] sm:$0xff]
        %v3072 = vld [vmem:[%s1523 + $0x30] sm:$0xff]
        %v3073 = vld [vmem:[%s1523 + $0x38] sm:$0xff]
        %v3074 = vld [vmem:[%s1523 + $0x48] sm:$0xff]
        %v3075 = vld [vmem:[%s1523 + $0x50] sm:$0xff]
        %v3076 = vld [vmem:[%s1523 + $0x60] sm:$0xff]
        %v3077 = vld [vmem:[%s1523 + $0x68] sm:$0xff]
        %v3078 = vld [vmem:[%s1523 + $0x78] sm:$0xff]
        %v3079 = vld [vmem:[%s1523 + $0x80] sm:$0xff]
        %v3080 = vld [vmem:[%s1523 + $0x90] sm:$0xff]
        %v3081 = vld [vmem:[%s1523 + $0x98] sm:$0xff]
        %v3082 = vld [vmem:[%s1523 + $0xa8] sm:$0xff]
        %v3083 = vld [vmem:[%s1523 + $0xb0] sm:$0xff]
        %v3084 = vld [vmem:[%s1523 + $0xc0] sm:$0xff]
        %v3085 = vld [vmem:[%s1523 + $0xc8] sm:$0xff]
        %v3086 = vld [vmem:[%s1523 + $0xd8] sm:$0xff]
        %v3087 = vld [vmem:[%s1523 + $0xe0] sm:$0xff]
        %v3088 = vld [vmem:[%s1523 + $0xf0] sm:$0xff]
        %v3089 = vld [vmem:[%s1523 + $0xf8] sm:$0xff]
        %v3090 = vld [vmem:[%s1523 + $0x108] sm:$0xff]
        %v3091 = vld [vmem:[%s1523 + $0x110] sm:$0xff]
        %v3092 = vld [vmem:[%s1523 + $0x120] sm:$0xff]
        %v3093 = vld [vmem:[%s1523 + $0x128] sm:$0xff]
        %v3094 = vld [vmem:[%s1523 + $0x138] sm:$0xff]
        %v3095 = vld [vmem:[%s1523 + $0x140] sm:$0xff]
        %v3096 = vld [vmem:[%s1523 + $0x150] sm:$0xff]
        %v3097 = vld [vmem:[%s1523 + $0x158] sm:$0xff]
        %v3098 = vld [vmem:[%s1523 + $0x168] sm:$0xff]
        %v3099 = vld [vmem:[%s1523 + $0x170] sm:$0xff]
        %v3100 = vld [vmem:[%s1523 + $0x1] sm:$0xff]
        %v3101 = vld [vmem:[%s1523 + $0x9] sm:$0xff]
        %v3102 = vld [vmem:[%s1523 + $0x19] sm:$0xff]
        %v3103 = vld [vmem:[%s1523 + $0x21] sm:$0xff]
        %v3104 = vld [vmem:[%s1523 + $0x31] sm:$0xff]
        %v3105 = vld [vmem:[%s1523 + $0x39] sm:$0xff]
        %v3106 = vld [vmem:[%s1523 + $0x49] sm:$0xff]
        %v3107 = vld [vmem:[%s1523 + $0x51] sm:$0xff]
        %v3108 = vld [vmem:[%s1523 + $0x61] sm:$0xff]
        %v3109 = vld [vmem:[%s1523 + $0x69] sm:$0xff]
        %v3110 = vld [vmem:[%s1523 + $0x79] sm:$0xff]
        %v3111 = vld [vmem:[%s1523 + $0x81] sm:$0xff]
        %v3112 = vld [vmem:[%s1523 + $0x91] sm:$0xff]
        %v3113 = vld [vmem:[%s1523 + $0x99] sm:$0xff]
        %v3114 = vld [vmem:[%s1523 + $0xa9] sm:$0xff]
        %v3115 = vld [vmem:[%s1523 + $0xb1] sm:$0xff]
        %v3116 = vld [vmem:[%s1523 + $0xc1] sm:$0xff]
        %v3117 = vld [vmem:[%s1523 + $0xc9] sm:$0xff]
        %v3118 = vld [vmem:[%s1523 + $0xd9] sm:$0xff]
        %v3119 = vld [vmem:[%s1523 + $0xe1] sm:$0xff]
        %v3120 = vld [vmem:[%s1523 + $0xf1] sm:$0xff]
        %v3121 = vld [vmem:[%s1523 + $0xf9] sm:$0xff]
        %v3122 = vld [vmem:[%s1523 + $0x109] sm:$0xff]
        %v3123 = vld [vmem:[%s1523 + $0x111] sm:$0xff]
        %v3124 = vld [vmem:[%s1523 + $0x121] sm:$0xff]
        %v3125 = vld [vmem:[%s1523 + $0x129] sm:$0xff]
        %v3126 = vld [vmem:[%s1523 + $0x139] sm:$0xff]
        %v3127 = vld [vmem:[%s1523 + $0x141] sm:$0xff]
        %v3128 = vld [vmem:[%s1523 + $0x151] sm:$0xff]
        %v3129 = vld [vmem:[%s1523 + $0x159] sm:$0xff]
        %v3130 = vld [vmem:[%s1523 + $0x169] sm:$0xff]
        %v3131 = vld [vmem:[%s1523 + $0x171] sm:$0xff]
        %v3132 = vld [vmem:[%s1523 + $0x2] sm:$0xff]
        %v3133 = vld [vmem:[%s1523 + $0xa] sm:$0xff]
        %v3134 = vld [vmem:[%s1523 + $0x1a] sm:$0xff]
        %v3135 = vld [vmem:[%s1523 + $0x22] sm:$0xff]
        %v3136 = vld [vmem:[%s1523 + $0x32] sm:$0xff]
        %v3137 = vld [vmem:[%s1523 + $0x3a] sm:$0xff]
        %v3138 = vld [vmem:[%s1523 + $0x4a] sm:$0xff]
        %v3139 = vld [vmem:[%s1523 + $0x52] sm:$0xff]
        %v3140 = vld [vmem:[%s1523 + $0x62] sm:$0xff]
        %v3141 = vld [vmem:[%s1523 + $0x6a] sm:$0xff]
        %v3142 = vld [vmem:[%s1523 + $0x7a] sm:$0xff]
        %v3143 = vld [vmem:[%s1523 + $0x82] sm:$0xff]
        %v3144 = vld [vmem:[%s1523 + $0x92] sm:$0xff]
        %v3145 = vld [vmem:[%s1523 + $0x9a] sm:$0xff]
        %v3146 = vld [vmem:[%s1523 + $0xaa] sm:$0xff]
        %v3147 = vld [vmem:[%s1523 + $0xb2] sm:$0xff]
        %v3148 = vld [vmem:[%s1523 + $0xc2] sm:$0xff]
        %v3149 = vld [vmem:[%s1523 + $0xca] sm:$0xff]
        %v3150 = vld [vmem:[%s1523 + $0xda] sm:$0xff]
        %v3151 = vld [vmem:[%s1523 + $0xe2] sm:$0xff]
        %v3152 = vld [vmem:[%s1523 + $0xf2] sm:$0xff]
        %v3153 = vld [vmem:[%s1523 + $0xfa] sm:$0xff]
        %v3154 = vld [vmem:[%s1523 + $0x10a] sm:$0xff]
        %v3155 = vld [vmem:[%s1523 + $0x112] sm:$0xff]
        %v3156 = vld [vmem:[%s1523 + $0x122] sm:$0xff]
        %v3157 = vld [vmem:[%s1523 + $0x12a] sm:$0xff]
        %v3158 = vld [vmem:[%s1523 + $0x13a] sm:$0xff]
        %v3159 = vld [vmem:[%s1523 + $0x142] sm:$0xff]
        %v3160 = vld [vmem:[%s1523 + $0x152] sm:$0xff]
        %v3161 = vld [vmem:[%s1523 + $0x15a] sm:$0xff]
        %v3162 = vld [vmem:[%s1523 + $0x16a] sm:$0xff]
        %v3163 = vld [vmem:[%s1523 + $0x172] sm:$0xff]
        %s3164 = scalar_lea.vmem [#allocation2], 480
        %v3165 = vld [vmem:[%s3164] sm:$0xff]
        %v3166 = vld [vmem:[%s3164 + $0x8] sm:$0xff]
        %v3167 = vld [vmem:[%s3164 + $0x18] sm:$0xff]
        %v3168 = vld [vmem:[%s3164 + $0x20] sm:$0xff]
        %v3169 = vld [vmem:[%s3164 + $0x30] sm:$0xff]
        %v3170 = vld [vmem:[%s3164 + $0x38] sm:$0xff]
        %v3171 = vld [vmem:[%s3164 + $0x48] sm:$0xff]
        %v3172 = vld [vmem:[%s3164 + $0x50] sm:$0xff]
        %v3173 = vld [vmem:[%s3164 + $0x60] sm:$0xff]
        %v3174 = vld [vmem:[%s3164 + $0x68] sm:$0xff]
        %v3175 = vld [vmem:[%s3164 + $0x78] sm:$0xff]
        %v3176 = vld [vmem:[%s3164 + $0x80] sm:$0xff]
        %v3177 = vld [vmem:[%s3164 + $0x90] sm:$0xff]
        %v3178 = vld [vmem:[%s3164 + $0x98] sm:$0xff]
        %v3179 = vld [vmem:[%s3164 + $0xa8] sm:$0xff]
        %v3180 = vld [vmem:[%s3164 + $0xb0] sm:$0xff]
        %v3181 = vld [vmem:[%s3164 + $0xc0] sm:$0xff]
        %v3182 = vld [vmem:[%s3164 + $0xc8] sm:$0xff]
        %v3183 = vld [vmem:[%s3164 + $0xd8] sm:$0xff]
        %v3184 = vld [vmem:[%s3164 + $0xe0] sm:$0xff]
        %v3185 = vld [vmem:[%s3164 + $0xf0] sm:$0xff]
        %v3186 = vld [vmem:[%s3164 + $0xf8] sm:$0xff]
        %v3187 = vld [vmem:[%s3164 + $0x108] sm:$0xff]
        %v3188 = vld [vmem:[%s3164 + $0x110] sm:$0xff]
        %v3189 = vld [vmem:[%s3164 + $0x120] sm:$0xff]
        %v3190 = vld [vmem:[%s3164 + $0x128] sm:$0xff]
        %v3191 = vld [vmem:[%s3164 + $0x138] sm:$0xff]
        %v3192 = vld [vmem:[%s3164 + $0x140] sm:$0xff]
        %v3193 = vld [vmem:[%s3164 + $0x150] sm:$0xff]
        %v3194 = vld [vmem:[%s3164 + $0x158] sm:$0xff]
        %v3195 = vld [vmem:[%s3164 + $0x168] sm:$0xff]
        %v3196 = vld [vmem:[%s3164 + $0x170] sm:$0xff]
        %v3197 = vld [vmem:[%s3164 + $0x1] sm:$0xff]
        %v3198 = vld [vmem:[%s3164 + $0x9] sm:$0xff]
        %v3199 = vld [vmem:[%s3164 + $0x19] sm:$0xff]
        %v3200 = vld [vmem:[%s3164 + $0x21] sm:$0xff]
        %v3201 = vld [vmem:[%s3164 + $0x31] sm:$0xff]
        %v3202 = vld [vmem:[%s3164 + $0x39] sm:$0xff]
        %v3203 = vld [vmem:[%s3164 + $0x49] sm:$0xff]
        %v3204 = vld [vmem:[%s3164 + $0x51] sm:$0xff]
        %v3205 = vld [vmem:[%s3164 + $0x61] sm:$0xff]
        %v3206 = vld [vmem:[%s3164 + $0x69] sm:$0xff]
        %v3207 = vld [vmem:[%s3164 + $0x79] sm:$0xff]
        %v3208 = vld [vmem:[%s3164 + $0x81] sm:$0xff]
        %v3209 = vld [vmem:[%s3164 + $0x91] sm:$0xff]
        %v3210 = vld [vmem:[%s3164 + $0x99] sm:$0xff]
        %v3211 = vld [vmem:[%s3164 + $0xa9] sm:$0xff]
        %v3212 = vld [vmem:[%s3164 + $0xb1] sm:$0xff]
        %v3213 = vld [vmem:[%s3164 + $0xc1] sm:$0xff]
        %v3214 = vld [vmem:[%s3164 + $0xc9] sm:$0xff]
        %v3215 = vld [vmem:[%s3164 + $0xd9] sm:$0xff]
        %v3216 = vld [vmem:[%s3164 + $0xe1] sm:$0xff]
        %v3217 = vld [vmem:[%s3164 + $0xf1] sm:$0xff]
        %v3218 = vld [vmem:[%s3164 + $0xf9] sm:$0xff]
        %v3219 = vld [vmem:[%s3164 + $0x109] sm:$0xff]
        %v3220 = vld [vmem:[%s3164 + $0x111] sm:$0xff]
        %v3221 = vld [vmem:[%s3164 + $0x121] sm:$0xff]
        %v3222 = vld [vmem:[%s3164 + $0x129] sm:$0xff]
        %v3223 = vld [vmem:[%s3164 + $0x139] sm:$0xff]
        %v3224 = vld [vmem:[%s3164 + $0x141] sm:$0xff]
        %v3225 = vld [vmem:[%s3164 + $0x151] sm:$0xff]
        %v3226 = vld [vmem:[%s3164 + $0x159] sm:$0xff]
        %v3227 = vld [vmem:[%s3164 + $0x169] sm:$0xff]
        %v3228 = vld [vmem:[%s3164 + $0x171] sm:$0xff]
        %v3229 = vld [vmem:[%s3164 + $0x2] sm:$0xff]
        %v3230 = vld [vmem:[%s3164 + $0xa] sm:$0xff]
        %v3231 = vld [vmem:[%s3164 + $0x1a] sm:$0xff]
        %v3232 = vld [vmem:[%s3164 + $0x22] sm:$0xff]
        %v3233 = vld [vmem:[%s3164 + $0x32] sm:$0xff]
        %v3234 = vld [vmem:[%s3164 + $0x3a] sm:$0xff]
        %v3235 = vld [vmem:[%s3164 + $0x4a] sm:$0xff]
        %v3236 = vld [vmem:[%s3164 + $0x52] sm:$0xff]
        %v3237 = vld [vmem:[%s3164 + $0x62] sm:$0xff]
        %v3238 = vld [vmem:[%s3164 + $0x6a] sm:$0xff]
        %v3239 = vld [vmem:[%s3164 + $0x7a] sm:$0xff]
        %v3240 = vld [vmem:[%s3164 + $0x82] sm:$0xff]
        %v3241 = vld [vmem:[%s3164 + $0x92] sm:$0xff]
        %v3242 = vld [vmem:[%s3164 + $0x9a] sm:$0xff]
        %v3243 = vld [vmem:[%s3164 + $0xaa] sm:$0xff]
        %v3244 = vld [vmem:[%s3164 + $0xb2] sm:$0xff]
        %v3245 = vld [vmem:[%s3164 + $0xc2] sm:$0xff]
        %v3246 = vld [vmem:[%s3164 + $0xca] sm:$0xff]
        %v3247 = vld [vmem:[%s3164 + $0xda] sm:$0xff]
        %v3248 = vld [vmem:[%s3164 + $0xe2] sm:$0xff]
        %v3249 = vld [vmem:[%s3164 + $0xf2] sm:$0xff]
        %v3250 = vld [vmem:[%s3164 + $0xfa] sm:$0xff]
        %v3251 = vld [vmem:[%s3164 + $0x10a] sm:$0xff]
        %v3252 = vld [vmem:[%s3164 + $0x112] sm:$0xff]
        %v3253 = vld [vmem:[%s3164 + $0x122] sm:$0xff]
        %v3254 = vld [vmem:[%s3164 + $0x12a] sm:$0xff]
        %v3255 = vld [vmem:[%s3164 + $0x13a] sm:$0xff]
        %v3256 = vld [vmem:[%s3164 + $0x142] sm:$0xff]
        %v3257 = vld [vmem:[%s3164 + $0x152] sm:$0xff]
        %v3258 = vld [vmem:[%s3164 + $0x15a] sm:$0xff]
        %v3259 = vld [vmem:[%s3164 + $0x16a] sm:$0xff]
        %v3260 = vld [vmem:[%s3164 + $0x172] sm:$0xff]
        %3293 = vrot.lane.b32.xlu0 %v3004, 16
        %v3294 = vpop.permute.xlu0 %3293
        %3295 = vrot.lane.b32.xlu0 %v3005, 16
        %v3296 = vpop.permute.xlu0 %3295
        %3297 = vrot.lane.b32.xlu0 %v3006, 16
        %v3298 = vpop.permute.xlu0 %3297
        %3299 = vrot.lane.b32.xlu0 %v3007, 16
        %v3300 = vpop.permute.xlu0 %3299
        %3301 = vrot.lane.b32.xlu0 %v3008, 16
        %v3302 = vpop.permute.xlu0 %3301
        %3303 = vrot.lane.b32.xlu0 %v3009, 16
        %v3304 = vpop.permute.xlu0 %3303
        %3305 = vrot.lane.b32.xlu0 %v3010, 16
        %v3306 = vpop.permute.xlu0 %3305
        %3307 = vrot.lane.b32.xlu0 %v3011, 16
        %v3308 = vpop.permute.xlu0 %3307
        %3309 = vrot.lane.b32.xlu0 %v3012, 16
        %v3310 = vpop.permute.xlu0 %3309
        %3311 = vrot.lane.b32.xlu0 %v3013, 16
        %v3312 = vpop.permute.xlu0 %3311
        %3313 = vrot.lane.b32.xlu0 %v3014, 16
        %v3314 = vpop.permute.xlu0 %3313
        %3315 = vrot.lane.b32.xlu0 %v3015, 16
        %v3316 = vpop.permute.xlu0 %3315
        %3317 = vrot.lane.b32.xlu0 %v3016, 16
        %v3318 = vpop.permute.xlu0 %3317
        %3319 = vrot.lane.b32.xlu0 %v3017, 16
        %v3320 = vpop.permute.xlu0 %3319
        %3321 = vrot.lane.b32.xlu0 %v3018, 16
        %v3322 = vpop.permute.xlu0 %3321
        %3323 = vrot.lane.b32.xlu0 %v3019, 16
        %v3324 = vpop.permute.xlu0 %3323
        %3325 = vrot.lane.b32.xlu0 %v3020, 16
        %v3326 = vpop.permute.xlu0 %3325
        %3327 = vrot.lane.b32.xlu0 %v3021, 16
        %v3328 = vpop.permute.xlu0 %3327
        %3329 = vrot.lane.b32.xlu0 %v3022, 16
        %v3330 = vpop.permute.xlu0 %3329
        %3331 = vrot.lane.b32.xlu0 %v3023, 16
        %v3332 = vpop.permute.xlu0 %3331
        %3333 = vrot.lane.b32.xlu0 %v3024, 16
        %v3334 = vpop.permute.xlu0 %3333
        %3335 = vrot.lane.b32.xlu0 %v3025, 16
        %v3336 = vpop.permute.xlu0 %3335
        %3337 = vrot.lane.b32.xlu0 %v3026, 16
        %v3338 = vpop.permute.xlu0 %3337
        %3339 = vrot.lane.b32.xlu0 %v3027, 16
        %v3340 = vpop.permute.xlu0 %3339
        %3341 = vrot.lane.b32.xlu0 %v3028, 16
        %v3342 = vpop.permute.xlu0 %3341
        %3343 = vrot.lane.b32.xlu0 %v3029, 16
        %v3344 = vpop.permute.xlu0 %3343
        %3345 = vrot.lane.b32.xlu0 %v3030, 16
        %v3346 = vpop.permute.xlu0 %3345
        %3347 = vrot.lane.b32.xlu0 %v3031, 16
        %v3348 = vpop.permute.xlu0 %3347
        %3349 = vrot.lane.b32.xlu0 %v3032, 16
        %v3350 = vpop.permute.xlu0 %3349
        %3351 = vrot.lane.b32.xlu0 %v3033, 16
        %v3352 = vpop.permute.xlu0 %3351
        %3353 = vrot.lane.b32.xlu0 %v3034, 16
        %v3354 = vpop.permute.xlu0 %3353
        %3355 = vrot.lane.b32.xlu0 %v3035, 16
        %v3356 = vpop.permute.xlu0 %3355
        %3421 = vrot.lane.b32.xlu0 %v3036, 32
        %v3422 = vpop.permute.xlu0 %3421
        %3423 = vrot.lane.b32.xlu0 %v3037, 32
        %v3424 = vpop.permute.xlu0 %3423
        %3425 = vrot.lane.b32.xlu0 %v3038, 32
        %v3426 = vpop.permute.xlu0 %3425
        %3427 = vrot.lane.b32.xlu0 %v3039, 32
        %v3428 = vpop.permute.xlu0 %3427
        %3429 = vrot.lane.b32.xlu0 %v3040, 32
        %v3430 = vpop.permute.xlu0 %3429
        %3431 = vrot.lane.b32.xlu0 %v3041, 32
        %v3432 = vpop.permute.xlu0 %3431
        %3433 = vrot.lane.b32.xlu0 %v3042, 32
        %v3434 = vpop.permute.xlu0 %3433
        %3435 = vrot.lane.b32.xlu0 %v3043, 32
        %v3436 = vpop.permute.xlu0 %3435
        %3437 = vrot.lane.b32.xlu0 %v3044, 32
        %v3438 = vpop.permute.xlu0 %3437
        %3439 = vrot.lane.b32.xlu0 %v3045, 32
        %v3440 = vpop.permute.xlu0 %3439
        %3441 = vrot.lane.b32.xlu0 %v3046, 32
        %v3442 = vpop.permute.xlu0 %3441
        %3443 = vrot.lane.b32.xlu0 %v3047, 32
        %v3444 = vpop.permute.xlu0 %3443
        %3445 = vrot.lane.b32.xlu0 %v3048, 32
        %v3446 = vpop.permute.xlu0 %3445
        %3447 = vrot.lane.b32.xlu0 %v3049, 32
        %v3448 = vpop.permute.xlu0 %3447
        %3449 = vrot.lane.b32.xlu0 %v3050, 32
        %v3450 = vpop.permute.xlu0 %3449
        %3451 = vrot.lane.b32.xlu0 %v3051, 32
        %v3452 = vpop.permute.xlu0 %3451
        %3453 = vrot.lane.b32.xlu0 %v3052, 32
        %v3454 = vpop.permute.xlu0 %3453
        %3455 = vrot.lane.b32.xlu0 %v3053, 32
        %v3456 = vpop.permute.xlu0 %3455
        %3457 = vrot.lane.b32.xlu0 %v3054, 32
        %v3458 = vpop.permute.xlu0 %3457
        %3459 = vrot.lane.b32.xlu0 %v3055, 32
        %v3460 = vpop.permute.xlu0 %3459
        %3461 = vrot.lane.b32.xlu0 %v3056, 32
        %v3462 = vpop.permute.xlu0 %3461
        %3463 = vrot.lane.b32.xlu0 %v3057, 32
        %v3464 = vpop.permute.xlu0 %3463
        %3465 = vrot.lane.b32.xlu0 %v3058, 32
        %v3466 = vpop.permute.xlu0 %3465
        %3467 = vrot.lane.b32.xlu0 %v3059, 32
        %v3468 = vpop.permute.xlu0 %3467
        %3469 = vrot.lane.b32.xlu0 %v3060, 32
        %v3470 = vpop.permute.xlu0 %3469
        %3471 = vrot.lane.b32.xlu0 %v3061, 32
        %v3472 = vpop.permute.xlu0 %3471
        %3473 = vrot.lane.b32.xlu0 %v3062, 32
        %v3474 = vpop.permute.xlu0 %3473
        %3475 = vrot.lane.b32.xlu0 %v3063, 32
        %v3476 = vpop.permute.xlu0 %3475
        %3477 = vrot.lane.b32.xlu0 %v3064, 32
        %v3478 = vpop.permute.xlu0 %3477
        %3479 = vrot.lane.b32.xlu0 %v3065, 32
        %v3480 = vpop.permute.xlu0 %3479
        %3481 = vrot.lane.b32.xlu0 %v3066, 32
        %v3482 = vpop.permute.xlu0 %3481
        %3483 = vrot.lane.b32.xlu0 %v3067, 32
        %v3484 = vpop.permute.xlu0 %3483
        %3549 = vrot.lane.b32.xlu0 %v3068, 48
        %v3550 = vpop.permute.xlu0 %3549
        %3551 = vrot.lane.b32.xlu0 %v3069, 48
        %v3552 = vpop.permute.xlu0 %3551
        %3553 = vrot.lane.b32.xlu0 %v3070, 48
        %v3554 = vpop.permute.xlu0 %3553
        %3555 = vrot.lane.b32.xlu0 %v3071, 48
        %v3556 = vpop.permute.xlu0 %3555
        %3557 = vrot.lane.b32.xlu0 %v3072, 48
        %v3558 = vpop.permute.xlu0 %3557
        %3559 = vrot.lane.b32.xlu0 %v3073, 48
        %v3560 = vpop.permute.xlu0 %3559
        %3561 = vrot.lane.b32.xlu0 %v3074, 48
        %v3562 = vpop.permute.xlu0 %3561
        %3563 = vrot.lane.b32.xlu0 %v3075, 48
        %v3564 = vpop.permute.xlu0 %3563
        %3565 = vrot.lane.b32.xlu0 %v3076, 48
        %v3566 = vpop.permute.xlu0 %3565
        %3567 = vrot.lane.b32.xlu0 %v3077, 48
        %v3568 = vpop.permute.xlu0 %3567
        %3569 = vrot.lane.b32.xlu0 %v3078, 48
        %v3570 = vpop.permute.xlu0 %3569
        %3571 = vrot.lane.b32.xlu0 %v3079, 48
        %v3572 = vpop.permute.xlu0 %3571
        %3573 = vrot.lane.b32.xlu0 %v3080, 48
        %v3574 = vpop.permute.xlu0 %3573
        %3575 = vrot.lane.b32.xlu0 %v3081, 48
        %v3576 = vpop.permute.xlu0 %3575
        %3577 = vrot.lane.b32.xlu0 %v3082, 48
        %v3578 = vpop.permute.xlu0 %3577
        %3579 = vrot.lane.b32.xlu0 %v3083, 48
        %v3580 = vpop.permute.xlu0 %3579
        %3581 = vrot.lane.b32.xlu0 %v3084, 48
        %v3582 = vpop.permute.xlu0 %3581
        %3583 = vrot.lane.b32.xlu0 %v3085, 48
        %v3584 = vpop.permute.xlu0 %3583
        %3585 = vrot.lane.b32.xlu0 %v3086, 48
        %v3586 = vpop.permute.xlu0 %3585
        %3587 = vrot.lane.b32.xlu0 %v3087, 48
        %v3588 = vpop.permute.xlu0 %3587
        %3589 = vrot.lane.b32.xlu0 %v3088, 48
        %v3590 = vpop.permute.xlu0 %3589
        %3591 = vrot.lane.b32.xlu0 %v3089, 48
        %v3592 = vpop.permute.xlu0 %3591
        %3593 = vrot.lane.b32.xlu0 %v3090, 48
        %v3594 = vpop.permute.xlu0 %3593
        %3595 = vrot.lane.b32.xlu0 %v3091, 48
        %v3596 = vpop.permute.xlu0 %3595
        %3597 = vrot.lane.b32.xlu0 %v3092, 48
        %v3598 = vpop.permute.xlu0 %3597
        %3599 = vrot.lane.b32.xlu0 %v3093, 48
        %v3600 = vpop.permute.xlu0 %3599
        %3601 = vrot.lane.b32.xlu0 %v3094, 48
        %v3602 = vpop.permute.xlu0 %3601
        %3603 = vrot.lane.b32.xlu0 %v3095, 48
        %v3604 = vpop.permute.xlu0 %3603
        %3605 = vrot.lane.b32.xlu0 %v3096, 48
        %v3606 = vpop.permute.xlu0 %3605
        %3607 = vrot.lane.b32.xlu0 %v3097, 48
        %v3608 = vpop.permute.xlu0 %3607
        %3609 = vrot.lane.b32.xlu0 %v3098, 48
        %v3610 = vpop.permute.xlu0 %3609
        %3611 = vrot.lane.b32.xlu0 %v3099, 48
        %v3612 = vpop.permute.xlu0 %3611
        %3677 = vrot.lane.b32.xlu0 %v3100, 64
        %v3678 = vpop.permute.xlu0 %3677
        %3679 = vrot.lane.b32.xlu0 %v3101, 64
        %v3680 = vpop.permute.xlu0 %3679
        %3681 = vrot.lane.b32.xlu0 %v3102, 64
        %v3682 = vpop.permute.xlu0 %3681
        %3683 = vrot.lane.b32.xlu0 %v3103, 64
        %v3684 = vpop.permute.xlu0 %3683
        %3685 = vrot.lane.b32.xlu0 %v3104, 64
        %v3686 = vpop.permute.xlu0 %3685
        %3687 = vrot.lane.b32.xlu0 %v3105, 64
        %v3688 = vpop.permute.xlu0 %3687
        %3689 = vrot.lane.b32.xlu0 %v3106, 64
        %v3690 = vpop.permute.xlu0 %3689
        %3691 = vrot.lane.b32.xlu0 %v3107, 64
        %v3692 = vpop.permute.xlu0 %3691
        %3693 = vrot.lane.b32.xlu0 %v3108, 64
        %v3694 = vpop.permute.xlu0 %3693
        %3695 = vrot.lane.b32.xlu0 %v3109, 64
        %v3696 = vpop.permute.xlu0 %3695
        %3697 = vrot.lane.b32.xlu0 %v3110, 64
        %v3698 = vpop.permute.xlu0 %3697
        %3699 = vrot.lane.b32.xlu0 %v3111, 64
        %v3700 = vpop.permute.xlu0 %3699
        %3701 = vrot.lane.b32.xlu0 %v3112, 64
        %v3702 = vpop.permute.xlu0 %3701
        %3703 = vrot.lane.b32.xlu0 %v3113, 64
        %v3704 = vpop.permute.xlu0 %3703
        %3705 = vrot.lane.b32.xlu0 %v3114, 64
        %v3706 = vpop.permute.xlu0 %3705
        %3707 = vrot.lane.b32.xlu0 %v3115, 64
        %v3708 = vpop.permute.xlu0 %3707
        %3709 = vrot.lane.b32.xlu0 %v3116, 64
        %v3710 = vpop.permute.xlu0 %3709
        %3711 = vrot.lane.b32.xlu0 %v3117, 64
        %v3712 = vpop.permute.xlu0 %3711
        %3713 = vrot.lane.b32.xlu0 %v3118, 64
        %v3714 = vpop.permute.xlu0 %3713
        %3715 = vrot.lane.b32.xlu0 %v3119, 64
        %v3716 = vpop.permute.xlu0 %3715
        %3717 = vrot.lane.b32.xlu0 %v3120, 64
        %v3718 = vpop.permute.xlu0 %3717
        %3719 = vrot.lane.b32.xlu0 %v3121, 64
        %v3720 = vpop.permute.xlu0 %3719
        %3721 = vrot.lane.b32.xlu0 %v3122, 64
        %v3722 = vpop.permute.xlu0 %3721
        %3723 = vrot.lane.b32.xlu0 %v3123, 64
        %v3724 = vpop.permute.xlu0 %3723
        %3725 = vrot.lane.b32.xlu0 %v3124, 64
        %v3726 = vpop.permute.xlu0 %3725
        %3727 = vrot.lane.b32.xlu0 %v3125, 64
        %v3728 = vpop.permute.xlu0 %3727
        %3729 = vrot.lane.b32.xlu0 %v3126, 64
        %v3730 = vpop.permute.xlu0 %3729
        %3731 = vrot.lane.b32.xlu0 %v3127, 64
        %v3732 = vpop.permute.xlu0 %3731
        %3733 = vrot.lane.b32.xlu0 %v3128, 64
        %v3734 = vpop.permute.xlu0 %3733
        %3735 = vrot.lane.b32.xlu0 %v3129, 64
        %v3736 = vpop.permute.xlu0 %3735
        %3737 = vrot.lane.b32.xlu0 %v3130, 64
        %v3738 = vpop.permute.xlu0 %3737
        %3739 = vrot.lane.b32.xlu0 %v3131, 64
        %v3740 = vpop.permute.xlu0 %3739
        %3805 = vrot.lane.b32.xlu0 %v3132, 80
        %v3806 = vpop.permute.xlu0 %3805
        %3807 = vrot.lane.b32.xlu0 %v3133, 80
        %v3808 = vpop.permute.xlu0 %3807
        %3809 = vrot.lane.b32.xlu0 %v3134, 80
        %v3810 = vpop.permute.xlu0 %3809
        %3811 = vrot.lane.b32.xlu0 %v3135, 80
        %v3812 = vpop.permute.xlu0 %3811
        %3813 = vrot.lane.b32.xlu0 %v3136, 80
        %v3814 = vpop.permute.xlu0 %3813
        %3815 = vrot.lane.b32.xlu0 %v3137, 80
        %v3816 = vpop.permute.xlu0 %3815
        %3817 = vrot.lane.b32.xlu0 %v3138, 80
        %v3818 = vpop.permute.xlu0 %3817
        %3819 = vrot.lane.b32.xlu0 %v3139, 80
        %v3820 = vpop.permute.xlu0 %3819
        %3821 = vrot.lane.b32.xlu0 %v3140, 80
        %v3822 = vpop.permute.xlu0 %3821
        %3823 = vrot.lane.b32.xlu0 %v3141, 80
        %v3824 = vpop.permute.xlu0 %3823
        %3825 = vrot.lane.b32.xlu0 %v3142, 80
        %v3826 = vpop.permute.xlu0 %3825
        %3827 = vrot.lane.b32.xlu0 %v3143, 80
        %v3828 = vpop.permute.xlu0 %3827
        %3829 = vrot.lane.b32.xlu0 %v3144, 80
        %v3830 = vpop.permute.xlu0 %3829
        %3831 = vrot.lane.b32.xlu0 %v3145, 80
        %v3832 = vpop.permute.xlu0 %3831
        %3833 = vrot.lane.b32.xlu0 %v3146, 80
        %v3834 = vpop.permute.xlu0 %3833
        %3835 = vrot.lane.b32.xlu0 %v3147, 80
        %v3836 = vpop.permute.xlu0 %3835
        %3837 = vrot.lane.b32.xlu0 %v3148, 80
        %v3838 = vpop.permute.xlu0 %3837
        %3839 = vrot.lane.b32.xlu0 %v3149, 80
        %v3840 = vpop.permute.xlu0 %3839
        %3841 = vrot.lane.b32.xlu0 %v3150, 80
        %v3842 = vpop.permute.xlu0 %3841
        %3843 = vrot.lane.b32.xlu0 %v3151, 80
        %v3844 = vpop.permute.xlu0 %3843
        %3845 = vrot.lane.b32.xlu0 %v3152, 80
        %v3846 = vpop.permute.xlu0 %3845
        %3847 = vrot.lane.b32.xlu0 %v3153, 80
        %v3848 = vpop.permute.xlu0 %3847
        %3849 = vrot.lane.b32.xlu0 %v3154, 80
        %v3850 = vpop.permute.xlu0 %3849
        %3851 = vrot.lane.b32.xlu0 %v3155, 80
        %v3852 = vpop.permute.xlu0 %3851
        %3853 = vrot.lane.b32.xlu0 %v3156, 80
        %v3854 = vpop.permute.xlu0 %3853
        %3855 = vrot.lane.b32.xlu0 %v3157, 80
        %v3856 = vpop.permute.xlu0 %3855
        %3857 = vrot.lane.b32.xlu0 %v3158, 80
        %v3858 = vpop.permute.xlu0 %3857
        %3859 = vrot.lane.b32.xlu0 %v3159, 80
        %v3860 = vpop.permute.xlu0 %3859
        %3861 = vrot.lane.b32.xlu0 %v3160, 80
        %v3862 = vpop.permute.xlu0 %3861
        %3863 = vrot.lane.b32.xlu0 %v3161, 80
        %v3864 = vpop.permute.xlu0 %3863
        %3865 = vrot.lane.b32.xlu0 %v3162, 80
        %v3866 = vpop.permute.xlu0 %3865
        %3867 = vrot.lane.b32.xlu0 %v3163, 80
        %v3868 = vpop.permute.xlu0 %3867
        %3933 = vrot.lane.b32.xlu0 %v3165, 96
        %v3934 = vpop.permute.xlu0 %3933
        %3935 = vrot.lane.b32.xlu0 %v3166, 96
        %v3936 = vpop.permute.xlu0 %3935
        %3937 = vrot.lane.b32.xlu0 %v3167, 96
        %v3938 = vpop.permute.xlu0 %3937
        %3939 = vrot.lane.b32.xlu0 %v3168, 96
        %v3940 = vpop.permute.xlu0 %3939
        %3941 = vrot.lane.b32.xlu0 %v3169, 96
        %v3942 = vpop.permute.xlu0 %3941
        %3943 = vrot.lane.b32.xlu0 %v3170, 96
        %v3944 = vpop.permute.xlu0 %3943
        %3945 = vrot.lane.b32.xlu0 %v3171, 96
        %v3946 = vpop.permute.xlu0 %3945
        %3947 = vrot.lane.b32.xlu0 %v3172, 96
        %v3948 = vpop.permute.xlu0 %3947
        %3949 = vrot.lane.b32.xlu0 %v3173, 96
        %v3950 = vpop.permute.xlu0 %3949
        %3951 = vrot.lane.b32.xlu0 %v3174, 96
        %v3952 = vpop.permute.xlu0 %3951
        %3953 = vrot.lane.b32.xlu0 %v3175, 96
        %v3954 = vpop.permute.xlu0 %3953
        %3955 = vrot.lane.b32.xlu0 %v3176, 96
        %v3956 = vpop.permute.xlu0 %3955
        %3957 = vrot.lane.b32.xlu0 %v3177, 96
        %v3958 = vpop.permute.xlu0 %3957
        %3959 = vrot.lane.b32.xlu0 %v3178, 96
        %v3960 = vpop.permute.xlu0 %3959
        %3961 = vrot.lane.b32.xlu0 %v3179, 96
        %v3962 = vpop.permute.xlu0 %3961
        %3963 = vrot.lane.b32.xlu0 %v3180, 96
        %v3964 = vpop.permute.xlu0 %3963
        %3965 = vrot.lane.b32.xlu0 %v3181, 96
        %v3966 = vpop.permute.xlu0 %3965
        %3967 = vrot.lane.b32.xlu0 %v3182, 96
        %v3968 = vpop.permute.xlu0 %3967
        %3969 = vrot.lane.b32.xlu0 %v3183, 96
        %v3970 = vpop.permute.xlu0 %3969
        %3971 = vrot.lane.b32.xlu0 %v3184, 96
        %v3972 = vpop.permute.xlu0 %3971
        %3973 = vrot.lane.b32.xlu0 %v3185, 96
        %v3974 = vpop.permute.xlu0 %3973
        %3975 = vrot.lane.b32.xlu0 %v3186, 96
        %v3976 = vpop.permute.xlu0 %3975
        %3977 = vrot.lane.b32.xlu0 %v3187, 96
        %v3978 = vpop.permute.xlu0 %3977
        %3979 = vrot.lane.b32.xlu0 %v3188, 96
        %v3980 = vpop.permute.xlu0 %3979
        %3981 = vrot.lane.b32.xlu0 %v3189, 96
        %v3982 = vpop.permute.xlu0 %3981
        %3983 = vrot.lane.b32.xlu0 %v3190, 96
        %v3984 = vpop.permute.xlu0 %3983
        %3985 = vrot.lane.b32.xlu0 %v3191, 96
        %v3986 = vpop.permute.xlu0 %3985
        %3987 = vrot.lane.b32.xlu0 %v3192, 96
        %v3988 = vpop.permute.xlu0 %3987
        %3989 = vrot.lane.b32.xlu0 %v3193, 96
        %v3990 = vpop.permute.xlu0 %3989
        %3991 = vrot.lane.b32.xlu0 %v3194, 96
        %v3992 = vpop.permute.xlu0 %3991
        %3993 = vrot.lane.b32.xlu0 %v3195, 96
        %v3994 = vpop.permute.xlu0 %3993
        %3995 = vrot.lane.b32.xlu0 %v3196, 96
        %v3996 = vpop.permute.xlu0 %3995
        %4061 = vrot.lane.b32.xlu0 %v3197, 112
        %v4062 = vpop.permute.xlu0 %4061
        %4063 = vrot.lane.b32.xlu0 %v3198, 112
        %v4064 = vpop.permute.xlu0 %4063
        %4065 = vrot.lane.b32.xlu0 %v3199, 112
        %v4066 = vpop.permute.xlu0 %4065
        %4067 = vrot.lane.b32.xlu0 %v3200, 112
        %v4068 = vpop.permute.xlu0 %4067
        %4069 = vrot.lane.b32.xlu0 %v3201, 112
        %v4070 = vpop.permute.xlu0 %4069
        %4071 = vrot.lane.b32.xlu0 %v3202, 112
        %v4072 = vpop.permute.xlu0 %4071
        %4073 = vrot.lane.b32.xlu0 %v3203, 112
        %v4074 = vpop.permute.xlu0 %4073
        %4075 = vrot.lane.b32.xlu0 %v3204, 112
        %v4076 = vpop.permute.xlu0 %4075
        %4077 = vrot.lane.b32.xlu0 %v3205, 112
        %v4078 = vpop.permute.xlu0 %4077
        %4079 = vrot.lane.b32.xlu0 %v3206, 112
        %v4080 = vpop.permute.xlu0 %4079
        %4081 = vrot.lane.b32.xlu0 %v3207, 112
        %v4082 = vpop.permute.xlu0 %4081
        %4083 = vrot.lane.b32.xlu0 %v3208, 112
        %v4084 = vpop.permute.xlu0 %4083
        %4085 = vrot.lane.b32.xlu0 %v3209, 112
        %v4086 = vpop.permute.xlu0 %4085
        %4087 = vrot.lane.b32.xlu0 %v3210, 112
        %v4088 = vpop.permute.xlu0 %4087
        %4089 = vrot.lane.b32.xlu0 %v3211, 112
        %v4090 = vpop.permute.xlu0 %4089
        %4091 = vrot.lane.b32.xlu0 %v3212, 112
        %v4092 = vpop.permute.xlu0 %4091
        %4093 = vrot.lane.b32.xlu0 %v3213, 112
        %v4094 = vpop.permute.xlu0 %4093
        %4095 = vrot.lane.b32.xlu0 %v3214, 112
        %v4096 = vpop.permute.xlu0 %4095
        %4097 = vrot.lane.b32.xlu0 %v3215, 112
        %v4098 = vpop.permute.xlu0 %4097
        %4099 = vrot.lane.b32.xlu0 %v3216, 112
        %v4100 = vpop.permute.xlu0 %4099
        %4101 = vrot.lane.b32.xlu0 %v3217, 112
        %v4102 = vpop.permute.xlu0 %4101
        %4103 = vrot.lane.b32.xlu0 %v3218, 112
        %v4104 = vpop.permute.xlu0 %4103
        %4105 = vrot.lane.b32.xlu0 %v3219, 112
        %v4106 = vpop.permute.xlu0 %4105
        %4107 = vrot.lane.b32.xlu0 %v3220, 112
        %v4108 = vpop.permute.xlu0 %4107
        %4109 = vrot.lane.b32.xlu0 %v3221, 112
        %v4110 = vpop.permute.xlu0 %4109
        %4111 = vrot.lane.b32.xlu0 %v3222, 112
        %v4112 = vpop.permute.xlu0 %4111
        %4113 = vrot.lane.b32.xlu0 %v3223, 112
        %v4114 = vpop.permute.xlu0 %4113
        %4115 = vrot.lane.b32.xlu0 %v3224, 112
        %v4116 = vpop.permute.xlu0 %4115
        %4117 = vrot.lane.b32.xlu0 %v3225, 112
        %v4118 = vpop.permute.xlu0 %4117
        %4119 = vrot.lane.b32.xlu0 %v3226, 112
        %v4120 = vpop.permute.xlu0 %4119
        %4121 = vrot.lane.b32.xlu0 %v3227, 112
        %v4122 = vpop.permute.xlu0 %4121
        %4123 = vrot.lane.b32.xlu0 %v3228, 112
        %v4124 = vpop.permute.xlu0 %4123
        %v4157 = vsel %vm1380, %v2972, %v3294
        %v4158 = vsel %vm1380, %v2973, %v3296
        %v4159 = vsel %vm1380, %v2974, %v3298
        %v4160 = vsel %vm1380, %v2975, %v3300
        %v4161 = vsel %vm1380, %v2976, %v3302
        %v4162 = vsel %vm1380, %v2977, %v3304
        %v4163 = vsel %vm1380, %v2978, %v3306
        %v4164 = vsel %vm1380, %v2979, %v3308
        %v4165 = vsel %vm1380, %v2980, %v3310
        %v4166 = vsel %vm1380, %v2981, %v3312
        %v4167 = vsel %vm1380, %v2982, %v3314
        %v4168 = vsel %vm1380, %v2983, %v3316
        %v4169 = vsel %vm1380, %v2984, %v3318
        %v4170 = vsel %vm1380, %v2985, %v3320
        %v4171 = vsel %vm1380, %v2986, %v3322
        %v4172 = vsel %vm1380, %v2987, %v3324
        %v4173 = vsel %vm1380, %v2988, %v3326
        %v4174 = vsel %vm1380, %v2989, %v3328
        %v4175 = vsel %vm1380, %v2990, %v3330
        %v4176 = vsel %vm1380, %v2991, %v3332
        %v4177 = vsel %vm1380, %v2992, %v3334
        %v4178 = vsel %vm1380, %v2993, %v3336
        %v4179 = vsel %vm1380, %v2994, %v3338
        %v4180 = vsel %vm1380, %v2995, %v3340
        %v4181 = vsel %vm1380, %v2996, %v3342
        %v4182 = vsel %vm1380, %v2997, %v3344
        %v4183 = vsel %vm1380, %v2998, %v3346
        %v4184 = vsel %vm1380, %v2999, %v3348
        %v4185 = vsel %vm1380, %v3000, %v3350
        %v4186 = vsel %vm1380, %v3001, %v3352
        %v4187 = vsel %vm1380, %v3002, %v3354
        %v4188 = vsel %vm1380, %v3003, %v3356
        %v4189 = vsel %vm2773, %v4157, %v3422
        %v4190 = vsel %vm2773, %v4158, %v3424
        %v4191 = vsel %vm2773, %v4159, %v3426
        %v4192 = vsel %vm2773, %v4160, %v3428
        %v4193 = vsel %vm2773, %v4161, %v3430
        %v4194 = vsel %vm2773, %v4162, %v3432
        %v4195 = vsel %vm2773, %v4163, %v3434
        %v4196 = vsel %vm2773, %v4164, %v3436
        %v4197 = vsel %vm2773, %v4165, %v3438
        %v4198 = vsel %vm2773, %v4166, %v3440
        %v4199 = vsel %vm2773, %v4167, %v3442
        %v4200 = vsel %vm2773, %v4168, %v3444
        %v4201 = vsel %vm2773, %v4169, %v3446
        %v4202 = vsel %vm2773, %v4170, %v3448
        %v4203 = vsel %vm2773, %v4171, %v3450
        %v4204 = vsel %vm2773, %v4172, %v3452
        %v4205 = vsel %vm2773, %v4173, %v3454
        %v4206 = vsel %vm2773, %v4174, %v3456
        %v4207 = vsel %vm2773, %v4175, %v3458
        %v4208 = vsel %vm2773, %v4176, %v3460
        %v4209 = vsel %vm2773, %v4177, %v3462
        %v4210 = vsel %vm2773, %v4178, %v3464
        %v4211 = vsel %vm2773, %v4179, %v3466
        %v4212 = vsel %vm2773, %v4180, %v3468
        %v4213 = vsel %vm2773, %v4181, %v3470
        %v4214 = vsel %vm2773, %v4182, %v3472
        %v4215 = vsel %vm2773, %v4183, %v3474
        %v4216 = vsel %vm2773, %v4184, %v3476
        %v4217 = vsel %vm2773, %v4185, %v3478
        %v4218 = vsel %vm2773, %v4186, %v3480
        %v4219 = vsel %vm2773, %v4187, %v3482
        %v4220 = vsel %vm2773, %v4188, %v3484
        %v4221 = vsel %vm2806, %v4189, %v3550
        %v4222 = vsel %vm2806, %v4190, %v3552
        %v4223 = vsel %vm2806, %v4191, %v3554
        %v4224 = vsel %vm2806, %v4192, %v3556
        %v4225 = vsel %vm2806, %v4193, %v3558
        %v4226 = vsel %vm2806, %v4194, %v3560
        %v4227 = vsel %vm2806, %v4195, %v3562
        %v4228 = vsel %vm2806, %v4196, %v3564
        %v4229 = vsel %vm2806, %v4197, %v3566
        %v4230 = vsel %vm2806, %v4198, %v3568
        %v4231 = vsel %vm2806, %v4199, %v3570
        %v4232 = vsel %vm2806, %v4200, %v3572
        %v4233 = vsel %vm2806, %v4201, %v3574
        %v4234 = vsel %vm2806, %v4202, %v3576
        %v4235 = vsel %vm2806, %v4203, %v3578
        %v4236 = vsel %vm2806, %v4204, %v3580
        %v4237 = vsel %vm2806, %v4205, %v3582
        %v4238 = vsel %vm2806, %v4206, %v3584
        %v4239 = vsel %vm2806, %v4207, %v3586
        %v4240 = vsel %vm2806, %v4208, %v3588
        %v4241 = vsel %vm2806, %v4209, %v3590
        %v4242 = vsel %vm2806, %v4210, %v3592
        %v4243 = vsel %vm2806, %v4211, %v3594
        %v4244 = vsel %vm2806, %v4212, %v3596
        %v4245 = vsel %vm2806, %v4213, %v3598
        %v4246 = vsel %vm2806, %v4214, %v3600
        %v4247 = vsel %vm2806, %v4215, %v3602
        %v4248 = vsel %vm2806, %v4216, %v3604
        %v4249 = vsel %vm2806, %v4217, %v3606
        %v4250 = vsel %vm2806, %v4218, %v3608
        %v4251 = vsel %vm2806, %v4219, %v3610
        %v4252 = vsel %vm2806, %v4220, %v3612
        %v4253 = vsel %vm2839, %v4221, %v3678
        %v4254 = vsel %vm2839, %v4222, %v3680
        %v4255 = vsel %vm2839, %v4223, %v3682
        %v4256 = vsel %vm2839, %v4224, %v3684
        %v4257 = vsel %vm2839, %v4225, %v3686
        %v4258 = vsel %vm2839, %v4226, %v3688
        %v4259 = vsel %vm2839, %v4227, %v3690
        %v4260 = vsel %vm2839, %v4228, %v3692
        %v4261 = vsel %vm2839, %v4229, %v3694
        %v4262 = vsel %vm2839, %v4230, %v3696
        %v4263 = vsel %vm2839, %v4231, %v3698
        %v4264 = vsel %vm2839, %v4232, %v3700
        %v4265 = vsel %vm2839, %v4233, %v3702
        %v4266 = vsel %vm2839, %v4234, %v3704
        %v4267 = vsel %vm2839, %v4235, %v3706
        %v4268 = vsel %vm2839, %v4236, %v3708
        %v4269 = vsel %vm2839, %v4237, %v3710
        %v4270 = vsel %vm2839, %v4238, %v3712
        %v4271 = vsel %vm2839, %v4239, %v3714
        %v4272 = vsel %vm2839, %v4240, %v3716
        %v4273 = vsel %vm2839, %v4241, %v3718
        %v4274 = vsel %vm2839, %v4242, %v3720
        %v4275 = vsel %vm2839, %v4243, %v3722
        %v4276 = vsel %vm2839, %v4244, %v3724
        %v4277 = vsel %vm2839, %v4245, %v3726
        %v4278 = vsel %vm2839, %v4246, %v3728
        %v4279 = vsel %vm2839, %v4247, %v3730
        %v4280 = vsel %vm2839, %v4248, %v3732
        %v4281 = vsel %vm2839, %v4249, %v3734
        %v4282 = vsel %vm2839, %v4250, %v3736
        %v4283 = vsel %vm2839, %v4251, %v3738
        %v4284 = vsel %vm2839, %v4252, %v3740
        %v4285 = vsel %vm2872, %v4253, %v3806
        %v4286 = vsel %vm2872, %v4254, %v3808
        %v4287 = vsel %vm2872, %v4255, %v3810
        %v4288 = vsel %vm2872, %v4256, %v3812
        %v4289 = vsel %vm2872, %v4257, %v3814
        %v4290 = vsel %vm2872, %v4258, %v3816
        %v4291 = vsel %vm2872, %v4259, %v3818
        %v4292 = vsel %vm2872, %v4260, %v3820
        %v4293 = vsel %vm2872, %v4261, %v3822
        %v4294 = vsel %vm2872, %v4262, %v3824
        %v4295 = vsel %vm2872, %v4263, %v3826
        %v4296 = vsel %vm2872, %v4264, %v3828
        %v4297 = vsel %vm2872, %v4265, %v3830
        %v4298 = vsel %vm2872, %v4266, %v3832
        %v4299 = vsel %vm2872, %v4267, %v3834
        %v4300 = vsel %vm2872, %v4268, %v3836
        %v4301 = vsel %vm2872, %v4269, %v3838
        %v4302 = vsel %vm2872, %v4270, %v3840
        %v4303 = vsel %vm2872, %v4271, %v3842
        %v4304 = vsel %vm2872, %v4272, %v3844
        %v4305 = vsel %vm2872, %v4273, %v3846
        %v4306 = vsel %vm2872, %v4274, %v3848
        %v4307 = vsel %vm2872, %v4275, %v3850
        %v4308 = vsel %vm2872, %v4276, %v3852
        %v4309 = vsel %vm2872, %v4277, %v3854
        %v4310 = vsel %vm2872, %v4278, %v3856
        %v4311 = vsel %vm2872, %v4279, %v3858
        %v4312 = vsel %vm2872, %v4280, %v3860
        %v4313 = vsel %vm2872, %v4281, %v3862
        %v4314 = vsel %vm2872, %v4282, %v3864
        %v4315 = vsel %vm2872, %v4283, %v3866
        %v4316 = vsel %vm2872, %v4284, %v3868
        %v4317 = vsel %vm2905, %v4285, %v3934
        %v4318 = vsel %vm2905, %v4286, %v3936
        %v4319 = vsel %vm2905, %v4287, %v3938
        %v4320 = vsel %vm2905, %v4288, %v3940
        %v4321 = vsel %vm2905, %v4289, %v3942
        %v4322 = vsel %vm2905, %v4290, %v3944
        %v4323 = vsel %vm2905, %v4291, %v3946
        %v4324 = vsel %vm2905, %v4292, %v3948
        %v4325 = vsel %vm2905, %v4293, %v3950
        %v4326 = vsel %vm2905, %v4294, %v3952
        %v4327 = vsel %vm2905, %v4295, %v3954
        %v4328 = vsel %vm2905, %v4296, %v3956
        %v4329 = vsel %vm2905, %v4297, %v3958
        %v4330 = vsel %vm2905, %v4298, %v3960
        %v4331 = vsel %vm2905, %v4299, %v3962
        %v4332 = vsel %vm2905, %v4300, %v3964
        %v4333 = vsel %vm2905, %v4301, %v3966
        %v4334 = vsel %vm2905, %v4302, %v3968
        %v4335 = vsel %vm2905, %v4303, %v3970
        %v4336 = vsel %vm2905, %v4304, %v3972
        %v4337 = vsel %vm2905, %v4305, %v3974
        %v4338 = vsel %vm2905, %v4306, %v3976
        %v4339 = vsel %vm2905, %v4307, %v3978
        %v4340 = vsel %vm2905, %v4308, %v3980
        %v4341 = vsel %vm2905, %v4309, %v3982
        %v4342 = vsel %vm2905, %v4310, %v3984
        %v4343 = vsel %vm2905, %v4311, %v3986
        %v4344 = vsel %vm2905, %v4312, %v3988
        %v4345 = vsel %vm2905, %v4313, %v3990
        %v4346 = vsel %vm2905, %v4314, %v3992
        %v4347 = vsel %vm2905, %v4315, %v3994
        %v4348 = vsel %vm2905, %v4316, %v3996
        %v4349 = vsel %vm2938, %v4317, %v4062
        %v4350 = vsel %vm2938, %v4318, %v4064
        %v4351 = vsel %vm2938, %v4319, %v4066
        %v4352 = vsel %vm2938, %v4320, %v4068
        %v4353 = vsel %vm2938, %v4321, %v4070
        %v4354 = vsel %vm2938, %v4322, %v4072
        %v4355 = vsel %vm2938, %v4323, %v4074
        %v4356 = vsel %vm2938, %v4324, %v4076
        %v4357 = vsel %vm2938, %v4325, %v4078
        %v4358 = vsel %vm2938, %v4326, %v4080
        %v4359 = vsel %vm2938, %v4327, %v4082
        %v4360 = vsel %vm2938, %v4328, %v4084
        %v4361 = vsel %vm2938, %v4329, %v4086
        %v4362 = vsel %vm2938, %v4330, %v4088
        %v4363 = vsel %vm2938, %v4331, %v4090
        %v4364 = vsel %vm2938, %v4332, %v4092
        %v4365 = vsel %vm2938, %v4333, %v4094
        %v4366 = vsel %vm2938, %v4334, %v4096
        %v4367 = vsel %vm2938, %v4335, %v4098
        %v4368 = vsel %vm2938, %v4336, %v4100
        %v4369 = vsel %vm2938, %v4337, %v4102
        %v4370 = vsel %vm2938, %v4338, %v4104
        %v4371 = vsel %vm2938, %v4339, %v4106
        %v4372 = vsel %vm2938, %v4340, %v4108
        %v4373 = vsel %vm2938, %v4341, %v4110
        %v4374 = vsel %vm2938, %v4342, %v4112
        %v4375 = vsel %vm2938, %v4343, %v4114
        %v4376 = vsel %vm2938, %v4344, %v4116
        %v4377 = vsel %vm2938, %v4345, %v4118
        %v4378 = vsel %vm2938, %v4346, %v4120
        %v4379 = vsel %vm2938, %v4347, %v4122
        %v4380 = vsel %vm2938, %v4348, %v4124
        %v4382 = vsel %vm1380, %v1813, 0
        %v4385 = vsel %vm1380, %v1814, 0
        %v4388 = vsel %vm1380, %v1815, 0
        %v4391 = vsel %vm1380, %v1816, 0
        %v4394 = vsel %vm1380, %v1817, 0
        %v4397 = vsel %vm1380, %v1818, 0
        %v4400 = vsel %vm1380, %v1819, 0
        %v4403 = vsel %vm1380, %v1820, 0
        %v4406 = vsel %vm1380, %v1821, 0
        %v4409 = vsel %vm1380, %v1822, 0
        %v4412 = vsel %vm1380, %v1823, 0
        %v4415 = vsel %vm1380, %v1824, 0
        %v4418 = vsel %vm1380, %v1825, 0
        %v4421 = vsel %vm1380, %v1826, 0
        %v4424 = vsel %vm1380, %v1827, 0
        %v4427 = vsel %vm1380, %v1828, 0
        %v4430 = vsel %vm1380, %v1829, 0
        %v4433 = vsel %vm1380, %v1830, 0
        %v4436 = vsel %vm1380, %v1831, 0
        %v4439 = vsel %vm1380, %v1832, 0
        %v4442 = vsel %vm1380, %v1833, 0
        %v4445 = vsel %vm1380, %v1834, 0
        %v4448 = vsel %vm1380, %v1835, 0
        %v4451 = vsel %vm1380, %v1836, 0
        %v4454 = vsel %vm1380, %v1837, 0
        %v4457 = vsel %vm1380, %v1838, 0
        %v4460 = vsel %vm1380, %v1839, 0
        %v4463 = vsel %vm1380, %v1840, 0
        %v4466 = vsel %vm1380, %v1841, 0
        %v4469 = vsel %vm1380, %v1842, 0
        %v4472 = vsel %vm1380, %v1843, 0
        %v4475 = vsel %vm1380, %v1844, 0
        %v4478 = vsel %vm1380, %v3229, 0
        %v4481 = vsel %vm1380, %v3230, 0
        %v4484 = vsel %vm1380, %v3231, 0
        %v4487 = vsel %vm1380, %v3232, 0
        %v4490 = vsel %vm1380, %v3233, 0
        %v4493 = vsel %vm1380, %v3234, 0
        %v4496 = vsel %vm1380, %v3235, 0
        %v4499 = vsel %vm1380, %v3236, 0
        %v4502 = vsel %vm1380, %v3237, 0
        %v4505 = vsel %vm1380, %v3238, 0
        %v4508 = vsel %vm1380, %v3239, 0
        %v4511 = vsel %vm1380, %v3240, 0
        %v4514 = vsel %vm1380, %v3241, 0
        %v4517 = vsel %vm1380, %v3242, 0
        %v4520 = vsel %vm1380, %v3243, 0
        %v4523 = vsel %vm1380, %v3244, 0
        %v4526 = vsel %vm1380, %v3245, 0
        %v4529 = vsel %vm1380, %v3246, 0
        %v4532 = vsel %vm1380, %v3247, 0
        %v4535 = vsel %vm1380, %v3248, 0
        %v4538 = vsel %vm1380, %v3249, 0
        %v4541 = vsel %vm1380, %v3250, 0
        %v4544 = vsel %vm1380, %v3251, 0
        %v4547 = vsel %vm1380, %v3252, 0
        %v4550 = vsel %vm1380, %v3253, 0
        %v4553 = vsel %vm1380, %v3254, 0
        %v4556 = vsel %vm1380, %v3255, 0
        %v4559 = vsel %vm1380, %v3256, 0
        %v4562 = vsel %vm1380, %v3257, 0
        %v4565 = vsel %vm1380, %v3258, 0
        %v4568 = vsel %vm1380, %v3259, 0
        %v4571 = vsel %vm1380, %v3260, 0
        %4573 = vmatprep.subr.mxu0 0.0
        %4574 = vmatpush1.msra.mxu0 %v703
        %4575 = vmatprep.subr.mxu0 0.0
        %4576 = vmatpush1.msra.mxu0 %v704
        %4577 = vmatprep.subr.mxu0 0.0
        %4578 = vmatpush1.msra.mxu0 %v705
        %4579 = vmatprep.subr.mxu0 0.0
        %4580 = vmatpush1.msra.mxu0 %v706
        %4581 = vmatprep.subr.mxu0 0.0
        %4582 = vmatpush1.msra.mxu0 %v707
        %4583 = vmatprep.subr.mxu0 0.0
        %4584 = vmatpush1.msra.mxu0 %v708
        %4585 = vmatprep.subr.mxu0 0.0
        %4586 = vmatpush1.msra.mxu0 %v709
        %4587 = vmatprep.subr.mxu0 0.0
        %4588 = vmatpush1.msra.mxu0 %v710
        %4589 = vmatprep.subr.mxu0 0.0
        %4590 = vmatpush1.msra.mxu0 %v711
        %4591 = vmatprep.subr.mxu0 0.0
        %4592 = vmatpush1.msra.mxu0 %v712
        %4593 = vmatprep.subr.mxu0 0.0
        %4594 = vmatpush1.msra.mxu0 %v713
        %4595 = vmatprep.subr.mxu0 0.0
        %4596 = vmatpush1.msra.mxu0 %v714
        %4597 = vmatprep.subr.mxu0 0.0
        %4598 = vmatpush1.msra.mxu0 %v715
        %4599 = vmatprep.subr.mxu0 0.0
        %4600 = vmatpush1.msra.mxu0 %v716
        %4601 = vmatprep.subr.mxu0 0.0
        %4602 = vmatpush1.msra.mxu0 %v717
        %4603 = vmatprep.subr.mxu0 0.0
        %4604 = vmatpush1.msra.mxu0 %v718
        %4605 = vmatprep.subr.mxu0 0.0
        %4606 = vmatpush1.msra.mxu0 %v719
        %4607 = vmatprep.subr.mxu0 0.0
        %4608 = vmatpush1.msra.mxu0 %v720
        %4609 = vmatprep.subr.mxu0 0.0
        %4610 = vmatpush1.msra.mxu0 0.0
        %4611 = vmatprep.subr.mxu0 0.0
        %4612 = vmatpush1.msra.mxu0 0.0
        %4613 = vmatprep.subr.mxu0 0.0
        %4614 = vmatpush1.msra.mxu0 0.0
        %4615 = vmatprep.subr.mxu0 0.0
        %4616 = vmatpush1.msra.mxu0 0.0
        %4617 = vmatprep.subr.mxu0 0.0
        %4618 = vmatpush1.msra.mxu0 0.0
        %4619 = vmatprep.subr.mxu0 0.0
        %4620 = vmatpush1.msra.mxu0 0.0
        %4621 = vmatprep.subr.mxu0 0.0
        %4622 = vmatpush1.msra.mxu0 0.0
        %4623 = vmatprep.subr.mxu0 0.0
        %4624 = vmatpush1.msra.mxu0 0.0
        %4625 = vmatprep.subr.mxu0 0.0
        %4626 = vmatpush1.msra.mxu0 0.0
        %4627 = vmatprep.subr.mxu0 0.0
        %4628 = vmatpush1.msra.mxu0 0.0
        %4629 = vmatprep.subr.mxu0 0.0
        %4630 = vmatpush1.msra.mxu0 0.0
        %4631 = vmatprep.subr.mxu0 0.0
        %4632 = vmatpush1.msra.mxu0 0.0
        %4633 = vmatprep.subr.mxu0 0.0
        %4634 = vmatpush1.msra.mxu0 0.0
        %4635 = vmatprep.subr.mxu0 0.0
        %4636 = vmatpush1.msra.mxu0 0.0
        %4637 = vmatprep.mubr.f32.mxu0 %v4382
        %4638 = vmatmul.mubr.f32.gmra.mrb[0].mxu0 %v2939
        %v4639 = vpop.f32.mrb[0].mxu0
        %v4640 = vadd.f32 0.0, %v4639
        %v4641 = vpop.f32.mrb[0].mxu0
        %4642 = vmatprep.mubr.f32.mxu0 %v4385
        %4643 = vmatmul.mubr.f32.gmra.mrb[0].mxu0 %v2940
        %v4644 = vpop.f32.mrb[0].mxu0
        %v4645 = vadd.f32 0.0, %v4644
        %v4646 = vpop.f32.mrb[0].mxu0
        %4647 = vmatprep.mubr.f32.mxu0 %v4388
        %4648 = vmatmul.mubr.f32.gmra.mrb[0].mxu0 %v2941
        %v4649 = vpop.f32.mrb[0].mxu0
        %v4650 = vadd.f32 0.0, %v4649
        %v4651 = vpop.f32.mrb[0].mxu0
        %4652 = vmatprep.mubr.f32.mxu0 %v4391
        %4653 = vmatmul.mubr.f32.gmra.mrb[0].mxu0 %v2942
        %v4654 = vpop.f32.mrb[0].mxu0
        %v4655 = vadd.f32 0.0, %v4654
        %v4656 = vpop.f32.mrb[0].mxu0
        %4657 = vmatprep.mubr.f32.mxu0 %v4394
        %4658 = vmatmul.mubr.f32.gmra.mrb[0].mxu0 %v2943
        %v4659 = vpop.f32.mrb[0].mxu0
        %v4660 = vadd.f32 0.0, %v4659
        %v4661 = vpop.f32.mrb[0].mxu0
        %4662 = vmatprep.mubr.f32.mxu0 %v4397
        %4663 = vmatmul.mubr.f32.gmra.mrb[0].mxu0 %v2944
        %v4664 = vpop.f32.mrb[0].mxu0
        %v4665 = vadd.f32 0.0, %v4664
        %v4666 = vpop.f32.mrb[0].mxu0
        %4667 = vmatprep.mubr.f32.mxu0 %v4400
        %4668 = vmatmul.mubr.f32.gmra.mrb[0].mxu0 %v2945
        %v4669 = vpop.f32.mrb[0].mxu0
        %v4670 = vadd.f32 0.0, %v4669
        %v4671 = vpop.f32.mrb[0].mxu0
        %4672 = vmatprep.mubr.f32.mxu0 %v4403
        %4673 = vmatmul.mubr.f32.gmra.mrb[0].mxu0 %v2946
        %v4674 = vpop.f32.mrb[0].mxu0
        %v4675 = vadd.f32 0.0, %v4674
        %v4676 = vpop.f32.mrb[0].mxu0
        %4677 = vmatprep.mubr.f32.mxu0 %v4406
        %4678 = vmatmul.mubr.f32.gmra.mrb[0].mxu0 %v2947
        %v4679 = vpop.f32.mrb[0].mxu0
        %v4680 = vadd.f32 0.0, %v4679
        %v4681 = vpop.f32.mrb[0].mxu0
        %4682 = vmatprep.mubr.f32.mxu0 %v4409
        %4683 = vmatmul.mubr.f32.gmra.mrb[0].mxu0 %v2948
        %v4684 = vpop.f32.mrb[0].mxu0
        %v4685 = vadd.f32 0.0, %v4684
        %v4686 = vpop.f32.mrb[0].mxu0
        %4687 = vmatprep.mubr.f32.mxu0 %v4412
        %4688 = vmatmul.mubr.f32.gmra.mrb[0].mxu0 %v2949
        %v4689 = vpop.f32.mrb[0].mxu0
        %v4690 = vadd.f32 0.0, %v4689
        %v4691 = vpop.f32.mrb[0].mxu0
        %4692 = vmatprep.mubr.f32.mxu0 %v4415
        %4693 = vmatmul.mubr.f32.gmra.mrb[0].mxu0 %v2950
        %v4694 = vpop.f32.mrb[0].mxu0
        %v4695 = vadd.f32 0.0, %v4694
        %v4696 = vpop.f32.mrb[0].mxu0
        %4697 = vmatprep.mubr.f32.mxu0 %v4418
        %4698 = vmatmul.mubr.f32.gmra.mrb[0].mxu0 %v2951
        %v4699 = vpop.f32.mrb[0].mxu0
        %v4700 = vadd.f32 0.0, %v4699
        %v4701 = vpop.f32.mrb[0].mxu0
        %4702 = vmatprep.mubr.f32.mxu0 %v4421
        %4703 = vmatmul.mubr.f32.gmra.mrb[0].mxu0 %v2952
        %v4704 = vpop.f32.mrb[0].mxu0
        %v4705 = vadd.f32 0.0, %v4704
        %v4706 = vpop.f32.mrb[0].mxu0
        %4707 = vmatprep.mubr.f32.mxu0 %v4424
        %4708 = vmatmul.mubr.f32.gmra.mrb[0].mxu0 %v2953
        %v4709 = vpop.f32.mrb[0].mxu0
        %v4710 = vadd.f32 0.0, %v4709
        %v4711 = vpop.f32.mrb[0].mxu0
        %4712 = vmatprep.mubr.f32.mxu0 %v4427
        %4713 = vmatmul.mubr.f32.gmra.mrb[0].mxu0 %v2954
        %v4714 = vpop.f32.mrb[0].mxu0
        %v4715 = vadd.f32 0.0, %v4714
        %v4716 = vpop.f32.mrb[0].mxu0
        %4717 = vmatprep.mubr.f32.mxu0 %v4430
        %4718 = vmatmul.mubr.f32.gmra.mrb[0].mxu0 %v2955
        %v4719 = vpop.f32.mrb[0].mxu0
        %v4720 = vadd.f32 0.0, %v4719
        %v4721 = vpop.f32.mrb[0].mxu0
        %4722 = vmatprep.mubr.f32.mxu0 %v4433
        %4723 = vmatmul.mubr.f32.gmra.mrb[0].mxu0 %v2956
        %v4724 = vpop.f32.mrb[0].mxu0
        %v4725 = vadd.f32 0.0, %v4724
        %v4726 = vpop.f32.mrb[0].mxu0
        %4727 = vmatprep.mubr.f32.mxu0 %v4436
        %4728 = vmatmul.mubr.f32.gmra.mrb[0].mxu0 %v2957
        %v4729 = vpop.f32.mrb[0].mxu0
        %v4730 = vadd.f32 0.0, %v4729
        %v4731 = vpop.f32.mrb[0].mxu0
        %4732 = vmatprep.mubr.f32.mxu0 %v4439
        %4733 = vmatmul.mubr.f32.gmra.mrb[0].mxu0 %v2958
        %v4734 = vpop.f32.mrb[0].mxu0
        %v4735 = vadd.f32 0.0, %v4734
        %v4736 = vpop.f32.mrb[0].mxu0
        %4737 = vmatprep.mubr.f32.mxu0 %v4442
        %4738 = vmatmul.mubr.f32.gmra.mrb[0].mxu0 %v2959
        %v4739 = vpop.f32.mrb[0].mxu0
        %v4740 = vadd.f32 0.0, %v4739
        %v4741 = vpop.f32.mrb[0].mxu0
        %4742 = vmatprep.mubr.f32.mxu0 %v4445
        %4743 = vmatmul.mubr.f32.gmra.mrb[0].mxu0 %v2960
        %v4744 = vpop.f32.mrb[0].mxu0
        %v4745 = vadd.f32 0.0, %v4744
        %v4746 = vpop.f32.mrb[0].mxu0
        %4747 = vmatprep.mubr.f32.mxu0 %v4448
        %4748 = vmatmul.mubr.f32.gmra.mrb[0].mxu0 %v2961
        %v4749 = vpop.f32.mrb[0].mxu0
        %v4750 = vadd.f32 0.0, %v4749
        %v4751 = vpop.f32.mrb[0].mxu0
        %4752 = vmatprep.mubr.f32.mxu0 %v4451
        %4753 = vmatmul.mubr.f32.gmra.mrb[0].mxu0 %v2962
        %v4754 = vpop.f32.mrb[0].mxu0
        %v4755 = vadd.f32 0.0, %v4754
        %v4756 = vpop.f32.mrb[0].mxu0
        %4757 = vmatprep.mubr.f32.mxu0 %v4454
        %4758 = vmatmul.mubr.f32.gmra.mrb[0].mxu0 %v2963
        %v4759 = vpop.f32.mrb[0].mxu0
        %v4760 = vadd.f32 0.0, %v4759
        %v4761 = vpop.f32.mrb[0].mxu0
        %4762 = vmatprep.mubr.f32.mxu0 %v4457
        %4763 = vmatmul.mubr.f32.gmra.mrb[0].mxu0 %v2964
        %v4764 = vpop.f32.mrb[0].mxu0
        %v4765 = vadd.f32 0.0, %v4764
        %v4766 = vpop.f32.mrb[0].mxu0
        %4767 = vmatprep.mubr.f32.mxu0 %v4460
        %4768 = vmatmul.mubr.f32.gmra.mrb[0].mxu0 %v2965
        %v4769 = vpop.f32.mrb[0].mxu0
        %v4770 = vadd.f32 0.0, %v4769
        %v4771 = vpop.f32.mrb[0].mxu0
        %4772 = vmatprep.mubr.f32.mxu0 %v4463
        %4773 = vmatmul.mubr.f32.gmra.mrb[0].mxu0 %v2966
        %v4774 = vpop.f32.mrb[0].mxu0
        %v4775 = vadd.f32 0.0, %v4774
        %v4776 = vpop.f32.mrb[0].mxu0
        %4777 = vmatprep.mubr.f32.mxu0 %v4466
        %4778 = vmatmul.mubr.f32.gmra.mrb[0].mxu0 %v2967
        %v4779 = vpop.f32.mrb[0].mxu0
        %v4780 = vadd.f32 0.0, %v4779
        %v4781 = vpop.f32.mrb[0].mxu0
        %4782 = vmatprep.mubr.f32.mxu0 %v4469
        %4783 = vmatmul.mubr.f32.gmra.mrb[0].mxu0 %v2968
        %v4784 = vpop.f32.mrb[0].mxu0
        %v4785 = vadd.f32 0.0, %v4784
        %v4786 = vpop.f32.mrb[0].mxu0
        %4787 = vmatprep.mubr.f32.mxu0 %v4472
        %4788 = vmatmul.mubr.f32.gmra.mrb[0].mxu0 %v2969
        %v4789 = vpop.f32.mrb[0].mxu0
        %v4790 = vadd.f32 0.0, %v4789
        %v4791 = vpop.f32.mrb[0].mxu0
        %4792 = vmatprep.mubr.f32.mxu0 %v4475
        %4793 = vmatmul.mubr.f32.gmra.mrb[0].mxu0 %v2970
        %v4794 = vpop.f32.mrb[0].mxu0
        %v4795 = vadd.f32 0.0, %v4794
        %v4796 = vpop.f32.mrb[0].mxu0
        %4797 = vmatprep.mubr.f32.mxu0 %v4478
        %4798 = vmatmul.mubr.f32.gmra.mrb[0].mxu0 %v4349
        %v4799 = vpop.f32.mrb[0].mxu0
        %v4800 = vadd.f32 0.0, %v4799
        %v4801 = vpop.f32.mrb[0].mxu0
        %4802 = vmatprep.mubr.f32.mxu0 %v4481
        %4803 = vmatmul.mubr.f32.gmra.mrb[0].mxu0 %v4350
        %v4804 = vpop.f32.mrb[0].mxu0
        %v4805 = vadd.f32 0.0, %v4804
        %v4806 = vpop.f32.mrb[0].mxu0
        %4807 = vmatprep.mubr.f32.mxu0 %v4484
        %4808 = vmatmul.mubr.f32.gmra.mrb[0].mxu0 %v4351
        %v4809 = vpop.f32.mrb[0].mxu0
        %v4810 = vadd.f32 0.0, %v4809
        %v4811 = vpop.f32.mrb[0].mxu0
        %4812 = vmatprep.mubr.f32.mxu0 %v4487
        %4813 = vmatmul.mubr.f32.gmra.mrb[0].mxu0 %v4352
        %v4814 = vpop.f32.mrb[0].mxu0
        %v4815 = vadd.f32 0.0, %v4814
        %v4816 = vpop.f32.mrb[0].mxu0
        %4817 = vmatprep.mubr.f32.mxu0 %v4490
        %4818 = vmatmul.mubr.f32.gmra.mrb[0].mxu0 %v4353
        %v4819 = vpop.f32.mrb[0].mxu0
        %v4820 = vadd.f32 0.0, %v4819
        %v4821 = vpop.f32.mrb[0].mxu0
        %4822 = vmatprep.mubr.f32.mxu0 %v4493
        %4823 = vmatmul.mubr.f32.gmra.mrb[0].mxu0 %v4354
        %v4824 = vpop.f32.mrb[0].mxu0
        %v4825 = vadd.f32 0.0, %v4824
        %v4826 = vpop.f32.mrb[0].mxu0
        %4827 = vmatprep.mubr.f32.mxu0 %v4496
        %4828 = vmatmul.mubr.f32.gmra.mrb[0].mxu0 %v4355
        %v4829 = vpop.f32.mrb[0].mxu0
        %v4830 = vadd.f32 0.0, %v4829
        %v4831 = vpop.f32.mrb[0].mxu0
        %4832 = vmatprep.mubr.f32.mxu0 %v4499
        %4833 = vmatmul.mubr.f32.gmra.mrb[0].mxu0 %v4356
        %v4834 = vpop.f32.mrb[0].mxu0
        %v4835 = vadd.f32 0.0, %v4834
        %v4836 = vpop.f32.mrb[0].mxu0
        %4837 = vmatprep.mubr.f32.mxu0 %v4502
        %4838 = vmatmul.mubr.f32.gmra.mrb[0].mxu0 %v4357
        %v4839 = vpop.f32.mrb[0].mxu0
        %v4840 = vadd.f32 0.0, %v4839
        %v4841 = vpop.f32.mrb[0].mxu0
        %4842 = vmatprep.mubr.f32.mxu0 %v4505
        %4843 = vmatmul.mubr.f32.gmra.mrb[0].mxu0 %v4358
        %v4844 = vpop.f32.mrb[0].mxu0
        %v4845 = vadd.f32 0.0, %v4844
        %v4846 = vpop.f32.mrb[0].mxu0
        %4847 = vmatprep.mubr.f32.mxu0 %v4508
        %4848 = vmatmul.mubr.f32.gmra.mrb[0].mxu0 %v4359
        %v4849 = vpop.f32.mrb[0].mxu0
        %v4850 = vadd.f32 0.0, %v4849
        %v4851 = vpop.f32.mrb[0].mxu0
        %4852 = vmatprep.mubr.f32.mxu0 %v4511
        %4853 = vmatmul.mubr.f32.gmra.mrb[0].mxu0 %v4360
        %v4854 = vpop.f32.mrb[0].mxu0
        %v4855 = vadd.f32 0.0, %v4854
        %v4856 = vpop.f32.mrb[0].mxu0
        %4857 = vmatprep.mubr.f32.mxu0 %v4514
        %4858 = vmatmul.mubr.f32.gmra.mrb[0].mxu0 %v4361
        %v4859 = vpop.f32.mrb[0].mxu0
        %v4860 = vadd.f32 0.0, %v4859
        %v4861 = vpop.f32.mrb[0].mxu0
        %4862 = vmatprep.mubr.f32.mxu0 %v4517
        %4863 = vmatmul.mubr.f32.gmra.mrb[0].mxu0 %v4362
        %v4864 = vpop.f32.mrb[0].mxu0
        %v4865 = vadd.f32 0.0, %v4864
        %v4866 = vpop.f32.mrb[0].mxu0
        %4867 = vmatprep.mubr.f32.mxu0 %v4520
        %4868 = vmatmul.mubr.f32.gmra.mrb[0].mxu0 %v4363
        %v4869 = vpop.f32.mrb[0].mxu0
        %v4870 = vadd.f32 0.0, %v4869
        %v4871 = vpop.f32.mrb[0].mxu0
        %4872 = vmatprep.mubr.f32.mxu0 %v4523
        %4873 = vmatmul.mubr.f32.gmra.mrb[0].mxu0 %v4364
        %v4874 = vpop.f32.mrb[0].mxu0
        %v4875 = vadd.f32 0.0, %v4874
        %v4876 = vpop.f32.mrb[0].mxu0
        %4877 = vmatprep.mubr.f32.mxu0 %v4526
        %4878 = vmatmul.mubr.f32.gmra.mrb[0].mxu0 %v4365
        %v4879 = vpop.f32.mrb[0].mxu0
        %v4880 = vadd.f32 0.0, %v4879
        %v4881 = vpop.f32.mrb[0].mxu0
        %4882 = vmatprep.mubr.f32.mxu0 %v4529
        %4883 = vmatmul.mubr.f32.gmra.mrb[0].mxu0 %v4366
        %v4884 = vpop.f32.mrb[0].mxu0
        %v4885 = vadd.f32 0.0, %v4884
        %v4886 = vpop.f32.mrb[0].mxu0
        %4887 = vmatprep.mubr.f32.mxu0 %v4532
        %4888 = vmatmul.mubr.f32.gmra.mrb[0].mxu0 %v4367
        %v4889 = vpop.f32.mrb[0].mxu0
        %v4890 = vadd.f32 0.0, %v4889
        %v4891 = vpop.f32.mrb[0].mxu0
        %4892 = vmatprep.mubr.f32.mxu0 %v4535
        %4893 = vmatmul.mubr.f32.gmra.mrb[0].mxu0 %v4368
        %v4894 = vpop.f32.mrb[0].mxu0
        %v4895 = vadd.f32 0.0, %v4894
        %v4896 = vpop.f32.mrb[0].mxu0
        %4897 = vmatprep.mubr.f32.mxu0 %v4538
        %4898 = vmatmul.mubr.f32.gmra.mrb[0].mxu0 %v4369
        %v4899 = vpop.f32.mrb[0].mxu0
        %v4900 = vadd.f32 0.0, %v4899
        %v4901 = vpop.f32.mrb[0].mxu0
        %4902 = vmatprep.mubr.f32.mxu0 %v4541
        %4903 = vmatmul.mubr.f32.gmra.mrb[0].mxu0 %v4370
        %v4904 = vpop.f32.mrb[0].mxu0
        %v4905 = vadd.f32 0.0, %v4904
        %v4906 = vpop.f32.mrb[0].mxu0
        %4907 = vmatprep.mubr.f32.mxu0 %v4544
        %4908 = vmatmul.mubr.f32.gmra.mrb[0].mxu0 %v4371
        %v4909 = vpop.f32.mrb[0].mxu0
        %v4910 = vadd.f32 0.0, %v4909
        %v4911 = vpop.f32.mrb[0].mxu0
        %4912 = vmatprep.mubr.f32.mxu0 %v4547
        %4913 = vmatmul.mubr.f32.gmra.mrb[0].mxu0 %v4372
        %v4914 = vpop.f32.mrb[0].mxu0
        %v4915 = vadd.f32 0.0, %v4914
        %v4916 = vpop.f32.mrb[0].mxu0
        %4917 = vmatprep.mubr.f32.mxu0 %v4550
        %4918 = vmatmul.mubr.f32.gmra.mrb[0].mxu0 %v4373
        %v4919 = vpop.f32.mrb[0].mxu0
        %v4920 = vadd.f32 0.0, %v4919
        %v4921 = vpop.f32.mrb[0].mxu0
        %4922 = vmatprep.mubr.f32.mxu0 %v4553
        %4923 = vmatmul.mubr.f32.gmra.mrb[0].mxu0 %v4374
        %v4924 = vpop.f32.mrb[0].mxu0
        %v4925 = vadd.f32 0.0, %v4924
        %v4926 = vpop.f32.mrb[0].mxu0
        %4927 = vmatprep.mubr.f32.mxu0 %v4556
        %4928 = vmatmul.mubr.f32.gmra.mrb[0].mxu0 %v4375
        %v4929 = vpop.f32.mrb[0].mxu0
        %v4930 = vadd.f32 0.0, %v4929
        %v4931 = vpop.f32.mrb[0].mxu0
        %4932 = vmatprep.mubr.f32.mxu0 %v4559
        %4933 = vmatmul.mubr.f32.gmra.mrb[0].mxu0 %v4376
        %v4934 = vpop.f32.mrb[0].mxu0
        %v4935 = vadd.f32 0.0, %v4934
        %v4936 = vpop.f32.mrb[0].mxu0
        %4937 = vmatprep.mubr.f32.mxu0 %v4562
        %4938 = vmatmul.mubr.f32.gmra.mrb[0].mxu0 %v4377
        %v4939 = vpop.f32.mrb[0].mxu0
        %v4940 = vadd.f32 0.0, %v4939
        %v4941 = vpop.f32.mrb[0].mxu0
        %4942 = vmatprep.mubr.f32.mxu0 %v4565
        %4943 = vmatmul.mubr.f32.gmra.mrb[0].mxu0 %v4378
        %v4944 = vpop.f32.mrb[0].mxu0
        %v4945 = vadd.f32 0.0, %v4944
        %v4946 = vpop.f32.mrb[0].mxu0
        %4947 = vmatprep.mubr.f32.mxu0 %v4568
        %4948 = vmatmul.mubr.f32.gmra.mrb[0].mxu0 %v4379
        %v4949 = vpop.f32.mrb[0].mxu0
        %v4950 = vadd.f32 0.0, %v4949
        %v4951 = vpop.f32.mrb[0].mxu0
        %4952 = vmatprep.mubr.f32.mxu0 %v4571
        %4953 = vmatmul.mubr.f32.gmra.mrb[0].mxu0 %v4380
        %v4954 = vpop.f32.mrb[0].mxu0
        %v4955 = vadd.f32 0.0, %v4954
        %v4956 = vpop.f32.mrb[0].mxu0
        %4957 = vdwg.mxu0
        %v4959 = vsel %vm927, %v702, 0
        %4961 = vmatprep.subr.mxu0 0.0
        %4962 = vmatpush1.msra.mxu0 %v699
        %4963 = vmatprep.subr.mxu0 0.0
        %4964 = vmatpush1.msra.mxu0 %v700
        %4965 = vmatprep.subr.mxu0 0.0
        %4966 = vmatpush1.msra.mxu0 %v701
        %4967 = vmatprep.subr.mxu0 0.0
        %4968 = vmatpush1.msra.mxu0 %v4959
        %4969 = vmatprep.subr.mxu0 0.0
        %4970 = vmatpush1.msra.mxu0 0.0
        %4971 = vmatprep.subr.mxu0 0.0
        %4972 = vmatpush1.msra.mxu0 0.0
        %4973 = vmatprep.subr.mxu0 0.0
        %4974 = vmatpush1.msra.mxu0 0.0
        %4975 = vmatprep.subr.mxu0 0.0
        %4976 = vmatpush1.msra.mxu0 0.0
        %4977 = vmatprep.subr.mxu0 0.0
        %4978 = vmatpush1.msra.mxu0 0.0
        %4979 = vmatprep.subr.mxu0 0.0
        %4980 = vmatpush1.msra.mxu0 0.0
        %4981 = vmatprep.subr.mxu0 0.0
        %4982 = vmatpush1.msra.mxu0 0.0
        %4983 = vmatprep.subr.mxu0 0.0
        %4984 = vmatpush1.msra.mxu0 0.0
        %4985 = vmatprep.subr.mxu0 0.0
        %4986 = vmatpush1.msra.mxu0 0.0
        %4987 = vmatprep.subr.mxu0 0.0
        %4988 = vmatpush1.msra.mxu0 0.0
        %4989 = vmatprep.subr.mxu0 0.0
        %4990 = vmatpush1.msra.mxu0 0.0
        %4991 = vmatprep.subr.mxu0 0.0
        %4992 = vmatpush1.msra.mxu0 0.0
        %4993 = vmatprep.subr.mxu0 0.0
        %4994 = vmatpush1.msra.mxu0 0.0
        %4995 = vmatprep.subr.mxu0 0.0
        %4996 = vmatpush1.msra.mxu0 0.0
        %4997 = vmatprep.subr.mxu0 0.0
        %4998 = vmatpush1.msra.mxu0 0.0
        %4999 = vmatprep.subr.mxu0 0.0
        %5000 = vmatpush1.msra.mxu0 0.0
        %5001 = vmatprep.subr.mxu0 0.0
        %5002 = vmatpush1.msra.mxu0 0.0
        %5003 = vmatprep.subr.mxu0 0.0
        %5004 = vmatpush1.msra.mxu0 0.0
        %5005 = vmatprep.subr.mxu0 0.0
        %5006 = vmatpush1.msra.mxu0 0.0
        %5007 = vmatprep.subr.mxu0 0.0
        %5008 = vmatpush1.msra.mxu0 0.0
        %5009 = vmatprep.subr.mxu0 0.0
        %5010 = vmatpush1.msra.mxu0 0.0
        %5011 = vmatprep.subr.mxu0 0.0
        %5012 = vmatpush1.msra.mxu0 0.0
        %5013 = vmatprep.subr.mxu0 0.0
        %5014 = vmatpush1.msra.mxu0 0.0
        %5015 = vmatprep.subr.mxu0 0.0
        %5016 = vmatpush1.msra.mxu0 0.0
        %5017 = vmatprep.subr.mxu0 0.0
        %5018 = vmatpush1.msra.mxu0 0.0
        %5019 = vmatprep.subr.mxu0 0.0
        %5020 = vmatpush1.msra.mxu0 0.0
        %5021 = vmatprep.subr.mxu0 0.0
        %5022 = vmatpush1.msra.mxu0 0.0
        %5023 = vmatprep.subr.mxu0 0.0
        %5024 = vmatpush1.msra.mxu0 0.0
        %5025 = vmatprep.mubr.f32.mxu0 0.0
        %5026 = vmatmul.mubr.f32.gmra.mrb[0].mxu0 %v736
        %v5027 = vpop.f32.mrb[0].mxu0
        %v5028 = vadd.f32 %v4640, %v5027
        %v5029 = vpop.f32.mrb[0].mxu0
        %5030 = vmatprep.mubr.f32.mxu0 0.0
        %5031 = vmatmul.mubr.f32.gmra.mrb[0].mxu0 %v739
        %v5032 = vpop.f32.mrb[0].mxu0
        %v5033 = vadd.f32 %v4645, %v5032
        %v5034 = vpop.f32.mrb[0].mxu0
        %5035 = vmatprep.mubr.f32.mxu0 0.0
        %5036 = vmatmul.mubr.f32.gmra.mrb[0].mxu0 %v742
        %v5037 = vpop.f32.mrb[0].mxu0
        %v5038 = vadd.f32 %v4650, %v5037
        %v5039 = vpop.f32.mrb[0].mxu0
        %5040 = vmatprep.mubr.f32.mxu0 0.0
        %5041 = vmatmul.mubr.f32.gmra.mrb[0].mxu0 %v745
        %v5042 = vpop.f32.mrb[0].mxu0
        %v5043 = vadd.f32 %v4655, %v5042
        %v5044 = vpop.f32.mrb[0].mxu0
        %5045 = vmatprep.mubr.f32.mxu0 0.0
        %5046 = vmatmul.mubr.f32.gmra.mrb[0].mxu0 %v748
        %v5047 = vpop.f32.mrb[0].mxu0
        %v5048 = vadd.f32 %v4660, %v5047
        %v5049 = vpop.f32.mrb[0].mxu0
        %5050 = vmatprep.mubr.f32.mxu0 0.0
        %5051 = vmatmul.mubr.f32.gmra.mrb[0].mxu0 %v751
        %v5052 = vpop.f32.mrb[0].mxu0
        %v5053 = vadd.f32 %v4665, %v5052
        %v5054 = vpop.f32.mrb[0].mxu0
        %5055 = vmatprep.mubr.f32.mxu0 0.0
        %5056 = vmatmul.mubr.f32.gmra.mrb[0].mxu0 %v754
        %v5057 = vpop.f32.mrb[0].mxu0
        %v5058 = vadd.f32 %v4670, %v5057
        %v5059 = vpop.f32.mrb[0].mxu0
        %5060 = vmatprep.mubr.f32.mxu0 0.0
        %5061 = vmatmul.mubr.f32.gmra.mrb[0].mxu0 %v757
        %v5062 = vpop.f32.mrb[0].mxu0
        %v5063 = vadd.f32 %v4675, %v5062
        %v5064 = vpop.f32.mrb[0].mxu0
        %5065 = vmatprep.mubr.f32.mxu0 0.0
        %5066 = vmatmul.mubr.f32.gmra.mrb[0].mxu0 %v760
        %v5067 = vpop.f32.mrb[0].mxu0
        %v5068 = vadd.f32 %v4680, %v5067
        %v5069 = vpop.f32.mrb[0].mxu0
        %5070 = vmatprep.mubr.f32.mxu0 0.0
        %5071 = vmatmul.mubr.f32.gmra.mrb[0].mxu0 %v763
        %v5072 = vpop.f32.mrb[0].mxu0
        %v5073 = vadd.f32 %v4685, %v5072
        %v5074 = vpop.f32.mrb[0].mxu0
        %5075 = vmatprep.mubr.f32.mxu0 0.0
        %5076 = vmatmul.mubr.f32.gmra.mrb[0].mxu0 %v766
        %v5077 = vpop.f32.mrb[0].mxu0
        %v5078 = vadd.f32 %v4690, %v5077
        %v5079 = vpop.f32.mrb[0].mxu0
        %5080 = vmatprep.mubr.f32.mxu0 0.0
        %5081 = vmatmul.mubr.f32.gmra.mrb[0].mxu0 %v769
        %v5082 = vpop.f32.mrb[0].mxu0
        %v5083 = vadd.f32 %v4695, %v5082
        %v5084 = vpop.f32.mrb[0].mxu0
        %5085 = vmatprep.mubr.f32.mxu0 0.0
        %5086 = vmatmul.mubr.f32.gmra.mrb[0].mxu0 %v772
        %v5087 = vpop.f32.mrb[0].mxu0
        %v5088 = vadd.f32 %v4700, %v5087
        %v5089 = vpop.f32.mrb[0].mxu0
        %5090 = vmatprep.mubr.f32.mxu0 0.0
        %5091 = vmatmul.mubr.f32.gmra.mrb[0].mxu0 %v775
        %v5092 = vpop.f32.mrb[0].mxu0
        %v5093 = vadd.f32 %v4705, %v5092
        %v5094 = vpop.f32.mrb[0].mxu0
        %5095 = vmatprep.mubr.f32.mxu0 0.0
        %5096 = vmatmul.mubr.f32.gmra.mrb[0].mxu0 %v778
        %v5097 = vpop.f32.mrb[0].mxu0
        %v5098 = vadd.f32 %v4710, %v5097
        %v5099 = vpop.f32.mrb[0].mxu0
        %5100 = vmatprep.mubr.f32.mxu0 0.0
        %5101 = vmatmul.mubr.f32.gmra.mrb[0].mxu0 %v781
        %v5102 = vpop.f32.mrb[0].mxu0
        %v5103 = vadd.f32 %v4715, %v5102
        %v5104 = vpop.f32.mrb[0].mxu0
        %5105 = vmatprep.mubr.f32.mxu0 0.0
        %5106 = vmatmul.mubr.f32.gmra.mrb[0].mxu0 %v784
        %v5107 = vpop.f32.mrb[0].mxu0
        %v5108 = vadd.f32 %v4720, %v5107
        %v5109 = vpop.f32.mrb[0].mxu0
        %5110 = vmatprep.mubr.f32.mxu0 0.0
        %5111 = vmatmul.mubr.f32.gmra.mrb[0].mxu0 %v787
        %v5112 = vpop.f32.mrb[0].mxu0
        %v5113 = vadd.f32 %v4725, %v5112
        %v5114 = vpop.f32.mrb[0].mxu0
        %5115 = vmatprep.mubr.f32.mxu0 0.0
        %5116 = vmatmul.mubr.f32.gmra.mrb[0].mxu0 %v790
        %v5117 = vpop.f32.mrb[0].mxu0
        %v5118 = vadd.f32 %v4730, %v5117
        %v5119 = vpop.f32.mrb[0].mxu0
        %5120 = vmatprep.mubr.f32.mxu0 0.0
        %5121 = vmatmul.mubr.f32.gmra.mrb[0].mxu0 %v793
        %v5122 = vpop.f32.mrb[0].mxu0
        %v5123 = vadd.f32 %v4735, %v5122
        %v5124 = vpop.f32.mrb[0].mxu0
        %5125 = vmatprep.mubr.f32.mxu0 0.0
        %5126 = vmatmul.mubr.f32.gmra.mrb[0].mxu0 %v796
        %v5127 = vpop.f32.mrb[0].mxu0
        %v5128 = vadd.f32 %v4740, %v5127
        %v5129 = vpop.f32.mrb[0].mxu0
        %5130 = vmatprep.mubr.f32.mxu0 0.0
        %5131 = vmatmul.mubr.f32.gmra.mrb[0].mxu0 %v799
        %v5132 = vpop.f32.mrb[0].mxu0
        %v5133 = vadd.f32 %v4745, %v5132
        %v5134 = vpop.f32.mrb[0].mxu0
        %5135 = vmatprep.mubr.f32.mxu0 0.0
        %5136 = vmatmul.mubr.f32.gmra.mrb[0].mxu0 %v802
        %v5137 = vpop.f32.mrb[0].mxu0
        %v5138 = vadd.f32 %v4750, %v5137
        %v5139 = vpop.f32.mrb[0].mxu0
        %5140 = vmatprep.mubr.f32.mxu0 0.0
        %5141 = vmatmul.mubr.f32.gmra.mrb[0].mxu0 %v805
        %v5142 = vpop.f32.mrb[0].mxu0
        %v5143 = vadd.f32 %v4755, %v5142
        %v5144 = vpop.f32.mrb[0].mxu0
        %5145 = vmatprep.mubr.f32.mxu0 0.0
        %5146 = vmatmul.mubr.f32.gmra.mrb[0].mxu0 %v808
        %v5147 = vpop.f32.mrb[0].mxu0
        %v5148 = vadd.f32 %v4760, %v5147
        %v5149 = vpop.f32.mrb[0].mxu0
        %5150 = vmatprep.mubr.f32.mxu0 0.0
        %5151 = vmatmul.mubr.f32.gmra.mrb[0].mxu0 %v811
        %v5152 = vpop.f32.mrb[0].mxu0
        %v5153 = vadd.f32 %v4765, %v5152
        %v5154 = vpop.f32.mrb[0].mxu0
        %5155 = vmatprep.mubr.f32.mxu0 0.0
        %5156 = vmatmul.mubr.f32.gmra.mrb[0].mxu0 %v814
        %v5157 = vpop.f32.mrb[0].mxu0
        %v5158 = vadd.f32 %v4770, %v5157
        %v5159 = vpop.f32.mrb[0].mxu0
        %5160 = vmatprep.mubr.f32.mxu0 0.0
        %5161 = vmatmul.mubr.f32.gmra.mrb[0].mxu0 %v817
        %v5162 = vpop.f32.mrb[0].mxu0
        %v5163 = vadd.f32 %v4775, %v5162
        %v5164 = vpop.f32.mrb[0].mxu0
        %5165 = vmatprep.mubr.f32.mxu0 0.0
        %5166 = vmatmul.mubr.f32.gmra.mrb[0].mxu0 %v820
        %v5167 = vpop.f32.mrb[0].mxu0
        %v5168 = vadd.f32 %v4780, %v5167
        %v5169 = vpop.f32.mrb[0].mxu0
        %5170 = vmatprep.mubr.f32.mxu0 0.0
        %5171 = vmatmul.mubr.f32.gmra.mrb[0].mxu0 %v823
        %v5172 = vpop.f32.mrb[0].mxu0
        %v5173 = vadd.f32 %v4785, %v5172
        %v5174 = vpop.f32.mrb[0].mxu0
        %5175 = vmatprep.mubr.f32.mxu0 0.0
        %5176 = vmatmul.mubr.f32.gmra.mrb[0].mxu0 %v826
        %v5177 = vpop.f32.mrb[0].mxu0
        %v5178 = vadd.f32 %v4790, %v5177
        %v5179 = vpop.f32.mrb[0].mxu0
        %5180 = vmatprep.mubr.f32.mxu0 0.0
        %5181 = vmatmul.mubr.f32.gmra.mrb[0].mxu0 %v829
        %v5182 = vpop.f32.mrb[0].mxu0
        %v5183 = vadd.f32 %v4795, %v5182
        %v5184 = vpop.f32.mrb[0].mxu0
        %5185 = vmatprep.mubr.f32.mxu0 0.0
        %5186 = vmatmul.mubr.f32.gmra.mrb[0].mxu0 %v832
        %v5187 = vpop.f32.mrb[0].mxu0
        %v5188 = vadd.f32 %v4800, %v5187
        %v5189 = vpop.f32.mrb[0].mxu0
        %5190 = vmatprep.mubr.f32.mxu0 0.0
        %5191 = vmatmul.mubr.f32.gmra.mrb[0].mxu0 %v835
        %v5192 = vpop.f32.mrb[0].mxu0
        %v5193 = vadd.f32 %v4805, %v5192
        %v5194 = vpop.f32.mrb[0].mxu0
        %5195 = vmatprep.mubr.f32.mxu0 0.0
        %5196 = vmatmul.mubr.f32.gmra.mrb[0].mxu0 %v838
        %v5197 = vpop.f32.mrb[0].mxu0
        %v5198 = vadd.f32 %v4810, %v5197
        %v5199 = vpop.f32.mrb[0].mxu0
        %5200 = vmatprep.mubr.f32.mxu0 0.0
        %5201 = vmatmul.mubr.f32.gmra.mrb[0].mxu0 %v841
        %v5202 = vpop.f32.mrb[0].mxu0
        %v5203 = vadd.f32 %v4815, %v5202
        %v5204 = vpop.f32.mrb[0].mxu0
        %5205 = vmatprep.mubr.f32.mxu0 0.0
        %5206 = vmatmul.mubr.f32.gmra.mrb[0].mxu0 %v844
        %v5207 = vpop.f32.mrb[0].mxu0
        %v5208 = vadd.f32 %v4820, %v5207
        %v5209 = vpop.f32.mrb[0].mxu0
        %5210 = vmatprep.mubr.f32.mxu0 0.0
        %5211 = vmatmul.mubr.f32.gmra.mrb[0].mxu0 %v847
        %v5212 = vpop.f32.mrb[0].mxu0
        %v5213 = vadd.f32 %v4825, %v5212
        %v5214 = vpop.f32.mrb[0].mxu0
        %5215 = vmatprep.mubr.f32.mxu0 0.0
        %5216 = vmatmul.mubr.f32.gmra.mrb[0].mxu0 %v850
        %v5217 = vpop.f32.mrb[0].mxu0
        %v5218 = vadd.f32 %v4830, %v5217
        %v5219 = vpop.f32.mrb[0].mxu0
        %5220 = vmatprep.mubr.f32.mxu0 0.0
        %5221 = vmatmul.mubr.f32.gmra.mrb[0].mxu0 %v853
        %v5222 = vpop.f32.mrb[0].mxu0
        %v5223 = vadd.f32 %v4835, %v5222
        %v5224 = vpop.f32.mrb[0].mxu0
        %5225 = vmatprep.mubr.f32.mxu0 0.0
        %5226 = vmatmul.mubr.f32.gmra.mrb[0].mxu0 %v856
        %v5227 = vpop.f32.mrb[0].mxu0
        %v5228 = vadd.f32 %v4840, %v5227
        %v5229 = vpop.f32.mrb[0].mxu0
        %5230 = vmatprep.mubr.f32.mxu0 0.0
        %5231 = vmatmul.mubr.f32.gmra.mrb[0].mxu0 %v859
        %v5232 = vpop.f32.mrb[0].mxu0
        %v5233 = vadd.f32 %v4845, %v5232
        %v5234 = vpop.f32.mrb[0].mxu0
        %5235 = vmatprep.mubr.f32.mxu0 0.0
        %5236 = vmatmul.mubr.f32.gmra.mrb[0].mxu0 %v862
        %v5237 = vpop.f32.mrb[0].mxu0
        %v5238 = vadd.f32 %v4850, %v5237
        %v5239 = vpop.f32.mrb[0].mxu0
        %5240 = vmatprep.mubr.f32.mxu0 0.0
        %5241 = vmatmul.mubr.f32.gmra.mrb[0].mxu0 %v865
        %v5242 = vpop.f32.mrb[0].mxu0
        %v5243 = vadd.f32 %v4855, %v5242
        %v5244 = vpop.f32.mrb[0].mxu0
        %5245 = vmatprep.mubr.f32.mxu0 0.0
        %5246 = vmatmul.mubr.f32.gmra.mrb[0].mxu0 %v868
        %v5247 = vpop.f32.mrb[0].mxu0
        %v5248 = vadd.f32 %v4860, %v5247
        %v5249 = vpop.f32.mrb[0].mxu0
        %5250 = vmatprep.mubr.f32.mxu0 0.0
        %5251 = vmatmul.mubr.f32.gmra.mrb[0].mxu0 %v871
        %v5252 = vpop.f32.mrb[0].mxu0
        %v5253 = vadd.f32 %v4865, %v5252
        %v5254 = vpop.f32.mrb[0].mxu0
        %5255 = vmatprep.mubr.f32.mxu0 0.0
        %5256 = vmatmul.mubr.f32.gmra.mrb[0].mxu0 %v874
        %v5257 = vpop.f32.mrb[0].mxu0
        %v5258 = vadd.f32 %v4870, %v5257
        %v5259 = vpop.f32.mrb[0].mxu0
        %5260 = vmatprep.mubr.f32.mxu0 0.0
        %5261 = vmatmul.mubr.f32.gmra.mrb[0].mxu0 %v877
        %v5262 = vpop.f32.mrb[0].mxu0
        %v5263 = vadd.f32 %v4875, %v5262
        %v5264 = vpop.f32.mrb[0].mxu0
        %5265 = vmatprep.mubr.f32.mxu0 0.0
        %5266 = vmatmul.mubr.f32.gmra.mrb[0].mxu0 %v880
        %v5267 = vpop.f32.mrb[0].mxu0
        %v5268 = vadd.f32 %v4880, %v5267
        %v5269 = vpop.f32.mrb[0].mxu0
        %5270 = vmatprep.mubr.f32.mxu0 0.0
        %5271 = vmatmul.mubr.f32.gmra.mrb[0].mxu0 %v883
        %v5272 = vpop.f32.mrb[0].mxu0
        %v5273 = vadd.f32 %v4885, %v5272
        %v5274 = vpop.f32.mrb[0].mxu0
        %5275 = vmatprep.mubr.f32.mxu0 0.0
        %5276 = vmatmul.mubr.f32.gmra.mrb[0].mxu0 %v886
        %v5277 = vpop.f32.mrb[0].mxu0
        %v5278 = vadd.f32 %v4890, %v5277
        %v5279 = vpop.f32.mrb[0].mxu0
        %5280 = vmatprep.mubr.f32.mxu0 0.0
        %5281 = vmatmul.mubr.f32.gmra.mrb[0].mxu0 %v889
        %v5282 = vpop.f32.mrb[0].mxu0
        %v5283 = vadd.f32 %v4895, %v5282
        %v5284 = vpop.f32.mrb[0].mxu0
        %5285 = vmatprep.mubr.f32.mxu0 0.0
        %5286 = vmatmul.mubr.f32.gmra.mrb[0].mxu0 %v892
        %v5287 = vpop.f32.mrb[0].mxu0
        %v5288 = vadd.f32 %v4900, %v5287
        %v5289 = vpop.f32.mrb[0].mxu0
        %5290 = vmatprep.mubr.f32.mxu0 0.0
        %5291 = vmatmul.mubr.f32.gmra.mrb[0].mxu0 %v895
        %v5292 = vpop.f32.mrb[0].mxu0
        %v5293 = vadd.f32 %v4905, %v5292
        %v5294 = vpop.f32.mrb[0].mxu0
        %5295 = vmatprep.mubr.f32.mxu0 0.0
        %5296 = vmatmul.mubr.f32.gmra.mrb[0].mxu0 %v898
        %v5297 = vpop.f32.mrb[0].mxu0
        %v5298 = vadd.f32 %v4910, %v5297
        %v5299 = vpop.f32.mrb[0].mxu0
        %5300 = vmatprep.mubr.f32.mxu0 0.0
        %5301 = vmatmul.mubr.f32.gmra.mrb[0].mxu0 %v901
        %v5302 = vpop.f32.mrb[0].mxu0
        %v5303 = vadd.f32 %v4915, %v5302
        %v5304 = vpop.f32.mrb[0].mxu0
        %5305 = vmatprep.mubr.f32.mxu0 0.0
        %5306 = vmatmul.mubr.f32.gmra.mrb[0].mxu0 %v904
        %v5307 = vpop.f32.mrb[0].mxu0
        %v5308 = vadd.f32 %v4920, %v5307
        %v5309 = vpop.f32.mrb[0].mxu0
        %5310 = vmatprep.mubr.f32.mxu0 0.0
        %5311 = vmatmul.mubr.f32.gmra.mrb[0].mxu0 %v907
        %v5312 = vpop.f32.mrb[0].mxu0
        %v5313 = vadd.f32 %v4925, %v5312
        %v5314 = vpop.f32.mrb[0].mxu0
        %5315 = vmatprep.mubr.f32.mxu0 0.0
        %5316 = vmatmul.mubr.f32.gmra.mrb[0].mxu0 %v910
        %v5317 = vpop.f32.mrb[0].mxu0
        %v5318 = vadd.f32 %v4930, %v5317
        %v5319 = vpop.f32.mrb[0].mxu0
        %5320 = vmatprep.mubr.f32.mxu0 0.0
        %5321 = vmatmul.mubr.f32.gmra.mrb[0].mxu0 %v913
        %v5322 = vpop.f32.mrb[0].mxu0
        %v5323 = vadd.f32 %v4935, %v5322
        %v5324 = vpop.f32.mrb[0].mxu0
        %5325 = vmatprep.mubr.f32.mxu0 0.0
        %5326 = vmatmul.mubr.f32.gmra.mrb[0].mxu0 %v916
        %v5327 = vpop.f32.mrb[0].mxu0
        %v5328 = vadd.f32 %v4940, %v5327
        %v5329 = vpop.f32.mrb[0].mxu0
        %5330 = vmatprep.mubr.f32.mxu0 0.0
        %5331 = vmatmul.mubr.f32.gmra.mrb[0].mxu0 %v919
        %v5332 = vpop.f32.mrb[0].mxu0
        %v5333 = vadd.f32 %v4945, %v5332
        %v5334 = vpop.f32.mrb[0].mxu0
        %5335 = vmatprep.mubr.f32.mxu0 0.0
        %5336 = vmatmul.mubr.f32.gmra.mrb[0].mxu0 %v922
        %v5337 = vpop.f32.mrb[0].mxu0
        %v5338 = vadd.f32 %v4950, %v5337
        %v5339 = vpop.f32.mrb[0].mxu0
        %5340 = vmatprep.mubr.f32.mxu0 0.0
        %5341 = vmatmul.mubr.f32.gmra.mrb[0].mxu0 %v925
        %v5342 = vpop.f32.mrb[0].mxu0
        %v5343 = vadd.f32 %v4955, %v5342
        %v5344 = vpop.f32.mrb[0].mxu0
        %5345 = vdwg.mxu0
        %v5347 = vlaneseq
        %v5348 = vshrl.u32 %v5347, 7
        %v5349 = vsub.s32 0, %v5348
        %v5350 = vrot.slane %v721, %v5349
        %v5352 = vadd.f32 %v5028, %v5350
        %v5353 = vadd.f32 %v5033, %v5350
        %v5354 = vadd.f32 %v5038, %v5350
        %v5355 = vadd.f32 %v5043, %v5350
        %v5356 = vadd.f32 %v5048, %v5350
        %v5357 = vadd.f32 %v5053, %v5350
        %v5358 = vadd.f32 %v5058, %v5350
        %v5359 = vadd.f32 %v5063, %v5350
        %v5360 = vadd.f32 %v5068, %v5350
        %v5361 = vadd.f32 %v5073, %v5350
        %v5362 = vadd.f32 %v5078, %v5350
        %v5363 = vadd.f32 %v5083, %v5350
        %v5364 = vadd.f32 %v5088, %v5350
        %v5365 = vadd.f32 %v5093, %v5350
        %v5366 = vadd.f32 %v5098, %v5350
        %v5367 = vadd.f32 %v5103, %v5350
        %v5368 = vadd.f32 %v5108, %v5350
        %v5369 = vadd.f32 %v5113, %v5350
        %v5370 = vadd.f32 %v5118, %v5350
        %v5371 = vadd.f32 %v5123, %v5350
        %v5372 = vadd.f32 %v5128, %v5350
        %v5373 = vadd.f32 %v5133, %v5350
        %v5374 = vadd.f32 %v5138, %v5350
        %v5375 = vadd.f32 %v5143, %v5350
        %v5376 = vadd.f32 %v5148, %v5350
        %v5377 = vadd.f32 %v5153, %v5350
        %v5378 = vadd.f32 %v5158, %v5350
        %v5379 = vadd.f32 %v5163, %v5350
        %v5380 = vadd.f32 %v5168, %v5350
        %v5381 = vadd.f32 %v5173, %v5350
        %v5382 = vadd.f32 %v5178, %v5350
        %v5383 = vadd.f32 %v5183, %v5350
        %v5384 = vadd.f32 %v5188, %v5350
        %v5385 = vadd.f32 %v5193, %v5350
        %v5386 = vadd.f32 %v5198, %v5350
        %v5387 = vadd.f32 %v5203, %v5350
        %v5388 = vadd.f32 %v5208, %v5350
        %v5389 = vadd.f32 %v5213, %v5350
        %v5390 = vadd.f32 %v5218, %v5350
        %v5391 = vadd.f32 %v5223, %v5350
        %v5392 = vadd.f32 %v5228, %v5350
        %v5393 = vadd.f32 %v5233, %v5350
        %v5394 = vadd.f32 %v5238, %v5350
        %v5395 = vadd.f32 %v5243, %v5350
        %v5396 = vadd.f32 %v5248, %v5350
        %v5397 = vadd.f32 %v5253, %v5350
        %v5398 = vadd.f32 %v5258, %v5350
        %v5399 = vadd.f32 %v5263, %v5350
        %v5400 = vadd.f32 %v5268, %v5350
        %v5401 = vadd.f32 %v5273, %v5350
        %v5402 = vadd.f32 %v5278, %v5350
        %v5403 = vadd.f32 %v5283, %v5350
        %v5404 = vadd.f32 %v5288, %v5350
        %v5405 = vadd.f32 %v5293, %v5350
        %v5406 = vadd.f32 %v5298, %v5350
        %v5407 = vadd.f32 %v5303, %v5350
        %v5408 = vadd.f32 %v5308, %v5350
        %v5409 = vadd.f32 %v5313, %v5350
        %v5410 = vadd.f32 %v5318, %v5350
        %v5411 = vadd.f32 %v5323, %v5350
        %v5412 = vadd.f32 %v5328, %v5350
        %v5413 = vadd.f32 %v5333, %v5350
        %v5414 = vadd.f32 %v5338, %v5350
        %v5415 = vadd.f32 %v5343, %v5350
        %v5416 = vmax.f32 %v5352, 0.0
        %v5417 = vmax.f32 %v5353, 0.0
        %v5418 = vmax.f32 %v5354, 0.0
        %v5419 = vmax.f32 %v5355, 0.0
        %v5420 = vmax.f32 %v5356, 0.0
        %v5421 = vmax.f32 %v5357, 0.0
        %v5422 = vmax.f32 %v5358, 0.0
        %v5423 = vmax.f32 %v5359, 0.0
        %v5424 = vmax.f32 %v5360, 0.0
        %v5425 = vmax.f32 %v5361, 0.0
        %v5426 = vmax.f32 %v5362, 0.0
        %v5427 = vmax.f32 %v5363, 0.0
        %v5428 = vmax.f32 %v5364, 0.0
        %v5429 = vmax.f32 %v5365, 0.0
        %v5430 = vmax.f32 %v5366, 0.0
        %v5431 = vmax.f32 %v5367, 0.0
        %v5432 = vmax.f32 %v5368, 0.0
        %v5433 = vmax.f32 %v5369, 0.0
        %v5434 = vmax.f32 %v5370, 0.0
        %v5435 = vmax.f32 %v5371, 0.0
        %v5436 = vmax.f32 %v5372, 0.0
        %v5437 = vmax.f32 %v5373, 0.0
        %v5438 = vmax.f32 %v5374, 0.0
        %v5439 = vmax.f32 %v5375, 0.0
        %v5440 = vmax.f32 %v5376, 0.0
        %v5441 = vmax.f32 %v5377, 0.0
        %v5442 = vmax.f32 %v5378, 0.0
        %v5443 = vmax.f32 %v5379, 0.0
        %v5444 = vmax.f32 %v5380, 0.0
        %v5445 = vmax.f32 %v5381, 0.0
        %v5446 = vmax.f32 %v5382, 0.0
        %v5447 = vmax.f32 %v5383, 0.0
        %v5448 = vmax.f32 %v5384, 0.0
        %v5449 = vmax.f32 %v5385, 0.0
        %v5450 = vmax.f32 %v5386, 0.0
        %v5451 = vmax.f32 %v5387, 0.0
        %v5452 = vmax.f32 %v5388, 0.0
        %v5453 = vmax.f32 %v5389, 0.0
        %v5454 = vmax.f32 %v5390, 0.0
        %v5455 = vmax.f32 %v5391, 0.0
        %v5456 = vmax.f32 %v5392, 0.0
        %v5457 = vmax.f32 %v5393, 0.0
        %v5458 = vmax.f32 %v5394, 0.0
        %v5459 = vmax.f32 %v5395, 0.0
        %v5460 = vmax.f32 %v5396, 0.0
        %v5461 = vmax.f32 %v5397, 0.0
        %v5462 = vmax.f32 %v5398, 0.0
        %v5463 = vmax.f32 %v5399, 0.0
        %v5464 = vmax.f32 %v5400, 0.0
        %v5465 = vmax.f32 %v5401, 0.0
        %v5466 = vmax.f32 %v5402, 0.0
        %v5467 = vmax.f32 %v5403, 0.0
        %v5468 = vmax.f32 %v5404, 0.0
        %v5469 = vmax.f32 %v5405, 0.0
        %v5470 = vmax.f32 %v5406, 0.0
        %v5471 = vmax.f32 %v5407, 0.0
        %v5472 = vmax.f32 %v5408, 0.0
        %v5473 = vmax.f32 %v5409, 0.0
        %v5474 = vmax.f32 %v5410, 0.0
        %v5475 = vmax.f32 %v5411, 0.0
        %v5476 = vmax.f32 %v5412, 0.0
        %v5477 = vmax.f32 %v5413, 0.0
        %v5478 = vmax.f32 %v5414, 0.0
        %v5479 = vmax.f32 %v5415, 0.0
        %v5481 = vsel %vm1380, %v1316, 0
        %v5484 = vsel %vm1380, %v1317, 0
        %v5487 = vsel %vm1380, %v1318, 0
        %v5490 = vsel %vm1380, %v1319, 0
        %v5493 = vsel %vm1380, %v1320, 0
        %v5496 = vsel %vm1380, %v1321, 0
        %v5499 = vsel %vm1380, %v1322, 0
        %v5502 = vsel %vm1380, %v1323, 0
        %v5505 = vsel %vm1380, %v1324, 0
        %v5508 = vsel %vm1380, %v1325, 0
        %v5511 = vsel %vm1380, %v1326, 0
        %v5514 = vsel %vm1380, %v1327, 0
        %v5517 = vsel %vm1380, %v1328, 0
        %v5520 = vsel %vm1380, %v1329, 0
        %v5523 = vsel %vm1380, %v1330, 0
        %v5526 = vsel %vm1380, %v1331, 0
        %v5529 = vsel %vm1380, %v1332, 0
        %v5532 = vsel %vm1380, %v1333, 0
        %v5535 = vsel %vm1380, %v1334, 0
        %v5538 = vsel %vm1380, %v1335, 0
        %v5541 = vsel %vm1380, %v1336, 0
        %v5544 = vsel %vm1380, %v1337, 0
        %v5547 = vsel %vm1380, %v1338, 0
        %v5550 = vsel %vm1380, %v1339, 0
        %v5553 = vsel %vm1380, %v1340, 0
        %v5556 = vsel %vm1380, %v1341, 0
        %v5559 = vsel %vm1380, %v1342, 0
        %v5562 = vsel %vm1380, %v1343, 0
        %v5565 = vsel %vm1380, %v1344, 0
        %v5568 = vsel %vm1380, %v1345, 0
        %v5571 = vsel %vm1380, %v1346, 0
        %v5574 = vsel %vm1380, %v1347, 0
        %v5577 = vsel %vm1380, %v1348, 0
        %v5580 = vsel %vm1380, %v1349, 0
        %v5583 = vsel %vm1380, %v1350, 0
        %v5586 = vsel %vm1380, %v1351, 0
        %v5589 = vsel %vm1380, %v1352, 0
        %v5592 = vsel %vm1380, %v1353, 0
        %v5595 = vsel %vm1380, %v1354, 0
        %v5598 = vsel %vm1380, %v1355, 0
        %v5601 = vsel %vm1380, %v1356, 0
        %v5604 = vsel %vm1380, %v1357, 0
        %v5607 = vsel %vm1380, %v1358, 0
        %v5610 = vsel %vm1380, %v1359, 0
        %v5613 = vsel %vm1380, %v1360, 0
        %v5616 = vsel %vm1380, %v1361, 0
        %v5619 = vsel %vm1380, %v1362, 0
        %v5622 = vsel %vm1380, %v1363, 0
        %v5625 = vsel %vm1380, %v1364, 0
        %v5628 = vsel %vm1380, %v1365, 0
        %v5631 = vsel %vm1380, %v1366, 0
        %v5634 = vsel %vm1380, %v1367, 0
        %v5637 = vsel %vm1380, %v1368, 0
        %v5640 = vsel %vm1380, %v1369, 0
        %v5643 = vsel %vm1380, %v1370, 0
        %v5646 = vsel %vm1380, %v1371, 0
        %v5649 = vsel %vm1380, %v1372, 0
        %v5652 = vsel %vm1380, %v1373, 0
        %v5655 = vsel %vm1380, %v1374, 0
        %v5658 = vsel %vm1380, %v1375, 0
        %v5661 = vsel %vm1380, %v1376, 0
        %v5664 = vsel %vm1380, %v1377, 0
        %v5667 = vsel %vm1380, %v1378, 0
        %v5670 = vsel %vm1380, %v1379, 0
        %5672 = vmatprep.subr.mxu0 0.0
        %5673 = vmatpush1.msra.mxu0 %v723
        %5674 = vmatprep.subr.mxu0 0.0
        %5675 = vmatpush1.msra.mxu0 %v724
        %5676 = vmatprep.subr.mxu0 0.0
        %5677 = vmatpush1.msra.mxu0 0.0
        %5678 = vmatprep.subr.mxu0 0.0
        %5679 = vmatpush1.msra.mxu0 0.0
        %5680 = vmatprep.subr.mxu0 0.0
        %5681 = vmatpush1.msra.mxu0 0.0
        %5682 = vmatprep.subr.mxu0 0.0
        %5683 = vmatpush1.msra.mxu0 0.0
        %5684 = vmatprep.subr.mxu0 0.0
        %5685 = vmatpush1.msra.mxu0 0.0
        %5686 = vmatprep.subr.mxu0 0.0
        %5687 = vmatpush1.msra.mxu0 0.0
        %5688 = vmatprep.subr.mxu0 0.0
        %5689 = vmatpush1.msra.mxu0 0.0
        %5690 = vmatprep.subr.mxu0 0.0
        %5691 = vmatpush1.msra.mxu0 0.0
        %5692 = vmatprep.subr.mxu0 0.0
        %5693 = vmatpush1.msra.mxu0 0.0
        %5694 = vmatprep.subr.mxu0 0.0
        %5695 = vmatpush1.msra.mxu0 0.0
        %5696 = vmatprep.subr.mxu0 0.0
        %5697 = vmatpush1.msra.mxu0 0.0
        %5698 = vmatprep.subr.mxu0 0.0
        %5699 = vmatpush1.msra.mxu0 0.0
        %5700 = vmatprep.subr.mxu0 0.0
        %5701 = vmatpush1.msra.mxu0 0.0
        %5702 = vmatprep.subr.mxu0 0.0
        %5703 = vmatpush1.msra.mxu0 0.0
        %5704 = vmatprep.subr.mxu0 0.0
        %5705 = vmatpush1.msra.mxu0 0.0
        %5706 = vmatprep.subr.mxu0 0.0
        %5707 = vmatpush1.msra.mxu0 0.0
        %5708 = vmatprep.subr.mxu0 0.0
        %5709 = vmatpush1.msra.mxu0 0.0
        %5710 = vmatprep.subr.mxu0 0.0
        %5711 = vmatpush1.msra.mxu0 0.0
        %5712 = vmatprep.subr.mxu0 0.0
        %5713 = vmatpush1.msra.mxu0 0.0
        %5714 = vmatprep.subr.mxu0 0.0
        %5715 = vmatpush1.msra.mxu0 0.0
        %5716 = vmatprep.subr.mxu0 0.0
        %5717 = vmatpush1.msra.mxu0 0.0
        %5718 = vmatprep.subr.mxu0 0.0
        %5719 = vmatpush1.msra.mxu0 0.0
        %5720 = vmatprep.subr.mxu0 0.0
        %5721 = vmatpush1.msra.mxu0 0.0
        %5722 = vmatprep.subr.mxu0 0.0
        %5723 = vmatpush1.msra.mxu0 0.0
        %5724 = vmatprep.subr.mxu0 0.0
        %5725 = vmatpush1.msra.mxu0 0.0
        %5726 = vmatprep.subr.mxu0 0.0
        %5727 = vmatpush1.msra.mxu0 0.0
        %5728 = vmatprep.subr.mxu0 0.0
        %5729 = vmatpush1.msra.mxu0 0.0
        %5730 = vmatprep.subr.mxu0 0.0
        %5731 = vmatpush1.msra.mxu0 0.0
        %5732 = vmatprep.subr.mxu0 0.0
        %5733 = vmatpush1.msra.mxu0 0.0
        %5734 = vmatprep.subr.mxu0 0.0
        %5735 = vmatpush1.msra.mxu0 0.0
        %5736 = vmatprep.mubr.f32.mxu0 0.0
        %5737 = vmatmul.mubr.f32.gmra.mrb[0].mxu0 %v5481
        %v5738 = vpop.f32.mrb[0].mxu0
        %v5739 = vadd.f32 0.0, %v5738
        %v5740 = vpop.f32.mrb[0].mxu0
        %5741 = vmatprep.mubr.f32.mxu0 0.0
        %5742 = vmatmul.mubr.f32.gmra.mrb[0].mxu0 %v5484
        %v5743 = vpop.f32.mrb[0].mxu0
        %v5744 = vadd.f32 0.0, %v5743
        %v5745 = vpop.f32.mrb[0].mxu0
        %5746 = vmatprep.mubr.f32.mxu0 0.0
        %5747 = vmatmul.mubr.f32.gmra.mrb[0].mxu0 %v5487
        %v5748 = vpop.f32.mrb[0].mxu0
        %v5749 = vadd.f32 0.0, %v5748
        %v5750 = vpop.f32.mrb[0].mxu0
        %5751 = vmatprep.mubr.f32.mxu0 0.0
        %5752 = vmatmul.mubr.f32.gmra.mrb[0].mxu0 %v5490
        %v5753 = vpop.f32.mrb[0].mxu0
        %v5754 = vadd.f32 0.0, %v5753
        %v5755 = vpop.f32.mrb[0].mxu0
        %5756 = vmatprep.mubr.f32.mxu0 0.0
        %5757 = vmatmul.mubr.f32.gmra.mrb[0].mxu0 %v5493
        %v5758 = vpop.f32.mrb[0].mxu0
        %v5759 = vadd.f32 0.0, %v5758
        %v5760 = vpop.f32.mrb[0].mxu0
        %5761 = vmatprep.mubr.f32.mxu0 0.0
        %5762 = vmatmul.mubr.f32.gmra.mrb[0].mxu0 %v5496
        %v5763 = vpop.f32.mrb[0].mxu0
        %v5764 = vadd.f32 0.0, %v5763
        %v5765 = vpop.f32.mrb[0].mxu0
        %5766 = vmatprep.mubr.f32.mxu0 0.0
        %5767 = vmatmul.mubr.f32.gmra.mrb[0].mxu0 %v5499
        %v5768 = vpop.f32.mrb[0].mxu0
        %v5769 = vadd.f32 0.0, %v5768
        %v5770 = vpop.f32.mrb[0].mxu0
        %5771 = vmatprep.mubr.f32.mxu0 0.0
        %5772 = vmatmul.mubr.f32.gmra.mrb[0].mxu0 %v5502
        %v5773 = vpop.f32.mrb[0].mxu0
        %v5774 = vadd.f32 0.0, %v5773
        %v5775 = vpop.f32.mrb[0].mxu0
        %5776 = vmatprep.mubr.f32.mxu0 0.0
        %5777 = vmatmul.mubr.f32.gmra.mrb[0].mxu0 %v5505
        %v5778 = vpop.f32.mrb[0].mxu0
        %v5779 = vadd.f32 0.0, %v5778
        %v5780 = vpop.f32.mrb[0].mxu0
        %5781 = vmatprep.mubr.f32.mxu0 0.0
        %5782 = vmatmul.mubr.f32.gmra.mrb[0].mxu0 %v5508
        %v5783 = vpop.f32.mrb[0].mxu0
        %v5784 = vadd.f32 0.0, %v5783
        %v5785 = vpop.f32.mrb[0].mxu0
        %5786 = vmatprep.mubr.f32.mxu0 0.0
        %5787 = vmatmul.mubr.f32.gmra.mrb[0].mxu0 %v5511
        %v5788 = vpop.f32.mrb[0].mxu0
        %v5789 = vadd.f32 0.0, %v5788
        %v5790 = vpop.f32.mrb[0].mxu0
        %5791 = vmatprep.mubr.f32.mxu0 0.0
        %5792 = vmatmul.mubr.f32.gmra.mrb[0].mxu0 %v5514
        %v5793 = vpop.f32.mrb[0].mxu0
        %v5794 = vadd.f32 0.0, %v5793
        %v5795 = vpop.f32.mrb[0].mxu0
        %5796 = vmatprep.mubr.f32.mxu0 0.0
        %5797 = vmatmul.mubr.f32.gmra.mrb[0].mxu0 %v5517
        %v5798 = vpop.f32.mrb[0].mxu0
        %v5799 = vadd.f32 0.0, %v5798
        %v5800 = vpop.f32.mrb[0].mxu0
        %5801 = vmatprep.mubr.f32.mxu0 0.0
        %5802 = vmatmul.mubr.f32.gmra.mrb[0].mxu0 %v5520
        %v5803 = vpop.f32.mrb[0].mxu0
        %v5804 = vadd.f32 0.0, %v5803
        %v5805 = vpop.f32.mrb[0].mxu0
        %5806 = vmatprep.mubr.f32.mxu0 0.0
        %5807 = vmatmul.mubr.f32.gmra.mrb[0].mxu0 %v5523
        %v5808 = vpop.f32.mrb[0].mxu0
        %v5809 = vadd.f32 0.0, %v5808
        %v5810 = vpop.f32.mrb[0].mxu0
        %5811 = vmatprep.mubr.f32.mxu0 0.0
        %5812 = vmatmul.mubr.f32.gmra.mrb[0].mxu0 %v5526
        %v5813 = vpop.f32.mrb[0].mxu0
        %v5814 = vadd.f32 0.0, %v5813
        %v5815 = vpop.f32.mrb[0].mxu0
        %5816 = vmatprep.mubr.f32.mxu0 0.0
        %5817 = vmatmul.mubr.f32.gmra.mrb[0].mxu0 %v5529
        %v5818 = vpop.f32.mrb[0].mxu0
        %v5819 = vadd.f32 0.0, %v5818
        %v5820 = vpop.f32.mrb[0].mxu0
        %5821 = vmatprep.mubr.f32.mxu0 0.0
        %5822 = vmatmul.mubr.f32.gmra.mrb[0].mxu0 %v5532
        %v5823 = vpop.f32.mrb[0].mxu0
        %v5824 = vadd.f32 0.0, %v5823
        %v5825 = vpop.f32.mrb[0].mxu0
        %5826 = vmatprep.mubr.f32.mxu0 0.0
        %5827 = vmatmul.mubr.f32.gmra.mrb[0].mxu0 %v5535
        %v5828 = vpop.f32.mrb[0].mxu0
        %v5829 = vadd.f32 0.0, %v5828
        %v5830 = vpop.f32.mrb[0].mxu0
        %5831 = vmatprep.mubr.f32.mxu0 0.0
        %5832 = vmatmul.mubr.f32.gmra.mrb[0].mxu0 %v5538
        %v5833 = vpop.f32.mrb[0].mxu0
        %v5834 = vadd.f32 0.0, %v5833
        %v5835 = vpop.f32.mrb[0].mxu0
        %5836 = vmatprep.mubr.f32.mxu0 0.0
        %5837 = vmatmul.mubr.f32.gmra.mrb[0].mxu0 %v5541
        %v5838 = vpop.f32.mrb[0].mxu0
        %v5839 = vadd.f32 0.0, %v5838
        %v5840 = vpop.f32.mrb[0].mxu0
        %5841 = vmatprep.mubr.f32.mxu0 0.0
        %5842 = vmatmul.mubr.f32.gmra.mrb[0].mxu0 %v5544
        %v5843 = vpop.f32.mrb[0].mxu0
        %v5844 = vadd.f32 0.0, %v5843
        %v5845 = vpop.f32.mrb[0].mxu0
        %5846 = vmatprep.mubr.f32.mxu0 0.0
        %5847 = vmatmul.mubr.f32.gmra.mrb[0].mxu0 %v5547
        %v5848 = vpop.f32.mrb[0].mxu0
        %v5849 = vadd.f32 0.0, %v5848
        %v5850 = vpop.f32.mrb[0].mxu0
        %5851 = vmatprep.mubr.f32.mxu0 0.0
        %5852 = vmatmul.mubr.f32.gmra.mrb[0].mxu0 %v5550
        %v5853 = vpop.f32.mrb[0].mxu0
        %v5854 = vadd.f32 0.0, %v5853
        %v5855 = vpop.f32.mrb[0].mxu0
        %5856 = vmatprep.mubr.f32.mxu0 0.0
        %5857 = vmatmul.mubr.f32.gmra.mrb[0].mxu0 %v5553
        %v5858 = vpop.f32.mrb[0].mxu0
        %v5859 = vadd.f32 0.0, %v5858
        %v5860 = vpop.f32.mrb[0].mxu0
        %5861 = vmatprep.mubr.f32.mxu0 0.0
        %5862 = vmatmul.mubr.f32.gmra.mrb[0].mxu0 %v5556
        %v5863 = vpop.f32.mrb[0].mxu0
        %v5864 = vadd.f32 0.0, %v5863
        %v5865 = vpop.f32.mrb[0].mxu0
        %5866 = vmatprep.mubr.f32.mxu0 0.0
        %5867 = vmatmul.mubr.f32.gmra.mrb[0].mxu0 %v5559
        %v5868 = vpop.f32.mrb[0].mxu0
        %v5869 = vadd.f32 0.0, %v5868
        %v5870 = vpop.f32.mrb[0].mxu0
        %5871 = vmatprep.mubr.f32.mxu0 0.0
        %5872 = vmatmul.mubr.f32.gmra.mrb[0].mxu0 %v5562
        %v5873 = vpop.f32.mrb[0].mxu0
        %v5874 = vadd.f32 0.0, %v5873
        %v5875 = vpop.f32.mrb[0].mxu0
        %5876 = vmatprep.mubr.f32.mxu0 0.0
        %5877 = vmatmul.mubr.f32.gmra.mrb[0].mxu0 %v5565
        %v5878 = vpop.f32.mrb[0].mxu0
        %v5879 = vadd.f32 0.0, %v5878
        %v5880 = vpop.f32.mrb[0].mxu0
        %5881 = vmatprep.mubr.f32.mxu0 0.0
        %5882 = vmatmul.mubr.f32.gmra.mrb[0].mxu0 %v5568
        %v5883 = vpop.f32.mrb[0].mxu0
        %v5884 = vadd.f32 0.0, %v5883
        %v5885 = vpop.f32.mrb[0].mxu0
        %5886 = vmatprep.mubr.f32.mxu0 0.0
        %5887 = vmatmul.mubr.f32.gmra.mrb[0].mxu0 %v5571
        %v5888 = vpop.f32.mrb[0].mxu0
        %v5889 = vadd.f32 0.0, %v5888
        %v5890 = vpop.f32.mrb[0].mxu0
        %5891 = vmatprep.mubr.f32.mxu0 0.0
        %5892 = vmatmul.mubr.f32.gmra.mrb[0].mxu0 %v5574
        %v5893 = vpop.f32.mrb[0].mxu0
        %v5894 = vadd.f32 0.0, %v5893
        %v5895 = vpop.f32.mrb[0].mxu0
        %5896 = vmatprep.mubr.f32.mxu0 0.0
        %5897 = vmatmul.mubr.f32.gmra.mrb[0].mxu0 %v5577
        %v5898 = vpop.f32.mrb[0].mxu0
        %v5899 = vadd.f32 0.0, %v5898
        %v5900 = vpop.f32.mrb[0].mxu0
        %5901 = vmatprep.mubr.f32.mxu0 0.0
        %5902 = vmatmul.mubr.f32.gmra.mrb[0].mxu0 %v5580
        %v5903 = vpop.f32.mrb[0].mxu0
        %v5904 = vadd.f32 0.0, %v5903
        %v5905 = vpop.f32.mrb[0].mxu0
        %5906 = vmatprep.mubr.f32.mxu0 0.0
        %5907 = vmatmul.mubr.f32.gmra.mrb[0].mxu0 %v5583
        %v5908 = vpop.f32.mrb[0].mxu0
        %v5909 = vadd.f32 0.0, %v5908
        %v5910 = vpop.f32.mrb[0].mxu0
        %5911 = vmatprep.mubr.f32.mxu0 0.0
        %5912 = vmatmul.mubr.f32.gmra.mrb[0].mxu0 %v5586
        %v5913 = vpop.f32.mrb[0].mxu0
        %v5914 = vadd.f32 0.0, %v5913
        %v5915 = vpop.f32.mrb[0].mxu0
        %5916 = vmatprep.mubr.f32.mxu0 0.0
        %5917 = vmatmul.mubr.f32.gmra.mrb[0].mxu0 %v5589
        %v5918 = vpop.f32.mrb[0].mxu0
        %v5919 = vadd.f32 0.0, %v5918
        %v5920 = vpop.f32.mrb[0].mxu0
        %5921 = vmatprep.mubr.f32.mxu0 0.0
        %5922 = vmatmul.mubr.f32.gmra.mrb[0].mxu0 %v5592
        %v5923 = vpop.f32.mrb[0].mxu0
        %v5924 = vadd.f32 0.0, %v5923
        %v5925 = vpop.f32.mrb[0].mxu0
        %5926 = vmatprep.mubr.f32.mxu0 0.0
        %5927 = vmatmul.mubr.f32.gmra.mrb[0].mxu0 %v5595
        %v5928 = vpop.f32.mrb[0].mxu0
        %v5929 = vadd.f32 0.0, %v5928
        %v5930 = vpop.f32.mrb[0].mxu0
        %5931 = vmatprep.mubr.f32.mxu0 0.0
        %5932 = vmatmul.mubr.f32.gmra.mrb[0].mxu0 %v5598
        %v5933 = vpop.f32.mrb[0].mxu0
        %v5934 = vadd.f32 0.0, %v5933
        %v5935 = vpop.f32.mrb[0].mxu0
        %5936 = vmatprep.mubr.f32.mxu0 0.0
        %5937 = vmatmul.mubr.f32.gmra.mrb[0].mxu0 %v5601
        %v5938 = vpop.f32.mrb[0].mxu0
        %v5939 = vadd.f32 0.0, %v5938
        %v5940 = vpop.f32.mrb[0].mxu0
        %5941 = vmatprep.mubr.f32.mxu0 0.0
        %5942 = vmatmul.mubr.f32.gmra.mrb[0].mxu0 %v5604
        %v5943 = vpop.f32.mrb[0].mxu0
        %v5944 = vadd.f32 0.0, %v5943
        %v5945 = vpop.f32.mrb[0].mxu0
        %5946 = vmatprep.mubr.f32.mxu0 0.0
        %5947 = vmatmul.mubr.f32.gmra.mrb[0].mxu0 %v5607
        %v5948 = vpop.f32.mrb[0].mxu0
        %v5949 = vadd.f32 0.0, %v5948
        %v5950 = vpop.f32.mrb[0].mxu0
        %5951 = vmatprep.mubr.f32.mxu0 0.0
        %5952 = vmatmul.mubr.f32.gmra.mrb[0].mxu0 %v5610
        %v5953 = vpop.f32.mrb[0].mxu0
        %v5954 = vadd.f32 0.0, %v5953
        %v5955 = vpop.f32.mrb[0].mxu0
        %5956 = vmatprep.mubr.f32.mxu0 0.0
        %5957 = vmatmul.mubr.f32.gmra.mrb[0].mxu0 %v5613
        %v5958 = vpop.f32.mrb[0].mxu0
        %v5959 = vadd.f32 0.0, %v5958
        %v5960 = vpop.f32.mrb[0].mxu0
        %5961 = vmatprep.mubr.f32.mxu0 0.0
        %5962 = vmatmul.mubr.f32.gmra.mrb[0].mxu0 %v5616
        %v5963 = vpop.f32.mrb[0].mxu0
        %v5964 = vadd.f32 0.0, %v5963
        %v5965 = vpop.f32.mrb[0].mxu0
        %5966 = vmatprep.mubr.f32.mxu0 0.0
        %5967 = vmatmul.mubr.f32.gmra.mrb[0].mxu0 %v5619
        %v5968 = vpop.f32.mrb[0].mxu0
        %v5969 = vadd.f32 0.0, %v5968
        %v5970 = vpop.f32.mrb[0].mxu0
        %5971 = vmatprep.mubr.f32.mxu0 0.0
        %5972 = vmatmul.mubr.f32.gmra.mrb[0].mxu0 %v5622
        %v5973 = vpop.f32.mrb[0].mxu0
        %v5974 = vadd.f32 0.0, %v5973
        %v5975 = vpop.f32.mrb[0].mxu0
        %5976 = vmatprep.mubr.f32.mxu0 0.0
        %5977 = vmatmul.mubr.f32.gmra.mrb[0].mxu0 %v5625
        %v5978 = vpop.f32.mrb[0].mxu0
        %v5979 = vadd.f32 0.0, %v5978
        %v5980 = vpop.f32.mrb[0].mxu0
        %5981 = vmatprep.mubr.f32.mxu0 0.0
        %5982 = vmatmul.mubr.f32.gmra.mrb[0].mxu0 %v5628
        %v5983 = vpop.f32.mrb[0].mxu0
        %v5984 = vadd.f32 0.0, %v5983
        %v5985 = vpop.f32.mrb[0].mxu0
        %5986 = vmatprep.mubr.f32.mxu0 0.0
        %5987 = vmatmul.mubr.f32.gmra.mrb[0].mxu0 %v5631
        %v5988 = vpop.f32.mrb[0].mxu0
        %v5989 = vadd.f32 0.0, %v5988
        %v5990 = vpop.f32.mrb[0].mxu0
        %5991 = vmatprep.mubr.f32.mxu0 0.0
        %5992 = vmatmul.mubr.f32.gmra.mrb[0].mxu0 %v5634
        %v5993 = vpop.f32.mrb[0].mxu0
        %v5994 = vadd.f32 0.0, %v5993
        %v5995 = vpop.f32.mrb[0].mxu0
        %5996 = vmatprep.mubr.f32.mxu0 0.0
        %5997 = vmatmul.mubr.f32.gmra.mrb[0].mxu0 %v5637
        %v5998 = vpop.f32.mrb[0].mxu0
        %v5999 = vadd.f32 0.0, %v5998
        %v6000 = vpop.f32.mrb[0].mxu0
        %6001 = vmatprep.mubr.f32.mxu0 0.0
        %6002 = vmatmul.mubr.f32.gmra.mrb[0].mxu0 %v5640
        %v6003 = vpop.f32.mrb[0].mxu0
        %v6004 = vadd.f32 0.0, %v6003
        %v6005 = vpop.f32.mrb[0].mxu0
        %6006 = vmatprep.mubr.f32.mxu0 0.0
        %6007 = vmatmul.mubr.f32.gmra.mrb[0].mxu0 %v5643
        %v6008 = vpop.f32.mrb[0].mxu0
        %v6009 = vadd.f32 0.0, %v6008
        %v6010 = vpop.f32.mrb[0].mxu0
        %6011 = vmatprep.mubr.f32.mxu0 0.0
        %6012 = vmatmul.mubr.f32.gmra.mrb[0].mxu0 %v5646
        %v6013 = vpop.f32.mrb[0].mxu0
        %v6014 = vadd.f32 0.0, %v6013
        %v6015 = vpop.f32.mrb[0].mxu0
        %6016 = vmatprep.mubr.f32.mxu0 0.0
        %6017 = vmatmul.mubr.f32.gmra.mrb[0].mxu0 %v5649
        %v6018 = vpop.f32.mrb[0].mxu0
        %v6019 = vadd.f32 0.0, %v6018
        %v6020 = vpop.f32.mrb[0].mxu0
        %6021 = vmatprep.mubr.f32.mxu0 0.0
        %6022 = vmatmul.mubr.f32.gmra.mrb[0].mxu0 %v5652
        %v6023 = vpop.f32.mrb[0].mxu0
        %v6024 = vadd.f32 0.0, %v6023
        %v6025 = vpop.f32.mrb[0].mxu0
        %6026 = vmatprep.mubr.f32.mxu0 0.0
        %6027 = vmatmul.mubr.f32.gmra.mrb[0].mxu0 %v5655
        %v6028 = vpop.f32.mrb[0].mxu0
        %v6029 = vadd.f32 0.0, %v6028
        %v6030 = vpop.f32.mrb[0].mxu0
        %6031 = vmatprep.mubr.f32.mxu0 0.0
        %6032 = vmatmul.mubr.f32.gmra.mrb[0].mxu0 %v5658
        %v6033 = vpop.f32.mrb[0].mxu0
        %v6034 = vadd.f32 0.0, %v6033
        %v6035 = vpop.f32.mrb[0].mxu0
        %6036 = vmatprep.mubr.f32.mxu0 0.0
        %6037 = vmatmul.mubr.f32.gmra.mrb[0].mxu0 %v5661
        %v6038 = vpop.f32.mrb[0].mxu0
        %v6039 = vadd.f32 0.0, %v6038
        %v6040 = vpop.f32.mrb[0].mxu0
        %6041 = vmatprep.mubr.f32.mxu0 0.0
        %6042 = vmatmul.mubr.f32.gmra.mrb[0].mxu0 %v5664
        %v6043 = vpop.f32.mrb[0].mxu0
        %v6044 = vadd.f32 0.0, %v6043
        %v6045 = vpop.f32.mrb[0].mxu0
        %6046 = vmatprep.mubr.f32.mxu0 0.0
        %6047 = vmatmul.mubr.f32.gmra.mrb[0].mxu0 %v5667
        %v6048 = vpop.f32.mrb[0].mxu0
        %v6049 = vadd.f32 0.0, %v6048
        %v6050 = vpop.f32.mrb[0].mxu0
        %6051 = vmatprep.mubr.f32.mxu0 0.0
        %6052 = vmatmul.mubr.f32.gmra.mrb[0].mxu0 %v5670
        %v6053 = vpop.f32.mrb[0].mxu0
        %v6054 = vadd.f32 0.0, %v6053
        %v6055 = vpop.f32.mrb[0].mxu0
        %6056 = vdwg.mxu0
        %vm6057 = vcmask 23552
        %v6059 = vsel %vm6057, %v630, 0
        %v6062 = vsel %vm6057, %v631, 0
        %v6065 = vsel %vm6057, %v632, 0
        %v6068 = vsel %vm6057, %v633, 0
        %v6071 = vsel %vm6057, %v634, 0
        %v6074 = vsel %vm6057, %v635, 0
        %v6077 = vsel %vm6057, %v636, 0
        %v6080 = vsel %vm6057, %v637, 0
        %v6083 = vsel %vm6057, %v638, 0
        %v6086 = vsel %vm6057, %v639, 0
        %v6089 = vsel %vm6057, %v640, 0
        %v6092 = vsel %vm6057, %v641, 0
        %v6095 = vsel %vm6057, %v642, 0
        %v6098 = vsel %vm6057, %v643, 0
        %v6101 = vsel %vm6057, %v644, 0
        %v6104 = vsel %vm6057, %v645, 0
        %v6107 = vsel %vm6057, %v646, 0
        %v6110 = vsel %vm6057, %v647, 0
        %v6113 = vsel %vm6057, %v648, 0
        %v6116 = vsel %vm6057, %v649, 0
        %v6119 = vsel %vm6057, %v650, 0
        %v6122 = vsel %vm6057, %v651, 0
        %v6125 = vsel %vm6057, %v652, 0
        %v6128 = vsel %vm6057, %v653, 0
        %v6131 = vsel %vm6057, %v654, 0
        %v6134 = vsel %vm6057, %v655, 0
        %v6137 = vsel %vm6057, %v656, 0
        %v6140 = vsel %vm6057, %v657, 0
        %v6143 = vsel %vm6057, %v658, 0
        %v6146 = vsel %vm6057, %v659, 0
        %v6149 = vsel %vm6057, %v660, 0
        %v6152 = vsel %vm6057, %v661, 0
        %v6155 = vsel %vm6057, %v662, 0
        %v6158 = vsel %vm6057, %v663, 0
        %v6161 = vsel %vm6057, %v664, 0
        %v6164 = vsel %vm6057, %v665, 0
        %v6167 = vsel %vm6057, %v666, 0
        %v6170 = vsel %vm6057, %v667, 0
        %v6173 = vsel %vm6057, %v668, 0
        %v6176 = vsel %vm6057, %v669, 0
        %v6179 = vsel %vm6057, %v670, 0
        %v6182 = vsel %vm6057, %v671, 0
        %v6185 = vsel %vm6057, %v672, 0
        %v6188 = vsel %vm6057, %v673, 0
        %v6191 = vsel %vm6057, %v674, 0
        %v6194 = vsel %vm6057, %v675, 0
        %v6197 = vsel %vm6057, %v676, 0
        %v6200 = vsel %vm6057, %v677, 0
        %v6203 = vsel %vm6057, %v678, 0
        %v6206 = vsel %vm6057, %v679, 0
        %v6209 = vsel %vm6057, %v680, 0
        %v6212 = vsel %vm6057, %v681, 0
        %v6215 = vsel %vm6057, %v682, 0
        %v6218 = vsel %vm6057, %v683, 0
        %v6221 = vsel %vm6057, %v684, 0
        %v6224 = vsel %vm6057, %v685, 0
        %v6227 = vsel %vm6057, %v686, 0
        %v6230 = vsel %vm6057, %v687, 0
        %v6233 = vsel %vm6057, %v688, 0
        %v6236 = vsel %vm6057, %v689, 0
        %v6239 = vsel %vm6057, %v690, 0
        %v6242 = vsel %vm6057, %v691, 0
        %v6245 = vsel %vm6057, %v692, 0
        %v6248 = vsel %vm6057, %v693, 0
        %v6251 = vsel %vm927, %v722, 0
        %6253 = vmatprep.subr.mxu0 0.0
        %6254 = vmatpush1.msra.mxu0 %v6251
        %6255 = vmatprep.subr.mxu0 0.0
        %6256 = vmatpush1.msra.mxu0 0.0
        %6257 = vmatprep.subr.mxu0 0.0
        %6258 = vmatpush1.msra.mxu0 0.0
        %6259 = vmatprep.subr.mxu0 0.0
        %6260 = vmatpush1.msra.mxu0 0.0
        %6261 = vmatprep.subr.mxu0 0.0
        %6262 = vmatpush1.msra.mxu0 0.0
        %6263 = vmatprep.subr.mxu0 0.0
        %6264 = vmatpush1.msra.mxu0 0.0
        %6265 = vmatprep.subr.mxu0 0.0
        %6266 = vmatpush1.msra.mxu0 0.0
        %6267 = vmatprep.subr.mxu0 0.0
        %6268 = vmatpush1.msra.mxu0 0.0
        %6269 = vmatprep.subr.mxu0 0.0
        %6270 = vmatpush1.msra.mxu0 0.0
        %6271 = vmatprep.subr.mxu0 0.0
        %6272 = vmatpush1.msra.mxu0 0.0
        %6273 = vmatprep.subr.mxu0 0.0
        %6274 = vmatpush1.msra.mxu0 0.0
        %6275 = vmatprep.subr.mxu0 0.0
        %6276 = vmatpush1.msra.mxu0 0.0
        %6277 = vmatprep.subr.mxu0 0.0
        %6278 = vmatpush1.msra.mxu0 0.0
        %6279 = vmatprep.subr.mxu0 0.0
        %6280 = vmatpush1.msra.mxu0 0.0
        %6281 = vmatprep.subr.mxu0 0.0
        %6282 = vmatpush1.msra.mxu0 0.0
        %6283 = vmatprep.subr.mxu0 0.0
        %6284 = vmatpush1.msra.mxu0 0.0
        %6285 = vmatprep.subr.mxu0 0.0
        %6286 = vmatpush1.msra.mxu0 0.0
        %6287 = vmatprep.subr.mxu0 0.0
        %6288 = vmatpush1.msra.mxu0 0.0
        %6289 = vmatprep.subr.mxu0 0.0
        %6290 = vmatpush1.msra.mxu0 0.0
        %6291 = vmatprep.subr.mxu0 0.0
        %6292 = vmatpush1.msra.mxu0 0.0
        %6293 = vmatprep.subr.mxu0 0.0
        %6294 = vmatpush1.msra.mxu0 0.0
        %6295 = vmatprep.subr.mxu0 0.0
        %6296 = vmatpush1.msra.mxu0 0.0
        %6297 = vmatprep.subr.mxu0 0.0
        %6298 = vmatpush1.msra.mxu0 0.0
        %6299 = vmatprep.subr.mxu0 0.0
        %6300 = vmatpush1.msra.mxu0 0.0
        %6301 = vmatprep.subr.mxu0 0.0
        %6302 = vmatpush1.msra.mxu0 0.0
        %6303 = vmatprep.subr.mxu0 0.0
        %6304 = vmatpush1.msra.mxu0 0.0
        %6305 = vmatprep.subr.mxu0 0.0
        %6306 = vmatpush1.msra.mxu0 0.0
        %6307 = vmatprep.subr.mxu0 0.0
        %6308 = vmatpush1.msra.mxu0 0.0
        %6309 = vmatprep.subr.mxu0 0.0
        %6310 = vmatpush1.msra.mxu0 0.0
        %6311 = vmatprep.subr.mxu0 0.0
        %6312 = vmatpush1.msra.mxu0 0.0
        %6313 = vmatprep.subr.mxu0 0.0
        %6314 = vmatpush1.msra.mxu0 0.0
        %6315 = vmatprep.subr.mxu0 0.0
        %6316 = vmatpush1.msra.mxu0 0.0
        %6317 = vmatprep.mubr.f32.mxu0 0.0
        %6318 = vmatmul.mubr.f32.gmra.mrb[0].mxu0 %v6059
        %v6319 = vpop.f32.mrb[0].mxu0
        %v6320 = vadd.f32 %v5739, %v6319
        %v6321 = vpop.f32.mrb[0].mxu0
        %6322 = vmatprep.mubr.f32.mxu0 0.0
        %6323 = vmatmul.mubr.f32.gmra.mrb[0].mxu0 %v6062
        %v6324 = vpop.f32.mrb[0].mxu0
        %v6325 = vadd.f32 %v5744, %v6324
        %v6326 = vpop.f32.mrb[0].mxu0
        %6327 = vmatprep.mubr.f32.mxu0 0.0
        %6328 = vmatmul.mubr.f32.gmra.mrb[0].mxu0 %v6065
        %v6329 = vpop.f32.mrb[0].mxu0
        %v6330 = vadd.f32 %v5749, %v6329
        %v6331 = vpop.f32.mrb[0].mxu0
        %6332 = vmatprep.mubr.f32.mxu0 0.0
        %6333 = vmatmul.mubr.f32.gmra.mrb[0].mxu0 %v6068
        %v6334 = vpop.f32.mrb[0].mxu0
        %v6335 = vadd.f32 %v5754, %v6334
        %v6336 = vpop.f32.mrb[0].mxu0
        %6337 = vmatprep.mubr.f32.mxu0 0.0
        %6338 = vmatmul.mubr.f32.gmra.mrb[0].mxu0 %v6071
        %v6339 = vpop.f32.mrb[0].mxu0
        %v6340 = vadd.f32 %v5759, %v6339
        %v6341 = vpop.f32.mrb[0].mxu0
        %6342 = vmatprep.mubr.f32.mxu0 0.0
        %6343 = vmatmul.mubr.f32.gmra.mrb[0].mxu0 %v6074
        %v6344 = vpop.f32.mrb[0].mxu0
        %v6345 = vadd.f32 %v5764, %v6344
        %v6346 = vpop.f32.mrb[0].mxu0
        %6347 = vmatprep.mubr.f32.mxu0 0.0
        %6348 = vmatmul.mubr.f32.gmra.mrb[0].mxu0 %v6077
        %v6349 = vpop.f32.mrb[0].mxu0
        %v6350 = vadd.f32 %v5769, %v6349
        %v6351 = vpop.f32.mrb[0].mxu0
        %6352 = vmatprep.mubr.f32.mxu0 0.0
        %6353 = vmatmul.mubr.f32.gmra.mrb[0].mxu0 %v6080
        %v6354 = vpop.f32.mrb[0].mxu0
        %v6355 = vadd.f32 %v5774, %v6354
        %v6356 = vpop.f32.mrb[0].mxu0
        %6357 = vmatprep.mubr.f32.mxu0 0.0
        %6358 = vmatmul.mubr.f32.gmra.mrb[0].mxu0 %v6083
        %v6359 = vpop.f32.mrb[0].mxu0
        %v6360 = vadd.f32 %v5779, %v6359
        %v6361 = vpop.f32.mrb[0].mxu0
        %6362 = vmatprep.mubr.f32.mxu0 0.0
        %6363 = vmatmul.mubr.f32.gmra.mrb[0].mxu0 %v6086
        %v6364 = vpop.f32.mrb[0].mxu0
        %v6365 = vadd.f32 %v5784, %v6364
        %v6366 = vpop.f32.mrb[0].mxu0
        %6367 = vmatprep.mubr.f32.mxu0 0.0
        %6368 = vmatmul.mubr.f32.gmra.mrb[0].mxu0 %v6089
        %v6369 = vpop.f32.mrb[0].mxu0
        %v6370 = vadd.f32 %v5789, %v6369
        %v6371 = vpop.f32.mrb[0].mxu0
        %6372 = vmatprep.mubr.f32.mxu0 0.0
        %6373 = vmatmul.mubr.f32.gmra.mrb[0].mxu0 %v6092
        %v6374 = vpop.f32.mrb[0].mxu0
        %v6375 = vadd.f32 %v5794, %v6374
        %v6376 = vpop.f32.mrb[0].mxu0
        %6377 = vmatprep.mubr.f32.mxu0 0.0
        %6378 = vmatmul.mubr.f32.gmra.mrb[0].mxu0 %v6095
        %v6379 = vpop.f32.mrb[0].mxu0
        %v6380 = vadd.f32 %v5799, %v6379
        %v6381 = vpop.f32.mrb[0].mxu0
        %6382 = vmatprep.mubr.f32.mxu0 0.0
        %6383 = vmatmul.mubr.f32.gmra.mrb[0].mxu0 %v6098
        %v6384 = vpop.f32.mrb[0].mxu0
        %v6385 = vadd.f32 %v5804, %v6384
        %v6386 = vpop.f32.mrb[0].mxu0
        %6387 = vmatprep.mubr.f32.mxu0 0.0
        %6388 = vmatmul.mubr.f32.gmra.mrb[0].mxu0 %v6101
        %v6389 = vpop.f32.mrb[0].mxu0
        %v6390 = vadd.f32 %v5809, %v6389
        %v6391 = vpop.f32.mrb[0].mxu0
        %6392 = vmatprep.mubr.f32.mxu0 0.0
        %6393 = vmatmul.mubr.f32.gmra.mrb[0].mxu0 %v6104
        %v6394 = vpop.f32.mrb[0].mxu0
        %v6395 = vadd.f32 %v5814, %v6394
        %v6396 = vpop.f32.mrb[0].mxu0
        %6397 = vmatprep.mubr.f32.mxu0 0.0
        %6398 = vmatmul.mubr.f32.gmra.mrb[0].mxu0 %v6107
        %v6399 = vpop.f32.mrb[0].mxu0
        %v6400 = vadd.f32 %v5819, %v6399
        %v6401 = vpop.f32.mrb[0].mxu0
        %6402 = vmatprep.mubr.f32.mxu0 0.0
        %6403 = vmatmul.mubr.f32.gmra.mrb[0].mxu0 %v6110
        %v6404 = vpop.f32.mrb[0].mxu0
        %v6405 = vadd.f32 %v5824, %v6404
        %v6406 = vpop.f32.mrb[0].mxu0
        %6407 = vmatprep.mubr.f32.mxu0 0.0
        %6408 = vmatmul.mubr.f32.gmra.mrb[0].mxu0 %v6113
        %v6409 = vpop.f32.mrb[0].mxu0
        %v6410 = vadd.f32 %v5829, %v6409
        %v6411 = vpop.f32.mrb[0].mxu0
        %6412 = vmatprep.mubr.f32.mxu0 0.0
        %6413 = vmatmul.mubr.f32.gmra.mrb[0].mxu0 %v6116
        %v6414 = vpop.f32.mrb[0].mxu0
        %v6415 = vadd.f32 %v5834, %v6414
        %v6416 = vpop.f32.mrb[0].mxu0
        %6417 = vmatprep.mubr.f32.mxu0 0.0
        %6418 = vmatmul.mubr.f32.gmra.mrb[0].mxu0 %v6119
        %v6419 = vpop.f32.mrb[0].mxu0
        %v6420 = vadd.f32 %v5839, %v6419
        %v6421 = vpop.f32.mrb[0].mxu0
        %6422 = vmatprep.mubr.f32.mxu0 0.0
        %6423 = vmatmul.mubr.f32.gmra.mrb[0].mxu0 %v6122
        %v6424 = vpop.f32.mrb[0].mxu0
        %v6425 = vadd.f32 %v5844, %v6424
        %v6426 = vpop.f32.mrb[0].mxu0
        %6427 = vmatprep.mubr.f32.mxu0 0.0
        %6428 = vmatmul.mubr.f32.gmra.mrb[0].mxu0 %v6125
        %v6429 = vpop.f32.mrb[0].mxu0
        %v6430 = vadd.f32 %v5849, %v6429
        %v6431 = vpop.f32.mrb[0].mxu0
        %6432 = vmatprep.mubr.f32.mxu0 0.0
        %6433 = vmatmul.mubr.f32.gmra.mrb[0].mxu0 %v6128
        %v6434 = vpop.f32.mrb[0].mxu0
        %v6435 = vadd.f32 %v5854, %v6434
        %v6436 = vpop.f32.mrb[0].mxu0
        %6437 = vmatprep.mubr.f32.mxu0 0.0
        %6438 = vmatmul.mubr.f32.gmra.mrb[0].mxu0 %v6131
        %v6439 = vpop.f32.mrb[0].mxu0
        %v6440 = vadd.f32 %v5859, %v6439
        %v6441 = vpop.f32.mrb[0].mxu0
        %6442 = vmatprep.mubr.f32.mxu0 0.0
        %6443 = vmatmul.mubr.f32.gmra.mrb[0].mxu0 %v6134
        %v6444 = vpop.f32.mrb[0].mxu0
        %v6445 = vadd.f32 %v5864, %v6444
        %v6446 = vpop.f32.mrb[0].mxu0
        %6447 = vmatprep.mubr.f32.mxu0 0.0
        %6448 = vmatmul.mubr.f32.gmra.mrb[0].mxu0 %v6137
        %v6449 = vpop.f32.mrb[0].mxu0
        %v6450 = vadd.f32 %v5869, %v6449
        %v6451 = vpop.f32.mrb[0].mxu0
        %6452 = vmatprep.mubr.f32.mxu0 0.0
        %6453 = vmatmul.mubr.f32.gmra.mrb[0].mxu0 %v6140
        %v6454 = vpop.f32.mrb[0].mxu0
        %v6455 = vadd.f32 %v5874, %v6454
        %v6456 = vpop.f32.mrb[0].mxu0
        %6457 = vmatprep.mubr.f32.mxu0 0.0
        %6458 = vmatmul.mubr.f32.gmra.mrb[0].mxu0 %v6143
        %v6459 = vpop.f32.mrb[0].mxu0
        %v6460 = vadd.f32 %v5879, %v6459
        %v6461 = vpop.f32.mrb[0].mxu0
        %6462 = vmatprep.mubr.f32.mxu0 0.0
        %6463 = vmatmul.mubr.f32.gmra.mrb[0].mxu0 %v6146
        %v6464 = vpop.f32.mrb[0].mxu0
        %v6465 = vadd.f32 %v5884, %v6464
        %v6466 = vpop.f32.mrb[0].mxu0
        %6467 = vmatprep.mubr.f32.mxu0 0.0
        %6468 = vmatmul.mubr.f32.gmra.mrb[0].mxu0 %v6149
        %v6469 = vpop.f32.mrb[0].mxu0
        %v6470 = vadd.f32 %v5889, %v6469
        %v6471 = vpop.f32.mrb[0].mxu0
        %6472 = vmatprep.mubr.f32.mxu0 0.0
        %6473 = vmatmul.mubr.f32.gmra.mrb[0].mxu0 %v6152
        %v6474 = vpop.f32.mrb[0].mxu0
        %v6475 = vadd.f32 %v5894, %v6474
        %v6476 = vpop.f32.mrb[0].mxu0
        %6477 = vmatprep.mubr.f32.mxu0 0.0
        %6478 = vmatmul.mubr.f32.gmra.mrb[0].mxu0 %v6155
        %v6479 = vpop.f32.mrb[0].mxu0
        %v6480 = vadd.f32 %v5899, %v6479
        %v6481 = vpop.f32.mrb[0].mxu0
        %6482 = vmatprep.mubr.f32.mxu0 0.0
        %6483 = vmatmul.mubr.f32.gmra.mrb[0].mxu0 %v6158
        %v6484 = vpop.f32.mrb[0].mxu0
        %v6485 = vadd.f32 %v5904, %v6484
        %v6486 = vpop.f32.mrb[0].mxu0
        %6487 = vmatprep.mubr.f32.mxu0 0.0
        %6488 = vmatmul.mubr.f32.gmra.mrb[0].mxu0 %v6161
        %v6489 = vpop.f32.mrb[0].mxu0
        %v6490 = vadd.f32 %v5909, %v6489
        %v6491 = vpop.f32.mrb[0].mxu0
        %6492 = vmatprep.mubr.f32.mxu0 0.0
        %6493 = vmatmul.mubr.f32.gmra.mrb[0].mxu0 %v6164
        %v6494 = vpop.f32.mrb[0].mxu0
        %v6495 = vadd.f32 %v5914, %v6494
        %v6496 = vpop.f32.mrb[0].mxu0
        %6497 = vmatprep.mubr.f32.mxu0 0.0
        %6498 = vmatmul.mubr.f32.gmra.mrb[0].mxu0 %v6167
        %v6499 = vpop.f32.mrb[0].mxu0
        %v6500 = vadd.f32 %v5919, %v6499
        %v6501 = vpop.f32.mrb[0].mxu0
        %6502 = vmatprep.mubr.f32.mxu0 0.0
        %6503 = vmatmul.mubr.f32.gmra.mrb[0].mxu0 %v6170
        %v6504 = vpop.f32.mrb[0].mxu0
        %v6505 = vadd.f32 %v5924, %v6504
        %v6506 = vpop.f32.mrb[0].mxu0
        %6507 = vmatprep.mubr.f32.mxu0 0.0
        %6508 = vmatmul.mubr.f32.gmra.mrb[0].mxu0 %v6173
        %v6509 = vpop.f32.mrb[0].mxu0
        %v6510 = vadd.f32 %v5929, %v6509
        %v6511 = vpop.f32.mrb[0].mxu0
        %6512 = vmatprep.mubr.f32.mxu0 0.0
        %6513 = vmatmul.mubr.f32.gmra.mrb[0].mxu0 %v6176
        %v6514 = vpop.f32.mrb[0].mxu0
        %v6515 = vadd.f32 %v5934, %v6514
        %v6516 = vpop.f32.mrb[0].mxu0
        %6517 = vmatprep.mubr.f32.mxu0 0.0
        %6518 = vmatmul.mubr.f32.gmra.mrb[0].mxu0 %v6179
        %v6519 = vpop.f32.mrb[0].mxu0
        %v6520 = vadd.f32 %v5939, %v6519
        %v6521 = vpop.f32.mrb[0].mxu0
        %6522 = vmatprep.mubr.f32.mxu0 0.0
        %6523 = vmatmul.mubr.f32.gmra.mrb[0].mxu0 %v6182
        %v6524 = vpop.f32.mrb[0].mxu0
        %v6525 = vadd.f32 %v5944, %v6524
        %v6526 = vpop.f32.mrb[0].mxu0
        %6527 = vmatprep.mubr.f32.mxu0 0.0
        %6528 = vmatmul.mubr.f32.gmra.mrb[0].mxu0 %v6185
        %v6529 = vpop.f32.mrb[0].mxu0
        %v6530 = vadd.f32 %v5949, %v6529
        %v6531 = vpop.f32.mrb[0].mxu0
        %6532 = vmatprep.mubr.f32.mxu0 0.0
        %6533 = vmatmul.mubr.f32.gmra.mrb[0].mxu0 %v6188
        %v6534 = vpop.f32.mrb[0].mxu0
        %v6535 = vadd.f32 %v5954, %v6534
        %v6536 = vpop.f32.mrb[0].mxu0
        %6537 = vmatprep.mubr.f32.mxu0 0.0
        %6538 = vmatmul.mubr.f32.gmra.mrb[0].mxu0 %v6191
        %v6539 = vpop.f32.mrb[0].mxu0
        %v6540 = vadd.f32 %v5959, %v6539
        %v6541 = vpop.f32.mrb[0].mxu0
        %6542 = vmatprep.mubr.f32.mxu0 0.0
        %6543 = vmatmul.mubr.f32.gmra.mrb[0].mxu0 %v6194
        %v6544 = vpop.f32.mrb[0].mxu0
        %v6545 = vadd.f32 %v5964, %v6544
        %v6546 = vpop.f32.mrb[0].mxu0
        %6547 = vmatprep.mubr.f32.mxu0 0.0
        %6548 = vmatmul.mubr.f32.gmra.mrb[0].mxu0 %v6197
        %v6549 = vpop.f32.mrb[0].mxu0
        %v6550 = vadd.f32 %v5969, %v6549
        %v6551 = vpop.f32.mrb[0].mxu0
        %6552 = vmatprep.mubr.f32.mxu0 0.0
        %6553 = vmatmul.mubr.f32.gmra.mrb[0].mxu0 %v6200
        %v6554 = vpop.f32.mrb[0].mxu0
        %v6555 = vadd.f32 %v5974, %v6554
        %v6556 = vpop.f32.mrb[0].mxu0
        %6557 = vmatprep.mubr.f32.mxu0 0.0
        %6558 = vmatmul.mubr.f32.gmra.mrb[0].mxu0 %v6203
        %v6559 = vpop.f32.mrb[0].mxu0
        %v6560 = vadd.f32 %v5979, %v6559
        %v6561 = vpop.f32.mrb[0].mxu0
        %6562 = vmatprep.mubr.f32.mxu0 0.0
        %6563 = vmatmul.mubr.f32.gmra.mrb[0].mxu0 %v6206
        %v6564 = vpop.f32.mrb[0].mxu0
        %v6565 = vadd.f32 %v5984, %v6564
        %v6566 = vpop.f32.mrb[0].mxu0
        %6567 = vmatprep.mubr.f32.mxu0 0.0
        %6568 = vmatmul.mubr.f32.gmra.mrb[0].mxu0 %v6209
        %v6569 = vpop.f32.mrb[0].mxu0
        %v6570 = vadd.f32 %v5989, %v6569
        %v6571 = vpop.f32.mrb[0].mxu0
        %6572 = vmatprep.mubr.f32.mxu0 0.0
        %6573 = vmatmul.mubr.f32.gmra.mrb[0].mxu0 %v6212
        %v6574 = vpop.f32.mrb[0].mxu0
        %v6575 = vadd.f32 %v5994, %v6574
        %v6576 = vpop.f32.mrb[0].mxu0
        %6577 = vmatprep.mubr.f32.mxu0 0.0
        %6578 = vmatmul.mubr.f32.gmra.mrb[0].mxu0 %v6215
        %v6579 = vpop.f32.mrb[0].mxu0
        %v6580 = vadd.f32 %v5999, %v6579
        %v6581 = vpop.f32.mrb[0].mxu0
        %6582 = vmatprep.mubr.f32.mxu0 0.0
        %6583 = vmatmul.mubr.f32.gmra.mrb[0].mxu0 %v6218
        %v6584 = vpop.f32.mrb[0].mxu0
        %v6585 = vadd.f32 %v6004, %v6584
        %v6586 = vpop.f32.mrb[0].mxu0
        %6587 = vmatprep.mubr.f32.mxu0 0.0
        %6588 = vmatmul.mubr.f32.gmra.mrb[0].mxu0 %v6221
        %v6589 = vpop.f32.mrb[0].mxu0
        %v6590 = vadd.f32 %v6009, %v6589
        %v6591 = vpop.f32.mrb[0].mxu0
        %6592 = vmatprep.mubr.f32.mxu0 0.0
        %6593 = vmatmul.mubr.f32.gmra.mrb[0].mxu0 %v6224
        %v6594 = vpop.f32.mrb[0].mxu0
        %v6595 = vadd.f32 %v6014, %v6594
        %v6596 = vpop.f32.mrb[0].mxu0
        %6597 = vmatprep.mubr.f32.mxu0 0.0
        %6598 = vmatmul.mubr.f32.gmra.mrb[0].mxu0 %v6227
        %v6599 = vpop.f32.mrb[0].mxu0
        %v6600 = vadd.f32 %v6019, %v6599
        %v6601 = vpop.f32.mrb[0].mxu0
        %6602 = vmatprep.mubr.f32.mxu0 0.0
        %6603 = vmatmul.mubr.f32.gmra.mrb[0].mxu0 %v6230
        %v6604 = vpop.f32.mrb[0].mxu0
        %v6605 = vadd.f32 %v6024, %v6604
        %v6606 = vpop.f32.mrb[0].mxu0
        %6607 = vmatprep.mubr.f32.mxu0 0.0
        %6608 = vmatmul.mubr.f32.gmra.mrb[0].mxu0 %v6233
        %v6609 = vpop.f32.mrb[0].mxu0
        %v6610 = vadd.f32 %v6029, %v6609
        %v6611 = vpop.f32.mrb[0].mxu0
        %6612 = vmatprep.mubr.f32.mxu0 0.0
        %6613 = vmatmul.mubr.f32.gmra.mrb[0].mxu0 %v6236
        %v6614 = vpop.f32.mrb[0].mxu0
        %v6615 = vadd.f32 %v6034, %v6614
        %v6616 = vpop.f32.mrb[0].mxu0
        %6617 = vmatprep.mubr.f32.mxu0 0.0
        %6618 = vmatmul.mubr.f32.gmra.mrb[0].mxu0 %v6239
        %v6619 = vpop.f32.mrb[0].mxu0
        %v6620 = vadd.f32 %v6039, %v6619
        %v6621 = vpop.f32.mrb[0].mxu0
        %6622 = vmatprep.mubr.f32.mxu0 0.0
        %6623 = vmatmul.mubr.f32.gmra.mrb[0].mxu0 %v6242
        %v6624 = vpop.f32.mrb[0].mxu0
        %v6625 = vadd.f32 %v6044, %v6624
        %v6626 = vpop.f32.mrb[0].mxu0
        %6627 = vmatprep.mubr.f32.mxu0 0.0
        %6628 = vmatmul.mubr.f32.gmra.mrb[0].mxu0 %v6245
        %v6629 = vpop.f32.mrb[0].mxu0
        %v6630 = vadd.f32 %v6049, %v6629
        %v6631 = vpop.f32.mrb[0].mxu0
        %6632 = vmatprep.mubr.f32.mxu0 0.0
        %6633 = vmatmul.mubr.f32.gmra.mrb[0].mxu0 %v6248
        %v6634 = vpop.f32.mrb[0].mxu0
        %v6635 = vadd.f32 %v6054, %v6634
        %v6636 = vpop.f32.mrb[0].mxu0
        %6637 = vdwg.mxu0
        %v6639 = vsel %vm1380, %v5416, 0
        %v6642 = vsel %vm1380, %v5417, 0
        %v6645 = vsel %vm1380, %v5418, 0
        %v6648 = vsel %vm1380, %v5419, 0
        %v6651 = vsel %vm1380, %v5420, 0
        %v6654 = vsel %vm1380, %v5421, 0
        %v6657 = vsel %vm1380, %v5422, 0
        %v6660 = vsel %vm1380, %v5423, 0
        %v6663 = vsel %vm1380, %v5424, 0
        %v6666 = vsel %vm1380, %v5425, 0
        %v6669 = vsel %vm1380, %v5426, 0
        %v6672 = vsel %vm1380, %v5427, 0
        %v6675 = vsel %vm1380, %v5428, 0
        %v6678 = vsel %vm1380, %v5429, 0
        %v6681 = vsel %vm1380, %v5430, 0
        %v6684 = vsel %vm1380, %v5431, 0
        %v6687 = vsel %vm1380, %v5432, 0
        %v6690 = vsel %vm1380, %v5433, 0
        %v6693 = vsel %vm1380, %v5434, 0
        %v6696 = vsel %vm1380, %v5435, 0
        %v6699 = vsel %vm1380, %v5436, 0
        %v6702 = vsel %vm1380, %v5437, 0
        %v6705 = vsel %vm1380, %v5438, 0
        %v6708 = vsel %vm1380, %v5439, 0
        %v6711 = vsel %vm1380, %v5440, 0
        %v6714 = vsel %vm1380, %v5441, 0
        %v6717 = vsel %vm1380, %v5442, 0
        %v6720 = vsel %vm1380, %v5443, 0
        %v6723 = vsel %vm1380, %v5444, 0
        %v6726 = vsel %vm1380, %v5445, 0
        %v6729 = vsel %vm1380, %v5446, 0
        %v6732 = vsel %vm1380, %v5447, 0
        %v6735 = vsel %vm1380, %v5448, 0
        %v6738 = vsel %vm1380, %v5449, 0
        %v6741 = vsel %vm1380, %v5450, 0
        %v6744 = vsel %vm1380, %v5451, 0
        %v6747 = vsel %vm1380, %v5452, 0
        %v6750 = vsel %vm1380, %v5453, 0
        %v6753 = vsel %vm1380, %v5454, 0
        %v6756 = vsel %vm1380, %v5455, 0
        %v6759 = vsel %vm1380, %v5456, 0
        %v6762 = vsel %vm1380, %v5457, 0
        %v6765 = vsel %vm1380, %v5458, 0
        %v6768 = vsel %vm1380, %v5459, 0
        %v6771 = vsel %vm1380, %v5460, 0
        %v6774 = vsel %vm1380, %v5461, 0
        %v6777 = vsel %vm1380, %v5462, 0
        %v6780 = vsel %vm1380, %v5463, 0
        %v6783 = vsel %vm1380, %v5464, 0
        %v6786 = vsel %vm1380, %v5465, 0
        %v6789 = vsel %vm1380, %v5466, 0
        %v6792 = vsel %vm1380, %v5467, 0
        %v6795 = vsel %vm1380, %v5468, 0
        %v6798 = vsel %vm1380, %v5469, 0
        %v6801 = vsel %vm1380, %v5470, 0
        %v6804 = vsel %vm1380, %v5471, 0
        %v6807 = vsel %vm1380, %v5472, 0
        %v6810 = vsel %vm1380, %v5473, 0
        %v6813 = vsel %vm1380, %v5474, 0
        %v6816 = vsel %vm1380, %v5475, 0
        %v6819 = vsel %vm1380, %v5476, 0
        %v6822 = vsel %vm1380, %v5477, 0
        %v6825 = vsel %vm1380, %v5478, 0
        %v6828 = vsel %vm1380, %v5479, 0
        %6830 = vmatprep.subr.mxu0 0.0
        %6831 = vmatpush1.msra.mxu0 %v725
        %6832 = vmatprep.subr.mxu0 0.0
        %6833 = vmatpush1.msra.mxu0 %v726
        %6834 = vmatprep.subr.mxu0 0.0
        %6835 = vmatpush1.msra.mxu0 0.0
        %6836 = vmatprep.subr.mxu0 0.0
        %6837 = vmatpush1.msra.mxu0 0.0
        %6838 = vmatprep.subr.mxu0 0.0
        %6839 = vmatpush1.msra.mxu0 0.0
        %6840 = vmatprep.subr.mxu0 0.0
        %6841 = vmatpush1.msra.mxu0 0.0
        %6842 = vmatprep.subr.mxu0 0.0
        %6843 = vmatpush1.msra.mxu0 0.0
        %6844 = vmatprep.subr.mxu0 0.0
        %6845 = vmatpush1.msra.mxu0 0.0
        %6846 = vmatprep.subr.mxu0 0.0
        %6847 = vmatpush1.msra.mxu0 0.0
        %6848 = vmatprep.subr.mxu0 0.0
        %6849 = vmatpush1.msra.mxu0 0.0
        %6850 = vmatprep.subr.mxu0 0.0
        %6851 = vmatpush1.msra.mxu0 0.0
        %6852 = vmatprep.subr.mxu0 0.0
        %6853 = vmatpush1.msra.mxu0 0.0
        %6854 = vmatprep.subr.mxu0 0.0
        %6855 = vmatpush1.msra.mxu0 0.0
        %6856 = vmatprep.subr.mxu0 0.0
        %6857 = vmatpush1.msra.mxu0 0.0
        %6858 = vmatprep.subr.mxu0 0.0
        %6859 = vmatpush1.msra.mxu0 0.0
        %6860 = vmatprep.subr.mxu0 0.0
        %6861 = vmatpush1.msra.mxu0 0.0
        %6862 = vmatprep.subr.mxu0 0.0
        %6863 = vmatpush1.msra.mxu0 0.0
        %6864 = vmatprep.subr.mxu0 0.0
        %6865 = vmatpush1.msra.mxu0 0.0
        %6866 = vmatprep.subr.mxu0 0.0
        %6867 = vmatpush1.msra.mxu0 0.0
        %6868 = vmatprep.subr.mxu0 0.0
        %6869 = vmatpush1.msra.mxu0 0.0
        %6870 = vmatprep.subr.mxu0 0.0
        %6871 = vmatpush1.msra.mxu0 0.0
        %6872 = vmatprep.subr.mxu0 0.0
        %6873 = vmatpush1.msra.mxu0 0.0
        %6874 = vmatprep.subr.mxu0 0.0
        %6875 = vmatpush1.msra.mxu0 0.0
        %6876 = vmatprep.subr.mxu0 0.0
        %6877 = vmatpush1.msra.mxu0 0.0
        %6878 = vmatprep.subr.mxu0 0.0
        %6879 = vmatpush1.msra.mxu0 0.0
        %6880 = vmatprep.subr.mxu0 0.0
        %6881 = vmatpush1.msra.mxu0 0.0
        %6882 = vmatprep.subr.mxu0 0.0
        %6883 = vmatpush1.msra.mxu0 0.0
        %6884 = vmatprep.subr.mxu0 0.0
        %6885 = vmatpush1.msra.mxu0 0.0
        %6886 = vmatprep.subr.mxu0 0.0
        %6887 = vmatpush1.msra.mxu0 0.0
        %6888 = vmatprep.subr.mxu0 0.0
        %6889 = vmatpush1.msra.mxu0 0.0
        %6890 = vmatprep.subr.mxu0 0.0
        %6891 = vmatpush1.msra.mxu0 0.0
        %6892 = vmatprep.subr.mxu0 0.0
        %6893 = vmatpush1.msra.mxu0 0.0
        %6894 = vmatprep.mubr.f32.mxu0 0.0
        %6895 = vmatmul.mubr.f32.gmra.mrb[0].mxu0 %v6639
        %v6896 = vpop.f32.mrb[0].mxu0
        %v6897 = vadd.f32 0.0, %v6896
        %v6898 = vpop.f32.mrb[0].mxu0
        %6899 = vmatprep.mubr.f32.mxu0 0.0
        %6900 = vmatmul.mubr.f32.gmra.mrb[0].mxu0 %v6642
        %v6901 = vpop.f32.mrb[0].mxu0
        %v6902 = vadd.f32 0.0, %v6901
        %v6903 = vpop.f32.mrb[0].mxu0
        %6904 = vmatprep.mubr.f32.mxu0 0.0
        %6905 = vmatmul.mubr.f32.gmra.mrb[0].mxu0 %v6645
        %v6906 = vpop.f32.mrb[0].mxu0
        %v6907 = vadd.f32 0.0, %v6906
        %v6908 = vpop.f32.mrb[0].mxu0
        %6909 = vmatprep.mubr.f32.mxu0 0.0
        %6910 = vmatmul.mubr.f32.gmra.mrb[0].mxu0 %v6648
        %v6911 = vpop.f32.mrb[0].mxu0
        %v6912 = vadd.f32 0.0, %v6911
        %v6913 = vpop.f32.mrb[0].mxu0
        %6914 = vmatprep.mubr.f32.mxu0 0.0
        %6915 = vmatmul.mubr.f32.gmra.mrb[0].mxu0 %v6651
        %v6916 = vpop.f32.mrb[0].mxu0
        %v6917 = vadd.f32 0.0, %v6916
        %v6918 = vpop.f32.mrb[0].mxu0
        %6919 = vmatprep.mubr.f32.mxu0 0.0
        %6920 = vmatmul.mubr.f32.gmra.mrb[0].mxu0 %v6654
        %v6921 = vpop.f32.mrb[0].mxu0
        %v6922 = vadd.f32 0.0, %v6921
        %v6923 = vpop.f32.mrb[0].mxu0
        %6924 = vmatprep.mubr.f32.mxu0 0.0
        %6925 = vmatmul.mubr.f32.gmra.mrb[0].mxu0 %v6657
        %v6926 = vpop.f32.mrb[0].mxu0
        %v6927 = vadd.f32 0.0, %v6926
        %v6928 = vpop.f32.mrb[0].mxu0
        %6929 = vmatprep.mubr.f32.mxu0 0.0
        %6930 = vmatmul.mubr.f32.gmra.mrb[0].mxu0 %v6660
        %v6931 = vpop.f32.mrb[0].mxu0
        %v6932 = vadd.f32 0.0, %v6931
        %v6933 = vpop.f32.mrb[0].mxu0
        %6934 = vmatprep.mubr.f32.mxu0 0.0
        %6935 = vmatmul.mubr.f32.gmra.mrb[0].mxu0 %v6663
        %v6936 = vpop.f32.mrb[0].mxu0
        %v6937 = vadd.f32 0.0, %v6936
        %v6938 = vpop.f32.mrb[0].mxu0
        %6939 = vmatprep.mubr.f32.mxu0 0.0
        %6940 = vmatmul.mubr.f32.gmra.mrb[0].mxu0 %v6666
        %v6941 = vpop.f32.mrb[0].mxu0
        %v6942 = vadd.f32 0.0, %v6941
        %v6943 = vpop.f32.mrb[0].mxu0
        %6944 = vmatprep.mubr.f32.mxu0 0.0
        %6945 = vmatmul.mubr.f32.gmra.mrb[0].mxu0 %v6669
        %v6946 = vpop.f32.mrb[0].mxu0
        %v6947 = vadd.f32 0.0, %v6946
        %v6948 = vpop.f32.mrb[0].mxu0
        %6949 = vmatprep.mubr.f32.mxu0 0.0
        %6950 = vmatmul.mubr.f32.gmra.mrb[0].mxu0 %v6672
        %v6951 = vpop.f32.mrb[0].mxu0
        %v6952 = vadd.f32 0.0, %v6951
        %v6953 = vpop.f32.mrb[0].mxu0
        %6954 = vmatprep.mubr.f32.mxu0 0.0
        %6955 = vmatmul.mubr.f32.gmra.mrb[0].mxu0 %v6675
        %v6956 = vpop.f32.mrb[0].mxu0
        %v6957 = vadd.f32 0.0, %v6956
        %v6958 = vpop.f32.mrb[0].mxu0
        %6959 = vmatprep.mubr.f32.mxu0 0.0
        %6960 = vmatmul.mubr.f32.gmra.mrb[0].mxu0 %v6678
        %v6961 = vpop.f32.mrb[0].mxu0
        %v6962 = vadd.f32 0.0, %v6961
        %v6963 = vpop.f32.mrb[0].mxu0
        %6964 = vmatprep.mubr.f32.mxu0 0.0
        %6965 = vmatmul.mubr.f32.gmra.mrb[0].mxu0 %v6681
        %v6966 = vpop.f32.mrb[0].mxu0
        %v6967 = vadd.f32 0.0, %v6966
        %v6968 = vpop.f32.mrb[0].mxu0
        %6969 = vmatprep.mubr.f32.mxu0 0.0
        %6970 = vmatmul.mubr.f32.gmra.mrb[0].mxu0 %v6684
        %v6971 = vpop.f32.mrb[0].mxu0
        %v6972 = vadd.f32 0.0, %v6971
        %v6973 = vpop.f32.mrb[0].mxu0
        %6974 = vmatprep.mubr.f32.mxu0 0.0
        %6975 = vmatmul.mubr.f32.gmra.mrb[0].mxu0 %v6687
        %v6976 = vpop.f32.mrb[0].mxu0
        %v6977 = vadd.f32 0.0, %v6976
        %v6978 = vpop.f32.mrb[0].mxu0
        %6979 = vmatprep.mubr.f32.mxu0 0.0
        %6980 = vmatmul.mubr.f32.gmra.mrb[0].mxu0 %v6690
        %v6981 = vpop.f32.mrb[0].mxu0
        %v6982 = vadd.f32 0.0, %v6981
        %v6983 = vpop.f32.mrb[0].mxu0
        %6984 = vmatprep.mubr.f32.mxu0 0.0
        %6985 = vmatmul.mubr.f32.gmra.mrb[0].mxu0 %v6693
        %v6986 = vpop.f32.mrb[0].mxu0
        %v6987 = vadd.f32 0.0, %v6986
        %v6988 = vpop.f32.mrb[0].mxu0
        %6989 = vmatprep.mubr.f32.mxu0 0.0
        %6990 = vmatmul.mubr.f32.gmra.mrb[0].mxu0 %v6696
        %v6991 = vpop.f32.mrb[0].mxu0
        %v6992 = vadd.f32 0.0, %v6991
        %v6993 = vpop.f32.mrb[0].mxu0
        %6994 = vmatprep.mubr.f32.mxu0 0.0
        %6995 = vmatmul.mubr.f32.gmra.mrb[0].mxu0 %v6699
        %v6996 = vpop.f32.mrb[0].mxu0
        %v6997 = vadd.f32 0.0, %v6996
        %v6998 = vpop.f32.mrb[0].mxu0
        %6999 = vmatprep.mubr.f32.mxu0 0.0
        %7000 = vmatmul.mubr.f32.gmra.mrb[0].mxu0 %v6702
        %v7001 = vpop.f32.mrb[0].mxu0
        %v7002 = vadd.f32 0.0, %v7001
        %v7003 = vpop.f32.mrb[0].mxu0
        %7004 = vmatprep.mubr.f32.mxu0 0.0
        %7005 = vmatmul.mubr.f32.gmra.mrb[0].mxu0 %v6705
        %v7006 = vpop.f32.mrb[0].mxu0
        %v7007 = vadd.f32 0.0, %v7006
        %v7008 = vpop.f32.mrb[0].mxu0
        %7009 = vmatprep.mubr.f32.mxu0 0.0
        %7010 = vmatmul.mubr.f32.gmra.mrb[0].mxu0 %v6708
        %v7011 = vpop.f32.mrb[0].mxu0
        %v7012 = vadd.f32 0.0, %v7011
        %v7013 = vpop.f32.mrb[0].mxu0
        %7014 = vmatprep.mubr.f32.mxu0 0.0
        %7015 = vmatmul.mubr.f32.gmra.mrb[0].mxu0 %v6711
        %v7016 = vpop.f32.mrb[0].mxu0
        %v7017 = vadd.f32 0.0, %v7016
        %v7018 = vpop.f32.mrb[0].mxu0
        %7019 = vmatprep.mubr.f32.mxu0 0.0
        %7020 = vmatmul.mubr.f32.gmra.mrb[0].mxu0 %v6714
        %v7021 = vpop.f32.mrb[0].mxu0
        %v7022 = vadd.f32 0.0, %v7021
        %v7023 = vpop.f32.mrb[0].mxu0
        %7024 = vmatprep.mubr.f32.mxu0 0.0
        %7025 = vmatmul.mubr.f32.gmra.mrb[0].mxu0 %v6717
        %v7026 = vpop.f32.mrb[0].mxu0
        %v7027 = vadd.f32 0.0, %v7026
        %v7028 = vpop.f32.mrb[0].mxu0
        %7029 = vmatprep.mubr.f32.mxu0 0.0
        %7030 = vmatmul.mubr.f32.gmra.mrb[0].mxu0 %v6720
        %v7031 = vpop.f32.mrb[0].mxu0
        %v7032 = vadd.f32 0.0, %v7031
        %v7033 = vpop.f32.mrb[0].mxu0
        %7034 = vmatprep.mubr.f32.mxu0 0.0
        %7035 = vmatmul.mubr.f32.gmra.mrb[0].mxu0 %v6723
        %v7036 = vpop.f32.mrb[0].mxu0
        %v7037 = vadd.f32 0.0, %v7036
        %v7038 = vpop.f32.mrb[0].mxu0
        %7039 = vmatprep.mubr.f32.mxu0 0.0
        %7040 = vmatmul.mubr.f32.gmra.mrb[0].mxu0 %v6726
        %v7041 = vpop.f32.mrb[0].mxu0
        %v7042 = vadd.f32 0.0, %v7041
        %v7043 = vpop.f32.mrb[0].mxu0
        %7044 = vmatprep.mubr.f32.mxu0 0.0
        %7045 = vmatmul.mubr.f32.gmra.mrb[0].mxu0 %v6729
        %v7046 = vpop.f32.mrb[0].mxu0
        %v7047 = vadd.f32 0.0, %v7046
        %v7048 = vpop.f32.mrb[0].mxu0
        %7049 = vmatprep.mubr.f32.mxu0 0.0
        %7050 = vmatmul.mubr.f32.gmra.mrb[0].mxu0 %v6732
        %v7051 = vpop.f32.mrb[0].mxu0
        %v7052 = vadd.f32 0.0, %v7051
        %v7053 = vpop.f32.mrb[0].mxu0
        %7054 = vmatprep.mubr.f32.mxu0 0.0
        %7055 = vmatmul.mubr.f32.gmra.mrb[0].mxu0 %v6735
        %v7056 = vpop.f32.mrb[0].mxu0
        %v7057 = vadd.f32 0.0, %v7056
        %v7058 = vpop.f32.mrb[0].mxu0
        %7059 = vmatprep.mubr.f32.mxu0 0.0
        %7060 = vmatmul.mubr.f32.gmra.mrb[0].mxu0 %v6738
        %v7061 = vpop.f32.mrb[0].mxu0
        %v7062 = vadd.f32 0.0, %v7061
        %v7063 = vpop.f32.mrb[0].mxu0
        %7064 = vmatprep.mubr.f32.mxu0 0.0
        %7065 = vmatmul.mubr.f32.gmra.mrb[0].mxu0 %v6741
        %v7066 = vpop.f32.mrb[0].mxu0
        %v7067 = vadd.f32 0.0, %v7066
        %v7068 = vpop.f32.mrb[0].mxu0
        %7069 = vmatprep.mubr.f32.mxu0 0.0
        %7070 = vmatmul.mubr.f32.gmra.mrb[0].mxu0 %v6744
        %v7071 = vpop.f32.mrb[0].mxu0
        %v7072 = vadd.f32 0.0, %v7071
        %v7073 = vpop.f32.mrb[0].mxu0
        %7074 = vmatprep.mubr.f32.mxu0 0.0
        %7075 = vmatmul.mubr.f32.gmra.mrb[0].mxu0 %v6747
        %v7076 = vpop.f32.mrb[0].mxu0
        %v7077 = vadd.f32 0.0, %v7076
        %v7078 = vpop.f32.mrb[0].mxu0
        %7079 = vmatprep.mubr.f32.mxu0 0.0
        %7080 = vmatmul.mubr.f32.gmra.mrb[0].mxu0 %v6750
        %v7081 = vpop.f32.mrb[0].mxu0
        %v7082 = vadd.f32 0.0, %v7081
        %v7083 = vpop.f32.mrb[0].mxu0
        %7084 = vmatprep.mubr.f32.mxu0 0.0
        %7085 = vmatmul.mubr.f32.gmra.mrb[0].mxu0 %v6753
        %v7086 = vpop.f32.mrb[0].mxu0
        %v7087 = vadd.f32 0.0, %v7086
        %v7088 = vpop.f32.mrb[0].mxu0
        %7089 = vmatprep.mubr.f32.mxu0 0.0
        %7090 = vmatmul.mubr.f32.gmra.mrb[0].mxu0 %v6756
        %v7091 = vpop.f32.mrb[0].mxu0
        %v7092 = vadd.f32 0.0, %v7091
        %v7093 = vpop.f32.mrb[0].mxu0
        %7094 = vmatprep.mubr.f32.mxu0 0.0
        %7095 = vmatmul.mubr.f32.gmra.mrb[0].mxu0 %v6759
        %v7096 = vpop.f32.mrb[0].mxu0
        %v7097 = vadd.f32 0.0, %v7096
        %v7098 = vpop.f32.mrb[0].mxu0
        %7099 = vmatprep.mubr.f32.mxu0 0.0
        %7100 = vmatmul.mubr.f32.gmra.mrb[0].mxu0 %v6762
        %v7101 = vpop.f32.mrb[0].mxu0
        %v7102 = vadd.f32 0.0, %v7101
        %v7103 = vpop.f32.mrb[0].mxu0
        %7104 = vmatprep.mubr.f32.mxu0 0.0
        %7105 = vmatmul.mubr.f32.gmra.mrb[0].mxu0 %v6765
        %v7106 = vpop.f32.mrb[0].mxu0
        %v7107 = vadd.f32 0.0, %v7106
        %v7108 = vpop.f32.mrb[0].mxu0
        %7109 = vmatprep.mubr.f32.mxu0 0.0
        %7110 = vmatmul.mubr.f32.gmra.mrb[0].mxu0 %v6768
        %v7111 = vpop.f32.mrb[0].mxu0
        %v7112 = vadd.f32 0.0, %v7111
        %v7113 = vpop.f32.mrb[0].mxu0
        %7114 = vmatprep.mubr.f32.mxu0 0.0
        %7115 = vmatmul.mubr.f32.gmra.mrb[0].mxu0 %v6771
        %v7116 = vpop.f32.mrb[0].mxu0
        %v7117 = vadd.f32 0.0, %v7116
        %v7118 = vpop.f32.mrb[0].mxu0
        %7119 = vmatprep.mubr.f32.mxu0 0.0
        %7120 = vmatmul.mubr.f32.gmra.mrb[0].mxu0 %v6774
        %v7121 = vpop.f32.mrb[0].mxu0
        %v7122 = vadd.f32 0.0, %v7121
        %v7123 = vpop.f32.mrb[0].mxu0
        %7124 = vmatprep.mubr.f32.mxu0 0.0
        %7125 = vmatmul.mubr.f32.gmra.mrb[0].mxu0 %v6777
        %v7126 = vpop.f32.mrb[0].mxu0
        %v7127 = vadd.f32 0.0, %v7126
        %v7128 = vpop.f32.mrb[0].mxu0
        %7129 = vmatprep.mubr.f32.mxu0 0.0
        %7130 = vmatmul.mubr.f32.gmra.mrb[0].mxu0 %v6780
        %v7131 = vpop.f32.mrb[0].mxu0
        %v7132 = vadd.f32 0.0, %v7131
        %v7133 = vpop.f32.mrb[0].mxu0
        %7134 = vmatprep.mubr.f32.mxu0 0.0
        %7135 = vmatmul.mubr.f32.gmra.mrb[0].mxu0 %v6783
        %v7136 = vpop.f32.mrb[0].mxu0
        %v7137 = vadd.f32 0.0, %v7136
        %v7138 = vpop.f32.mrb[0].mxu0
        %7139 = vmatprep.mubr.f32.mxu0 0.0
        %7140 = vmatmul.mubr.f32.gmra.mrb[0].mxu0 %v6786
        %v7141 = vpop.f32.mrb[0].mxu0
        %v7142 = vadd.f32 0.0, %v7141
        %v7143 = vpop.f32.mrb[0].mxu0
        %7144 = vmatprep.mubr.f32.mxu0 0.0
        %7145 = vmatmul.mubr.f32.gmra.mrb[0].mxu0 %v6789
        %v7146 = vpop.f32.mrb[0].mxu0
        %v7147 = vadd.f32 0.0, %v7146
        %v7148 = vpop.f32.mrb[0].mxu0
        %7149 = vmatprep.mubr.f32.mxu0 0.0
        %7150 = vmatmul.mubr.f32.gmra.mrb[0].mxu0 %v6792
        %v7151 = vpop.f32.mrb[0].mxu0
        %v7152 = vadd.f32 0.0, %v7151
        %v7153 = vpop.f32.mrb[0].mxu0
        %7154 = vmatprep.mubr.f32.mxu0 0.0
        %7155 = vmatmul.mubr.f32.gmra.mrb[0].mxu0 %v6795
        %v7156 = vpop.f32.mrb[0].mxu0
        %v7157 = vadd.f32 0.0, %v7156
        %v7158 = vpop.f32.mrb[0].mxu0
        %7159 = vmatprep.mubr.f32.mxu0 0.0
        %7160 = vmatmul.mubr.f32.gmra.mrb[0].mxu0 %v6798
        %v7161 = vpop.f32.mrb[0].mxu0
        %v7162 = vadd.f32 0.0, %v7161
        %v7163 = vpop.f32.mrb[0].mxu0
        %7164 = vmatprep.mubr.f32.mxu0 0.0
        %7165 = vmatmul.mubr.f32.gmra.mrb[0].mxu0 %v6801
        %v7166 = vpop.f32.mrb[0].mxu0
        %v7167 = vadd.f32 0.0, %v7166
        %v7168 = vpop.f32.mrb[0].mxu0
        %7169 = vmatprep.mubr.f32.mxu0 0.0
        %7170 = vmatmul.mubr.f32.gmra.mrb[0].mxu0 %v6804
        %v7171 = vpop.f32.mrb[0].mxu0
        %v7172 = vadd.f32 0.0, %v7171
        %v7173 = vpop.f32.mrb[0].mxu0
        %7174 = vmatprep.mubr.f32.mxu0 0.0
        %7175 = vmatmul.mubr.f32.gmra.mrb[0].mxu0 %v6807
        %v7176 = vpop.f32.mrb[0].mxu0
        %v7177 = vadd.f32 0.0, %v7176
        %v7178 = vpop.f32.mrb[0].mxu0
        %7179 = vmatprep.mubr.f32.mxu0 0.0
        %7180 = vmatmul.mubr.f32.gmra.mrb[0].mxu0 %v6810
        %v7181 = vpop.f32.mrb[0].mxu0
        %v7182 = vadd.f32 0.0, %v7181
        %v7183 = vpop.f32.mrb[0].mxu0
        %7184 = vmatprep.mubr.f32.mxu0 0.0
        %7185 = vmatmul.mubr.f32.gmra.mrb[0].mxu0 %v6813
        %v7186 = vpop.f32.mrb[0].mxu0
        %v7187 = vadd.f32 0.0, %v7186
        %v7188 = vpop.f32.mrb[0].mxu0
        %7189 = vmatprep.mubr.f32.mxu0 0.0
        %7190 = vmatmul.mubr.f32.gmra.mrb[0].mxu0 %v6816
        %v7191 = vpop.f32.mrb[0].mxu0
        %v7192 = vadd.f32 0.0, %v7191
        %v7193 = vpop.f32.mrb[0].mxu0
        %7194 = vmatprep.mubr.f32.mxu0 0.0
        %7195 = vmatmul.mubr.f32.gmra.mrb[0].mxu0 %v6819
        %v7196 = vpop.f32.mrb[0].mxu0
        %v7197 = vadd.f32 0.0, %v7196
        %v7198 = vpop.f32.mrb[0].mxu0
        %7199 = vmatprep.mubr.f32.mxu0 0.0
        %7200 = vmatmul.mubr.f32.gmra.mrb[0].mxu0 %v6822
        %v7201 = vpop.f32.mrb[0].mxu0
        %v7202 = vadd.f32 0.0, %v7201
        %v7203 = vpop.f32.mrb[0].mxu0
        %7204 = vmatprep.mubr.f32.mxu0 0.0
        %7205 = vmatmul.mubr.f32.gmra.mrb[0].mxu0 %v6825
        %v7206 = vpop.f32.mrb[0].mxu0
        %v7207 = vadd.f32 0.0, %v7206
        %v7208 = vpop.f32.mrb[0].mxu0
        %7209 = vmatprep.mubr.f32.mxu0 0.0
        %7210 = vmatmul.mubr.f32.gmra.mrb[0].mxu0 %v6828
        %v7211 = vpop.f32.mrb[0].mxu0
        %v7212 = vadd.f32 0.0, %v7211
        %v7213 = vpop.f32.mrb[0].mxu0
        %7214 = vdwg.mxu0
        %v7215 = vadd.f32 %v6320, %v6897
        %v7216 = vadd.f32 %v6325, %v6902
        %v7217 = vadd.f32 %v6330, %v6907
        %v7218 = vadd.f32 %v6335, %v6912
        %v7219 = vadd.f32 %v6340, %v6917
        %v7220 = vadd.f32 %v6345, %v6922
        %v7221 = vadd.f32 %v6350, %v6927
        %v7222 = vadd.f32 %v6355, %v6932
        %v7223 = vadd.f32 %v6360, %v6937
        %v7224 = vadd.f32 %v6365, %v6942
        %v7225 = vadd.f32 %v6370, %v6947
        %v7226 = vadd.f32 %v6375, %v6952
        %v7227 = vadd.f32 %v6380, %v6957
        %v7228 = vadd.f32 %v6385, %v6962
        %v7229 = vadd.f32 %v6390, %v6967
        %v7230 = vadd.f32 %v6395, %v6972
        %v7231 = vadd.f32 %v6400, %v6977
        %v7232 = vadd.f32 %v6405, %v6982
        %v7233 = vadd.f32 %v6410, %v6987
        %v7234 = vadd.f32 %v6415, %v6992
        %v7235 = vadd.f32 %v6420, %v6997
        %v7236 = vadd.f32 %v6425, %v7002
        %v7237 = vadd.f32 %v6430, %v7007
        %v7238 = vadd.f32 %v6435, %v7012
        %v7239 = vadd.f32 %v6440, %v7017
        %v7240 = vadd.f32 %v6445, %v7022
        %v7241 = vadd.f32 %v6450, %v7027
        %v7242 = vadd.f32 %v6455, %v7032
        %v7243 = vadd.f32 %v6460, %v7037
        %v7244 = vadd.f32 %v6465, %v7042
        %v7245 = vadd.f32 %v6470, %v7047
        %v7246 = vadd.f32 %v6475, %v7052
        %v7247 = vadd.f32 %v6480, %v7057
        %v7248 = vadd.f32 %v6485, %v7062
        %v7249 = vadd.f32 %v6490, %v7067
        %v7250 = vadd.f32 %v6495, %v7072
        %v7251 = vadd.f32 %v6500, %v7077
        %v7252 = vadd.f32 %v6505, %v7082
        %v7253 = vadd.f32 %v6510, %v7087
        %v7254 = vadd.f32 %v6515, %v7092
        %v7255 = vadd.f32 %v6520, %v7097
        %v7256 = vadd.f32 %v6525, %v7102
        %v7257 = vadd.f32 %v6530, %v7107
        %v7258 = vadd.f32 %v6535, %v7112
        %v7259 = vadd.f32 %v6540, %v7117
        %v7260 = vadd.f32 %v6545, %v7122
        %v7261 = vadd.f32 %v6550, %v7127
        %v7262 = vadd.f32 %v6555, %v7132
        %v7263 = vadd.f32 %v6560, %v7137
        %v7264 = vadd.f32 %v6565, %v7142
        %v7265 = vadd.f32 %v6570, %v7147
        %v7266 = vadd.f32 %v6575, %v7152
        %v7267 = vadd.f32 %v6580, %v7157
        %v7268 = vadd.f32 %v6585, %v7162
        %v7269 = vadd.f32 %v6590, %v7167
        %v7270 = vadd.f32 %v6595, %v7172
        %v7271 = vadd.f32 %v6600, %v7177
        %v7272 = vadd.f32 %v6605, %v7182
        %v7273 = vadd.f32 %v6610, %v7187
        %v7274 = vadd.f32 %v6615, %v7192
        %v7275 = vadd.f32 %v6620, %v7197
        %v7276 = vadd.f32 %v6625, %v7202
        %v7277 = vadd.f32 %v6630, %v7207
        %v7278 = vadd.f32 %v6635, %v7212
        %v7280 = vlaneseq
        %v7281 = vshrl.u32 %v7280, 7
        %v7282 = vsub.s32 0, %v7281
        %v7283 = vrot.slane %v727, %v7282
        %v7285 = vadd.f32 %v7215, %v7283
        %v7286 = vadd.f32 %v7216, %v7283
        %v7287 = vadd.f32 %v7217, %v7283
        %v7288 = vadd.f32 %v7218, %v7283
        %v7289 = vadd.f32 %v7219, %v7283
        %v7290 = vadd.f32 %v7220, %v7283
        %v7291 = vadd.f32 %v7221, %v7283
        %v7292 = vadd.f32 %v7222, %v7283
        %v7293 = vadd.f32 %v7223, %v7283
        %v7294 = vadd.f32 %v7224, %v7283
        %v7295 = vadd.f32 %v7225, %v7283
        %v7296 = vadd.f32 %v7226, %v7283
        %v7297 = vadd.f32 %v7227, %v7283
        %v7298 = vadd.f32 %v7228, %v7283
        %v7299 = vadd.f32 %v7229, %v7283
        %v7300 = vadd.f32 %v7230, %v7283
        %v7301 = vadd.f32 %v7231, %v7283
        %v7302 = vadd.f32 %v7232, %v7283
        %v7303 = vadd.f32 %v7233, %v7283
        %v7304 = vadd.f32 %v7234, %v7283
        %v7305 = vadd.f32 %v7235, %v7283
        %v7306 = vadd.f32 %v7236, %v7283
        %v7307 = vadd.f32 %v7237, %v7283
        %v7308 = vadd.f32 %v7238, %v7283
        %v7309 = vadd.f32 %v7239, %v7283
        %v7310 = vadd.f32 %v7240, %v7283
        %v7311 = vadd.f32 %v7241, %v7283
        %v7312 = vadd.f32 %v7242, %v7283
        %v7313 = vadd.f32 %v7243, %v7283
        %v7314 = vadd.f32 %v7244, %v7283
        %v7315 = vadd.f32 %v7245, %v7283
        %v7316 = vadd.f32 %v7246, %v7283
        %v7317 = vadd.f32 %v7247, %v7283
        %v7318 = vadd.f32 %v7248, %v7283
        %v7319 = vadd.f32 %v7249, %v7283
        %v7320 = vadd.f32 %v7250, %v7283
        %v7321 = vadd.f32 %v7251, %v7283
        %v7322 = vadd.f32 %v7252, %v7283
        %v7323 = vadd.f32 %v7253, %v7283
        %v7324 = vadd.f32 %v7254, %v7283
        %v7325 = vadd.f32 %v7255, %v7283
        %v7326 = vadd.f32 %v7256, %v7283
        %v7327 = vadd.f32 %v7257, %v7283
        %v7328 = vadd.f32 %v7258, %v7283
        %v7329 = vadd.f32 %v7259, %v7283
        %v7330 = vadd.f32 %v7260, %v7283
        %v7331 = vadd.f32 %v7261, %v7283
        %v7332 = vadd.f32 %v7262, %v7283
        %v7333 = vadd.f32 %v7263, %v7283
        %v7334 = vadd.f32 %v7264, %v7283
        %v7335 = vadd.f32 %v7265, %v7283
        %v7336 = vadd.f32 %v7266, %v7283
        %v7337 = vadd.f32 %v7267, %v7283
        %v7338 = vadd.f32 %v7268, %v7283
        %v7339 = vadd.f32 %v7269, %v7283
        %v7340 = vadd.f32 %v7270, %v7283
        %v7341 = vadd.f32 %v7271, %v7283
        %v7342 = vadd.f32 %v7272, %v7283
        %v7343 = vadd.f32 %v7273, %v7283
        %v7344 = vadd.f32 %v7274, %v7283
        %v7345 = vadd.f32 %v7275, %v7283
        %v7346 = vadd.f32 %v7276, %v7283
        %v7347 = vadd.f32 %v7277, %v7283
        %v7348 = vadd.f32 %v7278, %v7283
        %vm7349 = vcmask 15360
        %7350 = vst.msk [vmem:[%s565] sm:$0xff] %vm7349, %v7285
        %7351 = vst.msk [vmem:[%s565 + $0x8] sm:$0xff] %vm7349, %v7286
        %7352 = vst.msk [vmem:[%s565 + $0x10] sm:$0xff] %vm7349, %v7287
        %7353 = vst.msk [vmem:[%s565 + $0x18] sm:$0xff] %vm7349, %v7288
        %7354 = vst.msk [vmem:[%s565 + $0x20] sm:$0xff] %vm7349, %v7289
        %7355 = vst.msk [vmem:[%s565 + $0x28] sm:$0xff] %vm7349, %v7290
        %7356 = vst.msk [vmem:[%s565 + $0x30] sm:$0xff] %vm7349, %v7291
        %7357 = vst.msk [vmem:[%s565 + $0x38] sm:$0xff] %vm7349, %v7292
        %7358 = vst.msk [vmem:[%s565 + $0x40] sm:$0xff] %vm7349, %v7293
        %7359 = vst.msk [vmem:[%s565 + $0x48] sm:$0xff] %vm7349, %v7294
        %7360 = vst.msk [vmem:[%s565 + $0x50] sm:$0xff] %vm7349, %v7295
        %7361 = vst.msk [vmem:[%s565 + $0x58] sm:$0xff] %vm7349, %v7296
        %7362 = vst.msk [vmem:[%s565 + $0x60] sm:$0xff] %vm7349, %v7297
        %7363 = vst.msk [vmem:[%s565 + $0x68] sm:$0xff] %vm7349, %v7298
        %7364 = vst.msk [vmem:[%s565 + $0x70] sm:$0xff] %vm7349, %v7299
        %7365 = vst.msk [vmem:[%s565 + $0x78] sm:$0xff] %vm7349, %v7300
        %7366 = vst.msk [vmem:[%s565 + $0x80] sm:$0xff] %vm7349, %v7301
        %7367 = vst.msk [vmem:[%s565 + $0x88] sm:$0xff] %vm7349, %v7302
        %7368 = vst.msk [vmem:[%s565 + $0x90] sm:$0xff] %vm7349, %v7303
        %7369 = vst.msk [vmem:[%s565 + $0x98] sm:$0xff] %vm7349, %v7304
        %7370 = vst.msk [vmem:[%s565 + $0xa0] sm:$0xff] %vm7349, %v7305
        %7371 = vst.msk [vmem:[%s565 + $0xa8] sm:$0xff] %vm7349, %v7306
        %7372 = vst.msk [vmem:[%s565 + $0xb0] sm:$0xff] %vm7349, %v7307
        %7373 = vst.msk [vmem:[%s565 + $0xb8] sm:$0xff] %vm7349, %v7308
        %7374 = vst.msk [vmem:[%s565 + $0xc0] sm:$0xff] %vm7349, %v7309
        %7375 = vst.msk [vmem:[%s565 + $0xc8] sm:$0xff] %vm7349, %v7310
        %7376 = vst.msk [vmem:[%s565 + $0xd0] sm:$0xff] %vm7349, %v7311
        %7377 = vst.msk [vmem:[%s565 + $0xd8] sm:$0xff] %vm7349, %v7312
        %7378 = vst.msk [vmem:[%s565 + $0xe0] sm:$0xff] %vm7349, %v7313
        %7379 = vst.msk [vmem:[%s565 + $0xe8] sm:$0xff] %vm7349, %v7314
        %7380 = vst.msk [vmem:[%s565 + $0xf0] sm:$0xff] %vm7349, %v7315
        %7381 = vst.msk [vmem:[%s565 + $0xf8] sm:$0xff] %vm7349, %v7316
        %7382 = vst.msk [vmem:[%s565 + $0x100] sm:$0xff] %vm7349, %v7317
        %7383 = vst.msk [vmem:[%s565 + $0x108] sm:$0xff] %vm7349, %v7318
        %7384 = vst.msk [vmem:[%s565 + $0x110] sm:$0xff] %vm7349, %v7319
        %7385 = vst.msk [vmem:[%s565 + $0x118] sm:$0xff] %vm7349, %v7320
        %7386 = vst.msk [vmem:[%s565 + $0x120] sm:$0xff] %vm7349, %v7321
        %7387 = vst.msk [vmem:[%s565 + $0x128] sm:$0xff] %vm7349, %v7322
        %7388 = vst.msk [vmem:[%s565 + $0x130] sm:$0xff] %vm7349, %v7323
        %7389 = vst.msk [vmem:[%s565 + $0x138] sm:$0xff] %vm7349, %v7324
        %7390 = vst.msk [vmem:[%s565 + $0x140] sm:$0xff] %vm7349, %v7325
        %7391 = vst.msk [vmem:[%s565 + $0x148] sm:$0xff] %vm7349, %v7326
        %7392 = vst.msk [vmem:[%s565 + $0x150] sm:$0xff] %vm7349, %v7327
        %7393 = vst.msk [vmem:[%s565 + $0x158] sm:$0xff] %vm7349, %v7328
        %7394 = vst.msk [vmem:[%s565 + $0x160] sm:$0xff] %vm7349, %v7329
        %7395 = vst.msk [vmem:[%s565 + $0x168] sm:$0xff] %vm7349, %v7330
        %7396 = vst.msk [vmem:[%s565 + $0x170] sm:$0xff] %vm7349, %v7331
        %7397 = vst.msk [vmem:[%s565 + $0x178] sm:$0xff] %vm7349, %v7332
        %7398 = vst.msk [vmem:[%s565 + $0x180] sm:$0xff] %vm7349, %v7333
        %7399 = vst.msk [vmem:[%s565 + $0x188] sm:$0xff] %vm7349, %v7334
        %7400 = vst.msk [vmem:[%s565 + $0x190] sm:$0xff] %vm7349, %v7335
        %7401 = vst.msk [vmem:[%s565 + $0x198] sm:$0xff] %vm7349, %v7336
        %7402 = vst.msk [vmem:[%s565 + $0x1a0] sm:$0xff] %vm7349, %v7337
        %7403 = vst.msk [vmem:[%s565 + $0x1a8] sm:$0xff] %vm7349, %v7338
        %7404 = vst.msk [vmem:[%s565 + $0x1b0] sm:$0xff] %vm7349, %v7339
        %7405 = vst.msk [vmem:[%s565 + $0x1b8] sm:$0xff] %vm7349, %v7340
        %7406 = vst.msk [vmem:[%s565 + $0x1c0] sm:$0xff] %vm7349, %v7341
        %7407 = vst.msk [vmem:[%s565 + $0x1c8] sm:$0xff] %vm7349, %v7342
        %7408 = vst.msk [vmem:[%s565 + $0x1d0] sm:$0xff] %vm7349, %v7343
        %7409 = vst.msk [vmem:[%s565 + $0x1d8] sm:$0xff] %vm7349, %v7344
        %7410 = vst.msk [vmem:[%s565 + $0x1e0] sm:$0xff] %vm7349, %v7345
        %7411 = vst.msk [vmem:[%s565 + $0x1e8] sm:$0xff] %vm7349, %v7346
        %7412 = vst.msk [vmem:[%s565 + $0x1f0] sm:$0xff] %vm7349, %v7347
        %7413 = vst.msk [vmem:[%s565 + $0x1f8] sm:$0xff] %vm7349, %v7348
        %p7414 = scmp.lt.s32.totalorder %s28, 7
        %s7415 = scalar_select %p7414, %s28, 7
        %s7416 = smul.addr %s7415, 64
        %s7417 = smul.addr %s7416, 8
        %s7418 = scalar_lea.vmem %s11, %s7417
        // Predicated region
        $region73: #{tpu_custom_call.1} parent=63 // pred_check
          %p7419 = pneg %p322
        $region74: #{tpu_custom_call.1} parent=63 // pred_check_branch
          %7421 = sbr.rel (%p7419) target = $region76
        $region75: #{tpu_custom_call.1} parent=63 // pred_region
          _
        $region76: #{tpu_custom_call.1} parent=63 // pred_fallthru
          _
      $region64: #{tpu_custom_call.1} parent=5 // pred_fallthru
        _
      %p7422 = scmp.le.s32.totalorder 2, %s23
      // Predicated region
      $region77: #{tpu_custom_call.1} parent=5 // pred_check
        %p7423 = pneg %p7422
      $region78: #{tpu_custom_call.1} parent=5 // pred_check_branch
        %7425 = sbr.rel (%p7423) target = $region80
      $region79: #{tpu_custom_call.1} parent=5 // pred_region
        %s7426 = ssub.s32 %s23, 2
        // Predicated region
        $region81: #{tpu_custom_call.1} parent=79 // pred_check
          %p7427 = pneg %p328
        $region82: #{tpu_custom_call.1} parent=79 // pred_check_branch
          %7429 = sbr.rel (%p7427) target = $region84
        $region83: #{tpu_custom_call.1} parent=79 // pred_region
          %p7430 = scmp.lt.s32.totalorder %s29, 7
          %s7431 = scalar_select %p7430, %s29, 7
          %s7432 = smul.addr %s7431, 64
          %s7433 = smul.addr %s7432, 8
          %s7434 = scalar_lea.vmem %s11, %s7433
        $region84: #{tpu_custom_call.1} parent=79 // pred_fallthru
          _
      $region80: #{tpu_custom_call.1} parent=5 // pred_fallthru
        _
    $region6: #{tpu_custom_call.1} parent=1 // loop_footer
      %s27 = sadd.s32 1, %s23
    $region7: #{tpu_custom_call.1} parent=1 // loop_footer_branch
      %22 = sbr.rel target = $region3
    $region8: #{tpu_custom_call.1} parent=1 // loop_exit
      _
    %7435 = vsyncpa [#allocation4], 1
    %s7436 = scalar_lea.sflag [#allocation4], 1
    %7437 = vsyncpa %s7436, 1
    %7438 = vsyncpa [#allocation6], 1
    %s7439 = scalar_lea.sflag [#allocation6], 1
    %7440 = vsyncpa %s7439, 1

</llo_original>
